<compile_context>
chip_gen: v5e
topology: v5e:2x2
jax: 0.10.0
libtpu: 0.0.40
codegen_flags: <defaults>
</compile_context>

<pallas_src>
import functools

import jax
import jax.numpy as jnp
from jax.experimental import pallas as pl
from jax.experimental.pallas import tpu as pltpu

HP = 128          # padded width of one gate / one direction's hidden state
G = 3 * HP        # padded width of the (r, z, n) gate block
BN_EPS = 1e-5

VMEM_SPEC = pl.BlockSpec(memory_space=pltpu.MemorySpace.VMEM)


# ---------------------------------------------------------------------------
# Fused kernel: conv(+bn1) -> BiGRU1(+norm1) -> BiGRU2 -> (+bn2) dense head
# ---------------------------------------------------------------------------
def fused_kernel(xw_ref, w1_ref, whh_ref, w2_ref, wd_ref, bi_ref, bhh_ref, bd_ref,
                 out_ref, gif_s, gib_s, hs1f_s, hs1b_s, *, T, Bp):
    f32 = jnp.float32
    bf16 = jnp.bfloat16

    # --- BiGRU1 input projection, hoisted out of the recurrence ---------------
    # (conv + eval-BatchNorm + dropout(identity) are already folded into w1/bi)
    xw = xw_ref[...]                                                 # (T*Bp, KCp) bf16
    gif_s[...] = jnp.dot(xw, w1_ref[0], preferred_element_type=f32) + bi_ref[0]
    gib_s[...] = jnp.dot(xw, w1_ref[1], preferred_element_type=f32) + bi_ref[1]

    def gru_layer(layer, store_outputs):
        """Both directions of one bidirectional GRU layer, statically unrolled."""
        h_f = jnp.zeros((Bp, HP), f32)
        h_b = jnp.zeros((Bp, HP), f32)
        for s in range(T):                            # static unroll (T is small)
            rows_t = pl.ds(s * Bp, Bp)                # forward direction: time s
            rows_r = pl.ds((T - 1 - s) * Bp, Bp)      # backward direction: time T-1-s

            gh_f = jnp.dot(h_f.astype(bf16), whh_ref[2 * layer],
                           preferred_element_type=f32) + bhh_ref[2 * layer]
            gh_b = jnp.dot(h_b.astype(bf16), whh_ref[2 * layer + 1],
                           preferred_element_type=f32) + bhh_ref[2 * layer + 1]
            gi_f = gif_s[rows_t, :]
            gi_b = gib_s[rows_r, :]

            def gates(gi, gh, h):                     # 128-aligned lane slices only
                r = jax.nn.sigmoid(gi[:, 0:HP] + gh[:, 0:HP])
                z = jax.nn.sigmoid(gi[:, HP:2 * HP] + gh[:, HP:2 * HP])
                n = jnp.tanh(gi[:, 2 * HP:3 * HP] + r * gh[:, 2 * HP:3 * HP])
                return (1.0 - z) * n + z * h

            h_f = gates(gi_f, gh_f, h_f)
            h_b = gates(gi_b, gh_b, h_b)
            if store_outputs:                         # BiGRU1 outputs feed BiGRU2
                hs1f_s[rows_t, :] = h_f
                hs1b_s[rows_r, :] = h_b
        return h_f, h_b

    # --- BiGRU1 ----------------------------------------------------------------
    gru_layer(0, True)

    # --- BiGRU2 input projection, hoisted (BiGRU1 output norm folded into w2) ---
    hs1f = hs1f_s[...].astype(bf16)
    hs1b = hs1b_s[...].astype(bf16)
    gif_s[...] = (jnp.dot(hs1f, w2_ref[0], preferred_element_type=f32)
                  + jnp.dot(hs1b, w2_ref[1], preferred_element_type=f32) + bi_ref[2])
    gib_s[...] = (jnp.dot(hs1f, w2_ref[2], preferred_element_type=f32)
                  + jnp.dot(hs1b, w2_ref[3], preferred_element_type=f32) + bi_ref[3])

    # --- BiGRU2: only the final hidden states are used downstream ---------------
    h2f, h2b = gru_layer(1, False)

    # --- classifier head: eval-BatchNorm + Linear folded into one matmul --------
    out_ref[...] = (jnp.dot(h2f.astype(bf16), wd_ref[0], preferred_element_type=f32)
                    + jnp.dot(h2b.astype(bf16), wd_ref[1], preferred_element_type=f32)
                    + bd_ref[...])


# ---------------------------------------------------------------------------
# Parameter initialisation (PyTorch-style) and inference-time preparation
# ---------------------------------------------------------------------------
def init_params(key, *, in_channels, rnn_dim, KS, n_targ):
    """Parameters of all Norm_CnnRnnClassifier sub-modules (eval mode: BatchNorm
    running statistics are part of the parameters)."""
    H = rnn_dim
    keys = jax.random.split(key, 48)
    it = iter(keys)

    def u(shape, bound):
        return jax.random.uniform(next(it), shape, jnp.float32, -bound, bound)

    def bn(n):
        return dict(gamma=1.0 + u((n,), 0.2), beta=u((n,), 0.1),
                    mean=u((n,), 0.1), var=1.0 + u((n,), 0.2))

    def gru(d_in):
        b = 1.0 / (H ** 0.5)
        return dict(wih=u((3 * H, d_in), b), whh=u((3 * H, H), b),
                    bih=u((3 * H,), b), bhh=u((3 * H,), b))

    cb = 1.0 / ((in_channels * KS) ** 0.5)
    db = 1.0 / ((2 * H) ** 0.5)
    return dict(
        conv_w=u((H, in_channels, KS), cb), conv_b=u((H,), cb),
        bn1=bn(H),
        gru1=[gru(H), gru(H)],            # fwd, bwd
        norm1=bn(2 * H),
        gru2=[gru(2 * H), gru(2 * H)],    # fwd, bwd
        bn2=bn(2 * H),
        dense_w=u((n_targ, 2 * H), db), dense_b=u((n_targ,), db),
    )


def _bn_affine(bn):
    s = bn["gamma"] * jax.lax.rsqrt(bn["var"] + BN_EPS)
    return s, bn["beta"] - bn["mean"] * s


def _pad_gate_cols(w, H):
    """(Din, 3H) -> (Din, 3*HP): gate g columns land at [g*HP, g*HP + H)."""
    out = jnp.zeros((w.shape[0], G), jnp.float32)
    for g in range(3):
        out = out.at[:, g * HP:g * HP + H].set(w[:, g * H:(g + 1) * H])
    return out


def _pad_rows(w, rows):
    return jnp.pad(w, ((0, rows - w.shape[0]), (0, 0)))


def _pad_gate_bias(b, H):
    out = jnp.zeros((1, G), jnp.float32)
    for g in range(3):
        out = out.at[0, g * HP:g * HP + H].set(b[g * H:(g + 1) * H])
    return out


def prepare_params(p, *, KS, in_channels, rnn_dim, n_targ):
    """Fold the eval-mode norms into neighbouring matmuls, pre-transpose, pad every
    lane dim to a multiple of 128, and cast all MXU operands to bf16."""
    H = rnn_dim
    KC = KS * in_channels
    KCp = ((KC + 127) // 128) * 128

    # conv + bn1 -> single affine on the (KS*C)-wide conv windows
    s1, c1 = _bn_affine(p["bn1"])
    w_conv = jnp.transpose(p["conv_w"], (2, 1, 0)).reshape(KC, H) * s1[None, :]
    b_conv = p["conv_b"] * s1 + c1                                   # (H,)

    # BiGRU1 input projection with the conv/bn affine folded in
    w1, b1 = [], []
    for d in range(2):
        wih_t = p["gru1"][d]["wih"].T                                # (H, 3H)
        w1.append(_pad_rows(_pad_gate_cols(w_conv @ wih_t, H), KCp))
        b1.append(_pad_gate_bias(b_conv @ wih_t + p["gru1"][d]["bih"], H))

    # BiGRU2 input projection with BiGRU1's output norm folded in
    sn, cn = _bn_affine(p["norm1"])
    w2, b2 = [], []
    for d in range(2):
        wih_t = p["gru2"][d]["wih"].T                                # (2H, 3H)
        w_scaled = sn[:, None] * wih_t
        w2.append(_pad_rows(_pad_gate_cols(w_scaled[:H], H), HP))    # fwd half of input
        w2.append(_pad_rows(_pad_gate_cols(w_scaled[H:], H), HP))    # bwd half of input
        b2.append(_pad_gate_bias(cn @ wih_t + p["gru2"][d]["bih"], H))

    # recurrent weights/biases: order [gru1_fwd, gru1_bwd, gru2_fwd, gru2_bwd]
    whh, bhh = [], []
    for layer in (p["gru1"], p["gru2"]):
        for d in range(2):
            whh.append(_pad_rows(_pad_gate_cols(layer[d]["whh"].T, H), HP))
            bhh.append(_pad_gate_bias(layer[d]["bhh"], H))

    # classifier head: bn2 + dense folded into one (2H -> n_targ) matmul
    s2, c2 = _bn_affine(p["bn2"])
    wd_t = s2[:, None] * p["dense_w"].T                              # (2H, n_targ)
    bd = c2 @ p["dense_w"].T + p["dense_b"]                          # (n_targ,)

    def pad_head(w):
        return jnp.zeros((HP, 128), jnp.float32).at[:H, :n_targ].set(w)

    bf16 = jnp.bfloat16
    return dict(
        w1=jnp.stack(w1).astype(bf16),          # (2, KCp, 3*HP)
        whh=jnp.stack(whh).astype(bf16),        # (4, HP,  3*HP)
        w2=jnp.stack(w2).astype(bf16),          # (4, HP,  3*HP)
        wd=jnp.stack([pad_head(wd_t[:H]), pad_head(wd_t[H:])]).astype(bf16),
        bi=jnp.stack(b1 + b2),                  # (4, 1, 3*HP) f32
        bhh=jnp.stack(bhh),                     # (4, 1, 3*HP) f32
        bd=jnp.zeros((1, 128), jnp.float32).at[0, :n_targ].set(bd),
    )


# ---------------------------------------------------------------------------
# Forward wrapper
# ---------------------------------------------------------------------------
def forward(x, prep, *, KS, rnn_dim, n_targ):
    """x: (B, T, C) -> logits (B, n_targ)."""
    B, T, C = x.shape
    KC = KS * C
    KCp = ((KC + 127) // 128) * 128
    Tp = (T - KS) // KS + 1            # Conv1d(kernel=KS, stride=KS) output length
    Bp = ((B + 7) // 8) * 8            # pad batch to full sublane tiles

    # im2col for the stride==kernel conv; time-major rows (t*Bp + b), zero-padded
    xw = x[:, :Tp * KS, :].reshape(B, Tp, KC)
    xw = jnp.transpose(xw, (1, 0, 2))
    xw = jnp.pad(xw, ((0, 0), (0, Bp - B), (0, KCp - KC)))
    xw = xw.reshape(Tp * Bp, KCp).astype(jnp.bfloat16)

    out_pad = pl.pallas_call(
        functools.partial(fused_kernel, T=Tp, Bp=Bp),
        out_shape=jax.ShapeDtypeStruct((Bp, 128), jnp.float32),
        in_specs=[VMEM_SPEC] * 8,
        out_specs=VMEM_SPEC,
        scratch_shapes=[
            pltpu.VMEM((Tp * Bp, G), jnp.float32),    # hoisted gi, forward direction
            pltpu.VMEM((Tp * Bp, G), jnp.float32),    # hoisted gi, backward direction
            pltpu.VMEM((Tp * Bp, HP), jnp.float32),   # BiGRU1 fwd outputs (time-aligned)
            pltpu.VMEM((Tp * Bp, HP), jnp.float32),   # BiGRU1 bwd outputs (time-aligned)
        ],
    )(xw, prep["w1"], prep["whh"], prep["w2"], prep["wd"],
      prep["bi"], prep["bhh"], prep["bd"])
    return out_pad[:B, :n_targ]


# ---------------------------------------------------------------------------
# Pure-JAX f32 reference of the PyTorch forward (eval mode), for verification
# ---------------------------------------------------------------------------
def reference_forward(x, p, *, KS, rnn_dim):
    B, T, C = x.shape
    H = rnn_dim
    Tp = (T - KS) // KS + 1

    xw = x[:, :Tp * KS, :].reshape(B, Tp, KS * C)
    w_flat = jnp.transpose(p["conv_w"], (2, 1, 0)).reshape(KS * C, H)
    conv = xw @ w_flat + p["conv_b"]
    s1, c1 = _bn_affine(p["bn1"])
    seq = jnp.transpose(conv * s1 + c1, (1, 0, 2))             # (Tp, B, H)

    def gru_dir(xs, w):
        wih_t, whh_t = w["wih"].T, w["whh"].T

        def step(h, x_t):
            gi = x_t @ wih_t + w["bih"]
            gh = h @ whh_t + w["bhh"]
            r = jax.nn.sigmoid(gi[:, :H] + gh[:, :H])
            z = jax.nn.sigmoid(gi[:, H:2 * H] + gh[:, H:2 * H])
            n = jnp.tanh(gi[:, 2 * H:] + r * gh[:, 2 * H:])
            h = (1.0 - z) * n + z * h
            return h, h

        return jax.lax.scan(step, jnp.zeros((xs.shape[1], H), jnp.float32), xs)

    def bigru(xs, w_fwd, w_bwd):
        h_f, y_f = gru_dir(xs, w_fwd)
        h_b, y_b = gru_dir(xs[::-1], w_bwd)
        return jnp.concatenate([y_f, y_b[::-1]], axis=-1), (h_f, h_b)

    out1, _ = bigru(seq, p["gru1"][0], p["gru1"][1])
    sn, cn = _bn_affine(p["norm1"])
    out1 = out1 * sn + cn                                      # BiGRU1 output norm (eval)
    _, (h2f, h2b) = bigru(out1, p["gru2"][0], p["gru2"][1])

    hn = jnp.concatenate([h2f, h2b], axis=-1)                  # (B, 2H) == reshaped h_n
    s2, c2 = _bn_affine(p["bn2"])
    return (hn * s2 + c2) @ p["dense_w"].T + p["dense_b"]


# ---------------------------------------------------------------------------
if __name__ == "__main__":
    B, T, C = 2, 16, 8
    rnn_dim, KS, n_targ = 32, 2, 5

    root = jax.random.PRNGKey(0)
    k_params, k_x = jax.random.split(root)
    params = init_params(k_params, in_channels=C, rnn_dim=rnn_dim, KS=KS, n_targ=n_targ)
    prep = prepare_params(params, KS=KS, in_channels=C, rnn_dim=rnn_dim, n_targ=n_targ)
    x = jax.random.normal(k_x, (B, T, C), jnp.float32)

    out = forward(x, prep, KS=KS, rnn_dim=rnn_dim, n_targ=n_targ)
    out = jax.block_until_ready(out)
    assert out.shape == (B, n_targ), out.shape
    assert bool(jnp.all(jnp.isfinite(out)))

    # verify against the pure-JAX f32 reference (bf16 MXU operands => loose tol)
    ref = reference_forward(x, params, KS=KS, rnn_dim=rnn_dim)
    err = float(jnp.max(jnp.abs(out - ref)))
    assert err < 0.1, f"kernel/reference mismatch: max abs err {err}"

    print("KERNEL_OK")
</pallas_src>

<mosaic_0001>
module attributes {stable_mosaic.version = 11 : i64} {
  func.func @fused_kernel(%arg0: memref<64x128xbf16, #tpu.memory_space<vmem>>, %arg1: memref<2x128x384xbf16, #tpu.memory_space<vmem>>, %arg2: memref<4x128x384xbf16, #tpu.memory_space<vmem>>, %arg3: memref<4x128x384xbf16, #tpu.memory_space<vmem>>, %arg4: memref<2x128x128xbf16, #tpu.memory_space<vmem>>, %arg5: memref<4x1x384xf32, #tpu.memory_space<vmem>>, %arg6: memref<4x1x384xf32, #tpu.memory_space<vmem>>, %arg7: memref<1x128xf32, #tpu.memory_space<vmem>>, %arg8: memref<8x128xf32, #tpu.memory_space<vmem>>, %arg9: memref<64x384xf32, #tpu.memory_space<vmem>>, %arg10: memref<64x384xf32, #tpu.memory_space<vmem>>, %arg11: memref<64x128xf32, #tpu.memory_space<vmem>>, %arg12: memref<64x128xf32, #tpu.memory_space<vmem>>) attributes {dimension_semantics = [], scalar_prefetch = 0 : i64, scratch_operands = 4 : i64, tpu.core_type = #tpu.core_type<tc>} {
    %c0 = arith.constant 0 : index
    %c0_0 = arith.constant 0 : index
    %0 = vector.load %arg0[%c0, %c0_0] : memref<64x128xbf16, #tpu.memory_space<vmem>>, vector<64x128xbf16>
    %c0_1 = arith.constant 0 : index
    %c0_2 = arith.constant 0 : index
    %c0_3 = arith.constant 0 : index
    %1 = vector.load %arg1[%c0_1, %c0_2, %c0_3] : memref<2x128x384xbf16, #tpu.memory_space<vmem>>, vector<1x128x384xbf16>
    %2 = vector.shape_cast %1 : vector<1x128x384xbf16> to vector<128x384xbf16>
    %cst = arith.constant dense<0.000000e+00> : vector<64x384xf32>
    %3 = tpu.matmul %0, %2, %cst {dimension_numbers = #tpu.dot_dimension_numbers<[1], [0], [0], [1], [0, 0, 1, 1], [], []>} : vector<64x128xbf16>, vector<128x384xbf16>, vector<64x384xf32> -> vector<64x384xf32>
    %c0_4 = arith.constant 0 : index
    %c0_5 = arith.constant 0 : index
    %c0_6 = arith.constant 0 : index
    %4 = vector.load %arg5[%c0_4, %c0_5, %c0_6] : memref<4x1x384xf32, #tpu.memory_space<vmem>>, vector<1x1x384xf32>
    %5 = vector.shape_cast %4 : vector<1x1x384xf32> to vector<1x384xf32>
    %6 = vector.broadcast %5 : vector<1x384xf32> to vector<64x384xf32>
    %7 = arith.addf %3, %6 : vector<64x384xf32>
    %c0_7 = arith.constant 0 : index
    %c0_8 = arith.constant 0 : index
    %8 = vector.load %arg9[%c0_7, %c0_8] : memref<64x384xf32, #tpu.memory_space<vmem>>, vector<64x384xf32>
    tpu.vector_store %arg9[%c0_7, %c0_8], %7 {strides = array<i32>} : memref<64x384xf32, #tpu.memory_space<vmem>>, vector<64x384xf32>,
    %c1 = arith.constant 1 : index
    %c0_9 = arith.constant 0 : index
    %c0_10 = arith.constant 0 : index
    %9 = vector.load %arg1[%c1, %c0_9, %c0_10] : memref<2x128x384xbf16, #tpu.memory_space<vmem>>, vector<1x128x384xbf16>
    %10 = vector.shape_cast %9 : vector<1x128x384xbf16> to vector<128x384xbf16>
    %cst_11 = arith.constant dense<0.000000e+00> : vector<64x384xf32>
    %11 = tpu.matmul %0, %10, %cst_11 {dimension_numbers = #tpu.dot_dimension_numbers<[1], [0], [0], [1], [0, 0, 1, 1], [], []>} : vector<64x128xbf16>, vector<128x384xbf16>, vector<64x384xf32> -> vector<64x384xf32>
    %c1_12 = arith.constant 1 : index
    %c0_13 = arith.constant 0 : index
    %c0_14 = arith.constant 0 : index
    %12 = vector.load %arg5[%c1_12, %c0_13, %c0_14] : memref<4x1x384xf32, #tpu.memory_space<vmem>>, vector<1x1x384xf32>
    %13 = vector.shape_cast %12 : vector<1x1x384xf32> to vector<1x384xf32>
    %14 = vector.broadcast %13 : vector<1x384xf32> to vector<64x384xf32>
    %15 = arith.addf %11, %14 : vector<64x384xf32>
    %c0_15 = arith.constant 0 : index
    %c0_16 = arith.constant 0 : index
    %16 = vector.load %arg10[%c0_15, %c0_16] : memref<64x384xf32, #tpu.memory_space<vmem>>, vector<64x384xf32>
    tpu.vector_store %arg10[%c0_15, %c0_16], %15 {strides = array<i32>} : memref<64x384xf32, #tpu.memory_space<vmem>>, vector<64x384xf32>,
    %cst_17 = arith.constant 0.000000e+00 : f32
    %17 = vector.broadcast %cst_17 : f32 to vector<8x128xf32>
    %cst_18 = arith.constant 0.000000e+00 : f32
    %18 = vector.broadcast %cst_18 : f32 to vector<8x128xf32>
    %19 = arith.truncf %17 : vector<8x128xf32> to vector<8x128xbf16>
    %c0_19 = arith.constant 0 : index
    %c0_20 = arith.constant 0 : index
    %c0_21 = arith.constant 0 : index
    %20 = vector.load %arg2[%c0_19, %c0_20, %c0_21] : memref<4x128x384xbf16, #tpu.memory_space<vmem>>, vector<1x128x384xbf16>
    %21 = vector.shape_cast %20 : vector<1x128x384xbf16> to vector<128x384xbf16>
    %cst_22 = arith.constant dense<0.000000e+00> : vector<8x384xf32>
    %22 = tpu.matmul %19, %21, %cst_22 {dimension_numbers = #tpu.dot_dimension_numbers<[1], [0], [0], [1], [0, 0, 1, 1], [], []>} : vector<8x128xbf16>, vector<128x384xbf16>, vector<8x384xf32> -> vector<8x384xf32>
    %c0_23 = arith.constant 0 : index
    %c0_24 = arith.constant 0 : index
    %c0_25 = arith.constant 0 : index
    %23 = vector.load %arg6[%c0_23, %c0_24, %c0_25] : memref<4x1x384xf32, #tpu.memory_space<vmem>>, vector<1x1x384xf32>
    %24 = vector.shape_cast %23 : vector<1x1x384xf32> to vector<1x384xf32>
    %25 = vector.broadcast %24 : vector<1x384xf32> to vector<8x384xf32>
    %26 = arith.addf %22, %25 : vector<8x384xf32>
    %27 = arith.truncf %18 : vector<8x128xf32> to vector<8x128xbf16>
    %c1_26 = arith.constant 1 : index
    %c0_27 = arith.constant 0 : index
    %c0_28 = arith.constant 0 : index
    %28 = vector.load %arg2[%c1_26, %c0_27, %c0_28] : memref<4x128x384xbf16, #tpu.memory_space<vmem>>, vector<1x128x384xbf16>
    %29 = vector.shape_cast %28 : vector<1x128x384xbf16> to vector<128x384xbf16>
    %cst_29 = arith.constant dense<0.000000e+00> : vector<8x384xf32>
    %30 = tpu.matmul %27, %29, %cst_29 {dimension_numbers = #tpu.dot_dimension_numbers<[1], [0], [0], [1], [0, 0, 1, 1], [], []>} : vector<8x128xbf16>, vector<128x384xbf16>, vector<8x384xf32> -> vector<8x384xf32>
    %c1_30 = arith.constant 1 : index
    %c0_31 = arith.constant 0 : index
    %c0_32 = arith.constant 0 : index
    %31 = vector.load %arg6[%c1_30, %c0_31, %c0_32] : memref<4x1x384xf32, #tpu.memory_space<vmem>>, vector<1x1x384xf32>
    %32 = vector.shape_cast %31 : vector<1x1x384xf32> to vector<1x384xf32>
    %33 = vector.broadcast %32 : vector<1x384xf32> to vector<8x384xf32>
    %34 = arith.addf %30, %33 : vector<8x384xf32>
    %c0_33 = arith.constant 0 : index
    %c0_34 = arith.constant 0 : index
    %35 = vector.load %arg9[%c0_33, %c0_34] : memref<64x384xf32, #tpu.memory_space<vmem>>, vector<8x384xf32>
    %c56 = arith.constant 56 : index
    %c0_35 = arith.constant 0 : index
    %36 = vector.load %arg10[%c56, %c0_35] : memref<64x384xf32, #tpu.memory_space<vmem>>, vector<8x384xf32>
    %37 = vector.extract_strided_slice %35 {offsets = [0, 0], sizes = [8, 128], strides = [1, 1]} : vector<8x384xf32> to vector<8x128xf32>
    %38 = vector.extract_strided_slice %26 {offsets = [0, 0], sizes = [8, 128], strides = [1, 1]} : vector<8x384xf32> to vector<8x128xf32>
    %39 = arith.addf %37, %38 : vector<8x128xf32>
    %40 = arith.negf %39 : vector<8x128xf32>
    %41 = math.exp %40 : vector<8x128xf32>
    %cst_36 = arith.constant 1.000000e+00 : f32
    %42 = vector.broadcast %cst_36 : f32 to vector<8x128xf32>
    %43 = arith.addf %42, %41 : vector<8x128xf32>
    %44 = arith.divf %42, %43 : vector<8x128xf32>
    %45 = vector.extract_strided_slice %35 {offsets = [0, 128], sizes = [8, 128], strides = [1, 1]} : vector<8x384xf32> to vector<8x128xf32>
    %46 = vector.extract_strided_slice %26 {offsets = [0, 128], sizes = [8, 128], strides = [1, 1]} : vector<8x384xf32> to vector<8x128xf32>
    %47 = arith.addf %45, %46 : vector<8x128xf32>
    %48 = arith.negf %47 : vector<8x128xf32>
    %49 = math.exp %48 : vector<8x128xf32>
    %cst_37 = arith.constant 1.000000e+00 : f32
    %50 = vector.broadcast %cst_37 : f32 to vector<8x128xf32>
    %51 = arith.addf %50, %49 : vector<8x128xf32>
    %52 = arith.divf %50, %51 : vector<8x128xf32>
    %53 = vector.extract_strided_slice %35 {offsets = [0, 256], sizes = [8, 128], strides = [1, 1]} : vector<8x384xf32> to vector<8x128xf32>
    %54 = vector.extract_strided_slice %26 {offsets = [0, 256], sizes = [8, 128], strides = [1, 1]} : vector<8x384xf32> to vector<8x128xf32>
    %55 = arith.mulf %44, %54 : vector<8x128xf32>
    %56 = arith.addf %53, %55 : vector<8x128xf32>
    %57 = math.tanh %56 : vector<8x128xf32>
    %cst_38 = arith.constant 1.000000e+00 : f32
    %58 = vector.broadcast %cst_38 : f32 to vector<8x128xf32>
    %59 = arith.subf %58, %52 : vector<8x128xf32>
    %60 = arith.mulf %59, %57 : vector<8x128xf32>
    %61 = arith.mulf %52, %17 : vector<8x128xf32>
    %62 = arith.addf %60, %61 : vector<8x128xf32>
    %63 = vector.extract_strided_slice %36 {offsets = [0, 0], sizes = [8, 128], strides = [1, 1]} : vector<8x384xf32> to vector<8x128xf32>
    %64 = vector.extract_strided_slice %34 {offsets = [0, 0], sizes = [8, 128], strides = [1, 1]} : vector<8x384xf32> to vector<8x128xf32>
    %65 = arith.addf %63, %64 : vector<8x128xf32>
    %66 = arith.negf %65 : vector<8x128xf32>
    %67 = math.exp %66 : vector<8x128xf32>
    %cst_39 = arith.constant 1.000000e+00 : f32
    %68 = vector.broadcast %cst_39 : f32 to vector<8x128xf32>
    %69 = arith.addf %68, %67 : vector<8x128xf32>
    %70 = arith.divf %68, %69 : vector<8x128xf32>
    %71 = vector.extract_strided_slice %36 {offsets = [0, 128], sizes = [8, 128], strides = [1, 1]} : vector<8x384xf32> to vector<8x128xf32>
    %72 = vector.extract_strided_slice %34 {offsets = [0, 128], sizes = [8, 128], strides = [1, 1]} : vector<8x384xf32> to vector<8x128xf32>
    %73 = arith.addf %71, %72 : vector<8x128xf32>
    %74 = arith.negf %73 : vector<8x128xf32>
    %75 = math.exp %74 : vector<8x128xf32>
    %cst_40 = arith.constant 1.000000e+00 : f32
    %76 = vector.broadcast %cst_40 : f32 to vector<8x128xf32>
    %77 = arith.addf %76, %75 : vector<8x128xf32>
    %78 = arith.divf %76, %77 : vector<8x128xf32>
    %79 = vector.extract_strided_slice %36 {offsets = [0, 256], sizes = [8, 128], strides = [1, 1]} : vector<8x384xf32> to vector<8x128xf32>
    %80 = vector.extract_strided_slice %34 {offsets = [0, 256], sizes = [8, 128], strides = [1, 1]} : vector<8x384xf32> to vector<8x128xf32>
    %81 = arith.mulf %70, %80 : vector<8x128xf32>
    %82 = arith.addf %79, %81 : vector<8x128xf32>
    %83 = math.tanh %82 : vector<8x128xf32>
    %cst_41 = arith.constant 1.000000e+00 : f32
    %84 = vector.broadcast %cst_41 : f32 to vector<8x128xf32>
    %85 = arith.subf %84, %78 : vector<8x128xf32>
    %86 = arith.mulf %85, %83 : vector<8x128xf32>
    %87 = arith.mulf %78, %18 : vector<8x128xf32>
    %88 = arith.addf %86, %87 : vector<8x128xf32>
    %c0_42 = arith.constant 0 : index
    %c0_43 = arith.constant 0 : index
    %89 = vector.load %arg11[%c0_42, %c0_43] : memref<64x128xf32, #tpu.memory_space<vmem>>, vector<8x128xf32>
    tpu.vector_store %arg11[%c0_42, %c0_43], %62 {strides = array<i32>} : memref<64x128xf32, #tpu.memory_space<vmem>>, vector<8x128xf32>,
    %c56_44 = arith.constant 56 : index
    %c0_45 = arith.constant 0 : index
    %90 = vector.load %arg12[%c56_44, %c0_45] : memref<64x128xf32, #tpu.memory_space<vmem>>, vector<8x128xf32>
    tpu.vector_store %arg12[%c56_44, %c0_45], %88 {strides = array<i32>} : memref<64x128xf32, #tpu.memory_space<vmem>>, vector<8x128xf32>,
    %91 = arith.truncf %62 : vector<8x128xf32> to vector<8x128xbf16>
    %c0_46 = arith.constant 0 : index
    %c0_47 = arith.constant 0 : index
    %c0_48 = arith.constant 0 : index
    %92 = vector.load %arg2[%c0_46, %c0_47, %c0_48] : memref<4x128x384xbf16, #tpu.memory_space<vmem>>, vector<1x128x384xbf16>
    %93 = vector.shape_cast %92 : vector<1x128x384xbf16> to vector<128x384xbf16>
    %cst_49 = arith.constant dense<0.000000e+00> : vector<8x384xf32>
    %94 = tpu.matmul %91, %93, %cst_49 {dimension_numbers = #tpu.dot_dimension_numbers<[1], [0], [0], [1], [0, 0, 1, 1], [], []>} : vector<8x128xbf16>, vector<128x384xbf16>, vector<8x384xf32> -> vector<8x384xf32>
    %c0_50 = arith.constant 0 : index
    %c0_51 = arith.constant 0 : index
    %c0_52 = arith.constant 0 : index
    %95 = vector.load %arg6[%c0_50, %c0_51, %c0_52] : memref<4x1x384xf32, #tpu.memory_space<vmem>>, vector<1x1x384xf32>
    %96 = vector.shape_cast %95 : vector<1x1x384xf32> to vector<1x384xf32>
    %97 = vector.broadcast %96 : vector<1x384xf32> to vector<8x384xf32>
    %98 = arith.addf %94, %97 : vector<8x384xf32>
    %99 = arith.truncf %88 : vector<8x128xf32> to vector<8x128xbf16>
    %c1_53 = arith.constant 1 : index
    %c0_54 = arith.constant 0 : index
    %c0_55 = arith.constant 0 : index
    %100 = vector.load %arg2[%c1_53, %c0_54, %c0_55] : memref<4x128x384xbf16, #tpu.memory_space<vmem>>, vector<1x128x384xbf16>
    %101 = vector.shape_cast %100 : vector<1x128x384xbf16> to vector<128x384xbf16>
    %cst_56 = arith.constant dense<0.000000e+00> : vector<8x384xf32>
    %102 = tpu.matmul %99, %101, %cst_56 {dimension_numbers = #tpu.dot_dimension_numbers<[1], [0], [0], [1], [0, 0, 1, 1], [], []>} : vector<8x128xbf16>, vector<128x384xbf16>, vector<8x384xf32> -> vector<8x384xf32>
    %c1_57 = arith.constant 1 : index
    %c0_58 = arith.constant 0 : index
    %c0_59 = arith.constant 0 : index
    %103 = vector.load %arg6[%c1_57, %c0_58, %c0_59] : memref<4x1x384xf32, #tpu.memory_space<vmem>>, vector<1x1x384xf32>
    %104 = vector.shape_cast %103 : vector<1x1x384xf32> to vector<1x384xf32>
    %105 = vector.broadcast %104 : vector<1x384xf32> to vector<8x384xf32>
    %106 = arith.addf %102, %105 : vector<8x384xf32>
    %c8 = arith.constant 8 : index
    %c0_60 = arith.constant 0 : index
    %107 = vector.load %arg9[%c8, %c0_60] : memref<64x384xf32, #tpu.memory_space<vmem>>, vector<8x384xf32>
    %c48 = arith.constant 48 : index
    %c0_61 = arith.constant 0 : index
    %108 = vector.load %arg10[%c48, %c0_61] : memref<64x384xf32, #tpu.memory_space<vmem>>, vector<8x384xf32>
    %109 = vector.extract_strided_slice %107 {offsets = [0, 0], sizes = [8, 128], strides = [1, 1]} : vector<8x384xf32> to vector<8x128xf32>
    %110 = vector.extract_strided_slice %98 {offsets = [0, 0], sizes = [8, 128], strides = [1, 1]} : vector<8x384xf32> to vector<8x128xf32>
    %111 = arith.addf %109, %110 : vector<8x128xf32>
    %112 = arith.negf %111 : vector<8x128xf32>
    %113 = math.exp %112 : vector<8x128xf32>
    %cst_62 = arith.constant 1.000000e+00 : f32
    %114 = vector.broadcast %cst_62 : f32 to vector<8x128xf32>
    %115 = arith.addf %114, %113 : vector<8x128xf32>
    %116 = arith.divf %114, %115 : vector<8x128xf32>
    %117 = vector.extract_strided_slice %107 {offsets = [0, 128], sizes = [8, 128], strides = [1, 1]} : vector<8x384xf32> to vector<8x128xf32>
    %118 = vector.extract_strided_slice %98 {offsets = [0, 128], sizes = [8, 128], strides = [1, 1]} : vector<8x384xf32> to vector<8x128xf32>
    %119 = arith.addf %117, %118 : vector<8x128xf32>
    %120 = arith.negf %119 : vector<8x128xf32>
    %121 = math.exp %120 : vector<8x128xf32>
    %cst_63 = arith.constant 1.000000e+00 : f32
    %122 = vector.broadcast %cst_63 : f32 to vector<8x128xf32>
    %123 = arith.addf %122, %121 : vector<8x128xf32>
    %124 = arith.divf %122, %123 : vector<8x128xf32>
    %125 = vector.extract_strided_slice %107 {offsets = [0, 256], sizes = [8, 128], strides = [1, 1]} : vector<8x384xf32> to vector<8x128xf32>
    %126 = vector.extract_strided_slice %98 {offsets = [0, 256], sizes = [8, 128], strides = [1, 1]} : vector<8x384xf32> to vector<8x128xf32>
    %127 = arith.mulf %116, %126 : vector<8x128xf32>
    %128 = arith.addf %125, %127 : vector<8x128xf32>
    %129 = math.tanh %128 : vector<8x128xf32>
    %cst_64 = arith.constant 1.000000e+00 : f32
    %130 = vector.broadcast %cst_64 : f32 to vector<8x128xf32>
    %131 = arith.subf %130, %124 : vector<8x128xf32>
    %132 = arith.mulf %131, %129 : vector<8x128xf32>
    %133 = arith.mulf %124, %62 : vector<8x128xf32>
    %134 = arith.addf %132, %133 : vector<8x128xf32>
    %135 = vector.extract_strided_slice %108 {offsets = [0, 0], sizes = [8, 128], strides = [1, 1]} : vector<8x384xf32> to vector<8x128xf32>
    %136 = vector.extract_strided_slice %106 {offsets = [0, 0], sizes = [8, 128], strides = [1, 1]} : vector<8x384xf32> to vector<8x128xf32>
    %137 = arith.addf %135, %136 : vector<8x128xf32>
    %138 = arith.negf %137 : vector<8x128xf32>
    %139 = math.exp %138 : vector<8x128xf32>
    %cst_65 = arith.constant 1.000000e+00 : f32
    %140 = vector.broadcast %cst_65 : f32 to vector<8x128xf32>
    %141 = arith.addf %140, %139 : vector<8x128xf32>
    %142 = arith.divf %140, %141 : vector<8x128xf32>
    %143 = vector.extract_strided_slice %108 {offsets = [0, 128], sizes = [8, 128], strides = [1, 1]} : vector<8x384xf32> to vector<8x128xf32>
    %144 = vector.extract_strided_slice %106 {offsets = [0, 128], sizes = [8, 128], strides = [1, 1]} : vector<8x384xf32> to vector<8x128xf32>
    %145 = arith.addf %143, %144 : vector<8x128xf32>
    %146 = arith.negf %145 : vector<8x128xf32>
    %147 = math.exp %146 : vector<8x128xf32>
    %cst_66 = arith.constant 1.000000e+00 : f32
    %148 = vector.broadcast %cst_66 : f32 to vector<8x128xf32>
    %149 = arith.addf %148, %147 : vector<8x128xf32>
    %150 = arith.divf %148, %149 : vector<8x128xf32>
    %151 = vector.extract_strided_slice %108 {offsets = [0, 256], sizes = [8, 128], strides = [1, 1]} : vector<8x384xf32> to vector<8x128xf32>
    %152 = vector.extract_strided_slice %106 {offsets = [0, 256], sizes = [8, 128], strides = [1, 1]} : vector<8x384xf32> to vector<8x128xf32>
    %153 = arith.mulf %142, %152 : vector<8x128xf32>
    %154 = arith.addf %151, %153 : vector<8x128xf32>
    %155 = math.tanh %154 : vector<8x128xf32>
    %cst_67 = arith.constant 1.000000e+00 : f32
    %156 = vector.broadcast %cst_67 : f32 to vector<8x128xf32>
    %157 = arith.subf %156, %150 : vector<8x128xf32>
    %158 = arith.mulf %157, %155 : vector<8x128xf32>
    %159 = arith.mulf %150, %88 : vector<8x128xf32>
    %160 = arith.addf %158, %159 : vector<8x128xf32>
    %c8_68 = arith.constant 8 : index
    %c0_69 = arith.constant 0 : index
    %161 = vector.load %arg11[%c8_68, %c0_69] : memref<64x128xf32, #tpu.memory_space<vmem>>, vector<8x128xf32>
    tpu.vector_store %arg11[%c8_68, %c0_69], %134 {strides = array<i32>} : memref<64x128xf32, #tpu.memory_space<vmem>>, vector<8x128xf32>,
    %c48_70 = arith.constant 48 : index
    %c0_71 = arith.constant 0 : index
    %162 = vector.load %arg12[%c48_70, %c0_71] : memref<64x128xf32, #tpu.memory_space<vmem>>, vector<8x128xf32>
    tpu.vector_store %arg12[%c48_70, %c0_71], %160 {strides = array<i32>} : memref<64x128xf32, #tpu.memory_space<vmem>>, vector<8x128xf32>,
    %163 = arith.truncf %134 : vector<8x128xf32> to vector<8x128xbf16>
    %c0_72 = arith.constant 0 : index
    %c0_73 = arith.constant 0 : index
    %c0_74 = arith.constant 0 : index
    %164 = vector.load %arg2[%c0_72, %c0_73, %c0_74] : memref<4x128x384xbf16, #tpu.memory_space<vmem>>, vector<1x128x384xbf16>
    %165 = vector.shape_cast %164 : vector<1x128x384xbf16> to vector<128x384xbf16>
    %cst_75 = arith.constant dense<0.000000e+00> : vector<8x384xf32>
    %166 = tpu.matmul %163, %165, %cst_75 {dimension_numbers = #tpu.dot_dimension_numbers<[1], [0], [0], [1], [0, 0, 1, 1], [], []>} : vector<8x128xbf16>, vector<128x384xbf16>, vector<8x384xf32> -> vector<8x384xf32>
    %c0_76 = arith.constant 0 : index
    %c0_77 = arith.constant 0 : index
    %c0_78 = arith.constant 0 : index
    %167 = vector.load %arg6[%c0_76, %c0_77, %c0_78] : memref<4x1x384xf32, #tpu.memory_space<vmem>>, vector<1x1x384xf32>
    %168 = vector.shape_cast %167 : vector<1x1x384xf32> to vector<1x384xf32>
    %169 = vector.broadcast %168 : vector<1x384xf32> to vector<8x384xf32>
    %170 = arith.addf %166, %169 : vector<8x384xf32>
    %171 = arith.truncf %160 : vector<8x128xf32> to vector<8x128xbf16>
    %c1_79 = arith.constant 1 : index
    %c0_80 = arith.constant 0 : index
    %c0_81 = arith.constant 0 : index
    %172 = vector.load %arg2[%c1_79, %c0_80, %c0_81] : memref<4x128x384xbf16, #tpu.memory_space<vmem>>, vector<1x128x384xbf16>
    %173 = vector.shape_cast %172 : vector<1x128x384xbf16> to vector<128x384xbf16>
    %cst_82 = arith.constant dense<0.000000e+00> : vector<8x384xf32>
    %174 = tpu.matmul %171, %173, %cst_82 {dimension_numbers = #tpu.dot_dimension_numbers<[1], [0], [0], [1], [0, 0, 1, 1], [], []>} : vector<8x128xbf16>, vector<128x384xbf16>, vector<8x384xf32> -> vector<8x384xf32>
    %c1_83 = arith.constant 1 : index
    %c0_84 = arith.constant 0 : index
    %c0_85 = arith.constant 0 : index
    %175 = vector.load %arg6[%c1_83, %c0_84, %c0_85] : memref<4x1x384xf32, #tpu.memory_space<vmem>>, vector<1x1x384xf32>
    %176 = vector.shape_cast %175 : vector<1x1x384xf32> to vector<1x384xf32>
    %177 = vector.broadcast %176 : vector<1x384xf32> to vector<8x384xf32>
    %178 = arith.addf %174, %177 : vector<8x384xf32>
    %c16 = arith.constant 16 : index
    %c0_86 = arith.constant 0 : index
    %179 = vector.load %arg9[%c16, %c0_86] : memref<64x384xf32, #tpu.memory_space<vmem>>, vector<8x384xf32>
    %c40 = arith.constant 40 : index
    %c0_87 = arith.constant 0 : index
    %180 = vector.load %arg10[%c40, %c0_87] : memref<64x384xf32, #tpu.memory_space<vmem>>, vector<8x384xf32>
    %181 = vector.extract_strided_slice %179 {offsets = [0, 0], sizes = [8, 128], strides = [1, 1]} : vector<8x384xf32> to vector<8x128xf32>
    %182 = vector.extract_strided_slice %170 {offsets = [0, 0], sizes = [8, 128], strides = [1, 1]} : vector<8x384xf32> to vector<8x128xf32>
    %183 = arith.addf %181, %182 : vector<8x128xf32>
    %184 = arith.negf %183 : vector<8x128xf32>
    %185 = math.exp %184 : vector<8x128xf32>
    %cst_88 = arith.constant 1.000000e+00 : f32
    %186 = vector.broadcast %cst_88 : f32 to vector<8x128xf32>
    %187 = arith.addf %186, %185 : vector<8x128xf32>
    %188 = arith.divf %186, %187 : vector<8x128xf32>
    %189 = vector.extract_strided_slice %179 {offsets = [0, 128], sizes = [8, 128], strides = [1, 1]} : vector<8x384xf32> to vector<8x128xf32>
    %190 = vector.extract_strided_slice %170 {offsets = [0, 128], sizes = [8, 128], strides = [1, 1]} : vector<8x384xf32> to vector<8x128xf32>
    %191 = arith.addf %189, %190 : vector<8x128xf32>
    %192 = arith.negf %191 : vector<8x128xf32>
    %193 = math.exp %192 : vector<8x128xf32>
    %cst_89 = arith.constant 1.000000e+00 : f32
    %194 = vector.broadcast %cst_89 : f32 to vector<8x128xf32>
    %195 = arith.addf %194, %193 : vector<8x128xf32>
    %196 = arith.divf %194, %195 : vector<8x128xf32>
    %197 = vector.extract_strided_slice %179 {offsets = [0, 256], sizes = [8, 128], strides = [1, 1]} : vector<8x384xf32> to vector<8x128xf32>
    %198 = vector.extract_strided_slice %170 {offsets = [0, 256], sizes = [8, 128], strides = [1, 1]} : vector<8x384xf32> to vector<8x128xf32>
    %199 = arith.mulf %188, %198 : vector<8x128xf32>
    %200 = arith.addf %197, %199 : vector<8x128xf32>
    %201 = math.tanh %200 : vector<8x128xf32>
    %cst_90 = arith.constant 1.000000e+00 : f32
    %202 = vector.broadcast %cst_90 : f32 to vector<8x128xf32>
    %203 = arith.subf %202, %196 : vector<8x128xf32>
    %204 = arith.mulf %203, %201 : vector<8x128xf32>
    %205 = arith.mulf %196, %134 : vector<8x128xf32>
    %206 = arith.addf %204, %205 : vector<8x128xf32>
    %207 = vector.extract_strided_slice %180 {offsets = [0, 0], sizes = [8, 128], strides = [1, 1]} : vector<8x384xf32> to vector<8x128xf32>
    %208 = vector.extract_strided_slice %178 {offsets = [0, 0], sizes = [8, 128], strides = [1, 1]} : vector<8x384xf32> to vector<8x128xf32>
    %209 = arith.addf %207, %208 : vector<8x128xf32>
    %210 = arith.negf %209 : vector<8x128xf32>
    %211 = math.exp %210 : vector<8x128xf32>
    %cst_91 = arith.constant 1.000000e+00 : f32
    %212 = vector.broadcast %cst_91 : f32 to vector<8x128xf32>
    %213 = arith.addf %212, %211 : vector<8x128xf32>
    %214 = arith.divf %212, %213 : vector<8x128xf32>
    %215 = vector.extract_strided_slice %180 {offsets = [0, 128], sizes = [8, 128], strides = [1, 1]} : vector<8x384xf32> to vector<8x128xf32>
    %216 = vector.extract_strided_slice %178 {offsets = [0, 128], sizes = [8, 128], strides = [1, 1]} : vector<8x384xf32> to vector<8x128xf32>
    %217 = arith.addf %215, %216 : vector<8x128xf32>
    %218 = arith.negf %217 : vector<8x128xf32>
    %219 = math.exp %218 : vector<8x128xf32>
    %cst_92 = arith.constant 1.000000e+00 : f32
    %220 = vector.broadcast %cst_92 : f32 to vector<8x128xf32>
    %221 = arith.addf %220, %219 : vector<8x128xf32>
    %222 = arith.divf %220, %221 : vector<8x128xf32>
    %223 = vector.extract_strided_slice %180 {offsets = [0, 256], sizes = [8, 128], strides = [1, 1]} : vector<8x384xf32> to vector<8x128xf32>
    %224 = vector.extract_strided_slice %178 {offsets = [0, 256], sizes = [8, 128], strides = [1, 1]} : vector<8x384xf32> to vector<8x128xf32>
    %225 = arith.mulf %214, %224 : vector<8x128xf32>
    %226 = arith.addf %223, %225 : vector<8x128xf32>
    %227 = math.tanh %226 : vector<8x128xf32>
    %cst_93 = arith.constant 1.000000e+00 : f32
    %228 = vector.broadcast %cst_93 : f32 to vector<8x128xf32>
    %229 = arith.subf %228, %222 : vector<8x128xf32>
    %230 = arith.mulf %229, %227 : vector<8x128xf32>
    %231 = arith.mulf %222, %160 : vector<8x128xf32>
    %232 = arith.addf %230, %231 : vector<8x128xf32>
    %c16_94 = arith.constant 16 : index
    %c0_95 = arith.constant 0 : index
    %233 = vector.load %arg11[%c16_94, %c0_95] : memref<64x128xf32, #tpu.memory_space<vmem>>, vector<8x128xf32>
    tpu.vector_store %arg11[%c16_94, %c0_95], %206 {strides = array<i32>} : memref<64x128xf32, #tpu.memory_space<vmem>>, vector<8x128xf32>,
    %c40_96 = arith.constant 40 : index
    %c0_97 = arith.constant 0 : index
    %234 = vector.load %arg12[%c40_96, %c0_97] : memref<64x128xf32, #tpu.memory_space<vmem>>, vector<8x128xf32>
    tpu.vector_store %arg12[%c40_96, %c0_97], %232 {strides = array<i32>} : memref<64x128xf32, #tpu.memory_space<vmem>>, vector<8x128xf32>,
    %235 = arith.truncf %206 : vector<8x128xf32> to vector<8x128xbf16>
    %c0_98 = arith.constant 0 : index
    %c0_99 = arith.constant 0 : index
    %c0_100 = arith.constant 0 : index
    %236 = vector.load %arg2[%c0_98, %c0_99, %c0_100] : memref<4x128x384xbf16, #tpu.memory_space<vmem>>, vector<1x128x384xbf16>
    %237 = vector.shape_cast %236 : vector<1x128x384xbf16> to vector<128x384xbf16>
    %cst_101 = arith.constant dense<0.000000e+00> : vector<8x384xf32>
    %238 = tpu.matmul %235, %237, %cst_101 {dimension_numbers = #tpu.dot_dimension_numbers<[1], [0], [0], [1], [0, 0, 1, 1], [], []>} : vector<8x128xbf16>, vector<128x384xbf16>, vector<8x384xf32> -> vector<8x384xf32>
    %c0_102 = arith.constant 0 : index
    %c0_103 = arith.constant 0 : index
    %c0_104 = arith.constant 0 : index
    %239 = vector.load %arg6[%c0_102, %c0_103, %c0_104] : memref<4x1x384xf32, #tpu.memory_space<vmem>>, vector<1x1x384xf32>
    %240 = vector.shape_cast %239 : vector<1x1x384xf32> to vector<1x384xf32>
    %241 = vector.broadcast %240 : vector<1x384xf32> to vector<8x384xf32>
    %242 = arith.addf %238, %241 : vector<8x384xf32>
    %243 = arith.truncf %232 : vector<8x128xf32> to vector<8x128xbf16>
    %c1_105 = arith.constant 1 : index
    %c0_106 = arith.constant 0 : index
    %c0_107 = arith.constant 0 : index
    %244 = vector.load %arg2[%c1_105, %c0_106, %c0_107] : memref<4x128x384xbf16, #tpu.memory_space<vmem>>, vector<1x128x384xbf16>
    %245 = vector.shape_cast %244 : vector<1x128x384xbf16> to vector<128x384xbf16>
    %cst_108 = arith.constant dense<0.000000e+00> : vector<8x384xf32>
    %246 = tpu.matmul %243, %245, %cst_108 {dimension_numbers = #tpu.dot_dimension_numbers<[1], [0], [0], [1], [0, 0, 1, 1], [], []>} : vector<8x128xbf16>, vector<128x384xbf16>, vector<8x384xf32> -> vector<8x384xf32>
    %c1_109 = arith.constant 1 : index
    %c0_110 = arith.constant 0 : index
    %c0_111 = arith.constant 0 : index
    %247 = vector.load %arg6[%c1_109, %c0_110, %c0_111] : memref<4x1x384xf32, #tpu.memory_space<vmem>>, vector<1x1x384xf32>
    %248 = vector.shape_cast %247 : vector<1x1x384xf32> to vector<1x384xf32>
    %249 = vector.broadcast %248 : vector<1x384xf32> to vector<8x384xf32>
    %250 = arith.addf %246, %249 : vector<8x384xf32>
    %c24 = arith.constant 24 : index
    %c0_112 = arith.constant 0 : index
    %251 = vector.load %arg9[%c24, %c0_112] : memref<64x384xf32, #tpu.memory_space<vmem>>, vector<8x384xf32>
    %c32 = arith.constant 32 : index
    %c0_113 = arith.constant 0 : index
    %252 = vector.load %arg10[%c32, %c0_113] : memref<64x384xf32, #tpu.memory_space<vmem>>, vector<8x384xf32>
    %253 = vector.extract_strided_slice %251 {offsets = [0, 0], sizes = [8, 128], strides = [1, 1]} : vector<8x384xf32> to vector<8x128xf32>
    %254 = vector.extract_strided_slice %242 {offsets = [0, 0], sizes = [8, 128], strides = [1, 1]} : vector<8x384xf32> to vector<8x128xf32>
    %255 = arith.addf %253, %254 : vector<8x128xf32>
    %256 = arith.negf %255 : vector<8x128xf32>
    %257 = math.exp %256 : vector<8x128xf32>
    %cst_114 = arith.constant 1.000000e+00 : f32
    %258 = vector.broadcast %cst_114 : f32 to vector<8x128xf32>
    %259 = arith.addf %258, %257 : vector<8x128xf32>
    %260 = arith.divf %258, %259 : vector<8x128xf32>
    %261 = vector.extract_strided_slice %251 {offsets = [0, 128], sizes = [8, 128], strides = [1, 1]} : vector<8x384xf32> to vector<8x128xf32>
    %262 = vector.extract_strided_slice %242 {offsets = [0, 128], sizes = [8, 128], strides = [1, 1]} : vector<8x384xf32> to vector<8x128xf32>
    %263 = arith.addf %261, %262 : vector<8x128xf32>
    %264 = arith.negf %263 : vector<8x128xf32>
    %265 = math.exp %264 : vector<8x128xf32>
    %cst_115 = arith.constant 1.000000e+00 : f32
    %266 = vector.broadcast %cst_115 : f32 to vector<8x128xf32>
    %267 = arith.addf %266, %265 : vector<8x128xf32>
    %268 = arith.divf %266, %267 : vector<8x128xf32>
    %269 = vector.extract_strided_slice %251 {offsets = [0, 256], sizes = [8, 128], strides = [1, 1]} : vector<8x384xf32> to vector<8x128xf32>
    %270 = vector.extract_strided_slice %242 {offsets = [0, 256], sizes = [8, 128], strides = [1, 1]} : vector<8x384xf32> to vector<8x128xf32>
    %271 = arith.mulf %260, %270 : vector<8x128xf32>
    %272 = arith.addf %269, %271 : vector<8x128xf32>
    %273 = math.tanh %272 : vector<8x128xf32>
    %cst_116 = arith.constant 1.000000e+00 : f32
    %274 = vector.broadcast %cst_116 : f32 to vector<8x128xf32>
    %275 = arith.subf %274, %268 : vector<8x128xf32>
    %276 = arith.mulf %275, %273 : vector<8x128xf32>
    %277 = arith.mulf %268, %206 : vector<8x128xf32>
    %278 = arith.addf %276, %277 : vector<8x128xf32>
    %279 = vector.extract_strided_slice %252 {offsets = [0, 0], sizes = [8, 128], strides = [1, 1]} : vector<8x384xf32> to vector<8x128xf32>
    %280 = vector.extract_strided_slice %250 {offsets = [0, 0], sizes = [8, 128], strides = [1, 1]} : vector<8x384xf32> to vector<8x128xf32>
    %281 = arith.addf %279, %280 : vector<8x128xf32>
    %282 = arith.negf %281 : vector<8x128xf32>
    %283 = math.exp %282 : vector<8x128xf32>
    %cst_117 = arith.constant 1.000000e+00 : f32
    %284 = vector.broadcast %cst_117 : f32 to vector<8x128xf32>
    %285 = arith.addf %284, %283 : vector<8x128xf32>
    %286 = arith.divf %284, %285 : vector<8x128xf32>
    %287 = vector.extract_strided_slice %252 {offsets = [0, 128], sizes = [8, 128], strides = [1, 1]} : vector<8x384xf32> to vector<8x128xf32>
    %288 = vector.extract_strided_slice %250 {offsets = [0, 128], sizes = [8, 128], strides = [1, 1]} : vector<8x384xf32> to vector<8x128xf32>
    %289 = arith.addf %287, %288 : vector<8x128xf32>
    %290 = arith.negf %289 : vector<8x128xf32>
    %291 = math.exp %290 : vector<8x128xf32>
    %cst_118 = arith.constant 1.000000e+00 : f32
    %292 = vector.broadcast %cst_118 : f32 to vector<8x128xf32>
    %293 = arith.addf %292, %291 : vector<8x128xf32>
    %294 = arith.divf %292, %293 : vector<8x128xf32>
    %295 = vector.extract_strided_slice %252 {offsets = [0, 256], sizes = [8, 128], strides = [1, 1]} : vector<8x384xf32> to vector<8x128xf32>
    %296 = vector.extract_strided_slice %250 {offsets = [0, 256], sizes = [8, 128], strides = [1, 1]} : vector<8x384xf32> to vector<8x128xf32>
    %297 = arith.mulf %286, %296 : vector<8x128xf32>
    %298 = arith.addf %295, %297 : vector<8x128xf32>
    %299 = math.tanh %298 : vector<8x128xf32>
    %cst_119 = arith.constant 1.000000e+00 : f32
    %300 = vector.broadcast %cst_119 : f32 to vector<8x128xf32>
    %301 = arith.subf %300, %294 : vector<8x128xf32>
    %302 = arith.mulf %301, %299 : vector<8x128xf32>
    %303 = arith.mulf %294, %232 : vector<8x128xf32>
    %304 = arith.addf %302, %303 : vector<8x128xf32>
    %c24_120 = arith.constant 24 : index
    %c0_121 = arith.constant 0 : index
    %305 = vector.load %arg11[%c24_120, %c0_121] : memref<64x128xf32, #tpu.memory_space<vmem>>, vector<8x128xf32>
    tpu.vector_store %arg11[%c24_120, %c0_121], %278 {strides = array<i32>} : memref<64x128xf32, #tpu.memory_space<vmem>>, vector<8x128xf32>,
    %c32_122 = arith.constant 32 : index
    %c0_123 = arith.constant 0 : index
    %306 = vector.load %arg12[%c32_122, %c0_123] : memref<64x128xf32, #tpu.memory_space<vmem>>, vector<8x128xf32>
    tpu.vector_store %arg12[%c32_122, %c0_123], %304 {strides = array<i32>} : memref<64x128xf32, #tpu.memory_space<vmem>>, vector<8x128xf32>,
    %307 = arith.truncf %278 : vector<8x128xf32> to vector<8x128xbf16>
    %c0_124 = arith.constant 0 : index
    %c0_125 = arith.constant 0 : index
    %c0_126 = arith.constant 0 : index
    %308 = vector.load %arg2[%c0_124, %c0_125, %c0_126] : memref<4x128x384xbf16, #tpu.memory_space<vmem>>, vector<1x128x384xbf16>
    %309 = vector.shape_cast %308 : vector<1x128x384xbf16> to vector<128x384xbf16>
    %cst_127 = arith.constant dense<0.000000e+00> : vector<8x384xf32>
    %310 = tpu.matmul %307, %309, %cst_127 {dimension_numbers = #tpu.dot_dimension_numbers<[1], [0], [0], [1], [0, 0, 1, 1], [], []>} : vector<8x128xbf16>, vector<128x384xbf16>, vector<8x384xf32> -> vector<8x384xf32>
    %c0_128 = arith.constant 0 : index
    %c0_129 = arith.constant 0 : index
    %c0_130 = arith.constant 0 : index
    %311 = vector.load %arg6[%c0_128, %c0_129, %c0_130] : memref<4x1x384xf32, #tpu.memory_space<vmem>>, vector<1x1x384xf32>
    %312 = vector.shape_cast %311 : vector<1x1x384xf32> to vector<1x384xf32>
    %313 = vector.broadcast %312 : vector<1x384xf32> to vector<8x384xf32>
    %314 = arith.addf %310, %313 : vector<8x384xf32>
    %315 = arith.truncf %304 : vector<8x128xf32> to vector<8x128xbf16>
    %c1_131 = arith.constant 1 : index
    %c0_132 = arith.constant 0 : index
    %c0_133 = arith.constant 0 : index
    %316 = vector.load %arg2[%c1_131, %c0_132, %c0_133] : memref<4x128x384xbf16, #tpu.memory_space<vmem>>, vector<1x128x384xbf16>
    %317 = vector.shape_cast %316 : vector<1x128x384xbf16> to vector<128x384xbf16>
    %cst_134 = arith.constant dense<0.000000e+00> : vector<8x384xf32>
    %318 = tpu.matmul %315, %317, %cst_134 {dimension_numbers = #tpu.dot_dimension_numbers<[1], [0], [0], [1], [0, 0, 1, 1], [], []>} : vector<8x128xbf16>, vector<128x384xbf16>, vector<8x384xf32> -> vector<8x384xf32>
    %c1_135 = arith.constant 1 : index
    %c0_136 = arith.constant 0 : index
    %c0_137 = arith.constant 0 : index
    %319 = vector.load %arg6[%c1_135, %c0_136, %c0_137] : memref<4x1x384xf32, #tpu.memory_space<vmem>>, vector<1x1x384xf32>
    %320 = vector.shape_cast %319 : vector<1x1x384xf32> to vector<1x384xf32>
    %321 = vector.broadcast %320 : vector<1x384xf32> to vector<8x384xf32>
    %322 = arith.addf %318, %321 : vector<8x384xf32>
    %c32_138 = arith.constant 32 : index
    %c0_139 = arith.constant 0 : index
    %323 = vector.load %arg9[%c32_138, %c0_139] : memref<64x384xf32, #tpu.memory_space<vmem>>, vector<8x384xf32>
    %c24_140 = arith.constant 24 : index
    %c0_141 = arith.constant 0 : index
    %324 = vector.load %arg10[%c24_140, %c0_141] : memref<64x384xf32, #tpu.memory_space<vmem>>, vector<8x384xf32>
    %325 = vector.extract_strided_slice %323 {offsets = [0, 0], sizes = [8, 128], strides = [1, 1]} : vector<8x384xf32> to vector<8x128xf32>
    %326 = vector.extract_strided_slice %314 {offsets = [0, 0], sizes = [8, 128], strides = [1, 1]} : vector<8x384xf32> to vector<8x128xf32>
    %327 = arith.addf %325, %326 : vector<8x128xf32>
    %328 = arith.negf %327 : vector<8x128xf32>
    %329 = math.exp %328 : vector<8x128xf32>
    %cst_142 = arith.constant 1.000000e+00 : f32
    %330 = vector.broadcast %cst_142 : f32 to vector<8x128xf32>
    %331 = arith.addf %330, %329 : vector<8x128xf32>
    %332 = arith.divf %330, %331 : vector<8x128xf32>
    %333 = vector.extract_strided_slice %323 {offsets = [0, 128], sizes = [8, 128], strides = [1, 1]} : vector<8x384xf32> to vector<8x128xf32>
    %334 = vector.extract_strided_slice %314 {offsets = [0, 128], sizes = [8, 128], strides = [1, 1]} : vector<8x384xf32> to vector<8x128xf32>
    %335 = arith.addf %333, %334 : vector<8x128xf32>
    %336 = arith.negf %335 : vector<8x128xf32>
    %337 = math.exp %336 : vector<8x128xf32>
    %cst_143 = arith.constant 1.000000e+00 : f32
    %338 = vector.broadcast %cst_143 : f32 to vector<8x128xf32>
    %339 = arith.addf %338, %337 : vector<8x128xf32>
    %340 = arith.divf %338, %339 : vector<8x128xf32>
    %341 = vector.extract_strided_slice %323 {offsets = [0, 256], sizes = [8, 128], strides = [1, 1]} : vector<8x384xf32> to vector<8x128xf32>
    %342 = vector.extract_strided_slice %314 {offsets = [0, 256], sizes = [8, 128], strides = [1, 1]} : vector<8x384xf32> to vector<8x128xf32>
    %343 = arith.mulf %332, %342 : vector<8x128xf32>
    %344 = arith.addf %341, %343 : vector<8x128xf32>
    %345 = math.tanh %344 : vector<8x128xf32>
    %cst_144 = arith.constant 1.000000e+00 : f32
    %346 = vector.broadcast %cst_144 : f32 to vector<8x128xf32>
    %347 = arith.subf %346, %340 : vector<8x128xf32>
    %348 = arith.mulf %347, %345 : vector<8x128xf32>
    %349 = arith.mulf %340, %278 : vector<8x128xf32>
    %350 = arith.addf %348, %349 : vector<8x128xf32>
    %351 = vector.extract_strided_slice %324 {offsets = [0, 0], sizes = [8, 128], strides = [1, 1]} : vector<8x384xf32> to vector<8x128xf32>
    %352 = vector.extract_strided_slice %322 {offsets = [0, 0], sizes = [8, 128], strides = [1, 1]} : vector<8x384xf32> to vector<8x128xf32>
    %353 = arith.addf %351, %352 : vector<8x128xf32>
    %354 = arith.negf %353 : vector<8x128xf32>
    %355 = math.exp %354 : vector<8x128xf32>
    %cst_145 = arith.constant 1.000000e+00 : f32
    %356 = vector.broadcast %cst_145 : f32 to vector<8x128xf32>
    %357 = arith.addf %356, %355 : vector<8x128xf32>
    %358 = arith.divf %356, %357 : vector<8x128xf32>
    %359 = vector.extract_strided_slice %324 {offsets = [0, 128], sizes = [8, 128], strides = [1, 1]} : vector<8x384xf32> to vector<8x128xf32>
    %360 = vector.extract_strided_slice %322 {offsets = [0, 128], sizes = [8, 128], strides = [1, 1]} : vector<8x384xf32> to vector<8x128xf32>
    %361 = arith.addf %359, %360 : vector<8x128xf32>
    %362 = arith.negf %361 : vector<8x128xf32>
    %363 = math.exp %362 : vector<8x128xf32>
    %cst_146 = arith.constant 1.000000e+00 : f32
    %364 = vector.broadcast %cst_146 : f32 to vector<8x128xf32>
    %365 = arith.addf %364, %363 : vector<8x128xf32>
    %366 = arith.divf %364, %365 : vector<8x128xf32>
    %367 = vector.extract_strided_slice %324 {offsets = [0, 256], sizes = [8, 128], strides = [1, 1]} : vector<8x384xf32> to vector<8x128xf32>
    %368 = vector.extract_strided_slice %322 {offsets = [0, 256], sizes = [8, 128], strides = [1, 1]} : vector<8x384xf32> to vector<8x128xf32>
    %369 = arith.mulf %358, %368 : vector<8x128xf32>
    %370 = arith.addf %367, %369 : vector<8x128xf32>
    %371 = math.tanh %370 : vector<8x128xf32>
    %cst_147 = arith.constant 1.000000e+00 : f32
    %372 = vector.broadcast %cst_147 : f32 to vector<8x128xf32>
    %373 = arith.subf %372, %366 : vector<8x128xf32>
    %374 = arith.mulf %373, %371 : vector<8x128xf32>
    %375 = arith.mulf %366, %304 : vector<8x128xf32>
    %376 = arith.addf %374, %375 : vector<8x128xf32>
    %c32_148 = arith.constant 32 : index
    %c0_149 = arith.constant 0 : index
    %377 = vector.load %arg11[%c32_148, %c0_149] : memref<64x128xf32, #tpu.memory_space<vmem>>, vector<8x128xf32>
    tpu.vector_store %arg11[%c32_148, %c0_149], %350 {strides = array<i32>} : memref<64x128xf32, #tpu.memory_space<vmem>>, vector<8x128xf32>,
    %c24_150 = arith.constant 24 : index
    %c0_151 = arith.constant 0 : index
    %378 = vector.load %arg12[%c24_150, %c0_151] : memref<64x128xf32, #tpu.memory_space<vmem>>, vector<8x128xf32>
    tpu.vector_store %arg12[%c24_150, %c0_151], %376 {strides = array<i32>} : memref<64x128xf32, #tpu.memory_space<vmem>>, vector<8x128xf32>,
    %379 = arith.truncf %350 : vector<8x128xf32> to vector<8x128xbf16>
    %c0_152 = arith.constant 0 : index
    %c0_153 = arith.constant 0 : index
    %c0_154 = arith.constant 0 : index
    %380 = vector.load %arg2[%c0_152, %c0_153, %c0_154] : memref<4x128x384xbf16, #tpu.memory_space<vmem>>, vector<1x128x384xbf16>
    %381 = vector.shape_cast %380 : vector<1x128x384xbf16> to vector<128x384xbf16>
    %cst_155 = arith.constant dense<0.000000e+00> : vector<8x384xf32>
    %382 = tpu.matmul %379, %381, %cst_155 {dimension_numbers = #tpu.dot_dimension_numbers<[1], [0], [0], [1], [0, 0, 1, 1], [], []>} : vector<8x128xbf16>, vector<128x384xbf16>, vector<8x384xf32> -> vector<8x384xf32>
    %c0_156 = arith.constant 0 : index
    %c0_157 = arith.constant 0 : index
    %c0_158 = arith.constant 0 : index
    %383 = vector.load %arg6[%c0_156, %c0_157, %c0_158] : memref<4x1x384xf32, #tpu.memory_space<vmem>>, vector<1x1x384xf32>
    %384 = vector.shape_cast %383 : vector<1x1x384xf32> to vector<1x384xf32>
    %385 = vector.broadcast %384 : vector<1x384xf32> to vector<8x384xf32>
    %386 = arith.addf %382, %385 : vector<8x384xf32>
    %387 = arith.truncf %376 : vector<8x128xf32> to vector<8x128xbf16>
    %c1_159 = arith.constant 1 : index
    %c0_160 = arith.constant 0 : index
    %c0_161 = arith.constant 0 : index
    %388 = vector.load %arg2[%c1_159, %c0_160, %c0_161] : memref<4x128x384xbf16, #tpu.memory_space<vmem>>, vector<1x128x384xbf16>
    %389 = vector.shape_cast %388 : vector<1x128x384xbf16> to vector<128x384xbf16>
    %cst_162 = arith.constant dense<0.000000e+00> : vector<8x384xf32>
    %390 = tpu.matmul %387, %389, %cst_162 {dimension_numbers = #tpu.dot_dimension_numbers<[1], [0], [0], [1], [0, 0, 1, 1], [], []>} : vector<8x128xbf16>, vector<128x384xbf16>, vector<8x384xf32> -> vector<8x384xf32>
    %c1_163 = arith.constant 1 : index
    %c0_164 = arith.constant 0 : index
    %c0_165 = arith.constant 0 : index
    %391 = vector.load %arg6[%c1_163, %c0_164, %c0_165] : memref<4x1x384xf32, #tpu.memory_space<vmem>>, vector<1x1x384xf32>
    %392 = vector.shape_cast %391 : vector<1x1x384xf32> to vector<1x384xf32>
    %393 = vector.broadcast %392 : vector<1x384xf32> to vector<8x384xf32>
    %394 = arith.addf %390, %393 : vector<8x384xf32>
    %c40_166 = arith.constant 40 : index
    %c0_167 = arith.constant 0 : index
    %395 = vector.load %arg9[%c40_166, %c0_167] : memref<64x384xf32, #tpu.memory_space<vmem>>, vector<8x384xf32>
    %c16_168 = arith.constant 16 : index
    %c0_169 = arith.constant 0 : index
    %396 = vector.load %arg10[%c16_168, %c0_169] : memref<64x384xf32, #tpu.memory_space<vmem>>, vector<8x384xf32>
    %397 = vector.extract_strided_slice %395 {offsets = [0, 0], sizes = [8, 128], strides = [1, 1]} : vector<8x384xf32> to vector<8x128xf32>
    %398 = vector.extract_strided_slice %386 {offsets = [0, 0], sizes = [8, 128], strides = [1, 1]} : vector<8x384xf32> to vector<8x128xf32>
    %399 = arith.addf %397, %398 : vector<8x128xf32>
    %400 = arith.negf %399 : vector<8x128xf32>
    %401 = math.exp %400 : vector<8x128xf32>
    %cst_170 = arith.constant 1.000000e+00 : f32
    %402 = vector.broadcast %cst_170 : f32 to vector<8x128xf32>
    %403 = arith.addf %402, %401 : vector<8x128xf32>
    %404 = arith.divf %402, %403 : vector<8x128xf32>
    %405 = vector.extract_strided_slice %395 {offsets = [0, 128], sizes = [8, 128], strides = [1, 1]} : vector<8x384xf32> to vector<8x128xf32>
    %406 = vector.extract_strided_slice %386 {offsets = [0, 128], sizes = [8, 128], strides = [1, 1]} : vector<8x384xf32> to vector<8x128xf32>
    %407 = arith.addf %405, %406 : vector<8x128xf32>
    %408 = arith.negf %407 : vector<8x128xf32>
    %409 = math.exp %408 : vector<8x128xf32>
    %cst_171 = arith.constant 1.000000e+00 : f32
    %410 = vector.broadcast %cst_171 : f32 to vector<8x128xf32>
    %411 = arith.addf %410, %409 : vector<8x128xf32>
    %412 = arith.divf %410, %411 : vector<8x128xf32>
    %413 = vector.extract_strided_slice %395 {offsets = [0, 256], sizes = [8, 128], strides = [1, 1]} : vector<8x384xf32> to vector<8x128xf32>
    %414 = vector.extract_strided_slice %386 {offsets = [0, 256], sizes = [8, 128], strides = [1, 1]} : vector<8x384xf32> to vector<8x128xf32>
    %415 = arith.mulf %404, %414 : vector<8x128xf32>
    %416 = arith.addf %413, %415 : vector<8x128xf32>
    %417 = math.tanh %416 : vector<8x128xf32>
    %cst_172 = arith.constant 1.000000e+00 : f32
    %418 = vector.broadcast %cst_172 : f32 to vector<8x128xf32>
    %419 = arith.subf %418, %412 : vector<8x128xf32>
    %420 = arith.mulf %419, %417 : vector<8x128xf32>
    %421 = arith.mulf %412, %350 : vector<8x128xf32>
    %422 = arith.addf %420, %421 : vector<8x128xf32>
    %423 = vector.extract_strided_slice %396 {offsets = [0, 0], sizes = [8, 128], strides = [1, 1]} : vector<8x384xf32> to vector<8x128xf32>
    %424 = vector.extract_strided_slice %394 {offsets = [0, 0], sizes = [8, 128], strides = [1, 1]} : vector<8x384xf32> to vector<8x128xf32>
    %425 = arith.addf %423, %424 : vector<8x128xf32>
    %426 = arith.negf %425 : vector<8x128xf32>
    %427 = math.exp %426 : vector<8x128xf32>
    %cst_173 = arith.constant 1.000000e+00 : f32
    %428 = vector.broadcast %cst_173 : f32 to vector<8x128xf32>
    %429 = arith.addf %428, %427 : vector<8x128xf32>
    %430 = arith.divf %428, %429 : vector<8x128xf32>
    %431 = vector.extract_strided_slice %396 {offsets = [0, 128], sizes = [8, 128], strides = [1, 1]} : vector<8x384xf32> to vector<8x128xf32>
    %432 = vector.extract_strided_slice %394 {offsets = [0, 128], sizes = [8, 128], strides = [1, 1]} : vector<8x384xf32> to vector<8x128xf32>
    %433 = arith.addf %431, %432 : vector<8x128xf32>
    %434 = arith.negf %433 : vector<8x128xf32>
    %435 = math.exp %434 : vector<8x128xf32>
    %cst_174 = arith.constant 1.000000e+00 : f32
    %436 = vector.broadcast %cst_174 : f32 to vector<8x128xf32>
    %437 = arith.addf %436, %435 : vector<8x128xf32>
    %438 = arith.divf %436, %437 : vector<8x128xf32>
    %439 = vector.extract_strided_slice %396 {offsets = [0, 256], sizes = [8, 128], strides = [1, 1]} : vector<8x384xf32> to vector<8x128xf32>
    %440 = vector.extract_strided_slice %394 {offsets = [0, 256], sizes = [8, 128], strides = [1, 1]} : vector<8x384xf32> to vector<8x128xf32>
    %441 = arith.mulf %430, %440 : vector<8x128xf32>
    %442 = arith.addf %439, %441 : vector<8x128xf32>
    %443 = math.tanh %442 : vector<8x128xf32>
    %cst_175 = arith.constant 1.000000e+00 : f32
    %444 = vector.broadcast %cst_175 : f32 to vector<8x128xf32>
    %445 = arith.subf %444, %438 : vector<8x128xf32>
    %446 = arith.mulf %445, %443 : vector<8x128xf32>
    %447 = arith.mulf %438, %376 : vector<8x128xf32>
    %448 = arith.addf %446, %447 : vector<8x128xf32>
    %c40_176 = arith.constant 40 : index
    %c0_177 = arith.constant 0 : index
    %449 = vector.load %arg11[%c40_176, %c0_177] : memref<64x128xf32, #tpu.memory_space<vmem>>, vector<8x128xf32>
    tpu.vector_store %arg11[%c40_176, %c0_177], %422 {strides = array<i32>} : memref<64x128xf32, #tpu.memory_space<vmem>>, vector<8x128xf32>,
    %c16_178 = arith.constant 16 : index
    %c0_179 = arith.constant 0 : index
    %450 = vector.load %arg12[%c16_178, %c0_179] : memref<64x128xf32, #tpu.memory_space<vmem>>, vector<8x128xf32>
    tpu.vector_store %arg12[%c16_178, %c0_179], %448 {strides = array<i32>} : memref<64x128xf32, #tpu.memory_space<vmem>>, vector<8x128xf32>,
    %451 = arith.truncf %422 : vector<8x128xf32> to vector<8x128xbf16>
    %c0_180 = arith.constant 0 : index
    %c0_181 = arith.constant 0 : index
    %c0_182 = arith.constant 0 : index
    %452 = vector.load %arg2[%c0_180, %c0_181, %c0_182] : memref<4x128x384xbf16, #tpu.memory_space<vmem>>, vector<1x128x384xbf16>
    %453 = vector.shape_cast %452 : vector<1x128x384xbf16> to vector<128x384xbf16>
    %cst_183 = arith.constant dense<0.000000e+00> : vector<8x384xf32>
    %454 = tpu.matmul %451, %453, %cst_183 {dimension_numbers = #tpu.dot_dimension_numbers<[1], [0], [0], [1], [0, 0, 1, 1], [], []>} : vector<8x128xbf16>, vector<128x384xbf16>, vector<8x384xf32> -> vector<8x384xf32>
    %c0_184 = arith.constant 0 : index
    %c0_185 = arith.constant 0 : index
    %c0_186 = arith.constant 0 : index
    %455 = vector.load %arg6[%c0_184, %c0_185, %c0_186] : memref<4x1x384xf32, #tpu.memory_space<vmem>>, vector<1x1x384xf32>
    %456 = vector.shape_cast %455 : vector<1x1x384xf32> to vector<1x384xf32>
    %457 = vector.broadcast %456 : vector<1x384xf32> to vector<8x384xf32>
    %458 = arith.addf %454, %457 : vector<8x384xf32>
    %459 = arith.truncf %448 : vector<8x128xf32> to vector<8x128xbf16>
    %c1_187 = arith.constant 1 : index
    %c0_188 = arith.constant 0 : index
    %c0_189 = arith.constant 0 : index
    %460 = vector.load %arg2[%c1_187, %c0_188, %c0_189] : memref<4x128x384xbf16, #tpu.memory_space<vmem>>, vector<1x128x384xbf16>
    %461 = vector.shape_cast %460 : vector<1x128x384xbf16> to vector<128x384xbf16>
    %cst_190 = arith.constant dense<0.000000e+00> : vector<8x384xf32>
    %462 = tpu.matmul %459, %461, %cst_190 {dimension_numbers = #tpu.dot_dimension_numbers<[1], [0], [0], [1], [0, 0, 1, 1], [], []>} : vector<8x128xbf16>, vector<128x384xbf16>, vector<8x384xf32> -> vector<8x384xf32>
    %c1_191 = arith.constant 1 : index
    %c0_192 = arith.constant 0 : index
    %c0_193 = arith.constant 0 : index
    %463 = vector.load %arg6[%c1_191, %c0_192, %c0_193] : memref<4x1x384xf32, #tpu.memory_space<vmem>>, vector<1x1x384xf32>
    %464 = vector.shape_cast %463 : vector<1x1x384xf32> to vector<1x384xf32>
    %465 = vector.broadcast %464 : vector<1x384xf32> to vector<8x384xf32>
    %466 = arith.addf %462, %465 : vector<8x384xf32>
    %c48_194 = arith.constant 48 : index
    %c0_195 = arith.constant 0 : index
    %467 = vector.load %arg9[%c48_194, %c0_195] : memref<64x384xf32, #tpu.memory_space<vmem>>, vector<8x384xf32>
    %c8_196 = arith.constant 8 : index
    %c0_197 = arith.constant 0 : index
    %468 = vector.load %arg10[%c8_196, %c0_197] : memref<64x384xf32, #tpu.memory_space<vmem>>, vector<8x384xf32>
    %469 = vector.extract_strided_slice %467 {offsets = [0, 0], sizes = [8, 128], strides = [1, 1]} : vector<8x384xf32> to vector<8x128xf32>
    %470 = vector.extract_strided_slice %458 {offsets = [0, 0], sizes = [8, 128], strides = [1, 1]} : vector<8x384xf32> to vector<8x128xf32>
    %471 = arith.addf %469, %470 : vector<8x128xf32>
    %472 = arith.negf %471 : vector<8x128xf32>
    %473 = math.exp %472 : vector<8x128xf32>
    %cst_198 = arith.constant 1.000000e+00 : f32
    %474 = vector.broadcast %cst_198 : f32 to vector<8x128xf32>
    %475 = arith.addf %474, %473 : vector<8x128xf32>
    %476 = arith.divf %474, %475 : vector<8x128xf32>
    %477 = vector.extract_strided_slice %467 {offsets = [0, 128], sizes = [8, 128], strides = [1, 1]} : vector<8x384xf32> to vector<8x128xf32>
    %478 = vector.extract_strided_slice %458 {offsets = [0, 128], sizes = [8, 128], strides = [1, 1]} : vector<8x384xf32> to vector<8x128xf32>
    %479 = arith.addf %477, %478 : vector<8x128xf32>
    %480 = arith.negf %479 : vector<8x128xf32>
    %481 = math.exp %480 : vector<8x128xf32>
    %cst_199 = arith.constant 1.000000e+00 : f32
    %482 = vector.broadcast %cst_199 : f32 to vector<8x128xf32>
    %483 = arith.addf %482, %481 : vector<8x128xf32>
    %484 = arith.divf %482, %483 : vector<8x128xf32>
    %485 = vector.extract_strided_slice %467 {offsets = [0, 256], sizes = [8, 128], strides = [1, 1]} : vector<8x384xf32> to vector<8x128xf32>
    %486 = vector.extract_strided_slice %458 {offsets = [0, 256], sizes = [8, 128], strides = [1, 1]} : vector<8x384xf32> to vector<8x128xf32>
    %487 = arith.mulf %476, %486 : vector<8x128xf32>
    %488 = arith.addf %485, %487 : vector<8x128xf32>
    %489 = math.tanh %488 : vector<8x128xf32>
    %cst_200 = arith.constant 1.000000e+00 : f32
    %490 = vector.broadcast %cst_200 : f32 to vector<8x128xf32>
    %491 = arith.subf %490, %484 : vector<8x128xf32>
    %492 = arith.mulf %491, %489 : vector<8x128xf32>
    %493 = arith.mulf %484, %422 : vector<8x128xf32>
    %494 = arith.addf %492, %493 : vector<8x128xf32>
    %495 = vector.extract_strided_slice %468 {offsets = [0, 0], sizes = [8, 128], strides = [1, 1]} : vector<8x384xf32> to vector<8x128xf32>
    %496 = vector.extract_strided_slice %466 {offsets = [0, 0], sizes = [8, 128], strides = [1, 1]} : vector<8x384xf32> to vector<8x128xf32>
    %497 = arith.addf %495, %496 : vector<8x128xf32>
    %498 = arith.negf %497 : vector<8x128xf32>
    %499 = math.exp %498 : vector<8x128xf32>
    %cst_201 = arith.constant 1.000000e+00 : f32
    %500 = vector.broadcast %cst_201 : f32 to vector<8x128xf32>
    %501 = arith.addf %500, %499 : vector<8x128xf32>
    %502 = arith.divf %500, %501 : vector<8x128xf32>
    %503 = vector.extract_strided_slice %468 {offsets = [0, 128], sizes = [8, 128], strides = [1, 1]} : vector<8x384xf32> to vector<8x128xf32>
    %504 = vector.extract_strided_slice %466 {offsets = [0, 128], sizes = [8, 128], strides = [1, 1]} : vector<8x384xf32> to vector<8x128xf32>
    %505 = arith.addf %503, %504 : vector<8x128xf32>
    %506 = arith.negf %505 : vector<8x128xf32>
    %507 = math.exp %506 : vector<8x128xf32>
    %cst_202 = arith.constant 1.000000e+00 : f32
    %508 = vector.broadcast %cst_202 : f32 to vector<8x128xf32>
    %509 = arith.addf %508, %507 : vector<8x128xf32>
    %510 = arith.divf %508, %509 : vector<8x128xf32>
    %511 = vector.extract_strided_slice %468 {offsets = [0, 256], sizes = [8, 128], strides = [1, 1]} : vector<8x384xf32> to vector<8x128xf32>
    %512 = vector.extract_strided_slice %466 {offsets = [0, 256], sizes = [8, 128], strides = [1, 1]} : vector<8x384xf32> to vector<8x128xf32>
    %513 = arith.mulf %502, %512 : vector<8x128xf32>
    %514 = arith.addf %511, %513 : vector<8x128xf32>
    %515 = math.tanh %514 : vector<8x128xf32>
    %cst_203 = arith.constant 1.000000e+00 : f32
    %516 = vector.broadcast %cst_203 : f32 to vector<8x128xf32>
    %517 = arith.subf %516, %510 : vector<8x128xf32>
    %518 = arith.mulf %517, %515 : vector<8x128xf32>
    %519 = arith.mulf %510, %448 : vector<8x128xf32>
    %520 = arith.addf %518, %519 : vector<8x128xf32>
    %c48_204 = arith.constant 48 : index
    %c0_205 = arith.constant 0 : index
    %521 = vector.load %arg11[%c48_204, %c0_205] : memref<64x128xf32, #tpu.memory_space<vmem>>, vector<8x128xf32>
    tpu.vector_store %arg11[%c48_204, %c0_205], %494 {strides = array<i32>} : memref<64x128xf32, #tpu.memory_space<vmem>>, vector<8x128xf32>,
    %c8_206 = arith.constant 8 : index
    %c0_207 = arith.constant 0 : index
    %522 = vector.load %arg12[%c8_206, %c0_207] : memref<64x128xf32, #tpu.memory_space<vmem>>, vector<8x128xf32>
    tpu.vector_store %arg12[%c8_206, %c0_207], %520 {strides = array<i32>} : memref<64x128xf32, #tpu.memory_space<vmem>>, vector<8x128xf32>,
    %523 = arith.truncf %494 : vector<8x128xf32> to vector<8x128xbf16>
    %c0_208 = arith.constant 0 : index
    %c0_209 = arith.constant 0 : index
    %c0_210 = arith.constant 0 : index
    %524 = vector.load %arg2[%c0_208, %c0_209, %c0_210] : memref<4x128x384xbf16, #tpu.memory_space<vmem>>, vector<1x128x384xbf16>
    %525 = vector.shape_cast %524 : vector<1x128x384xbf16> to vector<128x384xbf16>
    %cst_211 = arith.constant dense<0.000000e+00> : vector<8x384xf32>
    %526 = tpu.matmul %523, %525, %cst_211 {dimension_numbers = #tpu.dot_dimension_numbers<[1], [0], [0], [1], [0, 0, 1, 1], [], []>} : vector<8x128xbf16>, vector<128x384xbf16>, vector<8x384xf32> -> vector<8x384xf32>
    %c0_212 = arith.constant 0 : index
    %c0_213 = arith.constant 0 : index
    %c0_214 = arith.constant 0 : index
    %527 = vector.load %arg6[%c0_212, %c0_213, %c0_214] : memref<4x1x384xf32, #tpu.memory_space<vmem>>, vector<1x1x384xf32>
    %528 = vector.shape_cast %527 : vector<1x1x384xf32> to vector<1x384xf32>
    %529 = vector.broadcast %528 : vector<1x384xf32> to vector<8x384xf32>
    %530 = arith.addf %526, %529 : vector<8x384xf32>
    %531 = arith.truncf %520 : vector<8x128xf32> to vector<8x128xbf16>
    %c1_215 = arith.constant 1 : index
    %c0_216 = arith.constant 0 : index
    %c0_217 = arith.constant 0 : index
    %532 = vector.load %arg2[%c1_215, %c0_216, %c0_217] : memref<4x128x384xbf16, #tpu.memory_space<vmem>>, vector<1x128x384xbf16>
    %533 = vector.shape_cast %532 : vector<1x128x384xbf16> to vector<128x384xbf16>
    %cst_218 = arith.constant dense<0.000000e+00> : vector<8x384xf32>
    %534 = tpu.matmul %531, %533, %cst_218 {dimension_numbers = #tpu.dot_dimension_numbers<[1], [0], [0], [1], [0, 0, 1, 1], [], []>} : vector<8x128xbf16>, vector<128x384xbf16>, vector<8x384xf32> -> vector<8x384xf32>
    %c1_219 = arith.constant 1 : index
    %c0_220 = arith.constant 0 : index
    %c0_221 = arith.constant 0 : index
    %535 = vector.load %arg6[%c1_219, %c0_220, %c0_221] : memref<4x1x384xf32, #tpu.memory_space<vmem>>, vector<1x1x384xf32>
    %536 = vector.shape_cast %535 : vector<1x1x384xf32> to vector<1x384xf32>
    %537 = vector.broadcast %536 : vector<1x384xf32> to vector<8x384xf32>
    %538 = arith.addf %534, %537 : vector<8x384xf32>
    %c56_222 = arith.constant 56 : index
    %c0_223 = arith.constant 0 : index
    %539 = vector.load %arg9[%c56_222, %c0_223] : memref<64x384xf32, #tpu.memory_space<vmem>>, vector<8x384xf32>
    %c0_224 = arith.constant 0 : index
    %c0_225 = arith.constant 0 : index
    %540 = vector.load %arg10[%c0_224, %c0_225] : memref<64x384xf32, #tpu.memory_space<vmem>>, vector<8x384xf32>
    %541 = vector.extract_strided_slice %539 {offsets = [0, 0], sizes = [8, 128], strides = [1, 1]} : vector<8x384xf32> to vector<8x128xf32>
    %542 = vector.extract_strided_slice %530 {offsets = [0, 0], sizes = [8, 128], strides = [1, 1]} : vector<8x384xf32> to vector<8x128xf32>
    %543 = arith.addf %541, %542 : vector<8x128xf32>
    %544 = arith.negf %543 : vector<8x128xf32>
    %545 = math.exp %544 : vector<8x128xf32>
    %cst_226 = arith.constant 1.000000e+00 : f32
    %546 = vector.broadcast %cst_226 : f32 to vector<8x128xf32>
    %547 = arith.addf %546, %545 : vector<8x128xf32>
    %548 = arith.divf %546, %547 : vector<8x128xf32>
    %549 = vector.extract_strided_slice %539 {offsets = [0, 128], sizes = [8, 128], strides = [1, 1]} : vector<8x384xf32> to vector<8x128xf32>
    %550 = vector.extract_strided_slice %530 {offsets = [0, 128], sizes = [8, 128], strides = [1, 1]} : vector<8x384xf32> to vector<8x128xf32>
    %551 = arith.addf %549, %550 : vector<8x128xf32>
    %552 = arith.negf %551 : vector<8x128xf32>
    %553 = math.exp %552 : vector<8x128xf32>
    %cst_227 = arith.constant 1.000000e+00 : f32
    %554 = vector.broadcast %cst_227 : f32 to vector<8x128xf32>
    %555 = arith.addf %554, %553 : vector<8x128xf32>
    %556 = arith.divf %554, %555 : vector<8x128xf32>
    %557 = vector.extract_strided_slice %539 {offsets = [0, 256], sizes = [8, 128], strides = [1, 1]} : vector<8x384xf32> to vector<8x128xf32>
    %558 = vector.extract_strided_slice %530 {offsets = [0, 256], sizes = [8, 128], strides = [1, 1]} : vector<8x384xf32> to vector<8x128xf32>
    %559 = arith.mulf %548, %558 : vector<8x128xf32>
    %560 = arith.addf %557, %559 : vector<8x128xf32>
    %561 = math.tanh %560 : vector<8x128xf32>
    %cst_228 = arith.constant 1.000000e+00 : f32
    %562 = vector.broadcast %cst_228 : f32 to vector<8x128xf32>
    %563 = arith.subf %562, %556 : vector<8x128xf32>
    %564 = arith.mulf %563, %561 : vector<8x128xf32>
    %565 = arith.mulf %556, %494 : vector<8x128xf32>
    %566 = arith.addf %564, %565 : vector<8x128xf32>
    %567 = vector.extract_strided_slice %540 {offsets = [0, 0], sizes = [8, 128], strides = [1, 1]} : vector<8x384xf32> to vector<8x128xf32>
    %568 = vector.extract_strided_slice %538 {offsets = [0, 0], sizes = [8, 128], strides = [1, 1]} : vector<8x384xf32> to vector<8x128xf32>
    %569 = arith.addf %567, %568 : vector<8x128xf32>
    %570 = arith.negf %569 : vector<8x128xf32>
    %571 = math.exp %570 : vector<8x128xf32>
    %cst_229 = arith.constant 1.000000e+00 : f32
    %572 = vector.broadcast %cst_229 : f32 to vector<8x128xf32>
    %573 = arith.addf %572, %571 : vector<8x128xf32>
    %574 = arith.divf %572, %573 : vector<8x128xf32>
    %575 = vector.extract_strided_slice %540 {offsets = [0, 128], sizes = [8, 128], strides = [1, 1]} : vector<8x384xf32> to vector<8x128xf32>
    %576 = vector.extract_strided_slice %538 {offsets = [0, 128], sizes = [8, 128], strides = [1, 1]} : vector<8x384xf32> to vector<8x128xf32>
    %577 = arith.addf %575, %576 : vector<8x128xf32>
    %578 = arith.negf %577 : vector<8x128xf32>
    %579 = math.exp %578 : vector<8x128xf32>
    %cst_230 = arith.constant 1.000000e+00 : f32
    %580 = vector.broadcast %cst_230 : f32 to vector<8x128xf32>
    %581 = arith.addf %580, %579 : vector<8x128xf32>
    %582 = arith.divf %580, %581 : vector<8x128xf32>
    %583 = vector.extract_strided_slice %540 {offsets = [0, 256], sizes = [8, 128], strides = [1, 1]} : vector<8x384xf32> to vector<8x128xf32>
    %584 = vector.extract_strided_slice %538 {offsets = [0, 256], sizes = [8, 128], strides = [1, 1]} : vector<8x384xf32> to vector<8x128xf32>
    %585 = arith.mulf %574, %584 : vector<8x128xf32>
    %586 = arith.addf %583, %585 : vector<8x128xf32>
    %587 = math.tanh %586 : vector<8x128xf32>
    %cst_231 = arith.constant 1.000000e+00 : f32
    %588 = vector.broadcast %cst_231 : f32 to vector<8x128xf32>
    %589 = arith.subf %588, %582 : vector<8x128xf32>
    %590 = arith.mulf %589, %587 : vector<8x128xf32>
    %591 = arith.mulf %582, %520 : vector<8x128xf32>
    %592 = arith.addf %590, %591 : vector<8x128xf32>
    %c56_232 = arith.constant 56 : index
    %c0_233 = arith.constant 0 : index
    %593 = vector.load %arg11[%c56_232, %c0_233] : memref<64x128xf32, #tpu.memory_space<vmem>>, vector<8x128xf32>
    tpu.vector_store %arg11[%c56_232, %c0_233], %566 {strides = array<i32>} : memref<64x128xf32, #tpu.memory_space<vmem>>, vector<8x128xf32>,
    %c0_234 = arith.constant 0 : index
    %c0_235 = arith.constant 0 : index
    %594 = vector.load %arg12[%c0_234, %c0_235] : memref<64x128xf32, #tpu.memory_space<vmem>>, vector<8x128xf32>
    tpu.vector_store %arg12[%c0_234, %c0_235], %592 {strides = array<i32>} : memref<64x128xf32, #tpu.memory_space<vmem>>, vector<8x128xf32>,
    %c0_236 = arith.constant 0 : index
    %c0_237 = arith.constant 0 : index
    %595 = vector.load %arg11[%c0_236, %c0_237] : memref<64x128xf32, #tpu.memory_space<vmem>>, vector<64x128xf32>
    %596 = arith.truncf %595 : vector<64x128xf32> to vector<64x128xbf16>
    %c0_238 = arith.constant 0 : index
    %c0_239 = arith.constant 0 : index
    %597 = vector.load %arg12[%c0_238, %c0_239] : memref<64x128xf32, #tpu.memory_space<vmem>>, vector<64x128xf32>
    %598 = arith.truncf %597 : vector<64x128xf32> to vector<64x128xbf16>
    %c0_240 = arith.constant 0 : index
    %c0_241 = arith.constant 0 : index
    %c0_242 = arith.constant 0 : index
    %599 = vector.load %arg3[%c0_240, %c0_241, %c0_242] : memref<4x128x384xbf16, #tpu.memory_space<vmem>>, vector<1x128x384xbf16>
    %600 = vector.shape_cast %599 : vector<1x128x384xbf16> to vector<128x384xbf16>
    %cst_243 = arith.constant dense<0.000000e+00> : vector<64x384xf32>
    %601 = tpu.matmul %596, %600, %cst_243 {dimension_numbers = #tpu.dot_dimension_numbers<[1], [0], [0], [1], [0, 0, 1, 1], [], []>} : vector<64x128xbf16>, vector<128x384xbf16>, vector<64x384xf32> -> vector<64x384xf32>
    %c1_244 = arith.constant 1 : index
    %c0_245 = arith.constant 0 : index
    %c0_246 = arith.constant 0 : index
    %602 = vector.load %arg3[%c1_244, %c0_245, %c0_246] : memref<4x128x384xbf16, #tpu.memory_space<vmem>>, vector<1x128x384xbf16>
    %603 = vector.shape_cast %602 : vector<1x128x384xbf16> to vector<128x384xbf16>
    %cst_247 = arith.constant dense<0.000000e+00> : vector<64x384xf32>
    %604 = tpu.matmul %598, %603, %cst_247 {dimension_numbers = #tpu.dot_dimension_numbers<[1], [0], [0], [1], [0, 0, 1, 1], [], []>} : vector<64x128xbf16>, vector<128x384xbf16>, vector<64x384xf32> -> vector<64x384xf32>
    %605 = arith.addf %601, %604 : vector<64x384xf32>
    %c2 = arith.constant 2 : index
    %c0_248 = arith.constant 0 : index
    %c0_249 = arith.constant 0 : index
    %606 = vector.load %arg5[%c2, %c0_248, %c0_249] : memref<4x1x384xf32, #tpu.memory_space<vmem>>, vector<1x1x384xf32>
    %607 = vector.shape_cast %606 : vector<1x1x384xf32> to vector<1x384xf32>
    %608 = vector.broadcast %607 : vector<1x384xf32> to vector<64x384xf32>
    %609 = arith.addf %605, %608 : vector<64x384xf32>
    %c0_250 = arith.constant 0 : index
    %c0_251 = arith.constant 0 : index
    %610 = vector.load %arg9[%c0_250, %c0_251] : memref<64x384xf32, #tpu.memory_space<vmem>>, vector<64x384xf32>
    tpu.vector_store %arg9[%c0_250, %c0_251], %609 {strides = array<i32>} : memref<64x384xf32, #tpu.memory_space<vmem>>, vector<64x384xf32>,
    %c2_252 = arith.constant 2 : index
    %c0_253 = arith.constant 0 : index
    %c0_254 = arith.constant 0 : index
    %611 = vector.load %arg3[%c2_252, %c0_253, %c0_254] : memref<4x128x384xbf16, #tpu.memory_space<vmem>>, vector<1x128x384xbf16>
    %612 = vector.shape_cast %611 : vector<1x128x384xbf16> to vector<128x384xbf16>
    %cst_255 = arith.constant dense<0.000000e+00> : vector<64x384xf32>
    %613 = tpu.matmul %596, %612, %cst_255 {dimension_numbers = #tpu.dot_dimension_numbers<[1], [0], [0], [1], [0, 0, 1, 1], [], []>} : vector<64x128xbf16>, vector<128x384xbf16>, vector<64x384xf32> -> vector<64x384xf32>
    %c3 = arith.constant 3 : index
    %c0_256 = arith.constant 0 : index
    %c0_257 = arith.constant 0 : index
    %614 = vector.load %arg3[%c3, %c0_256, %c0_257] : memref<4x128x384xbf16, #tpu.memory_space<vmem>>, vector<1x128x384xbf16>
    %615 = vector.shape_cast %614 : vector<1x128x384xbf16> to vector<128x384xbf16>
    %cst_258 = arith.constant dense<0.000000e+00> : vector<64x384xf32>
    %616 = tpu.matmul %598, %615, %cst_258 {dimension_numbers = #tpu.dot_dimension_numbers<[1], [0], [0], [1], [0, 0, 1, 1], [], []>} : vector<64x128xbf16>, vector<128x384xbf16>, vector<64x384xf32> -> vector<64x384xf32>
    %617 = arith.addf %613, %616 : vector<64x384xf32>
    %c3_259 = arith.constant 3 : index
    %c0_260 = arith.constant 0 : index
    %c0_261 = arith.constant 0 : index
    %618 = vector.load %arg5[%c3_259, %c0_260, %c0_261] : memref<4x1x384xf32, #tpu.memory_space<vmem>>, vector<1x1x384xf32>
    %619 = vector.shape_cast %618 : vector<1x1x384xf32> to vector<1x384xf32>
    %620 = vector.broadcast %619 : vector<1x384xf32> to vector<64x384xf32>
    %621 = arith.addf %617, %620 : vector<64x384xf32>
    %c0_262 = arith.constant 0 : index
    %c0_263 = arith.constant 0 : index
    %622 = vector.load %arg10[%c0_262, %c0_263] : memref<64x384xf32, #tpu.memory_space<vmem>>, vector<64x384xf32>
    tpu.vector_store %arg10[%c0_262, %c0_263], %621 {strides = array<i32>} : memref<64x384xf32, #tpu.memory_space<vmem>>, vector<64x384xf32>,
    %cst_264 = arith.constant 0.000000e+00 : f32
    %623 = vector.broadcast %cst_264 : f32 to vector<8x128xf32>
    %cst_265 = arith.constant 0.000000e+00 : f32
    %624 = vector.broadcast %cst_265 : f32 to vector<8x128xf32>
    %625 = arith.truncf %623 : vector<8x128xf32> to vector<8x128xbf16>
    %c2_266 = arith.constant 2 : index
    %c0_267 = arith.constant 0 : index
    %c0_268 = arith.constant 0 : index
    %626 = vector.load %arg2[%c2_266, %c0_267, %c0_268] : memref<4x128x384xbf16, #tpu.memory_space<vmem>>, vector<1x128x384xbf16>
    %627 = vector.shape_cast %626 : vector<1x128x384xbf16> to vector<128x384xbf16>
    %cst_269 = arith.constant dense<0.000000e+00> : vector<8x384xf32>
    %628 = tpu.matmul %625, %627, %cst_269 {dimension_numbers = #tpu.dot_dimension_numbers<[1], [0], [0], [1], [0, 0, 1, 1], [], []>} : vector<8x128xbf16>, vector<128x384xbf16>, vector<8x384xf32> -> vector<8x384xf32>
    %c2_270 = arith.constant 2 : index
    %c0_271 = arith.constant 0 : index
    %c0_272 = arith.constant 0 : index
    %629 = vector.load %arg6[%c2_270, %c0_271, %c0_272] : memref<4x1x384xf32, #tpu.memory_space<vmem>>, vector<1x1x384xf32>
    %630 = vector.shape_cast %629 : vector<1x1x384xf32> to vector<1x384xf32>
    %631 = vector.broadcast %630 : vector<1x384xf32> to vector<8x384xf32>
    %632 = arith.addf %628, %631 : vector<8x384xf32>
    %633 = arith.truncf %624 : vector<8x128xf32> to vector<8x128xbf16>
    %c3_273 = arith.constant 3 : index
    %c0_274 = arith.constant 0 : index
    %c0_275 = arith.constant 0 : index
    %634 = vector.load %arg2[%c3_273, %c0_274, %c0_275] : memref<4x128x384xbf16, #tpu.memory_space<vmem>>, vector<1x128x384xbf16>
    %635 = vector.shape_cast %634 : vector<1x128x384xbf16> to vector<128x384xbf16>
    %cst_276 = arith.constant dense<0.000000e+00> : vector<8x384xf32>
    %636 = tpu.matmul %633, %635, %cst_276 {dimension_numbers = #tpu.dot_dimension_numbers<[1], [0], [0], [1], [0, 0, 1, 1], [], []>} : vector<8x128xbf16>, vector<128x384xbf16>, vector<8x384xf32> -> vector<8x384xf32>
    %c3_277 = arith.constant 3 : index
    %c0_278 = arith.constant 0 : index
    %c0_279 = arith.constant 0 : index
    %637 = vector.load %arg6[%c3_277, %c0_278, %c0_279] : memref<4x1x384xf32, #tpu.memory_space<vmem>>, vector<1x1x384xf32>
    %638 = vector.shape_cast %637 : vector<1x1x384xf32> to vector<1x384xf32>
    %639 = vector.broadcast %638 : vector<1x384xf32> to vector<8x384xf32>
    %640 = arith.addf %636, %639 : vector<8x384xf32>
    %c0_280 = arith.constant 0 : index
    %c0_281 = arith.constant 0 : index
    %641 = vector.load %arg9[%c0_280, %c0_281] : memref<64x384xf32, #tpu.memory_space<vmem>>, vector<8x384xf32>
    %c56_282 = arith.constant 56 : index
    %c0_283 = arith.constant 0 : index
    %642 = vector.load %arg10[%c56_282, %c0_283] : memref<64x384xf32, #tpu.memory_space<vmem>>, vector<8x384xf32>
    %643 = vector.extract_strided_slice %641 {offsets = [0, 0], sizes = [8, 128], strides = [1, 1]} : vector<8x384xf32> to vector<8x128xf32>
    %644 = vector.extract_strided_slice %632 {offsets = [0, 0], sizes = [8, 128], strides = [1, 1]} : vector<8x384xf32> to vector<8x128xf32>
    %645 = arith.addf %643, %644 : vector<8x128xf32>
    %646 = arith.negf %645 : vector<8x128xf32>
    %647 = math.exp %646 : vector<8x128xf32>
    %cst_284 = arith.constant 1.000000e+00 : f32
    %648 = vector.broadcast %cst_284 : f32 to vector<8x128xf32>
    %649 = arith.addf %648, %647 : vector<8x128xf32>
    %650 = arith.divf %648, %649 : vector<8x128xf32>
    %651 = vector.extract_strided_slice %641 {offsets = [0, 128], sizes = [8, 128], strides = [1, 1]} : vector<8x384xf32> to vector<8x128xf32>
    %652 = vector.extract_strided_slice %632 {offsets = [0, 128], sizes = [8, 128], strides = [1, 1]} : vector<8x384xf32> to vector<8x128xf32>
    %653 = arith.addf %651, %652 : vector<8x128xf32>
    %654 = arith.negf %653 : vector<8x128xf32>
    %655 = math.exp %654 : vector<8x128xf32>
    %cst_285 = arith.constant 1.000000e+00 : f32
    %656 = vector.broadcast %cst_285 : f32 to vector<8x128xf32>
    %657 = arith.addf %656, %655 : vector<8x128xf32>
    %658 = arith.divf %656, %657 : vector<8x128xf32>
    %659 = vector.extract_strided_slice %641 {offsets = [0, 256], sizes = [8, 128], strides = [1, 1]} : vector<8x384xf32> to vector<8x128xf32>
    %660 = vector.extract_strided_slice %632 {offsets = [0, 256], sizes = [8, 128], strides = [1, 1]} : vector<8x384xf32> to vector<8x128xf32>
    %661 = arith.mulf %650, %660 : vector<8x128xf32>
    %662 = arith.addf %659, %661 : vector<8x128xf32>
    %663 = math.tanh %662 : vector<8x128xf32>
    %cst_286 = arith.constant 1.000000e+00 : f32
    %664 = vector.broadcast %cst_286 : f32 to vector<8x128xf32>
    %665 = arith.subf %664, %658 : vector<8x128xf32>
    %666 = arith.mulf %665, %663 : vector<8x128xf32>
    %667 = arith.mulf %658, %623 : vector<8x128xf32>
    %668 = arith.addf %666, %667 : vector<8x128xf32>
    %669 = vector.extract_strided_slice %642 {offsets = [0, 0], sizes = [8, 128], strides = [1, 1]} : vector<8x384xf32> to vector<8x128xf32>
    %670 = vector.extract_strided_slice %640 {offsets = [0, 0], sizes = [8, 128], strides = [1, 1]} : vector<8x384xf32> to vector<8x128xf32>
    %671 = arith.addf %669, %670 : vector<8x128xf32>
    %672 = arith.negf %671 : vector<8x128xf32>
    %673 = math.exp %672 : vector<8x128xf32>
    %cst_287 = arith.constant 1.000000e+00 : f32
    %674 = vector.broadcast %cst_287 : f32 to vector<8x128xf32>
    %675 = arith.addf %674, %673 : vector<8x128xf32>
    %676 = arith.divf %674, %675 : vector<8x128xf32>
    %677 = vector.extract_strided_slice %642 {offsets = [0, 128], sizes = [8, 128], strides = [1, 1]} : vector<8x384xf32> to vector<8x128xf32>
    %678 = vector.extract_strided_slice %640 {offsets = [0, 128], sizes = [8, 128], strides = [1, 1]} : vector<8x384xf32> to vector<8x128xf32>
    %679 = arith.addf %677, %678 : vector<8x128xf32>
    %680 = arith.negf %679 : vector<8x128xf32>
    %681 = math.exp %680 : vector<8x128xf32>
    %cst_288 = arith.constant 1.000000e+00 : f32
    %682 = vector.broadcast %cst_288 : f32 to vector<8x128xf32>
    %683 = arith.addf %682, %681 : vector<8x128xf32>
    %684 = arith.divf %682, %683 : vector<8x128xf32>
    %685 = vector.extract_strided_slice %642 {offsets = [0, 256], sizes = [8, 128], strides = [1, 1]} : vector<8x384xf32> to vector<8x128xf32>
    %686 = vector.extract_strided_slice %640 {offsets = [0, 256], sizes = [8, 128], strides = [1, 1]} : vector<8x384xf32> to vector<8x128xf32>
    %687 = arith.mulf %676, %686 : vector<8x128xf32>
    %688 = arith.addf %685, %687 : vector<8x128xf32>
    %689 = math.tanh %688 : vector<8x128xf32>
    %cst_289 = arith.constant 1.000000e+00 : f32
    %690 = vector.broadcast %cst_289 : f32 to vector<8x128xf32>
    %691 = arith.subf %690, %684 : vector<8x128xf32>
    %692 = arith.mulf %691, %689 : vector<8x128xf32>
    %693 = arith.mulf %684, %624 : vector<8x128xf32>
    %694 = arith.addf %692, %693 : vector<8x128xf32>
    %695 = arith.truncf %668 : vector<8x128xf32> to vector<8x128xbf16>
    %c2_290 = arith.constant 2 : index
    %c0_291 = arith.constant 0 : index
    %c0_292 = arith.constant 0 : index
    %696 = vector.load %arg2[%c2_290, %c0_291, %c0_292] : memref<4x128x384xbf16, #tpu.memory_space<vmem>>, vector<1x128x384xbf16>
    %697 = vector.shape_cast %696 : vector<1x128x384xbf16> to vector<128x384xbf16>
    %cst_293 = arith.constant dense<0.000000e+00> : vector<8x384xf32>
    %698 = tpu.matmul %695, %697, %cst_293 {dimension_numbers = #tpu.dot_dimension_numbers<[1], [0], [0], [1], [0, 0, 1, 1], [], []>} : vector<8x128xbf16>, vector<128x384xbf16>, vector<8x384xf32> -> vector<8x384xf32>
    %c2_294 = arith.constant 2 : index
    %c0_295 = arith.constant 0 : index
    %c0_296 = arith.constant 0 : index
    %699 = vector.load %arg6[%c2_294, %c0_295, %c0_296] : memref<4x1x384xf32, #tpu.memory_space<vmem>>, vector<1x1x384xf32>
    %700 = vector.shape_cast %699 : vector<1x1x384xf32> to vector<1x384xf32>
    %701 = vector.broadcast %700 : vector<1x384xf32> to vector<8x384xf32>
    %702 = arith.addf %698, %701 : vector<8x384xf32>
    %703 = arith.truncf %694 : vector<8x128xf32> to vector<8x128xbf16>
    %c3_297 = arith.constant 3 : index
    %c0_298 = arith.constant 0 : index
    %c0_299 = arith.constant 0 : index
    %704 = vector.load %arg2[%c3_297, %c0_298, %c0_299] : memref<4x128x384xbf16, #tpu.memory_space<vmem>>, vector<1x128x384xbf16>
    %705 = vector.shape_cast %704 : vector<1x128x384xbf16> to vector<128x384xbf16>
    %cst_300 = arith.constant dense<0.000000e+00> : vector<8x384xf32>
    %706 = tpu.matmul %703, %705, %cst_300 {dimension_numbers = #tpu.dot_dimension_numbers<[1], [0], [0], [1], [0, 0, 1, 1], [], []>} : vector<8x128xbf16>, vector<128x384xbf16>, vector<8x384xf32> -> vector<8x384xf32>
    %c3_301 = arith.constant 3 : index
    %c0_302 = arith.constant 0 : index
    %c0_303 = arith.constant 0 : index
    %707 = vector.load %arg6[%c3_301, %c0_302, %c0_303] : memref<4x1x384xf32, #tpu.memory_space<vmem>>, vector<1x1x384xf32>
    %708 = vector.shape_cast %707 : vector<1x1x384xf32> to vector<1x384xf32>
    %709 = vector.broadcast %708 : vector<1x384xf32> to vector<8x384xf32>
    %710 = arith.addf %706, %709 : vector<8x384xf32>
    %c8_304 = arith.constant 8 : index
    %c0_305 = arith.constant 0 : index
    %711 = vector.load %arg9[%c8_304, %c0_305] : memref<64x384xf32, #tpu.memory_space<vmem>>, vector<8x384xf32>
    %c48_306 = arith.constant 48 : index
    %c0_307 = arith.constant 0 : index
    %712 = vector.load %arg10[%c48_306, %c0_307] : memref<64x384xf32, #tpu.memory_space<vmem>>, vector<8x384xf32>
    %713 = vector.extract_strided_slice %711 {offsets = [0, 0], sizes = [8, 128], strides = [1, 1]} : vector<8x384xf32> to vector<8x128xf32>
    %714 = vector.extract_strided_slice %702 {offsets = [0, 0], sizes = [8, 128], strides = [1, 1]} : vector<8x384xf32> to vector<8x128xf32>
    %715 = arith.addf %713, %714 : vector<8x128xf32>
    %716 = arith.negf %715 : vector<8x128xf32>
    %717 = math.exp %716 : vector<8x128xf32>
    %cst_308 = arith.constant 1.000000e+00 : f32
    %718 = vector.broadcast %cst_308 : f32 to vector<8x128xf32>
    %719 = arith.addf %718, %717 : vector<8x128xf32>
    %720 = arith.divf %718, %719 : vector<8x128xf32>
    %721 = vector.extract_strided_slice %711 {offsets = [0, 128], sizes = [8, 128], strides = [1, 1]} : vector<8x384xf32> to vector<8x128xf32>
    %722 = vector.extract_strided_slice %702 {offsets = [0, 128], sizes = [8, 128], strides = [1, 1]} : vector<8x384xf32> to vector<8x128xf32>
    %723 = arith.addf %721, %722 : vector<8x128xf32>
    %724 = arith.negf %723 : vector<8x128xf32>
    %725 = math.exp %724 : vector<8x128xf32>
    %cst_309 = arith.constant 1.000000e+00 : f32
    %726 = vector.broadcast %cst_309 : f32 to vector<8x128xf32>
    %727 = arith.addf %726, %725 : vector<8x128xf32>
    %728 = arith.divf %726, %727 : vector<8x128xf32>
    %729 = vector.extract_strided_slice %711 {offsets = [0, 256], sizes = [8, 128], strides = [1, 1]} : vector<8x384xf32> to vector<8x128xf32>
    %730 = vector.extract_strided_slice %702 {offsets = [0, 256], sizes = [8, 128], strides = [1, 1]} : vector<8x384xf32> to vector<8x128xf32>
    %731 = arith.mulf %720, %730 : vector<8x128xf32>
    %732 = arith.addf %729, %731 : vector<8x128xf32>
    %733 = math.tanh %732 : vector<8x128xf32>
    %cst_310 = arith.constant 1.000000e+00 : f32
    %734 = vector.broadcast %cst_310 : f32 to vector<8x128xf32>
    %735 = arith.subf %734, %728 : vector<8x128xf32>
    %736 = arith.mulf %735, %733 : vector<8x128xf32>
    %737 = arith.mulf %728, %668 : vector<8x128xf32>
    %738 = arith.addf %736, %737 : vector<8x128xf32>
    %739 = vector.extract_strided_slice %712 {offsets = [0, 0], sizes = [8, 128], strides = [1, 1]} : vector<8x384xf32> to vector<8x128xf32>
    %740 = vector.extract_strided_slice %710 {offsets = [0, 0], sizes = [8, 128], strides = [1, 1]} : vector<8x384xf32> to vector<8x128xf32>
    %741 = arith.addf %739, %740 : vector<8x128xf32>
    %742 = arith.negf %741 : vector<8x128xf32>
    %743 = math.exp %742 : vector<8x128xf32>
    %cst_311 = arith.constant 1.000000e+00 : f32
    %744 = vector.broadcast %cst_311 : f32 to vector<8x128xf32>
    %745 = arith.addf %744, %743 : vector<8x128xf32>
    %746 = arith.divf %744, %745 : vector<8x128xf32>
    %747 = vector.extract_strided_slice %712 {offsets = [0, 128], sizes = [8, 128], strides = [1, 1]} : vector<8x384xf32> to vector<8x128xf32>
    %748 = vector.extract_strided_slice %710 {offsets = [0, 128], sizes = [8, 128], strides = [1, 1]} : vector<8x384xf32> to vector<8x128xf32>
    %749 = arith.addf %747, %748 : vector<8x128xf32>
    %750 = arith.negf %749 : vector<8x128xf32>
    %751 = math.exp %750 : vector<8x128xf32>
    %cst_312 = arith.constant 1.000000e+00 : f32
    %752 = vector.broadcast %cst_312 : f32 to vector<8x128xf32>
    %753 = arith.addf %752, %751 : vector<8x128xf32>
    %754 = arith.divf %752, %753 : vector<8x128xf32>
    %755 = vector.extract_strided_slice %712 {offsets = [0, 256], sizes = [8, 128], strides = [1, 1]} : vector<8x384xf32> to vector<8x128xf32>
    %756 = vector.extract_strided_slice %710 {offsets = [0, 256], sizes = [8, 128], strides = [1, 1]} : vector<8x384xf32> to vector<8x128xf32>
    %757 = arith.mulf %746, %756 : vector<8x128xf32>
    %758 = arith.addf %755, %757 : vector<8x128xf32>
    %759 = math.tanh %758 : vector<8x128xf32>
    %cst_313 = arith.constant 1.000000e+00 : f32
    %760 = vector.broadcast %cst_313 : f32 to vector<8x128xf32>
    %761 = arith.subf %760, %754 : vector<8x128xf32>
    %762 = arith.mulf %761, %759 : vector<8x128xf32>
    %763 = arith.mulf %754, %694 : vector<8x128xf32>
    %764 = arith.addf %762, %763 : vector<8x128xf32>
    %765 = arith.truncf %738 : vector<8x128xf32> to vector<8x128xbf16>
    %c2_314 = arith.constant 2 : index
    %c0_315 = arith.constant 0 : index
    %c0_316 = arith.constant 0 : index
    %766 = vector.load %arg2[%c2_314, %c0_315, %c0_316] : memref<4x128x384xbf16, #tpu.memory_space<vmem>>, vector<1x128x384xbf16>
    %767 = vector.shape_cast %766 : vector<1x128x384xbf16> to vector<128x384xbf16>
    %cst_317 = arith.constant dense<0.000000e+00> : vector<8x384xf32>
    %768 = tpu.matmul %765, %767, %cst_317 {dimension_numbers = #tpu.dot_dimension_numbers<[1], [0], [0], [1], [0, 0, 1, 1], [], []>} : vector<8x128xbf16>, vector<128x384xbf16>, vector<8x384xf32> -> vector<8x384xf32>
    %c2_318 = arith.constant 2 : index
    %c0_319 = arith.constant 0 : index
    %c0_320 = arith.constant 0 : index
    %769 = vector.load %arg6[%c2_318, %c0_319, %c0_320] : memref<4x1x384xf32, #tpu.memory_space<vmem>>, vector<1x1x384xf32>
    %770 = vector.shape_cast %769 : vector<1x1x384xf32> to vector<1x384xf32>
    %771 = vector.broadcast %770 : vector<1x384xf32> to vector<8x384xf32>
    %772 = arith.addf %768, %771 : vector<8x384xf32>
    %773 = arith.truncf %764 : vector<8x128xf32> to vector<8x128xbf16>
    %c3_321 = arith.constant 3 : index
    %c0_322 = arith.constant 0 : index
    %c0_323 = arith.constant 0 : index
    %774 = vector.load %arg2[%c3_321, %c0_322, %c0_323] : memref<4x128x384xbf16, #tpu.memory_space<vmem>>, vector<1x128x384xbf16>
    %775 = vector.shape_cast %774 : vector<1x128x384xbf16> to vector<128x384xbf16>
    %cst_324 = arith.constant dense<0.000000e+00> : vector<8x384xf32>
    %776 = tpu.matmul %773, %775, %cst_324 {dimension_numbers = #tpu.dot_dimension_numbers<[1], [0], [0], [1], [0, 0, 1, 1], [], []>} : vector<8x128xbf16>, vector<128x384xbf16>, vector<8x384xf32> -> vector<8x384xf32>
    %c3_325 = arith.constant 3 : index
    %c0_326 = arith.constant 0 : index
    %c0_327 = arith.constant 0 : index
    %777 = vector.load %arg6[%c3_325, %c0_326, %c0_327] : memref<4x1x384xf32, #tpu.memory_space<vmem>>, vector<1x1x384xf32>
    %778 = vector.shape_cast %777 : vector<1x1x384xf32> to vector<1x384xf32>
    %779 = vector.broadcast %778 : vector<1x384xf32> to vector<8x384xf32>
    %780 = arith.addf %776, %779 : vector<8x384xf32>
    %c16_328 = arith.constant 16 : index
    %c0_329 = arith.constant 0 : index
    %781 = vector.load %arg9[%c16_328, %c0_329] : memref<64x384xf32, #tpu.memory_space<vmem>>, vector<8x384xf32>
    %c40_330 = arith.constant 40 : index
    %c0_331 = arith.constant 0 : index
    %782 = vector.load %arg10[%c40_330, %c0_331] : memref<64x384xf32, #tpu.memory_space<vmem>>, vector<8x384xf32>
    %783 = vector.extract_strided_slice %781 {offsets = [0, 0], sizes = [8, 128], strides = [1, 1]} : vector<8x384xf32> to vector<8x128xf32>
    %784 = vector.extract_strided_slice %772 {offsets = [0, 0], sizes = [8, 128], strides = [1, 1]} : vector<8x384xf32> to vector<8x128xf32>
    %785 = arith.addf %783, %784 : vector<8x128xf32>
    %786 = arith.negf %785 : vector<8x128xf32>
    %787 = math.exp %786 : vector<8x128xf32>
    %cst_332 = arith.constant 1.000000e+00 : f32
    %788 = vector.broadcast %cst_332 : f32 to vector<8x128xf32>
    %789 = arith.addf %788, %787 : vector<8x128xf32>
    %790 = arith.divf %788, %789 : vector<8x128xf32>
    %791 = vector.extract_strided_slice %781 {offsets = [0, 128], sizes = [8, 128], strides = [1, 1]} : vector<8x384xf32> to vector<8x128xf32>
    %792 = vector.extract_strided_slice %772 {offsets = [0, 128], sizes = [8, 128], strides = [1, 1]} : vector<8x384xf32> to vector<8x128xf32>
    %793 = arith.addf %791, %792 : vector<8x128xf32>
    %794 = arith.negf %793 : vector<8x128xf32>
    %795 = math.exp %794 : vector<8x128xf32>
    %cst_333 = arith.constant 1.000000e+00 : f32
    %796 = vector.broadcast %cst_333 : f32 to vector<8x128xf32>
    %797 = arith.addf %796, %795 : vector<8x128xf32>
    %798 = arith.divf %796, %797 : vector<8x128xf32>
    %799 = vector.extract_strided_slice %781 {offsets = [0, 256], sizes = [8, 128], strides = [1, 1]} : vector<8x384xf32> to vector<8x128xf32>
    %800 = vector.extract_strided_slice %772 {offsets = [0, 256], sizes = [8, 128], strides = [1, 1]} : vector<8x384xf32> to vector<8x128xf32>
    %801 = arith.mulf %790, %800 : vector<8x128xf32>
    %802 = arith.addf %799, %801 : vector<8x128xf32>
    %803 = math.tanh %802 : vector<8x128xf32>
    %cst_334 = arith.constant 1.000000e+00 : f32
    %804 = vector.broadcast %cst_334 : f32 to vector<8x128xf32>
    %805 = arith.subf %804, %798 : vector<8x128xf32>
    %806 = arith.mulf %805, %803 : vector<8x128xf32>
    %807 = arith.mulf %798, %738 : vector<8x128xf32>
    %808 = arith.addf %806, %807 : vector<8x128xf32>
    %809 = vector.extract_strided_slice %782 {offsets = [0, 0], sizes = [8, 128], strides = [1, 1]} : vector<8x384xf32> to vector<8x128xf32>
    %810 = vector.extract_strided_slice %780 {offsets = [0, 0], sizes = [8, 128], strides = [1, 1]} : vector<8x384xf32> to vector<8x128xf32>
    %811 = arith.addf %809, %810 : vector<8x128xf32>
    %812 = arith.negf %811 : vector<8x128xf32>
    %813 = math.exp %812 : vector<8x128xf32>
    %cst_335 = arith.constant 1.000000e+00 : f32
    %814 = vector.broadcast %cst_335 : f32 to vector<8x128xf32>
    %815 = arith.addf %814, %813 : vector<8x128xf32>
    %816 = arith.divf %814, %815 : vector<8x128xf32>
    %817 = vector.extract_strided_slice %782 {offsets = [0, 128], sizes = [8, 128], strides = [1, 1]} : vector<8x384xf32> to vector<8x128xf32>
    %818 = vector.extract_strided_slice %780 {offsets = [0, 128], sizes = [8, 128], strides = [1, 1]} : vector<8x384xf32> to vector<8x128xf32>
    %819 = arith.addf %817, %818 : vector<8x128xf32>
    %820 = arith.negf %819 : vector<8x128xf32>
    %821 = math.exp %820 : vector<8x128xf32>
    %cst_336 = arith.constant 1.000000e+00 : f32
    %822 = vector.broadcast %cst_336 : f32 to vector<8x128xf32>
    %823 = arith.addf %822, %821 : vector<8x128xf32>
    %824 = arith.divf %822, %823 : vector<8x128xf32>
    %825 = vector.extract_strided_slice %782 {offsets = [0, 256], sizes = [8, 128], strides = [1, 1]} : vector<8x384xf32> to vector<8x128xf32>
    %826 = vector.extract_strided_slice %780 {offsets = [0, 256], sizes = [8, 128], strides = [1, 1]} : vector<8x384xf32> to vector<8x128xf32>
    %827 = arith.mulf %816, %826 : vector<8x128xf32>
    %828 = arith.addf %825, %827 : vector<8x128xf32>
    %829 = math.tanh %828 : vector<8x128xf32>
    %cst_337 = arith.constant 1.000000e+00 : f32
    %830 = vector.broadcast %cst_337 : f32 to vector<8x128xf32>
    %831 = arith.subf %830, %824 : vector<8x128xf32>
    %832 = arith.mulf %831, %829 : vector<8x128xf32>
    %833 = arith.mulf %824, %764 : vector<8x128xf32>
    %834 = arith.addf %832, %833 : vector<8x128xf32>
    %835 = arith.truncf %808 : vector<8x128xf32> to vector<8x128xbf16>
    %c2_338 = arith.constant 2 : index
    %c0_339 = arith.constant 0 : index
    %c0_340 = arith.constant 0 : index
    %836 = vector.load %arg2[%c2_338, %c0_339, %c0_340] : memref<4x128x384xbf16, #tpu.memory_space<vmem>>, vector<1x128x384xbf16>
    %837 = vector.shape_cast %836 : vector<1x128x384xbf16> to vector<128x384xbf16>
    %cst_341 = arith.constant dense<0.000000e+00> : vector<8x384xf32>
    %838 = tpu.matmul %835, %837, %cst_341 {dimension_numbers = #tpu.dot_dimension_numbers<[1], [0], [0], [1], [0, 0, 1, 1], [], []>} : vector<8x128xbf16>, vector<128x384xbf16>, vector<8x384xf32> -> vector<8x384xf32>
    %c2_342 = arith.constant 2 : index
    %c0_343 = arith.constant 0 : index
    %c0_344 = arith.constant 0 : index
    %839 = vector.load %arg6[%c2_342, %c0_343, %c0_344] : memref<4x1x384xf32, #tpu.memory_space<vmem>>, vector<1x1x384xf32>
    %840 = vector.shape_cast %839 : vector<1x1x384xf32> to vector<1x384xf32>
    %841 = vector.broadcast %840 : vector<1x384xf32> to vector<8x384xf32>
    %842 = arith.addf %838, %841 : vector<8x384xf32>
    %843 = arith.truncf %834 : vector<8x128xf32> to vector<8x128xbf16>
    %c3_345 = arith.constant 3 : index
    %c0_346 = arith.constant 0 : index
    %c0_347 = arith.constant 0 : index
    %844 = vector.load %arg2[%c3_345, %c0_346, %c0_347] : memref<4x128x384xbf16, #tpu.memory_space<vmem>>, vector<1x128x384xbf16>
    %845 = vector.shape_cast %844 : vector<1x128x384xbf16> to vector<128x384xbf16>
    %cst_348 = arith.constant dense<0.000000e+00> : vector<8x384xf32>
    %846 = tpu.matmul %843, %845, %cst_348 {dimension_numbers = #tpu.dot_dimension_numbers<[1], [0], [0], [1], [0, 0, 1, 1], [], []>} : vector<8x128xbf16>, vector<128x384xbf16>, vector<8x384xf32> -> vector<8x384xf32>
    %c3_349 = arith.constant 3 : index
    %c0_350 = arith.constant 0 : index
    %c0_351 = arith.constant 0 : index
    %847 = vector.load %arg6[%c3_349, %c0_350, %c0_351] : memref<4x1x384xf32, #tpu.memory_space<vmem>>, vector<1x1x384xf32>
    %848 = vector.shape_cast %847 : vector<1x1x384xf32> to vector<1x384xf32>
    %849 = vector.broadcast %848 : vector<1x384xf32> to vector<8x384xf32>
    %850 = arith.addf %846, %849 : vector<8x384xf32>
    %c24_352 = arith.constant 24 : index
    %c0_353 = arith.constant 0 : index
    %851 = vector.load %arg9[%c24_352, %c0_353] : memref<64x384xf32, #tpu.memory_space<vmem>>, vector<8x384xf32>
    %c32_354 = arith.constant 32 : index
    %c0_355 = arith.constant 0 : index
    %852 = vector.load %arg10[%c32_354, %c0_355] : memref<64x384xf32, #tpu.memory_space<vmem>>, vector<8x384xf32>
    %853 = vector.extract_strided_slice %851 {offsets = [0, 0], sizes = [8, 128], strides = [1, 1]} : vector<8x384xf32> to vector<8x128xf32>
    %854 = vector.extract_strided_slice %842 {offsets = [0, 0], sizes = [8, 128], strides = [1, 1]} : vector<8x384xf32> to vector<8x128xf32>
    %855 = arith.addf %853, %854 : vector<8x128xf32>
    %856 = arith.negf %855 : vector<8x128xf32>
    %857 = math.exp %856 : vector<8x128xf32>
    %cst_356 = arith.constant 1.000000e+00 : f32
    %858 = vector.broadcast %cst_356 : f32 to vector<8x128xf32>
    %859 = arith.addf %858, %857 : vector<8x128xf32>
    %860 = arith.divf %858, %859 : vector<8x128xf32>
    %861 = vector.extract_strided_slice %851 {offsets = [0, 128], sizes = [8, 128], strides = [1, 1]} : vector<8x384xf32> to vector<8x128xf32>
    %862 = vector.extract_strided_slice %842 {offsets = [0, 128], sizes = [8, 128], strides = [1, 1]} : vector<8x384xf32> to vector<8x128xf32>
    %863 = arith.addf %861, %862 : vector<8x128xf32>
    %864 = arith.negf %863 : vector<8x128xf32>
    %865 = math.exp %864 : vector<8x128xf32>
    %cst_357 = arith.constant 1.000000e+00 : f32
    %866 = vector.broadcast %cst_357 : f32 to vector<8x128xf32>
    %867 = arith.addf %866, %865 : vector<8x128xf32>
    %868 = arith.divf %866, %867 : vector<8x128xf32>
    %869 = vector.extract_strided_slice %851 {offsets = [0, 256], sizes = [8, 128], strides = [1, 1]} : vector<8x384xf32> to vector<8x128xf32>
    %870 = vector.extract_strided_slice %842 {offsets = [0, 256], sizes = [8, 128], strides = [1, 1]} : vector<8x384xf32> to vector<8x128xf32>
    %871 = arith.mulf %860, %870 : vector<8x128xf32>
    %872 = arith.addf %869, %871 : vector<8x128xf32>
    %873 = math.tanh %872 : vector<8x128xf32>
    %cst_358 = arith.constant 1.000000e+00 : f32
    %874 = vector.broadcast %cst_358 : f32 to vector<8x128xf32>
    %875 = arith.subf %874, %868 : vector<8x128xf32>
    %876 = arith.mulf %875, %873 : vector<8x128xf32>
    %877 = arith.mulf %868, %808 : vector<8x128xf32>
    %878 = arith.addf %876, %877 : vector<8x128xf32>
    %879 = vector.extract_strided_slice %852 {offsets = [0, 0], sizes = [8, 128], strides = [1, 1]} : vector<8x384xf32> to vector<8x128xf32>
    %880 = vector.extract_strided_slice %850 {offsets = [0, 0], sizes = [8, 128], strides = [1, 1]} : vector<8x384xf32> to vector<8x128xf32>
    %881 = arith.addf %879, %880 : vector<8x128xf32>
    %882 = arith.negf %881 : vector<8x128xf32>
    %883 = math.exp %882 : vector<8x128xf32>
    %cst_359 = arith.constant 1.000000e+00 : f32
    %884 = vector.broadcast %cst_359 : f32 to vector<8x128xf32>
    %885 = arith.addf %884, %883 : vector<8x128xf32>
    %886 = arith.divf %884, %885 : vector<8x128xf32>
    %887 = vector.extract_strided_slice %852 {offsets = [0, 128], sizes = [8, 128], strides = [1, 1]} : vector<8x384xf32> to vector<8x128xf32>
    %888 = vector.extract_strided_slice %850 {offsets = [0, 128], sizes = [8, 128], strides = [1, 1]} : vector<8x384xf32> to vector<8x128xf32>
    %889 = arith.addf %887, %888 : vector<8x128xf32>
    %890 = arith.negf %889 : vector<8x128xf32>
    %891 = math.exp %890 : vector<8x128xf32>
    %cst_360 = arith.constant 1.000000e+00 : f32
    %892 = vector.broadcast %cst_360 : f32 to vector<8x128xf32>
    %893 = arith.addf %892, %891 : vector<8x128xf32>
    %894 = arith.divf %892, %893 : vector<8x128xf32>
    %895 = vector.extract_strided_slice %852 {offsets = [0, 256], sizes = [8, 128], strides = [1, 1]} : vector<8x384xf32> to vector<8x128xf32>
    %896 = vector.extract_strided_slice %850 {offsets = [0, 256], sizes = [8, 128], strides = [1, 1]} : vector<8x384xf32> to vector<8x128xf32>
    %897 = arith.mulf %886, %896 : vector<8x128xf32>
    %898 = arith.addf %895, %897 : vector<8x128xf32>
    %899 = math.tanh %898 : vector<8x128xf32>
    %cst_361 = arith.constant 1.000000e+00 : f32
    %900 = vector.broadcast %cst_361 : f32 to vector<8x128xf32>
    %901 = arith.subf %900, %894 : vector<8x128xf32>
    %902 = arith.mulf %901, %899 : vector<8x128xf32>
    %903 = arith.mulf %894, %834 : vector<8x128xf32>
    %904 = arith.addf %902, %903 : vector<8x128xf32>
    %905 = arith.truncf %878 : vector<8x128xf32> to vector<8x128xbf16>
    %c2_362 = arith.constant 2 : index
    %c0_363 = arith.constant 0 : index
    %c0_364 = arith.constant 0 : index
    %906 = vector.load %arg2[%c2_362, %c0_363, %c0_364] : memref<4x128x384xbf16, #tpu.memory_space<vmem>>, vector<1x128x384xbf16>
    %907 = vector.shape_cast %906 : vector<1x128x384xbf16> to vector<128x384xbf16>
    %cst_365 = arith.constant dense<0.000000e+00> : vector<8x384xf32>
    %908 = tpu.matmul %905, %907, %cst_365 {dimension_numbers = #tpu.dot_dimension_numbers<[1], [0], [0], [1], [0, 0, 1, 1], [], []>} : vector<8x128xbf16>, vector<128x384xbf16>, vector<8x384xf32> -> vector<8x384xf32>
    %c2_366 = arith.constant 2 : index
    %c0_367 = arith.constant 0 : index
    %c0_368 = arith.constant 0 : index
    %909 = vector.load %arg6[%c2_366, %c0_367, %c0_368] : memref<4x1x384xf32, #tpu.memory_space<vmem>>, vector<1x1x384xf32>
    %910 = vector.shape_cast %909 : vector<1x1x384xf32> to vector<1x384xf32>
    %911 = vector.broadcast %910 : vector<1x384xf32> to vector<8x384xf32>
    %912 = arith.addf %908, %911 : vector<8x384xf32>
    %913 = arith.truncf %904 : vector<8x128xf32> to vector<8x128xbf16>
    %c3_369 = arith.constant 3 : index
    %c0_370 = arith.constant 0 : index
    %c0_371 = arith.constant 0 : index
    %914 = vector.load %arg2[%c3_369, %c0_370, %c0_371] : memref<4x128x384xbf16, #tpu.memory_space<vmem>>, vector<1x128x384xbf16>
    %915 = vector.shape_cast %914 : vector<1x128x384xbf16> to vector<128x384xbf16>
    %cst_372 = arith.constant dense<0.000000e+00> : vector<8x384xf32>
    %916 = tpu.matmul %913, %915, %cst_372 {dimension_numbers = #tpu.dot_dimension_numbers<[1], [0], [0], [1], [0, 0, 1, 1], [], []>} : vector<8x128xbf16>, vector<128x384xbf16>, vector<8x384xf32> -> vector<8x384xf32>
    %c3_373 = arith.constant 3 : index
    %c0_374 = arith.constant 0 : index
    %c0_375 = arith.constant 0 : index
    %917 = vector.load %arg6[%c3_373, %c0_374, %c0_375] : memref<4x1x384xf32, #tpu.memory_space<vmem>>, vector<1x1x384xf32>
    %918 = vector.shape_cast %917 : vector<1x1x384xf32> to vector<1x384xf32>
    %919 = vector.broadcast %918 : vector<1x384xf32> to vector<8x384xf32>
    %920 = arith.addf %916, %919 : vector<8x384xf32>
    %c32_376 = arith.constant 32 : index
    %c0_377 = arith.constant 0 : index
    %921 = vector.load %arg9[%c32_376, %c0_377] : memref<64x384xf32, #tpu.memory_space<vmem>>, vector<8x384xf32>
    %c24_378 = arith.constant 24 : index
    %c0_379 = arith.constant 0 : index
    %922 = vector.load %arg10[%c24_378, %c0_379] : memref<64x384xf32, #tpu.memory_space<vmem>>, vector<8x384xf32>
    %923 = vector.extract_strided_slice %921 {offsets = [0, 0], sizes = [8, 128], strides = [1, 1]} : vector<8x384xf32> to vector<8x128xf32>
    %924 = vector.extract_strided_slice %912 {offsets = [0, 0], sizes = [8, 128], strides = [1, 1]} : vector<8x384xf32> to vector<8x128xf32>
    %925 = arith.addf %923, %924 : vector<8x128xf32>
    %926 = arith.negf %925 : vector<8x128xf32>
    %927 = math.exp %926 : vector<8x128xf32>
    %cst_380 = arith.constant 1.000000e+00 : f32
    %928 = vector.broadcast %cst_380 : f32 to vector<8x128xf32>
    %929 = arith.addf %928, %927 : vector<8x128xf32>
    %930 = arith.divf %928, %929 : vector<8x128xf32>
    %931 = vector.extract_strided_slice %921 {offsets = [0, 128], sizes = [8, 128], strides = [1, 1]} : vector<8x384xf32> to vector<8x128xf32>
    %932 = vector.extract_strided_slice %912 {offsets = [0, 128], sizes = [8, 128], strides = [1, 1]} : vector<8x384xf32> to vector<8x128xf32>
    %933 = arith.addf %931, %932 : vector<8x128xf32>
    %934 = arith.negf %933 : vector<8x128xf32>
    %935 = math.exp %934 : vector<8x128xf32>
    %cst_381 = arith.constant 1.000000e+00 : f32
    %936 = vector.broadcast %cst_381 : f32 to vector<8x128xf32>
    %937 = arith.addf %936, %935 : vector<8x128xf32>
    %938 = arith.divf %936, %937 : vector<8x128xf32>
    %939 = vector.extract_strided_slice %921 {offsets = [0, 256], sizes = [8, 128], strides = [1, 1]} : vector<8x384xf32> to vector<8x128xf32>
    %940 = vector.extract_strided_slice %912 {offsets = [0, 256], sizes = [8, 128], strides = [1, 1]} : vector<8x384xf32> to vector<8x128xf32>
    %941 = arith.mulf %930, %940 : vector<8x128xf32>
    %942 = arith.addf %939, %941 : vector<8x128xf32>
    %943 = math.tanh %942 : vector<8x128xf32>
    %cst_382 = arith.constant 1.000000e+00 : f32
    %944 = vector.broadcast %cst_382 : f32 to vector<8x128xf32>
    %945 = arith.subf %944, %938 : vector<8x128xf32>
    %946 = arith.mulf %945, %943 : vector<8x128xf32>
    %947 = arith.mulf %938, %878 : vector<8x128xf32>
    %948 = arith.addf %946, %947 : vector<8x128xf32>
    %949 = vector.extract_strided_slice %922 {offsets = [0, 0], sizes = [8, 128], strides = [1, 1]} : vector<8x384xf32> to vector<8x128xf32>
    %950 = vector.extract_strided_slice %920 {offsets = [0, 0], sizes = [8, 128], strides = [1, 1]} : vector<8x384xf32> to vector<8x128xf32>
    %951 = arith.addf %949, %950 : vector<8x128xf32>
    %952 = arith.negf %951 : vector<8x128xf32>
    %953 = math.exp %952 : vector<8x128xf32>
    %cst_383 = arith.constant 1.000000e+00 : f32
    %954 = vector.broadcast %cst_383 : f32 to vector<8x128xf32>
    %955 = arith.addf %954, %953 : vector<8x128xf32>
    %956 = arith.divf %954, %955 : vector<8x128xf32>
    %957 = vector.extract_strided_slice %922 {offsets = [0, 128], sizes = [8, 128], strides = [1, 1]} : vector<8x384xf32> to vector<8x128xf32>
    %958 = vector.extract_strided_slice %920 {offsets = [0, 128], sizes = [8, 128], strides = [1, 1]} : vector<8x384xf32> to vector<8x128xf32>
    %959 = arith.addf %957, %958 : vector<8x128xf32>
    %960 = arith.negf %959 : vector<8x128xf32>
    %961 = math.exp %960 : vector<8x128xf32>
    %cst_384 = arith.constant 1.000000e+00 : f32
    %962 = vector.broadcast %cst_384 : f32 to vector<8x128xf32>
    %963 = arith.addf %962, %961 : vector<8x128xf32>
    %964 = arith.divf %962, %963 : vector<8x128xf32>
    %965 = vector.extract_strided_slice %922 {offsets = [0, 256], sizes = [8, 128], strides = [1, 1]} : vector<8x384xf32> to vector<8x128xf32>
    %966 = vector.extract_strided_slice %920 {offsets = [0, 256], sizes = [8, 128], strides = [1, 1]} : vector<8x384xf32> to vector<8x128xf32>
    %967 = arith.mulf %956, %966 : vector<8x128xf32>
    %968 = arith.addf %965, %967 : vector<8x128xf32>
    %969 = math.tanh %968 : vector<8x128xf32>
    %cst_385 = arith.constant 1.000000e+00 : f32
    %970 = vector.broadcast %cst_385 : f32 to vector<8x128xf32>
    %971 = arith.subf %970, %964 : vector<8x128xf32>
    %972 = arith.mulf %971, %969 : vector<8x128xf32>
    %973 = arith.mulf %964, %904 : vector<8x128xf32>
    %974 = arith.addf %972, %973 : vector<8x128xf32>
    %975 = arith.truncf %948 : vector<8x128xf32> to vector<8x128xbf16>
    %c2_386 = arith.constant 2 : index
    %c0_387 = arith.constant 0 : index
    %c0_388 = arith.constant 0 : index
    %976 = vector.load %arg2[%c2_386, %c0_387, %c0_388] : memref<4x128x384xbf16, #tpu.memory_space<vmem>>, vector<1x128x384xbf16>
    %977 = vector.shape_cast %976 : vector<1x128x384xbf16> to vector<128x384xbf16>
    %cst_389 = arith.constant dense<0.000000e+00> : vector<8x384xf32>
    %978 = tpu.matmul %975, %977, %cst_389 {dimension_numbers = #tpu.dot_dimension_numbers<[1], [0], [0], [1], [0, 0, 1, 1], [], []>} : vector<8x128xbf16>, vector<128x384xbf16>, vector<8x384xf32> -> vector<8x384xf32>
    %c2_390 = arith.constant 2 : index
    %c0_391 = arith.constant 0 : index
    %c0_392 = arith.constant 0 : index
    %979 = vector.load %arg6[%c2_390, %c0_391, %c0_392] : memref<4x1x384xf32, #tpu.memory_space<vmem>>, vector<1x1x384xf32>
    %980 = vector.shape_cast %979 : vector<1x1x384xf32> to vector<1x384xf32>
    %981 = vector.broadcast %980 : vector<1x384xf32> to vector<8x384xf32>
    %982 = arith.addf %978, %981 : vector<8x384xf32>
    %983 = arith.truncf %974 : vector<8x128xf32> to vector<8x128xbf16>
    %c3_393 = arith.constant 3 : index
    %c0_394 = arith.constant 0 : index
    %c0_395 = arith.constant 0 : index
    %984 = vector.load %arg2[%c3_393, %c0_394, %c0_395] : memref<4x128x384xbf16, #tpu.memory_space<vmem>>, vector<1x128x384xbf16>
    %985 = vector.shape_cast %984 : vector<1x128x384xbf16> to vector<128x384xbf16>
    %cst_396 = arith.constant dense<0.000000e+00> : vector<8x384xf32>
    %986 = tpu.matmul %983, %985, %cst_396 {dimension_numbers = #tpu.dot_dimension_numbers<[1], [0], [0], [1], [0, 0, 1, 1], [], []>} : vector<8x128xbf16>, vector<128x384xbf16>, vector<8x384xf32> -> vector<8x384xf32>
    %c3_397 = arith.constant 3 : index
    %c0_398 = arith.constant 0 : index
    %c0_399 = arith.constant 0 : index
    %987 = vector.load %arg6[%c3_397, %c0_398, %c0_399] : memref<4x1x384xf32, #tpu.memory_space<vmem>>, vector<1x1x384xf32>
    %988 = vector.shape_cast %987 : vector<1x1x384xf32> to vector<1x384xf32>
    %989 = vector.broadcast %988 : vector<1x384xf32> to vector<8x384xf32>
    %990 = arith.addf %986, %989 : vector<8x384xf32>
    %c40_400 = arith.constant 40 : index
    %c0_401 = arith.constant 0 : index
    %991 = vector.load %arg9[%c40_400, %c0_401] : memref<64x384xf32, #tpu.memory_space<vmem>>, vector<8x384xf32>
    %c16_402 = arith.constant 16 : index
    %c0_403 = arith.constant 0 : index
    %992 = vector.load %arg10[%c16_402, %c0_403] : memref<64x384xf32, #tpu.memory_space<vmem>>, vector<8x384xf32>
    %993 = vector.extract_strided_slice %991 {offsets = [0, 0], sizes = [8, 128], strides = [1, 1]} : vector<8x384xf32> to vector<8x128xf32>
    %994 = vector.extract_strided_slice %982 {offsets = [0, 0], sizes = [8, 128], strides = [1, 1]} : vector<8x384xf32> to vector<8x128xf32>
    %995 = arith.addf %993, %994 : vector<8x128xf32>
    %996 = arith.negf %995 : vector<8x128xf32>
    %997 = math.exp %996 : vector<8x128xf32>
    %cst_404 = arith.constant 1.000000e+00 : f32
    %998 = vector.broadcast %cst_404 : f32 to vector<8x128xf32>
    %999 = arith.addf %998, %997 : vector<8x128xf32>
    %1000 = arith.divf %998, %999 : vector<8x128xf32>
    %1001 = vector.extract_strided_slice %991 {offsets = [0, 128], sizes = [8, 128], strides = [1, 1]} : vector<8x384xf32> to vector<8x128xf32>
    %1002 = vector.extract_strided_slice %982 {offsets = [0, 128], sizes = [8, 128], strides = [1, 1]} : vector<8x384xf32> to vector<8x128xf32>
    %1003 = arith.addf %1001, %1002 : vector<8x128xf32>
    %1004 = arith.negf %1003 : vector<8x128xf32>
    %1005 = math.exp %1004 : vector<8x128xf32>
    %cst_405 = arith.constant 1.000000e+00 : f32
    %1006 = vector.broadcast %cst_405 : f32 to vector<8x128xf32>
    %1007 = arith.addf %1006, %1005 : vector<8x128xf32>
    %1008 = arith.divf %1006, %1007 : vector<8x128xf32>
    %1009 = vector.extract_strided_slice %991 {offsets = [0, 256], sizes = [8, 128], strides = [1, 1]} : vector<8x384xf32> to vector<8x128xf32>
    %1010 = vector.extract_strided_slice %982 {offsets = [0, 256], sizes = [8, 128], strides = [1, 1]} : vector<8x384xf32> to vector<8x128xf32>
    %1011 = arith.mulf %1000, %1010 : vector<8x128xf32>
    %1012 = arith.addf %1009, %1011 : vector<8x128xf32>
    %1013 = math.tanh %1012 : vector<8x128xf32>
    %cst_406 = arith.constant 1.000000e+00 : f32
    %1014 = vector.broadcast %cst_406 : f32 to vector<8x128xf32>
    %1015 = arith.subf %1014, %1008 : vector<8x128xf32>
    %1016 = arith.mulf %1015, %1013 : vector<8x128xf32>
    %1017 = arith.mulf %1008, %948 : vector<8x128xf32>
    %1018 = arith.addf %1016, %1017 : vector<8x128xf32>
    %1019 = vector.extract_strided_slice %992 {offsets = [0, 0], sizes = [8, 128], strides = [1, 1]} : vector<8x384xf32> to vector<8x128xf32>
    %1020 = vector.extract_strided_slice %990 {offsets = [0, 0], sizes = [8, 128], strides = [1, 1]} : vector<8x384xf32> to vector<8x128xf32>
    %1021 = arith.addf %1019, %1020 : vector<8x128xf32>
    %1022 = arith.negf %1021 : vector<8x128xf32>
    %1023 = math.exp %1022 : vector<8x128xf32>
    %cst_407 = arith.constant 1.000000e+00 : f32
    %1024 = vector.broadcast %cst_407 : f32 to vector<8x128xf32>
    %1025 = arith.addf %1024, %1023 : vector<8x128xf32>
    %1026 = arith.divf %1024, %1025 : vector<8x128xf32>
    %1027 = vector.extract_strided_slice %992 {offsets = [0, 128], sizes = [8, 128], strides = [1, 1]} : vector<8x384xf32> to vector<8x128xf32>
    %1028 = vector.extract_strided_slice %990 {offsets = [0, 128], sizes = [8, 128], strides = [1, 1]} : vector<8x384xf32> to vector<8x128xf32>
    %1029 = arith.addf %1027, %1028 : vector<8x128xf32>
    %1030 = arith.negf %1029 : vector<8x128xf32>
    %1031 = math.exp %1030 : vector<8x128xf32>
    %cst_408 = arith.constant 1.000000e+00 : f32
    %1032 = vector.broadcast %cst_408 : f32 to vector<8x128xf32>
    %1033 = arith.addf %1032, %1031 : vector<8x128xf32>
    %1034 = arith.divf %1032, %1033 : vector<8x128xf32>
    %1035 = vector.extract_strided_slice %992 {offsets = [0, 256], sizes = [8, 128], strides = [1, 1]} : vector<8x384xf32> to vector<8x128xf32>
    %1036 = vector.extract_strided_slice %990 {offsets = [0, 256], sizes = [8, 128], strides = [1, 1]} : vector<8x384xf32> to vector<8x128xf32>
    %1037 = arith.mulf %1026, %1036 : vector<8x128xf32>
    %1038 = arith.addf %1035, %1037 : vector<8x128xf32>
    %1039 = math.tanh %1038 : vector<8x128xf32>
    %cst_409 = arith.constant 1.000000e+00 : f32
    %1040 = vector.broadcast %cst_409 : f32 to vector<8x128xf32>
    %1041 = arith.subf %1040, %1034 : vector<8x128xf32>
    %1042 = arith.mulf %1041, %1039 : vector<8x128xf32>
    %1043 = arith.mulf %1034, %974 : vector<8x128xf32>
    %1044 = arith.addf %1042, %1043 : vector<8x128xf32>
    %1045 = arith.truncf %1018 : vector<8x128xf32> to vector<8x128xbf16>
    %c2_410 = arith.constant 2 : index
    %c0_411 = arith.constant 0 : index
    %c0_412 = arith.constant 0 : index
    %1046 = vector.load %arg2[%c2_410, %c0_411, %c0_412] : memref<4x128x384xbf16, #tpu.memory_space<vmem>>, vector<1x128x384xbf16>
    %1047 = vector.shape_cast %1046 : vector<1x128x384xbf16> to vector<128x384xbf16>
    %cst_413 = arith.constant dense<0.000000e+00> : vector<8x384xf32>
    %1048 = tpu.matmul %1045, %1047, %cst_413 {dimension_numbers = #tpu.dot_dimension_numbers<[1], [0], [0], [1], [0, 0, 1, 1], [], []>} : vector<8x128xbf16>, vector<128x384xbf16>, vector<8x384xf32> -> vector<8x384xf32>
    %c2_414 = arith.constant 2 : index
    %c0_415 = arith.constant 0 : index
    %c0_416 = arith.constant 0 : index
    %1049 = vector.load %arg6[%c2_414, %c0_415, %c0_416] : memref<4x1x384xf32, #tpu.memory_space<vmem>>, vector<1x1x384xf32>
    %1050 = vector.shape_cast %1049 : vector<1x1x384xf32> to vector<1x384xf32>
    %1051 = vector.broadcast %1050 : vector<1x384xf32> to vector<8x384xf32>
    %1052 = arith.addf %1048, %1051 : vector<8x384xf32>
    %1053 = arith.truncf %1044 : vector<8x128xf32> to vector<8x128xbf16>
    %c3_417 = arith.constant 3 : index
    %c0_418 = arith.constant 0 : index
    %c0_419 = arith.constant 0 : index
    %1054 = vector.load %arg2[%c3_417, %c0_418, %c0_419] : memref<4x128x384xbf16, #tpu.memory_space<vmem>>, vector<1x128x384xbf16>
    %1055 = vector.shape_cast %1054 : vector<1x128x384xbf16> to vector<128x384xbf16>
    %cst_420 = arith.constant dense<0.000000e+00> : vector<8x384xf32>
    %1056 = tpu.matmul %1053, %1055, %cst_420 {dimension_numbers = #tpu.dot_dimension_numbers<[1], [0], [0], [1], [0, 0, 1, 1], [], []>} : vector<8x128xbf16>, vector<128x384xbf16>, vector<8x384xf32> -> vector<8x384xf32>
    %c3_421 = arith.constant 3 : index
    %c0_422 = arith.constant 0 : index
    %c0_423 = arith.constant 0 : index
    %1057 = vector.load %arg6[%c3_421, %c0_422, %c0_423] : memref<4x1x384xf32, #tpu.memory_space<vmem>>, vector<1x1x384xf32>
    %1058 = vector.shape_cast %1057 : vector<1x1x384xf32> to vector<1x384xf32>
    %1059 = vector.broadcast %1058 : vector<1x384xf32> to vector<8x384xf32>
    %1060 = arith.addf %1056, %1059 : vector<8x384xf32>
    %c48_424 = arith.constant 48 : index
    %c0_425 = arith.constant 0 : index
    %1061 = vector.load %arg9[%c48_424, %c0_425] : memref<64x384xf32, #tpu.memory_space<vmem>>, vector<8x384xf32>
    %c8_426 = arith.constant 8 : index
    %c0_427 = arith.constant 0 : index
    %1062 = vector.load %arg10[%c8_426, %c0_427] : memref<64x384xf32, #tpu.memory_space<vmem>>, vector<8x384xf32>
    %1063 = vector.extract_strided_slice %1061 {offsets = [0, 0], sizes = [8, 128], strides = [1, 1]} : vector<8x384xf32> to vector<8x128xf32>
    %1064 = vector.extract_strided_slice %1052 {offsets = [0, 0], sizes = [8, 128], strides = [1, 1]} : vector<8x384xf32> to vector<8x128xf32>
    %1065 = arith.addf %1063, %1064 : vector<8x128xf32>
    %1066 = arith.negf %1065 : vector<8x128xf32>
    %1067 = math.exp %1066 : vector<8x128xf32>
    %cst_428 = arith.constant 1.000000e+00 : f32
    %1068 = vector.broadcast %cst_428 : f32 to vector<8x128xf32>
    %1069 = arith.addf %1068, %1067 : vector<8x128xf32>
    %1070 = arith.divf %1068, %1069 : vector<8x128xf32>
    %1071 = vector.extract_strided_slice %1061 {offsets = [0, 128], sizes = [8, 128], strides = [1, 1]} : vector<8x384xf32> to vector<8x128xf32>
    %1072 = vector.extract_strided_slice %1052 {offsets = [0, 128], sizes = [8, 128], strides = [1, 1]} : vector<8x384xf32> to vector<8x128xf32>
    %1073 = arith.addf %1071, %1072 : vector<8x128xf32>
    %1074 = arith.negf %1073 : vector<8x128xf32>
    %1075 = math.exp %1074 : vector<8x128xf32>
    %cst_429 = arith.constant 1.000000e+00 : f32
    %1076 = vector.broadcast %cst_429 : f32 to vector<8x128xf32>
    %1077 = arith.addf %1076, %1075 : vector<8x128xf32>
    %1078 = arith.divf %1076, %1077 : vector<8x128xf32>
    %1079 = vector.extract_strided_slice %1061 {offsets = [0, 256], sizes = [8, 128], strides = [1, 1]} : vector<8x384xf32> to vector<8x128xf32>
    %1080 = vector.extract_strided_slice %1052 {offsets = [0, 256], sizes = [8, 128], strides = [1, 1]} : vector<8x384xf32> to vector<8x128xf32>
    %1081 = arith.mulf %1070, %1080 : vector<8x128xf32>
    %1082 = arith.addf %1079, %1081 : vector<8x128xf32>
    %1083 = math.tanh %1082 : vector<8x128xf32>
    %cst_430 = arith.constant 1.000000e+00 : f32
    %1084 = vector.broadcast %cst_430 : f32 to vector<8x128xf32>
    %1085 = arith.subf %1084, %1078 : vector<8x128xf32>
    %1086 = arith.mulf %1085, %1083 : vector<8x128xf32>
    %1087 = arith.mulf %1078, %1018 : vector<8x128xf32>
    %1088 = arith.addf %1086, %1087 : vector<8x128xf32>
    %1089 = vector.extract_strided_slice %1062 {offsets = [0, 0], sizes = [8, 128], strides = [1, 1]} : vector<8x384xf32> to vector<8x128xf32>
    %1090 = vector.extract_strided_slice %1060 {offsets = [0, 0], sizes = [8, 128], strides = [1, 1]} : vector<8x384xf32> to vector<8x128xf32>
    %1091 = arith.addf %1089, %1090 : vector<8x128xf32>
    %1092 = arith.negf %1091 : vector<8x128xf32>
    %1093 = math.exp %1092 : vector<8x128xf32>
    %cst_431 = arith.constant 1.000000e+00 : f32
    %1094 = vector.broadcast %cst_431 : f32 to vector<8x128xf32>
    %1095 = arith.addf %1094, %1093 : vector<8x128xf32>
    %1096 = arith.divf %1094, %1095 : vector<8x128xf32>
    %1097 = vector.extract_strided_slice %1062 {offsets = [0, 128], sizes = [8, 128], strides = [1, 1]} : vector<8x384xf32> to vector<8x128xf32>
    %1098 = vector.extract_strided_slice %1060 {offsets = [0, 128], sizes = [8, 128], strides = [1, 1]} : vector<8x384xf32> to vector<8x128xf32>
    %1099 = arith.addf %1097, %1098 : vector<8x128xf32>
    %1100 = arith.negf %1099 : vector<8x128xf32>
    %1101 = math.exp %1100 : vector<8x128xf32>
    %cst_432 = arith.constant 1.000000e+00 : f32
    %1102 = vector.broadcast %cst_432 : f32 to vector<8x128xf32>
    %1103 = arith.addf %1102, %1101 : vector<8x128xf32>
    %1104 = arith.divf %1102, %1103 : vector<8x128xf32>
    %1105 = vector.extract_strided_slice %1062 {offsets = [0, 256], sizes = [8, 128], strides = [1, 1]} : vector<8x384xf32> to vector<8x128xf32>
    %1106 = vector.extract_strided_slice %1060 {offsets = [0, 256], sizes = [8, 128], strides = [1, 1]} : vector<8x384xf32> to vector<8x128xf32>
    %1107 = arith.mulf %1096, %1106 : vector<8x128xf32>
    %1108 = arith.addf %1105, %1107 : vector<8x128xf32>
    %1109 = math.tanh %1108 : vector<8x128xf32>
    %cst_433 = arith.constant 1.000000e+00 : f32
    %1110 = vector.broadcast %cst_433 : f32 to vector<8x128xf32>
    %1111 = arith.subf %1110, %1104 : vector<8x128xf32>
    %1112 = arith.mulf %1111, %1109 : vector<8x128xf32>
    %1113 = arith.mulf %1104, %1044 : vector<8x128xf32>
    %1114 = arith.addf %1112, %1113 : vector<8x128xf32>
    %1115 = arith.truncf %1088 : vector<8x128xf32> to vector<8x128xbf16>
    %c2_434 = arith.constant 2 : index
    %c0_435 = arith.constant 0 : index
    %c0_436 = arith.constant 0 : index
    %1116 = vector.load %arg2[%c2_434, %c0_435, %c0_436] : memref<4x128x384xbf16, #tpu.memory_space<vmem>>, vector<1x128x384xbf16>
    %1117 = vector.shape_cast %1116 : vector<1x128x384xbf16> to vector<128x384xbf16>
    %cst_437 = arith.constant dense<0.000000e+00> : vector<8x384xf32>
    %1118 = tpu.matmul %1115, %1117, %cst_437 {dimension_numbers = #tpu.dot_dimension_numbers<[1], [0], [0], [1], [0, 0, 1, 1], [], []>} : vector<8x128xbf16>, vector<128x384xbf16>, vector<8x384xf32> -> vector<8x384xf32>
    %c2_438 = arith.constant 2 : index
    %c0_439 = arith.constant 0 : index
    %c0_440 = arith.constant 0 : index
    %1119 = vector.load %arg6[%c2_438, %c0_439, %c0_440] : memref<4x1x384xf32, #tpu.memory_space<vmem>>, vector<1x1x384xf32>
    %1120 = vector.shape_cast %1119 : vector<1x1x384xf32> to vector<1x384xf32>
    %1121 = vector.broadcast %1120 : vector<1x384xf32> to vector<8x384xf32>
    %1122 = arith.addf %1118, %1121 : vector<8x384xf32>
    %1123 = arith.truncf %1114 : vector<8x128xf32> to vector<8x128xbf16>
    %c3_441 = arith.constant 3 : index
    %c0_442 = arith.constant 0 : index
    %c0_443 = arith.constant 0 : index
    %1124 = vector.load %arg2[%c3_441, %c0_442, %c0_443] : memref<4x128x384xbf16, #tpu.memory_space<vmem>>, vector<1x128x384xbf16>
    %1125 = vector.shape_cast %1124 : vector<1x128x384xbf16> to vector<128x384xbf16>
    %cst_444 = arith.constant dense<0.000000e+00> : vector<8x384xf32>
    %1126 = tpu.matmul %1123, %1125, %cst_444 {dimension_numbers = #tpu.dot_dimension_numbers<[1], [0], [0], [1], [0, 0, 1, 1], [], []>} : vector<8x128xbf16>, vector<128x384xbf16>, vector<8x384xf32> -> vector<8x384xf32>
    %c3_445 = arith.constant 3 : index
    %c0_446 = arith.constant 0 : index
    %c0_447 = arith.constant 0 : index
    %1127 = vector.load %arg6[%c3_445, %c0_446, %c0_447] : memref<4x1x384xf32, #tpu.memory_space<vmem>>, vector<1x1x384xf32>
    %1128 = vector.shape_cast %1127 : vector<1x1x384xf32> to vector<1x384xf32>
    %1129 = vector.broadcast %1128 : vector<1x384xf32> to vector<8x384xf32>
    %1130 = arith.addf %1126, %1129 : vector<8x384xf32>
    %c56_448 = arith.constant 56 : index
    %c0_449 = arith.constant 0 : index
    %1131 = vector.load %arg9[%c56_448, %c0_449] : memref<64x384xf32, #tpu.memory_space<vmem>>, vector<8x384xf32>
    %c0_450 = arith.constant 0 : index
    %c0_451 = arith.constant 0 : index
    %1132 = vector.load %arg10[%c0_450, %c0_451] : memref<64x384xf32, #tpu.memory_space<vmem>>, vector<8x384xf32>
    %1133 = vector.extract_strided_slice %1131 {offsets = [0, 0], sizes = [8, 128], strides = [1, 1]} : vector<8x384xf32> to vector<8x128xf32>
    %1134 = vector.extract_strided_slice %1122 {offsets = [0, 0], sizes = [8, 128], strides = [1, 1]} : vector<8x384xf32> to vector<8x128xf32>
    %1135 = arith.addf %1133, %1134 : vector<8x128xf32>
    %1136 = arith.negf %1135 : vector<8x128xf32>
    %1137 = math.exp %1136 : vector<8x128xf32>
    %cst_452 = arith.constant 1.000000e+00 : f32
    %1138 = vector.broadcast %cst_452 : f32 to vector<8x128xf32>
    %1139 = arith.addf %1138, %1137 : vector<8x128xf32>
    %1140 = arith.divf %1138, %1139 : vector<8x128xf32>
    %1141 = vector.extract_strided_slice %1131 {offsets = [0, 128], sizes = [8, 128], strides = [1, 1]} : vector<8x384xf32> to vector<8x128xf32>
    %1142 = vector.extract_strided_slice %1122 {offsets = [0, 128], sizes = [8, 128], strides = [1, 1]} : vector<8x384xf32> to vector<8x128xf32>
    %1143 = arith.addf %1141, %1142 : vector<8x128xf32>
    %1144 = arith.negf %1143 : vector<8x128xf32>
    %1145 = math.exp %1144 : vector<8x128xf32>
    %cst_453 = arith.constant 1.000000e+00 : f32
    %1146 = vector.broadcast %cst_453 : f32 to vector<8x128xf32>
    %1147 = arith.addf %1146, %1145 : vector<8x128xf32>
    %1148 = arith.divf %1146, %1147 : vector<8x128xf32>
    %1149 = vector.extract_strided_slice %1131 {offsets = [0, 256], sizes = [8, 128], strides = [1, 1]} : vector<8x384xf32> to vector<8x128xf32>
    %1150 = vector.extract_strided_slice %1122 {offsets = [0, 256], sizes = [8, 128], strides = [1, 1]} : vector<8x384xf32> to vector<8x128xf32>
    %1151 = arith.mulf %1140, %1150 : vector<8x128xf32>
    %1152 = arith.addf %1149, %1151 : vector<8x128xf32>
    %1153 = math.tanh %1152 : vector<8x128xf32>
    %cst_454 = arith.constant 1.000000e+00 : f32
    %1154 = vector.broadcast %cst_454 : f32 to vector<8x128xf32>
    %1155 = arith.subf %1154, %1148 : vector<8x128xf32>
    %1156 = arith.mulf %1155, %1153 : vector<8x128xf32>
    %1157 = arith.mulf %1148, %1088 : vector<8x128xf32>
    %1158 = arith.addf %1156, %1157 : vector<8x128xf32>
    %1159 = vector.extract_strided_slice %1132 {offsets = [0, 0], sizes = [8, 128], strides = [1, 1]} : vector<8x384xf32> to vector<8x128xf32>
    %1160 = vector.extract_strided_slice %1130 {offsets = [0, 0], sizes = [8, 128], strides = [1, 1]} : vector<8x384xf32> to vector<8x128xf32>
    %1161 = arith.addf %1159, %1160 : vector<8x128xf32>
    %1162 = arith.negf %1161 : vector<8x128xf32>
    %1163 = math.exp %1162 : vector<8x128xf32>
    %cst_455 = arith.constant 1.000000e+00 : f32
    %1164 = vector.broadcast %cst_455 : f32 to vector<8x128xf32>
    %1165 = arith.addf %1164, %1163 : vector<8x128xf32>
    %1166 = arith.divf %1164, %1165 : vector<8x128xf32>
    %1167 = vector.extract_strided_slice %1132 {offsets = [0, 128], sizes = [8, 128], strides = [1, 1]} : vector<8x384xf32> to vector<8x128xf32>
    %1168 = vector.extract_strided_slice %1130 {offsets = [0, 128], sizes = [8, 128], strides = [1, 1]} : vector<8x384xf32> to vector<8x128xf32>
    %1169 = arith.addf %1167, %1168 : vector<8x128xf32>
    %1170 = arith.negf %1169 : vector<8x128xf32>
    %1171 = math.exp %1170 : vector<8x128xf32>
    %cst_456 = arith.constant 1.000000e+00 : f32
    %1172 = vector.broadcast %cst_456 : f32 to vector<8x128xf32>
    %1173 = arith.addf %1172, %1171 : vector<8x128xf32>
    %1174 = arith.divf %1172, %1173 : vector<8x128xf32>
    %1175 = vector.extract_strided_slice %1132 {offsets = [0, 256], sizes = [8, 128], strides = [1, 1]} : vector<8x384xf32> to vector<8x128xf32>
    %1176 = vector.extract_strided_slice %1130 {offsets = [0, 256], sizes = [8, 128], strides = [1, 1]} : vector<8x384xf32> to vector<8x128xf32>
    %1177 = arith.mulf %1166, %1176 : vector<8x128xf32>
    %1178 = arith.addf %1175, %1177 : vector<8x128xf32>
    %1179 = math.tanh %1178 : vector<8x128xf32>
    %cst_457 = arith.constant 1.000000e+00 : f32
    %1180 = vector.broadcast %cst_457 : f32 to vector<8x128xf32>
    %1181 = arith.subf %1180, %1174 : vector<8x128xf32>
    %1182 = arith.mulf %1181, %1179 : vector<8x128xf32>
    %1183 = arith.mulf %1174, %1114 : vector<8x128xf32>
    %1184 = arith.addf %1182, %1183 : vector<8x128xf32>
    %1185 = arith.truncf %1158 : vector<8x128xf32> to vector<8x128xbf16>
    %c0_458 = arith.constant 0 : index
    %c0_459 = arith.constant 0 : index
    %c0_460 = arith.constant 0 : index
    %1186 = vector.load %arg4[%c0_458, %c0_459, %c0_460] : memref<2x128x128xbf16, #tpu.memory_space<vmem>>, vector<1x128x128xbf16>
    %1187 = vector.shape_cast %1186 : vector<1x128x128xbf16> to vector<128x128xbf16>
    %cst_461 = arith.constant dense<0.000000e+00> : vector<8x128xf32>
    %1188 = tpu.matmul %1185, %1187, %cst_461 {dimension_numbers = #tpu.dot_dimension_numbers<[1], [0], [0], [1], [0, 0, 1, 1], [], []>} : vector<8x128xbf16>, vector<128x128xbf16>, vector<8x128xf32> -> vector<8x128xf32>
    %1189 = arith.truncf %1184 : vector<8x128xf32> to vector<8x128xbf16>
    %c1_462 = arith.constant 1 : index
    %c0_463 = arith.constant 0 : index
    %c0_464 = arith.constant 0 : index
    %1190 = vector.load %arg4[%c1_462, %c0_463, %c0_464] : memref<2x128x128xbf16, #tpu.memory_space<vmem>>, vector<1x128x128xbf16>
    %1191 = vector.shape_cast %1190 : vector<1x128x128xbf16> to vector<128x128xbf16>
    %cst_465 = arith.constant dense<0.000000e+00> : vector<8x128xf32>
    %1192 = tpu.matmul %1189, %1191, %cst_465 {dimension_numbers = #tpu.dot_dimension_numbers<[1], [0], [0], [1], [0, 0, 1, 1], [], []>} : vector<8x128xbf16>, vector<128x128xbf16>, vector<8x128xf32> -> vector<8x128xf32>
    %1193 = arith.addf %1188, %1192 : vector<8x128xf32>
    %c0_466 = arith.constant 0 : index
    %c0_467 = arith.constant 0 : index
    %1194 = vector.load %arg7[%c0_466, %c0_467] : memref<1x128xf32, #tpu.memory_space<vmem>>, vector<1x128xf32>
    %1195 = vector.broadcast %1194 : vector<1x128xf32> to vector<8x128xf32>
    %1196 = arith.addf %1193, %1195 : vector<8x128xf32>
    %c0_468 = arith.constant 0 : index
    %c0_469 = arith.constant 0 : index
    %1197 = vector.load %arg8[%c0_468, %c0_469] : memref<8x128xf32, #tpu.memory_space<vmem>>, vector<8x128xf32>
    tpu.vector_store %arg8[%c0_468, %c0_469], %1196 {strides = array<i32>} : memref<8x128xf32, #tpu.memory_space<vmem>>, vector<8x128xf32>,
    return
  }
}

</mosaic_0001>

<llo_original>
// kernel: tpu_custom_call.1
$region0: #{tpu_custom_call.1}
  #allocation0 [shape = 'u32[]', space=smem, size = 0x4, offset = 0x4, fixed_abs, tag = 'smem constant byte address 0x4 - core index']
  #allocation1 [shape = 'u32[72,128]{1,0:T(1,128)}', space=vmem, size = 0x9000, scoped, tag = 'internal scratch']
  #allocation2 [shape = 'f32[64,384]{1,0:T(8,128)}', space=vmem, size = 0x18000, scoped, tag = 'scratch operand']
  #allocation3 [shape = 'f32[64,384]{1,0:T(8,128)}', space=vmem, size = 0x18000, scoped, tag = 'scratch operand']
  #allocation4 [shape = 'f32[64,128]{1,0:T(8,128)}', space=vmem, size = 0x8000, scoped, tag = 'scratch operand']
  #allocation5 [shape = 'f32[64,128]{1,0:T(8,128)}', space=vmem, size = 0x8000, scoped, tag = 'scratch operand']
  %s0 = inlined_call_operand.hbm [shape: bf16[64,128], index: 0, kind: input, shape index: {}]
  %s1 = inlined_call_operand.hbm [shape: bf16[2,128,384], index: 1, kind: input, shape index: {}]
  %s2 = inlined_call_operand.hbm [shape: bf16[4,128,384], index: 2, kind: input, shape index: {}]
  %s3 = inlined_call_operand.hbm [shape: bf16[4,128,384], index: 3, kind: input, shape index: {}]
  %s4 = inlined_call_operand.hbm [shape: bf16[2,128,128], index: 4, kind: input, shape index: {}]
  %s5 = inlined_call_operand.hbm [shape: f32[4,1,384], index: 5, kind: input, shape index: {}]
  %s6 = inlined_call_operand.hbm [shape: f32[4,1,384], index: 6, kind: input, shape index: {}]
  %s7 = inlined_call_operand.vmem [shape: f32[1,128], index: 7, kind: input, shape index: {}]
  %s8 = inlined_call_operand.hbm [shape: f32[8,128], index: 8, kind: output, shape index: {}]
  %s9 = sld [smem:[#allocation0]]
  $region70: #{tpu_custom_call.1} parent=0
    _
  %s11 = ssub.s32 1, %s9
  %s12 = scalar_select 0, %s11, %s9
  $region1: #{tpu_custom_call.1} parent=0
    #allocation6 [shape = 'u8[16384]{0}', space=vmem, size = 0x4000, scoped, tag = 'input window, operand 0, single buffered']
    #allocation7 [shape = 's32[1]{0}', space=sflag, size = 0x4, scoped, tag = 'scoped memory for tpu_custom_call.1']
    #allocation8 [shape = 's32[1]{0}', space=sflag, size = 0x4, scoped, tag = 'scoped memory for tpu_custom_call.1']
    #allocation9 [shape = 'u8[196608]{0}', space=vmem, size = 0x30000, scoped, tag = 'input window, operand 1, single buffered']
    #allocation10 [shape = 's32[1]{0}', space=sflag, size = 0x4, scoped, tag = 'scoped memory for tpu_custom_call.1']
    #allocation11 [shape = 'u8[393216]{0}', space=vmem, size = 0x60000, scoped, tag = 'input window, operand 2, single buffered']
    #allocation12 [shape = 'u8[393216]{0}', space=vmem, size = 0x60000, scoped, tag = 'input window, operand 3, single buffered']
    #allocation13 [shape = 's32[1]{0}', space=sflag, size = 0x4, scoped, tag = 'scoped memory for tpu_custom_call.1']
    #allocation14 [shape = 'u8[65536]{0}', space=vmem, size = 0x10000, scoped, tag = 'input window, operand 4, single buffered']
    #allocation15 [shape = 'u8[6144]{0}', space=vmem, size = 0x1800, scoped, tag = 'input window, operand 5, single buffered']
    #allocation16 [shape = 's32[1]{0}', space=sflag, size = 0x4, scoped, tag = 'scoped memory for tpu_custom_call.1']
    #allocation17 [shape = 'u8[6144]{0}', space=vmem, size = 0x1800, scoped, tag = 'input window, operand 6, single buffered']
    #allocation18 [shape = 'u8[4096]{0}', space=vmem, size = 0x1000, scoped, tag = 'output window, operand 0, single buffered']
    %13 = vsyncpa [#allocation7], 0
    %14 = vsyncpa [#allocation10], 0
    %15 = vsyncpa [#allocation13], 0
    %16 = vsyncpa [#allocation16], 0
    %17 = vsyncpa [#allocation8], 0
    // Predicated region
    $region2: #{tpu_custom_call.1} parent=1 // pred_check
      _
    $region3: #{tpu_custom_call.1} parent=1 // pred_check_branch
      %19 = sbr.rel (0) target = $region5
    $region4: #{tpu_custom_call.1} parent=1 // pred_region
      %21 = vsyncadd [#allocation7], 0
      %s22 = sshll.u32 %s0, 4
      %s23 = int_to_ptr.hbm [resolvable:$true] %s22
      %s24 = sshll.u32 [#allocation6], 4
      %s25 = int_to_ptr.vmem [resolvable:$true] %s24
      %30 = dma.hbm_to_vmem [thread:$0]  %s23, 512, %s25, [#allocation7], 64, 64, 4
    $region5: #{tpu_custom_call.1} parent=1 // pred_fallthru
      _
    // Predicated region
    $region6: #{tpu_custom_call.1} parent=1 // pred_check
      _
    $region7: #{tpu_custom_call.1} parent=1 // pred_check_branch
      %32 = sbr.rel (0) target = $region9
    $region8: #{tpu_custom_call.1} parent=1 // pred_region
      %34 = vsyncadd [#allocation10], 0
      %s35 = sshll.u32 %s1, 4
      %s36 = int_to_ptr.hbm [resolvable:$true] %s35
      %s37 = sshll.u32 [#allocation9], 4
      %s38 = int_to_ptr.vmem [resolvable:$true] %s37
      %43 = dma.hbm_to_vmem [thread:$0]  %s36, 6144, %s38, [#allocation10], 192, 192, 12
    $region9: #{tpu_custom_call.1} parent=1 // pred_fallthru
      _
    // Predicated region
    $region10: #{tpu_custom_call.1} parent=1 // pred_check
      _
    $region11: #{tpu_custom_call.1} parent=1 // pred_check_branch
      %45 = sbr.rel (0) target = $region13
    $region12: #{tpu_custom_call.1} parent=1 // pred_region
      %47 = vsyncadd [#allocation10], 0
      %s48 = sshll.u32 %s2, 4
      %s49 = int_to_ptr.hbm [resolvable:$true] %s48
      %s50 = sshll.u32 [#allocation11], 4
      %s51 = int_to_ptr.vmem [resolvable:$true] %s50
      %56 = dma.hbm_to_vmem [thread:$0]  %s49, 12288, %s51, [#allocation10], 192, 192, 12
    $region13: #{tpu_custom_call.1} parent=1 // pred_fallthru
      _
    // Predicated region
    $region14: #{tpu_custom_call.1} parent=1 // pred_check
      _
    $region15: #{tpu_custom_call.1} parent=1 // pred_check_branch
      %58 = sbr.rel (0) target = $region17
    $region16: #{tpu_custom_call.1} parent=1 // pred_region
      %60 = vsyncadd [#allocation13], 0
      %s61 = sshll.u32 %s3, 4
      %s62 = int_to_ptr.hbm [resolvable:$true] %s61
      %s63 = sshll.u32 [#allocation12], 4
      %s64 = int_to_ptr.vmem [resolvable:$true] %s63
      %69 = dma.hbm_to_vmem [thread:$0]  %s62, 12288, %s64, [#allocation13], 192, 192, 12
    $region17: #{tpu_custom_call.1} parent=1 // pred_fallthru
      _
    // Predicated region
    $region18: #{tpu_custom_call.1} parent=1 // pred_check
      _
    $region19: #{tpu_custom_call.1} parent=1 // pred_check_branch
      %71 = sbr.rel (0) target = $region21
    $region20: #{tpu_custom_call.1} parent=1 // pred_region
      %73 = vsyncadd [#allocation13], 0
      %s74 = sshll.u32 %s4, 4
      %s75 = int_to_ptr.hbm [resolvable:$true] %s74
      %s76 = sshll.u32 [#allocation14], 4
      %s77 = int_to_ptr.vmem [resolvable:$true] %s76
      %82 = dma.hbm_to_vmem [thread:$0]  %s75, 2048, %s77, [#allocation13], 64, 64, 4
    $region21: #{tpu_custom_call.1} parent=1 // pred_fallthru
      _
    // Predicated region
    $region22: #{tpu_custom_call.1} parent=1 // pred_check
      _
    $region23: #{tpu_custom_call.1} parent=1 // pred_check_branch
      %84 = sbr.rel (0) target = $region25
    $region24: #{tpu_custom_call.1} parent=1 // pred_region
      %86 = vsyncadd [#allocation16], 0
      %s87 = sshll.u32 %s5, 4
      %s88 = int_to_ptr.hbm [resolvable:$true] %s87
      %s89 = sshll.u32 [#allocation15], 4
      %s90 = int_to_ptr.vmem [resolvable:$true] %s89
      %95 = dma.hbm_to_vmem [thread:$0]  %s88, 192, %s90, [#allocation16], 48, 48, 3
    $region25: #{tpu_custom_call.1} parent=1 // pred_fallthru
      _
    // Predicated region
    $region26: #{tpu_custom_call.1} parent=1 // pred_check
      _
    $region27: #{tpu_custom_call.1} parent=1 // pred_check_branch
      %97 = sbr.rel (0) target = $region29
    $region28: #{tpu_custom_call.1} parent=1 // pred_region
      %99 = vsyncadd [#allocation16], 0
      %s100 = sshll.u32 %s6, 4
      %s101 = int_to_ptr.hbm [resolvable:$true] %s100
      %s102 = sshll.u32 [#allocation17], 4
      %s103 = int_to_ptr.vmem [resolvable:$true] %s102
      %108 = dma.hbm_to_vmem [thread:$0]  %s101, 192, %s103, [#allocation16], 48, 48, 3
    $region29: #{tpu_custom_call.1} parent=1 // pred_fallthru
      _
    // Predicated region
    $region30: #{tpu_custom_call.1} parent=1 // pred_check
      _
    $region31: #{tpu_custom_call.1} parent=1 // pred_check_branch
      %110 = sbr.rel (0) target = $region33
    $region32: #{tpu_custom_call.1} parent=1 // pred_region
      _
    $region33: #{tpu_custom_call.1} parent=1 // pred_fallthru
      _
    // Predicated region
    $region34: #{tpu_custom_call.1} parent=1 // pred_check
      _
    $region35: #{tpu_custom_call.1} parent=1 // pred_check_branch
      %112 = sbr.rel (0) target = $region37
    $region36: #{tpu_custom_call.1} parent=1 // pred_region
      %114 = dma.done [#allocation7], 512
    $region37: #{tpu_custom_call.1} parent=1 // pred_fallthru
      _
    // Predicated region
    $region38: #{tpu_custom_call.1} parent=1 // pred_check
      _
    $region39: #{tpu_custom_call.1} parent=1 // pred_check_branch
      %116 = sbr.rel (0) target = $region41
    $region40: #{tpu_custom_call.1} parent=1 // pred_region
      %118 = dma.done [#allocation10], 6144
    $region41: #{tpu_custom_call.1} parent=1 // pred_fallthru
      _
    // Predicated region
    $region42: #{tpu_custom_call.1} parent=1 // pred_check
      _
    $region43: #{tpu_custom_call.1} parent=1 // pred_check_branch
      %120 = sbr.rel (0) target = $region45
    $region44: #{tpu_custom_call.1} parent=1 // pred_region
      %122 = dma.done [#allocation10], 12288
    $region45: #{tpu_custom_call.1} parent=1 // pred_fallthru
      _
    // Predicated region
    $region46: #{tpu_custom_call.1} parent=1 // pred_check
      _
    $region47: #{tpu_custom_call.1} parent=1 // pred_check_branch
      %124 = sbr.rel (0) target = $region49
    $region48: #{tpu_custom_call.1} parent=1 // pred_region
      %126 = dma.done [#allocation13], 12288
    $region49: #{tpu_custom_call.1} parent=1 // pred_fallthru
      _
    // Predicated region
    $region50: #{tpu_custom_call.1} parent=1 // pred_check
      _
    $region51: #{tpu_custom_call.1} parent=1 // pred_check_branch
      %128 = sbr.rel (0) target = $region53
    $region52: #{tpu_custom_call.1} parent=1 // pred_region
      %130 = dma.done [#allocation13], 2048
    $region53: #{tpu_custom_call.1} parent=1 // pred_fallthru
      _
    // Predicated region
    $region54: #{tpu_custom_call.1} parent=1 // pred_check
      _
    $region55: #{tpu_custom_call.1} parent=1 // pred_check_branch
      %132 = sbr.rel (0) target = $region57
    $region56: #{tpu_custom_call.1} parent=1 // pred_region
      %134 = dma.done [#allocation16], 192
    $region57: #{tpu_custom_call.1} parent=1 // pred_fallthru
      _
    // Predicated region
    $region58: #{tpu_custom_call.1} parent=1 // pred_check
      _
    $region59: #{tpu_custom_call.1} parent=1 // pred_check_branch
      %136 = sbr.rel (0) target = $region61
    $region60: #{tpu_custom_call.1} parent=1 // pred_region
      %138 = dma.done [#allocation16], 192
    $region61: #{tpu_custom_call.1} parent=1 // pred_fallthru
      _
    %v140 = vld [vmem:[#allocation6] sm:$0xf]
    %v141 = vld [vmem:[#allocation6 + $0x4] sm:$0xf]
    %v142 = vld [vmem:[#allocation6 + $0x8] sm:$0xf]
    %v143 = vld [vmem:[#allocation6 + $0xc] sm:$0xf]
    %v144 = vld [vmem:[#allocation6 + $0x10] sm:$0xf]
    %v145 = vld [vmem:[#allocation6 + $0x14] sm:$0xf]
    %v146 = vld [vmem:[#allocation6 + $0x18] sm:$0xf]
    %v147 = vld [vmem:[#allocation6 + $0x1c] sm:$0xf]
    %v148 = vld [vmem:[#allocation9] sm:$0xff]
    %v149 = vld [vmem:[#allocation9 + $0x8] sm:$0xf]
    %v150 = vld [vmem:[#allocation9 + $0xc] sm:$0xff]
    %v151 = vld [vmem:[#allocation9 + $0x14] sm:$0xf]
    %v152 = vld [vmem:[#allocation9 + $0x18] sm:$0xff]
    %v153 = vld [vmem:[#allocation9 + $0x20] sm:$0xf]
    %v154 = vld [vmem:[#allocation9 + $0x24] sm:$0xff]
    %v155 = vld [vmem:[#allocation9 + $0x2c] sm:$0xf]
    %v156 = vld [vmem:[#allocation9 + $0x30] sm:$0xff]
    %v157 = vld [vmem:[#allocation9 + $0x38] sm:$0xf]
    %v158 = vld [vmem:[#allocation9 + $0x3c] sm:$0xff]
    %v159 = vld [vmem:[#allocation9 + $0x44] sm:$0xf]
    %v160 = vld [vmem:[#allocation9 + $0x48] sm:$0xff]
    %v161 = vld [vmem:[#allocation9 + $0x50] sm:$0xf]
    %v162 = vld [vmem:[#allocation9 + $0x54] sm:$0xff]
    %v163 = vld [vmem:[#allocation9 + $0x5c] sm:$0xf]
    %v164 = vld [vmem:[#allocation9 + $0x60] sm:$0xff]
    %v165 = vld [vmem:[#allocation9 + $0x68] sm:$0xf]
    %v166 = vld [vmem:[#allocation9 + $0x6c] sm:$0xff]
    %v167 = vld [vmem:[#allocation9 + $0x74] sm:$0xf]
    %v168 = vld [vmem:[#allocation9 + $0x78] sm:$0xff]
    %v169 = vld [vmem:[#allocation9 + $0x80] sm:$0xf]
    %v170 = vld [vmem:[#allocation9 + $0x84] sm:$0xff]
    %v171 = vld [vmem:[#allocation9 + $0x8c] sm:$0xf]
    %v172 = vld [vmem:[#allocation9 + $0x90] sm:$0xff]
    %v173 = vld [vmem:[#allocation9 + $0x98] sm:$0xf]
    %v174 = vld [vmem:[#allocation9 + $0x9c] sm:$0xff]
    %v175 = vld [vmem:[#allocation9 + $0xa4] sm:$0xf]
    %v176 = vld [vmem:[#allocation9 + $0xa8] sm:$0xff]
    %v177 = vld [vmem:[#allocation9 + $0xb0] sm:$0xf]
    %v178 = vld [vmem:[#allocation9 + $0xb4] sm:$0xff]
    %v179 = vld [vmem:[#allocation9 + $0xbc] sm:$0xf]
    %v180 = vld [vmem:[#allocation15] sm:$0x7]
    %v182 = vperm.slane %v180, 0
    %v183 = vperm.slane %v180, 1
    %v184 = vperm.slane %v180, 2
    %v196 = vunpack.c.l.b16 %v140
    %v197 = vunpack.c.l.b16 %v141
    %v198 = vunpack.c.l.b16 %v142
    %v199 = vunpack.c.l.b16 %v143
    %v200 = vunpack.c.l.b16 %v144
    %v201 = vunpack.c.l.b16 %v145
    %v202 = vunpack.c.l.b16 %v146
    %v203 = vunpack.c.l.b16 %v147
    %v204 = vpack.c.b16 %v197, %v196
    %v205 = vpack.c.b16 %v199, %v198
    %v206 = vpack.c.b16 %v201, %v200
    %v207 = vpack.c.b16 %v203, %v202
    %v244 = vunpack.c.l.b16 %v148
    %v245 = vunpack.c.h.b16 %v148
    %v246 = vunpack.c.l.b16 %v149
    %v247 = vunpack.c.l.b16 %v150
    %v248 = vunpack.c.h.b16 %v150
    %v249 = vunpack.c.l.b16 %v151
    %v250 = vunpack.c.l.b16 %v152
    %v251 = vunpack.c.h.b16 %v152
    %v252 = vunpack.c.l.b16 %v153
    %v253 = vunpack.c.l.b16 %v154
    %v254 = vunpack.c.h.b16 %v154
    %v255 = vunpack.c.l.b16 %v155
    %v256 = vunpack.c.l.b16 %v156
    %v257 = vunpack.c.h.b16 %v156
    %v258 = vunpack.c.l.b16 %v157
    %v259 = vunpack.c.l.b16 %v158
    %v260 = vunpack.c.h.b16 %v158
    %v261 = vunpack.c.l.b16 %v159
    %v262 = vunpack.c.l.b16 %v160
    %v263 = vunpack.c.h.b16 %v160
    %v264 = vunpack.c.l.b16 %v161
    %v265 = vunpack.c.l.b16 %v162
    %v266 = vunpack.c.h.b16 %v162
    %v267 = vunpack.c.l.b16 %v163
    %v268 = vunpack.c.l.b16 %v164
    %v269 = vunpack.c.h.b16 %v164
    %v270 = vunpack.c.l.b16 %v165
    %v271 = vunpack.c.l.b16 %v166
    %v272 = vunpack.c.h.b16 %v166
    %v273 = vunpack.c.l.b16 %v167
    %v274 = vunpack.c.l.b16 %v168
    %v275 = vunpack.c.h.b16 %v168
    %v276 = vunpack.c.l.b16 %v169
    %v277 = vunpack.c.l.b16 %v170
    %v278 = vunpack.c.h.b16 %v170
    %v279 = vunpack.c.l.b16 %v171
    %v280 = vunpack.c.l.b16 %v172
    %v281 = vunpack.c.h.b16 %v172
    %v282 = vunpack.c.l.b16 %v173
    %v283 = vunpack.c.l.b16 %v174
    %v284 = vunpack.c.h.b16 %v174
    %v285 = vunpack.c.l.b16 %v175
    %v286 = vunpack.c.l.b16 %v176
    %v287 = vunpack.c.h.b16 %v176
    %v288 = vunpack.c.l.b16 %v177
    %v289 = vunpack.c.l.b16 %v178
    %v290 = vunpack.c.h.b16 %v178
    %v291 = vunpack.c.l.b16 %v179
    %v292 = vpack.c.b16 %v247, %v244
    %v293 = vpack.c.b16 %v248, %v245
    %v294 = vpack.c.b16 %v249, %v246
    %v295 = vpack.c.b16 %v253, %v250
    %v296 = vpack.c.b16 %v254, %v251
    %v297 = vpack.c.b16 %v255, %v252
    %v298 = vpack.c.b16 %v259, %v256
    %v299 = vpack.c.b16 %v260, %v257
    %v300 = vpack.c.b16 %v261, %v258
    %v301 = vpack.c.b16 %v265, %v262
    %v302 = vpack.c.b16 %v266, %v263
    %v303 = vpack.c.b16 %v267, %v264
    %v304 = vpack.c.b16 %v271, %v268
    %v305 = vpack.c.b16 %v272, %v269
    %v306 = vpack.c.b16 %v273, %v270
    %v307 = vpack.c.b16 %v277, %v274
    %v308 = vpack.c.b16 %v278, %v275
    %v309 = vpack.c.b16 %v279, %v276
    %v310 = vpack.c.b16 %v283, %v280
    %v311 = vpack.c.b16 %v284, %v281
    %v312 = vpack.c.b16 %v285, %v282
    %v313 = vpack.c.b16 %v289, %v286
    %v314 = vpack.c.b16 %v290, %v287
    %v315 = vpack.c.b16 %v291, %v288
    %340 = vmatpush.bf16.msra.mxu0 %v313
    %341 = vmatpush.bf16.msra.mxu0 %v310
    %342 = vmatpush.bf16.msra.mxu0 %v307
    %343 = vmatpush.bf16.msra.mxu0 %v304
    %344 = vmatpush.bf16.msra.mxu0 %v301
    %345 = vmatpush.bf16.msra.mxu0 %v298
    %346 = vmatpush.bf16.msra.mxu0 %v295
    %347 = vmatpush.bf16.msra.mxu0 %v292
    %348 = vmatmul.bf16.gmra.mxu0 %v204
    %v349 = vpop.f32.mrf.mxu0
    %v350 = vadd.f32 %v182, %v349
    %v351 = vpop.f32.mrf.mxu0
    %v352 = vadd.f32 %v182, %v351
    %353 = vmatmul.bf16.gmra.mxu0 %v205
    %v354 = vpop.f32.mrf.mxu0
    %v355 = vadd.f32 %v182, %v354
    %v356 = vpop.f32.mrf.mxu0
    %v357 = vadd.f32 %v182, %v356
    %358 = vmatmul.bf16.gmra.mxu0 %v206
    %v359 = vpop.f32.mrf.mxu0
    %v360 = vadd.f32 %v182, %v359
    %v361 = vpop.f32.mrf.mxu0
    %v362 = vadd.f32 %v182, %v361
    %363 = vmatmul.bf16.gmra.mxu0 %v207
    %v364 = vpop.f32.mrf.mxu0
    %v365 = vadd.f32 %v182, %v364
    %v366 = vpop.f32.mrf.mxu0
    %v367 = vadd.f32 %v182, %v366
    %368 = vdwg.mxu0
    %369 = vmatpush.bf16.msra.mxu0 %v314
    %370 = vmatpush.bf16.msra.mxu0 %v311
    %371 = vmatpush.bf16.msra.mxu0 %v308
    %372 = vmatpush.bf16.msra.mxu0 %v305
    %373 = vmatpush.bf16.msra.mxu0 %v302
    %374 = vmatpush.bf16.msra.mxu0 %v299
    %375 = vmatpush.bf16.msra.mxu0 %v296
    %376 = vmatpush.bf16.msra.mxu0 %v293
    %377 = vmatmul.bf16.gmra.mxu0 %v204
    %v378 = vpop.f32.mrf.mxu0
    %v379 = vadd.f32 %v183, %v378
    %v380 = vpop.f32.mrf.mxu0
    %v381 = vadd.f32 %v183, %v380
    %382 = vmatmul.bf16.gmra.mxu0 %v205
    %v383 = vpop.f32.mrf.mxu0
    %v384 = vadd.f32 %v183, %v383
    %v385 = vpop.f32.mrf.mxu0
    %v386 = vadd.f32 %v183, %v385
    %387 = vmatmul.bf16.gmra.mxu0 %v206
    %v388 = vpop.f32.mrf.mxu0
    %v389 = vadd.f32 %v183, %v388
    %v390 = vpop.f32.mrf.mxu0
    %v391 = vadd.f32 %v183, %v390
    %392 = vmatmul.bf16.gmra.mxu0 %v207
    %v393 = vpop.f32.mrf.mxu0
    %v394 = vadd.f32 %v183, %v393
    %v395 = vpop.f32.mrf.mxu0
    %v396 = vadd.f32 %v183, %v395
    %397 = vdwg.mxu0
    %398 = vmatpush.bf16.msra.mxu0 %v315
    %399 = vmatpush.bf16.msra.mxu0 %v312
    %400 = vmatpush.bf16.msra.mxu0 %v309
    %401 = vmatpush.bf16.msra.mxu0 %v306
    %402 = vmatpush.bf16.msra.mxu0 %v303
    %403 = vmatpush.bf16.msra.mxu0 %v300
    %404 = vmatpush.bf16.msra.mxu0 %v297
    %405 = vmatpush.bf16.msra.mxu0 %v294
    %406 = vmatmul.bf16.gmra.mxu0 %v204
    %v407 = vpop.f32.mrf.mxu0
    %v408 = vadd.f32 %v184, %v407
    %v409 = vpop.f32.mrf.mxu0
    %v410 = vadd.f32 %v184, %v409
    %411 = vmatmul.bf16.gmra.mxu0 %v205
    %v412 = vpop.f32.mrf.mxu0
    %v413 = vadd.f32 %v184, %v412
    %v414 = vpop.f32.mrf.mxu0
    %v415 = vadd.f32 %v184, %v414
    %416 = vmatmul.bf16.gmra.mxu0 %v206
    %v417 = vpop.f32.mrf.mxu0
    %v418 = vadd.f32 %v184, %v417
    %v419 = vpop.f32.mrf.mxu0
    %v420 = vadd.f32 %v184, %v419
    %421 = vmatmul.bf16.gmra.mxu0 %v207
    %v422 = vpop.f32.mrf.mxu0
    %v423 = vadd.f32 %v184, %v422
    %v424 = vpop.f32.mrf.mxu0
    %v425 = vadd.f32 %v184, %v424
    %426 = vdwg.mxu0
    %427 = vst [vmem:[#allocation2] sm:$0xff] %v350
    %428 = vst [vmem:[#allocation2 + $0x8] sm:$0xff] %v379
    %429 = vst [vmem:[#allocation2 + $0x10] sm:$0xff] %v408
    %430 = vst [vmem:[#allocation2 + $0x18] sm:$0xff] %v352
    %431 = vst [vmem:[#allocation2 + $0x20] sm:$0xff] %v381
    %432 = vst [vmem:[#allocation2 + $0x28] sm:$0xff] %v410
    %433 = vst [vmem:[#allocation2 + $0x30] sm:$0xff] %v355
    %434 = vst [vmem:[#allocation2 + $0x38] sm:$0xff] %v384
    %435 = vst [vmem:[#allocation2 + $0x40] sm:$0xff] %v413
    %436 = vst [vmem:[#allocation2 + $0x48] sm:$0xff] %v357
    %437 = vst [vmem:[#allocation2 + $0x50] sm:$0xff] %v386
    %438 = vst [vmem:[#allocation2 + $0x58] sm:$0xff] %v415
    %439 = vst [vmem:[#allocation2 + $0x60] sm:$0xff] %v360
    %440 = vst [vmem:[#allocation2 + $0x68] sm:$0xff] %v389
    %441 = vst [vmem:[#allocation2 + $0x70] sm:$0xff] %v418
    %442 = vst [vmem:[#allocation2 + $0x78] sm:$0xff] %v362
    %443 = vst [vmem:[#allocation2 + $0x80] sm:$0xff] %v391
    %444 = vst [vmem:[#allocation2 + $0x88] sm:$0xff] %v420
    %445 = vst [vmem:[#allocation2 + $0x90] sm:$0xff] %v365
    %446 = vst [vmem:[#allocation2 + $0x98] sm:$0xff] %v394
    %447 = vst [vmem:[#allocation2 + $0xa0] sm:$0xff] %v423
    %448 = vst [vmem:[#allocation2 + $0xa8] sm:$0xff] %v367
    %449 = vst [vmem:[#allocation2 + $0xb0] sm:$0xff] %v396
    %450 = vst [vmem:[#allocation2 + $0xb8] sm:$0xff] %v425
    %s451 = scalar_lea.vmem [#allocation9], 192
    %v452 = vld [vmem:[%s451] sm:$0xff]
    %v453 = vld [vmem:[%s451 + $0x8] sm:$0xf]
    %v454 = vld [vmem:[%s451 + $0xc] sm:$0xff]
    %v455 = vld [vmem:[%s451 + $0x14] sm:$0xf]
    %v456 = vld [vmem:[%s451 + $0x18] sm:$0xff]
    %v457 = vld [vmem:[%s451 + $0x20] sm:$0xf]
    %v458 = vld [vmem:[%s451 + $0x24] sm:$0xff]
    %v459 = vld [vmem:[%s451 + $0x2c] sm:$0xf]
    %v460 = vld [vmem:[%s451 + $0x30] sm:$0xff]
    %v461 = vld [vmem:[%s451 + $0x38] sm:$0xf]
    %v462 = vld [vmem:[%s451 + $0x3c] sm:$0xff]
    %v463 = vld [vmem:[%s451 + $0x44] sm:$0xf]
    %v464 = vld [vmem:[%s451 + $0x48] sm:$0xff]
    %v465 = vld [vmem:[%s451 + $0x50] sm:$0xf]
    %v466 = vld [vmem:[%s451 + $0x54] sm:$0xff]
    %v467 = vld [vmem:[%s451 + $0x5c] sm:$0xf]
    %v468 = vld [vmem:[%s451 + $0x60] sm:$0xff]
    %v469 = vld [vmem:[%s451 + $0x68] sm:$0xf]
    %v470 = vld [vmem:[%s451 + $0x6c] sm:$0xff]
    %v471 = vld [vmem:[%s451 + $0x74] sm:$0xf]
    %v472 = vld [vmem:[%s451 + $0x78] sm:$0xff]
    %v473 = vld [vmem:[%s451 + $0x80] sm:$0xf]
    %v474 = vld [vmem:[%s451 + $0x84] sm:$0xff]
    %v475 = vld [vmem:[%s451 + $0x8c] sm:$0xf]
    %v476 = vld [vmem:[%s451 + $0x90] sm:$0xff]
    %v477 = vld [vmem:[%s451 + $0x98] sm:$0xf]
    %v478 = vld [vmem:[%s451 + $0x9c] sm:$0xff]
    %v479 = vld [vmem:[%s451 + $0xa4] sm:$0xf]
    %v480 = vld [vmem:[%s451 + $0xa8] sm:$0xff]
    %v481 = vld [vmem:[%s451 + $0xb0] sm:$0xf]
    %v482 = vld [vmem:[%s451 + $0xb4] sm:$0xff]
    %v483 = vld [vmem:[%s451 + $0xbc] sm:$0xf]
    %s484 = scalar_lea.vmem [#allocation15], 3
    %v485 = vld [vmem:[%s484] sm:$0x7]
    %v487 = vperm.slane %v485, 0
    %v488 = vperm.slane %v485, 1
    %v489 = vperm.slane %v485, 2
    %v525 = vunpack.c.l.b16 %v452
    %v526 = vunpack.c.h.b16 %v452
    %v527 = vunpack.c.l.b16 %v453
    %v528 = vunpack.c.l.b16 %v454
    %v529 = vunpack.c.h.b16 %v454
    %v530 = vunpack.c.l.b16 %v455
    %v531 = vunpack.c.l.b16 %v456
    %v532 = vunpack.c.h.b16 %v456
    %v533 = vunpack.c.l.b16 %v457
    %v534 = vunpack.c.l.b16 %v458
    %v535 = vunpack.c.h.b16 %v458
    %v536 = vunpack.c.l.b16 %v459
    %v537 = vunpack.c.l.b16 %v460
    %v538 = vunpack.c.h.b16 %v460
    %v539 = vunpack.c.l.b16 %v461
    %v540 = vunpack.c.l.b16 %v462
    %v541 = vunpack.c.h.b16 %v462
    %v542 = vunpack.c.l.b16 %v463
    %v543 = vunpack.c.l.b16 %v464
    %v544 = vunpack.c.h.b16 %v464
    %v545 = vunpack.c.l.b16 %v465
    %v546 = vunpack.c.l.b16 %v466
    %v547 = vunpack.c.h.b16 %v466
    %v548 = vunpack.c.l.b16 %v467
    %v549 = vunpack.c.l.b16 %v468
    %v550 = vunpack.c.h.b16 %v468
    %v551 = vunpack.c.l.b16 %v469
    %v552 = vunpack.c.l.b16 %v470
    %v553 = vunpack.c.h.b16 %v470
    %v554 = vunpack.c.l.b16 %v471
    %v555 = vunpack.c.l.b16 %v472
    %v556 = vunpack.c.h.b16 %v472
    %v557 = vunpack.c.l.b16 %v473
    %v558 = vunpack.c.l.b16 %v474
    %v559 = vunpack.c.h.b16 %v474
    %v560 = vunpack.c.l.b16 %v475
    %v561 = vunpack.c.l.b16 %v476
    %v562 = vunpack.c.h.b16 %v476
    %v563 = vunpack.c.l.b16 %v477
    %v564 = vunpack.c.l.b16 %v478
    %v565 = vunpack.c.h.b16 %v478
    %v566 = vunpack.c.l.b16 %v479
    %v567 = vunpack.c.l.b16 %v480
    %v568 = vunpack.c.h.b16 %v480
    %v569 = vunpack.c.l.b16 %v481
    %v570 = vunpack.c.l.b16 %v482
    %v571 = vunpack.c.h.b16 %v482
    %v572 = vunpack.c.l.b16 %v483
    %v573 = vpack.c.b16 %v528, %v525
    %v574 = vpack.c.b16 %v529, %v526
    %v575 = vpack.c.b16 %v530, %v527
    %v576 = vpack.c.b16 %v534, %v531
    %v577 = vpack.c.b16 %v535, %v532
    %v578 = vpack.c.b16 %v536, %v533
    %v579 = vpack.c.b16 %v540, %v537
    %v580 = vpack.c.b16 %v541, %v538
    %v581 = vpack.c.b16 %v542, %v539
    %v582 = vpack.c.b16 %v546, %v543
    %v583 = vpack.c.b16 %v547, %v544
    %v584 = vpack.c.b16 %v548, %v545
    %v585 = vpack.c.b16 %v552, %v549
    %v586 = vpack.c.b16 %v553, %v550
    %v587 = vpack.c.b16 %v554, %v551
    %v588 = vpack.c.b16 %v558, %v555
    %v589 = vpack.c.b16 %v559, %v556
    %v590 = vpack.c.b16 %v560, %v557
    %v591 = vpack.c.b16 %v564, %v561
    %v592 = vpack.c.b16 %v565, %v562
    %v593 = vpack.c.b16 %v566, %v563
    %v594 = vpack.c.b16 %v570, %v567
    %v595 = vpack.c.b16 %v571, %v568
    %v596 = vpack.c.b16 %v572, %v569
    %621 = vmatpush.bf16.msra.mxu0 %v594
    %622 = vmatpush.bf16.msra.mxu0 %v591
    %623 = vmatpush.bf16.msra.mxu0 %v588
    %624 = vmatpush.bf16.msra.mxu0 %v585
    %625 = vmatpush.bf16.msra.mxu0 %v582
    %626 = vmatpush.bf16.msra.mxu0 %v579
    %627 = vmatpush.bf16.msra.mxu0 %v576
    %628 = vmatpush.bf16.msra.mxu0 %v573
    %629 = vmatmul.bf16.gmra.mxu0 %v204
    %v630 = vpop.f32.mrf.mxu0
    %v631 = vadd.f32 %v487, %v630
    %v632 = vpop.f32.mrf.mxu0
    %v633 = vadd.f32 %v487, %v632
    %634 = vmatmul.bf16.gmra.mxu0 %v205
    %v635 = vpop.f32.mrf.mxu0
    %v636 = vadd.f32 %v487, %v635
    %v637 = vpop.f32.mrf.mxu0
    %v638 = vadd.f32 %v487, %v637
    %639 = vmatmul.bf16.gmra.mxu0 %v206
    %v640 = vpop.f32.mrf.mxu0
    %v641 = vadd.f32 %v487, %v640
    %v642 = vpop.f32.mrf.mxu0
    %v643 = vadd.f32 %v487, %v642
    %644 = vmatmul.bf16.gmra.mxu0 %v207
    %v645 = vpop.f32.mrf.mxu0
    %v646 = vadd.f32 %v487, %v645
    %v647 = vpop.f32.mrf.mxu0
    %v648 = vadd.f32 %v487, %v647
    %649 = vdwg.mxu0
    %650 = vmatpush.bf16.msra.mxu0 %v595
    %651 = vmatpush.bf16.msra.mxu0 %v592
    %652 = vmatpush.bf16.msra.mxu0 %v589
    %653 = vmatpush.bf16.msra.mxu0 %v586
    %654 = vmatpush.bf16.msra.mxu0 %v583
    %655 = vmatpush.bf16.msra.mxu0 %v580
    %656 = vmatpush.bf16.msra.mxu0 %v577
    %657 = vmatpush.bf16.msra.mxu0 %v574
    %658 = vmatmul.bf16.gmra.mxu0 %v204
    %v659 = vpop.f32.mrf.mxu0
    %v660 = vadd.f32 %v488, %v659
    %v661 = vpop.f32.mrf.mxu0
    %v662 = vadd.f32 %v488, %v661
    %663 = vmatmul.bf16.gmra.mxu0 %v205
    %v664 = vpop.f32.mrf.mxu0
    %v665 = vadd.f32 %v488, %v664
    %v666 = vpop.f32.mrf.mxu0
    %v667 = vadd.f32 %v488, %v666
    %668 = vmatmul.bf16.gmra.mxu0 %v206
    %v669 = vpop.f32.mrf.mxu0
    %v670 = vadd.f32 %v488, %v669
    %v671 = vpop.f32.mrf.mxu0
    %v672 = vadd.f32 %v488, %v671
    %673 = vmatmul.bf16.gmra.mxu0 %v207
    %v674 = vpop.f32.mrf.mxu0
    %v675 = vadd.f32 %v488, %v674
    %v676 = vpop.f32.mrf.mxu0
    %v677 = vadd.f32 %v488, %v676
    %678 = vdwg.mxu0
    %679 = vmatpush.bf16.msra.mxu0 %v596
    %680 = vmatpush.bf16.msra.mxu0 %v593
    %681 = vmatpush.bf16.msra.mxu0 %v590
    %682 = vmatpush.bf16.msra.mxu0 %v587
    %683 = vmatpush.bf16.msra.mxu0 %v584
    %684 = vmatpush.bf16.msra.mxu0 %v581
    %685 = vmatpush.bf16.msra.mxu0 %v578
    %686 = vmatpush.bf16.msra.mxu0 %v575
    %687 = vmatmul.bf16.gmra.mxu0 %v204
    %v688 = vpop.f32.mrf.mxu0
    %v689 = vadd.f32 %v489, %v688
    %v690 = vpop.f32.mrf.mxu0
    %v691 = vadd.f32 %v489, %v690
    %692 = vmatmul.bf16.gmra.mxu0 %v205
    %v693 = vpop.f32.mrf.mxu0
    %v694 = vadd.f32 %v489, %v693
    %v695 = vpop.f32.mrf.mxu0
    %v696 = vadd.f32 %v489, %v695
    %697 = vmatmul.bf16.gmra.mxu0 %v206
    %v698 = vpop.f32.mrf.mxu0
    %v699 = vadd.f32 %v489, %v698
    %v700 = vpop.f32.mrf.mxu0
    %v701 = vadd.f32 %v489, %v700
    %702 = vmatmul.bf16.gmra.mxu0 %v207
    %v703 = vpop.f32.mrf.mxu0
    %v704 = vadd.f32 %v489, %v703
    %v705 = vpop.f32.mrf.mxu0
    %v706 = vadd.f32 %v489, %v705
    %707 = vdwg.mxu0
    %708 = vst [vmem:[#allocation3] sm:$0xff] %v631
    %709 = vst [vmem:[#allocation3 + $0x8] sm:$0xff] %v660
    %710 = vst [vmem:[#allocation3 + $0x10] sm:$0xff] %v689
    %711 = vst [vmem:[#allocation3 + $0x18] sm:$0xff] %v633
    %712 = vst [vmem:[#allocation3 + $0x20] sm:$0xff] %v662
    %713 = vst [vmem:[#allocation3 + $0x28] sm:$0xff] %v691
    %714 = vst [vmem:[#allocation3 + $0x30] sm:$0xff] %v636
    %715 = vst [vmem:[#allocation3 + $0x38] sm:$0xff] %v665
    %716 = vst [vmem:[#allocation3 + $0x40] sm:$0xff] %v694
    %717 = vst [vmem:[#allocation3 + $0x48] sm:$0xff] %v638
    %718 = vst [vmem:[#allocation3 + $0x50] sm:$0xff] %v667
    %719 = vst [vmem:[#allocation3 + $0x58] sm:$0xff] %v696
    %720 = vst [vmem:[#allocation3 + $0x60] sm:$0xff] %v641
    %721 = vst [vmem:[#allocation3 + $0x68] sm:$0xff] %v670
    %722 = vst [vmem:[#allocation3 + $0x70] sm:$0xff] %v699
    %723 = vst [vmem:[#allocation3 + $0x78] sm:$0xff] %v643
    %724 = vst [vmem:[#allocation3 + $0x80] sm:$0xff] %v672
    %725 = vst [vmem:[#allocation3 + $0x88] sm:$0xff] %v701
    %726 = vst [vmem:[#allocation3 + $0x90] sm:$0xff] %v646
    %727 = vst [vmem:[#allocation3 + $0x98] sm:$0xff] %v675
    %728 = vst [vmem:[#allocation3 + $0xa0] sm:$0xff] %v704
    %729 = vst [vmem:[#allocation3 + $0xa8] sm:$0xff] %v648
    %730 = vst [vmem:[#allocation3 + $0xb0] sm:$0xff] %v677
    %731 = vst [vmem:[#allocation3 + $0xb8] sm:$0xff] %v706
    %v732 = vld [vmem:[#allocation11] sm:$0xff]
    %v733 = vld [vmem:[#allocation11 + $0x8] sm:$0xf]
    %v734 = vld [vmem:[#allocation11 + $0xc] sm:$0xff]
    %v735 = vld [vmem:[#allocation11 + $0x14] sm:$0xf]
    %v736 = vld [vmem:[#allocation11 + $0x18] sm:$0xff]
    %v737 = vld [vmem:[#allocation11 + $0x20] sm:$0xf]
    %v738 = vld [vmem:[#allocation11 + $0x24] sm:$0xff]
    %v739 = vld [vmem:[#allocation11 + $0x2c] sm:$0xf]
    %v740 = vld [vmem:[#allocation11 + $0x30] sm:$0xff]
    %v741 = vld [vmem:[#allocation11 + $0x38] sm:$0xf]
    %v742 = vld [vmem:[#allocation11 + $0x3c] sm:$0xff]
    %v743 = vld [vmem:[#allocation11 + $0x44] sm:$0xf]
    %v744 = vld [vmem:[#allocation11 + $0x48] sm:$0xff]
    %v745 = vld [vmem:[#allocation11 + $0x50] sm:$0xf]
    %v746 = vld [vmem:[#allocation11 + $0x54] sm:$0xff]
    %v747 = vld [vmem:[#allocation11 + $0x5c] sm:$0xf]
    %v748 = vld [vmem:[#allocation11 + $0x60] sm:$0xff]
    %v749 = vld [vmem:[#allocation11 + $0x68] sm:$0xf]
    %v750 = vld [vmem:[#allocation11 + $0x6c] sm:$0xff]
    %v751 = vld [vmem:[#allocation11 + $0x74] sm:$0xf]
    %v752 = vld [vmem:[#allocation11 + $0x78] sm:$0xff]
    %v753 = vld [vmem:[#allocation11 + $0x80] sm:$0xf]
    %v754 = vld [vmem:[#allocation11 + $0x84] sm:$0xff]
    %v755 = vld [vmem:[#allocation11 + $0x8c] sm:$0xf]
    %v756 = vld [vmem:[#allocation11 + $0x90] sm:$0xff]
    %v757 = vld [vmem:[#allocation11 + $0x98] sm:$0xf]
    %v758 = vld [vmem:[#allocation11 + $0x9c] sm:$0xff]
    %v759 = vld [vmem:[#allocation11 + $0xa4] sm:$0xf]
    %v760 = vld [vmem:[#allocation11 + $0xa8] sm:$0xff]
    %v761 = vld [vmem:[#allocation11 + $0xb0] sm:$0xf]
    %v762 = vld [vmem:[#allocation11 + $0xb4] sm:$0xff]
    %v763 = vld [vmem:[#allocation11 + $0xbc] sm:$0xf]
    %v764 = vld [vmem:[#allocation17] sm:$0x7]
    %v766 = vperm.slane %v764, 0
    %v767 = vperm.slane %v764, 1
    %v768 = vperm.slane %v764, 2
    %v804 = vunpack.c.l.b16 %v732
    %v805 = vunpack.c.h.b16 %v732
    %v806 = vunpack.c.l.b16 %v733
    %v807 = vunpack.c.l.b16 %v734
    %v808 = vunpack.c.h.b16 %v734
    %v809 = vunpack.c.l.b16 %v735
    %v810 = vunpack.c.l.b16 %v736
    %v811 = vunpack.c.h.b16 %v736
    %v812 = vunpack.c.l.b16 %v737
    %v813 = vunpack.c.l.b16 %v738
    %v814 = vunpack.c.h.b16 %v738
    %v815 = vunpack.c.l.b16 %v739
    %v816 = vunpack.c.l.b16 %v740
    %v817 = vunpack.c.h.b16 %v740
    %v818 = vunpack.c.l.b16 %v741
    %v819 = vunpack.c.l.b16 %v742
    %v820 = vunpack.c.h.b16 %v742
    %v821 = vunpack.c.l.b16 %v743
    %v822 = vunpack.c.l.b16 %v744
    %v823 = vunpack.c.h.b16 %v744
    %v824 = vunpack.c.l.b16 %v745
    %v825 = vunpack.c.l.b16 %v746
    %v826 = vunpack.c.h.b16 %v746
    %v827 = vunpack.c.l.b16 %v747
    %v828 = vunpack.c.l.b16 %v748
    %v829 = vunpack.c.h.b16 %v748
    %v830 = vunpack.c.l.b16 %v749
    %v831 = vunpack.c.l.b16 %v750
    %v832 = vunpack.c.h.b16 %v750
    %v833 = vunpack.c.l.b16 %v751
    %v834 = vunpack.c.l.b16 %v752
    %v835 = vunpack.c.h.b16 %v752
    %v836 = vunpack.c.l.b16 %v753
    %v837 = vunpack.c.l.b16 %v754
    %v838 = vunpack.c.h.b16 %v754
    %v839 = vunpack.c.l.b16 %v755
    %v840 = vunpack.c.l.b16 %v756
    %v841 = vunpack.c.h.b16 %v756
    %v842 = vunpack.c.l.b16 %v757
    %v843 = vunpack.c.l.b16 %v758
    %v844 = vunpack.c.h.b16 %v758
    %v845 = vunpack.c.l.b16 %v759
    %v846 = vunpack.c.l.b16 %v760
    %v847 = vunpack.c.h.b16 %v760
    %v848 = vunpack.c.l.b16 %v761
    %v849 = vunpack.c.l.b16 %v762
    %v850 = vunpack.c.h.b16 %v762
    %v851 = vunpack.c.l.b16 %v763
    %v852 = vpack.c.b16 %v807, %v804
    %v853 = vpack.c.b16 %v808, %v805
    %v854 = vpack.c.b16 %v809, %v806
    %v855 = vpack.c.b16 %v813, %v810
    %v856 = vpack.c.b16 %v814, %v811
    %v857 = vpack.c.b16 %v815, %v812
    %v858 = vpack.c.b16 %v819, %v816
    %v859 = vpack.c.b16 %v820, %v817
    %v860 = vpack.c.b16 %v821, %v818
    %v861 = vpack.c.b16 %v825, %v822
    %v862 = vpack.c.b16 %v826, %v823
    %v863 = vpack.c.b16 %v827, %v824
    %v864 = vpack.c.b16 %v831, %v828
    %v865 = vpack.c.b16 %v832, %v829
    %v866 = vpack.c.b16 %v833, %v830
    %v867 = vpack.c.b16 %v837, %v834
    %v868 = vpack.c.b16 %v838, %v835
    %v869 = vpack.c.b16 %v839, %v836
    %v870 = vpack.c.b16 %v843, %v840
    %v871 = vpack.c.b16 %v844, %v841
    %v872 = vpack.c.b16 %v845, %v842
    %v873 = vpack.c.b16 %v849, %v846
    %v874 = vpack.c.b16 %v850, %v847
    %v875 = vpack.c.b16 %v851, %v848
    %900 = vmatpush.bf16.msra.mxu0 %v873
    %901 = vmatpush.bf16.msra.mxu0 %v870
    %902 = vmatpush.bf16.msra.mxu0 %v867
    %903 = vmatpush.bf16.msra.mxu0 %v864
    %904 = vmatpush.bf16.msra.mxu0 %v861
    %905 = vmatpush.bf16.msra.mxu0 %v858
    %906 = vmatpush.bf16.msra.mxu0 %v855
    %907 = vmatpush.bf16.msra.mxu0 %v852
    %908 = vmatmul.bf16.gmra.mxu0 0
    %v909 = vpop.f32.mrf.mxu0
    %v910 = vadd.f32 %v766, %v909
    %v911 = vpop.f32.mrf.mxu0
    %912 = vdwg.mxu0
    %913 = vmatpush.bf16.msra.mxu0 %v874
    %914 = vmatpush.bf16.msra.mxu0 %v871
    %915 = vmatpush.bf16.msra.mxu0 %v868
    %916 = vmatpush.bf16.msra.mxu0 %v865
    %917 = vmatpush.bf16.msra.mxu0 %v862
    %918 = vmatpush.bf16.msra.mxu0 %v859
    %919 = vmatpush.bf16.msra.mxu0 %v856
    %920 = vmatpush.bf16.msra.mxu0 %v853
    %921 = vmatmul.bf16.gmra.mxu0 0
    %v922 = vpop.f32.mrf.mxu0
    %v923 = vadd.f32 %v767, %v922
    %v924 = vpop.f32.mrf.mxu0
    %925 = vdwg.mxu0
    %926 = vmatpush.bf16.msra.mxu0 %v875
    %927 = vmatpush.bf16.msra.mxu0 %v872
    %928 = vmatpush.bf16.msra.mxu0 %v869
    %929 = vmatpush.bf16.msra.mxu0 %v866
    %930 = vmatpush.bf16.msra.mxu0 %v863
    %931 = vmatpush.bf16.msra.mxu0 %v860
    %932 = vmatpush.bf16.msra.mxu0 %v857
    %933 = vmatpush.bf16.msra.mxu0 %v854
    %934 = vmatmul.bf16.gmra.mxu0 0
    %v935 = vpop.f32.mrf.mxu0
    %v936 = vadd.f32 %v768, %v935
    %v937 = vpop.f32.mrf.mxu0
    %938 = vdwg.mxu0
    %s939 = scalar_lea.vmem [#allocation11], 192
    %v940 = vld [vmem:[%s939] sm:$0xff]
    %v941 = vld [vmem:[%s939 + $0x8] sm:$0xf]
    %v942 = vld [vmem:[%s939 + $0xc] sm:$0xff]
    %v943 = vld [vmem:[%s939 + $0x14] sm:$0xf]
    %v944 = vld [vmem:[%s939 + $0x18] sm:$0xff]
    %v945 = vld [vmem:[%s939 + $0x20] sm:$0xf]
    %v946 = vld [vmem:[%s939 + $0x24] sm:$0xff]
    %v947 = vld [vmem:[%s939 + $0x2c] sm:$0xf]
    %v948 = vld [vmem:[%s939 + $0x30] sm:$0xff]
    %v949 = vld [vmem:[%s939 + $0x38] sm:$0xf]
    %v950 = vld [vmem:[%s939 + $0x3c] sm:$0xff]
    %v951 = vld [vmem:[%s939 + $0x44] sm:$0xf]
    %v952 = vld [vmem:[%s939 + $0x48] sm:$0xff]
    %v953 = vld [vmem:[%s939 + $0x50] sm:$0xf]
    %v954 = vld [vmem:[%s939 + $0x54] sm:$0xff]
    %v955 = vld [vmem:[%s939 + $0x5c] sm:$0xf]
    %v956 = vld [vmem:[%s939 + $0x60] sm:$0xff]
    %v957 = vld [vmem:[%s939 + $0x68] sm:$0xf]
    %v958 = vld [vmem:[%s939 + $0x6c] sm:$0xff]
    %v959 = vld [vmem:[%s939 + $0x74] sm:$0xf]
    %v960 = vld [vmem:[%s939 + $0x78] sm:$0xff]
    %v961 = vld [vmem:[%s939 + $0x80] sm:$0xf]
    %v962 = vld [vmem:[%s939 + $0x84] sm:$0xff]
    %v963 = vld [vmem:[%s939 + $0x8c] sm:$0xf]
    %v964 = vld [vmem:[%s939 + $0x90] sm:$0xff]
    %v965 = vld [vmem:[%s939 + $0x98] sm:$0xf]
    %v966 = vld [vmem:[%s939 + $0x9c] sm:$0xff]
    %v967 = vld [vmem:[%s939 + $0xa4] sm:$0xf]
    %v968 = vld [vmem:[%s939 + $0xa8] sm:$0xff]
    %v969 = vld [vmem:[%s939 + $0xb0] sm:$0xf]
    %v970 = vld [vmem:[%s939 + $0xb4] sm:$0xff]
    %v971 = vld [vmem:[%s939 + $0xbc] sm:$0xf]
    %s972 = scalar_lea.vmem [#allocation17], 3
    %v973 = vld [vmem:[%s972] sm:$0x7]
    %v975 = vperm.slane %v973, 0
    %v976 = vperm.slane %v973, 1
    %v977 = vperm.slane %v973, 2
    %v1013 = vunpack.c.l.b16 %v940
    %v1014 = vunpack.c.h.b16 %v940
    %v1015 = vunpack.c.l.b16 %v941
    %v1016 = vunpack.c.l.b16 %v942
    %v1017 = vunpack.c.h.b16 %v942
    %v1018 = vunpack.c.l.b16 %v943
    %v1019 = vunpack.c.l.b16 %v944
    %v1020 = vunpack.c.h.b16 %v944
    %v1021 = vunpack.c.l.b16 %v945
    %v1022 = vunpack.c.l.b16 %v946
    %v1023 = vunpack.c.h.b16 %v946
    %v1024 = vunpack.c.l.b16 %v947
    %v1025 = vunpack.c.l.b16 %v948
    %v1026 = vunpack.c.h.b16 %v948
    %v1027 = vunpack.c.l.b16 %v949
    %v1028 = vunpack.c.l.b16 %v950
    %v1029 = vunpack.c.h.b16 %v950
    %v1030 = vunpack.c.l.b16 %v951
    %v1031 = vunpack.c.l.b16 %v952
    %v1032 = vunpack.c.h.b16 %v952
    %v1033 = vunpack.c.l.b16 %v953
    %v1034 = vunpack.c.l.b16 %v954
    %v1035 = vunpack.c.h.b16 %v954
    %v1036 = vunpack.c.l.b16 %v955
    %v1037 = vunpack.c.l.b16 %v956
    %v1038 = vunpack.c.h.b16 %v956
    %v1039 = vunpack.c.l.b16 %v957
    %v1040 = vunpack.c.l.b16 %v958
    %v1041 = vunpack.c.h.b16 %v958
    %v1042 = vunpack.c.l.b16 %v959
    %v1043 = vunpack.c.l.b16 %v960
    %v1044 = vunpack.c.h.b16 %v960
    %v1045 = vunpack.c.l.b16 %v961
    %v1046 = vunpack.c.l.b16 %v962
    %v1047 = vunpack.c.h.b16 %v962
    %v1048 = vunpack.c.l.b16 %v963
    %v1049 = vunpack.c.l.b16 %v964
    %v1050 = vunpack.c.h.b16 %v964
    %v1051 = vunpack.c.l.b16 %v965
    %v1052 = vunpack.c.l.b16 %v966
    %v1053 = vunpack.c.h.b16 %v966
    %v1054 = vunpack.c.l.b16 %v967
    %v1055 = vunpack.c.l.b16 %v968
    %v1056 = vunpack.c.h.b16 %v968
    %v1057 = vunpack.c.l.b16 %v969
    %v1058 = vunpack.c.l.b16 %v970
    %v1059 = vunpack.c.h.b16 %v970
    %v1060 = vunpack.c.l.b16 %v971
    %v1061 = vpack.c.b16 %v1016, %v1013
    %v1062 = vpack.c.b16 %v1017, %v1014
    %v1063 = vpack.c.b16 %v1018, %v1015
    %v1064 = vpack.c.b16 %v1022, %v1019
    %v1065 = vpack.c.b16 %v1023, %v1020
    %v1066 = vpack.c.b16 %v1024, %v1021
    %v1067 = vpack.c.b16 %v1028, %v1025
    %v1068 = vpack.c.b16 %v1029, %v1026
    %v1069 = vpack.c.b16 %v1030, %v1027
    %v1070 = vpack.c.b16 %v1034, %v1031
    %v1071 = vpack.c.b16 %v1035, %v1032
    %v1072 = vpack.c.b16 %v1036, %v1033
    %v1073 = vpack.c.b16 %v1040, %v1037
    %v1074 = vpack.c.b16 %v1041, %v1038
    %v1075 = vpack.c.b16 %v1042, %v1039
    %v1076 = vpack.c.b16 %v1046, %v1043
    %v1077 = vpack.c.b16 %v1047, %v1044
    %v1078 = vpack.c.b16 %v1048, %v1045
    %v1079 = vpack.c.b16 %v1052, %v1049
    %v1080 = vpack.c.b16 %v1053, %v1050
    %v1081 = vpack.c.b16 %v1054, %v1051
    %v1082 = vpack.c.b16 %v1058, %v1055
    %v1083 = vpack.c.b16 %v1059, %v1056
    %v1084 = vpack.c.b16 %v1060, %v1057
    %1109 = vmatpush.bf16.msra.mxu0 %v1082
    %1110 = vmatpush.bf16.msra.mxu0 %v1079
    %1111 = vmatpush.bf16.msra.mxu0 %v1076
    %1112 = vmatpush.bf16.msra.mxu0 %v1073
    %1113 = vmatpush.bf16.msra.mxu0 %v1070
    %1114 = vmatpush.bf16.msra.mxu0 %v1067
    %1115 = vmatpush.bf16.msra.mxu0 %v1064
    %1116 = vmatpush.bf16.msra.mxu0 %v1061
    %1117 = vmatmul.bf16.gmra.mxu0 0
    %v1118 = vpop.f32.mrf.mxu0
    %v1119 = vadd.f32 %v975, %v1118
    %v1120 = vpop.f32.mrf.mxu0
    %1121 = vdwg.mxu0
    %1122 = vmatpush.bf16.msra.mxu0 %v1083
    %1123 = vmatpush.bf16.msra.mxu0 %v1080
    %1124 = vmatpush.bf16.msra.mxu0 %v1077
    %1125 = vmatpush.bf16.msra.mxu0 %v1074
    %1126 = vmatpush.bf16.msra.mxu0 %v1071
    %1127 = vmatpush.bf16.msra.mxu0 %v1068
    %1128 = vmatpush.bf16.msra.mxu0 %v1065
    %1129 = vmatpush.bf16.msra.mxu0 %v1062
    %1130 = vmatmul.bf16.gmra.mxu0 0
    %v1131 = vpop.f32.mrf.mxu0
    %v1132 = vadd.f32 %v976, %v1131
    %v1133 = vpop.f32.mrf.mxu0
    %1134 = vdwg.mxu0
    %1135 = vmatpush.bf16.msra.mxu0 %v1084
    %1136 = vmatpush.bf16.msra.mxu0 %v1081
    %1137 = vmatpush.bf16.msra.mxu0 %v1078
    %1138 = vmatpush.bf16.msra.mxu0 %v1075
    %1139 = vmatpush.bf16.msra.mxu0 %v1072
    %1140 = vmatpush.bf16.msra.mxu0 %v1069
    %1141 = vmatpush.bf16.msra.mxu0 %v1066
    %1142 = vmatpush.bf16.msra.mxu0 %v1063
    %1143 = vmatmul.bf16.gmra.mxu0 0
    %v1144 = vpop.f32.mrf.mxu0
    %v1145 = vadd.f32 %v977, %v1144
    %v1146 = vpop.f32.mrf.mxu0
    %1147 = vdwg.mxu0
    %v1148 = vld [vmem:[#allocation2] sm:$0xff]
    %v1149 = vld [vmem:[#allocation2 + $0x8] sm:$0xff]
    %v1150 = vld [vmem:[#allocation2 + $0x10] sm:$0xff]
    %v1151 = vld [vmem:[#allocation3 + $0xa8] sm:$0xff]
    %v1152 = vld [vmem:[#allocation3 + $0xb0] sm:$0xff]
    %v1153 = vld [vmem:[#allocation3 + $0xb8] sm:$0xff]
    %v1154 = vadd.f32 %v1148, %v910
    %v1155 = vxor.u32 %v1154, 2147483648
    %v1156 = vmul.f32 %v1155, 1.442695
    %v1157 = vpow.pop %v1156
    %v1158 = vadd.f32 %v1157, 1.0
    %v1159 = vrcp.pop %v1158
    %v1160 = vmul.f32 %v1158, %v1159
    %v1161 = vsub.f32 1.0, %v1160
    %v1162 = vmul.f32 %v1159, %v1161
    %v1163 = vadd.f32 %v1159, %v1162
    %vm1164 = vweird.f32 %v1158
    %vm1165 = vweird.f32 %v1159
    %vm1166 = vmor %vm1164, %vm1165
    %v1167 = vsel %vm1166, %v1159, %v1163
    %v1168 = vand.u32 2147483647, %v1158
    %vm1169 = vcmp.eq.f32.partialorder %v1168, 8.507059e+37
    %v1170 = vand.u32 %v1158, 2147483648
    %v1171 = vor.u32 1.1754944e-38, %v1170
    %v1172 = vsel %vm1169, %v1171, %v1167
    %v1173 = vmul.f32 1.0, %v1172
    %v1174 = vadd.f32 %v1149, %v923
    %v1175 = vxor.u32 %v1174, 2147483648
    %v1176 = vmul.f32 %v1175, 1.442695
    %v1177 = vpow.pop %v1176
    %v1178 = vadd.f32 %v1177, 1.0
    %v1179 = vrcp.pop %v1178
    %v1180 = vmul.f32 %v1178, %v1179
    %v1181 = vsub.f32 1.0, %v1180
    %v1182 = vmul.f32 %v1179, %v1181
    %v1183 = vadd.f32 %v1179, %v1182
    %vm1184 = vweird.f32 %v1178
    %vm1185 = vweird.f32 %v1179
    %vm1186 = vmor %vm1184, %vm1185
    %v1187 = vsel %vm1186, %v1179, %v1183
    %v1188 = vand.u32 2147483647, %v1178
    %vm1189 = vcmp.eq.f32.partialorder %v1188, 8.507059e+37
    %v1190 = vand.u32 %v1178, 2147483648
    %v1191 = vor.u32 1.1754944e-38, %v1190
    %v1192 = vsel %vm1189, %v1191, %v1187
    %v1193 = vmul.f32 1.0, %v1192
    %v1194 = vmul.f32 %v1173, %v936
    %v1195 = vadd.f32 %v1150, %v1194
    %v1196 = vtanh.pop %v1195
    %v1197 = vsub.f32 1.0, %v1193
    %v1198 = vmul.f32 %v1197, %v1196
    %v1199 = vmul.f32 %v1193, 0.0
    %v1200 = vadd.f32 %v1198, %v1199
    %v1201 = vadd.f32 %v1151, %v1119
    %v1202 = vxor.u32 %v1201, 2147483648
    %v1203 = vmul.f32 %v1202, 1.442695
    %v1204 = vpow.pop %v1203
    %v1205 = vadd.f32 %v1204, 1.0
    %v1206 = vrcp.pop %v1205
    %v1207 = vmul.f32 %v1205, %v1206
    %v1208 = vsub.f32 1.0, %v1207
    %v1209 = vmul.f32 %v1206, %v1208
    %v1210 = vadd.f32 %v1206, %v1209
    %vm1211 = vweird.f32 %v1205
    %vm1212 = vweird.f32 %v1206
    %vm1213 = vmor %vm1211, %vm1212
    %v1214 = vsel %vm1213, %v1206, %v1210
    %v1215 = vand.u32 2147483647, %v1205
    %vm1216 = vcmp.eq.f32.partialorder %v1215, 8.507059e+37
    %v1217 = vand.u32 %v1205, 2147483648
    %v1218 = vor.u32 1.1754944e-38, %v1217
    %v1219 = vsel %vm1216, %v1218, %v1214
    %v1220 = vmul.f32 1.0, %v1219
    %v1221 = vadd.f32 %v1152, %v1132
    %v1222 = vxor.u32 %v1221, 2147483648
    %v1223 = vmul.f32 %v1222, 1.442695
    %v1224 = vpow.pop %v1223
    %v1225 = vadd.f32 %v1224, 1.0
    %v1226 = vrcp.pop %v1225
    %v1227 = vmul.f32 %v1225, %v1226
    %v1228 = vsub.f32 1.0, %v1227
    %v1229 = vmul.f32 %v1226, %v1228
    %v1230 = vadd.f32 %v1226, %v1229
    %vm1231 = vweird.f32 %v1225
    %vm1232 = vweird.f32 %v1226
    %vm1233 = vmor %vm1231, %vm1232
    %v1234 = vsel %vm1233, %v1226, %v1230
    %v1235 = vand.u32 2147483647, %v1225
    %vm1236 = vcmp.eq.f32.partialorder %v1235, 8.507059e+37
    %v1237 = vand.u32 %v1225, 2147483648
    %v1238 = vor.u32 1.1754944e-38, %v1237
    %v1239 = vsel %vm1236, %v1238, %v1234
    %v1240 = vmul.f32 1.0, %v1239
    %v1241 = vmul.f32 %v1220, %v1145
    %v1242 = vadd.f32 %v1153, %v1241
    %v1243 = vtanh.pop %v1242
    %v1244 = vsub.f32 1.0, %v1240
    %v1245 = vmul.f32 %v1244, %v1243
    %v1246 = vmul.f32 %v1240, 0.0
    %v1247 = vadd.f32 %v1245, %v1246
    %1248 = vst [vmem:[#allocation4] sm:$0xff] %v1200
    %1249 = vst [vmem:[#allocation5 + $0x38] sm:$0xff] %v1247
    %v1250 = vpack.c.bf16 %v1200, %v1200
    %v1251 = vld [vmem:[#allocation11] sm:$0xff]
    %v1252 = vld [vmem:[#allocation11 + $0x8] sm:$0xf]
    %v1253 = vld [vmem:[#allocation11 + $0xc] sm:$0xff]
    %v1254 = vld [vmem:[#allocation11 + $0x14] sm:$0xf]
    %v1255 = vld [vmem:[#allocation11 + $0x18] sm:$0xff]
    %v1256 = vld [vmem:[#allocation11 + $0x20] sm:$0xf]
    %v1257 = vld [vmem:[#allocation11 + $0x24] sm:$0xff]
    %v1258 = vld [vmem:[#allocation11 + $0x2c] sm:$0xf]
    %v1259 = vld [vmem:[#allocation11 + $0x30] sm:$0xff]
    %v1260 = vld [vmem:[#allocation11 + $0x38] sm:$0xf]
    %v1261 = vld [vmem:[#allocation11 + $0x3c] sm:$0xff]
    %v1262 = vld [vmem:[#allocation11 + $0x44] sm:$0xf]
    %v1263 = vld [vmem:[#allocation11 + $0x48] sm:$0xff]
    %v1264 = vld [vmem:[#allocation11 + $0x50] sm:$0xf]
    %v1265 = vld [vmem:[#allocation11 + $0x54] sm:$0xff]
    %v1266 = vld [vmem:[#allocation11 + $0x5c] sm:$0xf]
    %v1267 = vld [vmem:[#allocation11 + $0x60] sm:$0xff]
    %v1268 = vld [vmem:[#allocation11 + $0x68] sm:$0xf]
    %v1269 = vld [vmem:[#allocation11 + $0x6c] sm:$0xff]
    %v1270 = vld [vmem:[#allocation11 + $0x74] sm:$0xf]
    %v1271 = vld [vmem:[#allocation11 + $0x78] sm:$0xff]
    %v1272 = vld [vmem:[#allocation11 + $0x80] sm:$0xf]
    %v1273 = vld [vmem:[#allocation11 + $0x84] sm:$0xff]
    %v1274 = vld [vmem:[#allocation11 + $0x8c] sm:$0xf]
    %v1275 = vld [vmem:[#allocation11 + $0x90] sm:$0xff]
    %v1276 = vld [vmem:[#allocation11 + $0x98] sm:$0xf]
    %v1277 = vld [vmem:[#allocation11 + $0x9c] sm:$0xff]
    %v1278 = vld [vmem:[#allocation11 + $0xa4] sm:$0xf]
    %v1279 = vld [vmem:[#allocation11 + $0xa8] sm:$0xff]
    %v1280 = vld [vmem:[#allocation11 + $0xb0] sm:$0xf]
    %v1281 = vld [vmem:[#allocation11 + $0xb4] sm:$0xff]
    %v1282 = vld [vmem:[#allocation11 + $0xbc] sm:$0xf]
    %v1283 = vld [vmem:[#allocation17] sm:$0x7]
    %v1285 = vperm.slane %v1283, 0
    %v1286 = vperm.slane %v1283, 1
    %v1287 = vperm.slane %v1283, 2
    %v1323 = vunpack.c.l.b16 %v1251
    %v1324 = vunpack.c.h.b16 %v1251
    %v1325 = vunpack.c.l.b16 %v1252
    %v1326 = vunpack.c.l.b16 %v1253
    %v1327 = vunpack.c.h.b16 %v1253
    %v1328 = vunpack.c.l.b16 %v1254
    %v1329 = vunpack.c.l.b16 %v1255
    %v1330 = vunpack.c.h.b16 %v1255
    %v1331 = vunpack.c.l.b16 %v1256
    %v1332 = vunpack.c.l.b16 %v1257
    %v1333 = vunpack.c.h.b16 %v1257
    %v1334 = vunpack.c.l.b16 %v1258
    %v1335 = vunpack.c.l.b16 %v1259
    %v1336 = vunpack.c.h.b16 %v1259
    %v1337 = vunpack.c.l.b16 %v1260
    %v1338 = vunpack.c.l.b16 %v1261
    %v1339 = vunpack.c.h.b16 %v1261
    %v1340 = vunpack.c.l.b16 %v1262
    %v1341 = vunpack.c.l.b16 %v1263
    %v1342 = vunpack.c.h.b16 %v1263
    %v1343 = vunpack.c.l.b16 %v1264
    %v1344 = vunpack.c.l.b16 %v1265
    %v1345 = vunpack.c.h.b16 %v1265
    %v1346 = vunpack.c.l.b16 %v1266
    %v1347 = vunpack.c.l.b16 %v1267
    %v1348 = vunpack.c.h.b16 %v1267
    %v1349 = vunpack.c.l.b16 %v1268
    %v1350 = vunpack.c.l.b16 %v1269
    %v1351 = vunpack.c.h.b16 %v1269
    %v1352 = vunpack.c.l.b16 %v1270
    %v1353 = vunpack.c.l.b16 %v1271
    %v1354 = vunpack.c.h.b16 %v1271
    %v1355 = vunpack.c.l.b16 %v1272
    %v1356 = vunpack.c.l.b16 %v1273
    %v1357 = vunpack.c.h.b16 %v1273
    %v1358 = vunpack.c.l.b16 %v1274
    %v1359 = vunpack.c.l.b16 %v1275
    %v1360 = vunpack.c.h.b16 %v1275
    %v1361 = vunpack.c.l.b16 %v1276
    %v1362 = vunpack.c.l.b16 %v1277
    %v1363 = vunpack.c.h.b16 %v1277
    %v1364 = vunpack.c.l.b16 %v1278
    %v1365 = vunpack.c.l.b16 %v1279
    %v1366 = vunpack.c.h.b16 %v1279
    %v1367 = vunpack.c.l.b16 %v1280
    %v1368 = vunpack.c.l.b16 %v1281
    %v1369 = vunpack.c.h.b16 %v1281
    %v1370 = vunpack.c.l.b16 %v1282
    %v1371 = vpack.c.b16 %v1326, %v1323
    %v1372 = vpack.c.b16 %v1327, %v1324
    %v1373 = vpack.c.b16 %v1328, %v1325
    %v1374 = vpack.c.b16 %v1332, %v1329
    %v1375 = vpack.c.b16 %v1333, %v1330
    %v1376 = vpack.c.b16 %v1334, %v1331
    %v1377 = vpack.c.b16 %v1338, %v1335
    %v1378 = vpack.c.b16 %v1339, %v1336
    %v1379 = vpack.c.b16 %v1340, %v1337
    %v1380 = vpack.c.b16 %v1344, %v1341
    %v1381 = vpack.c.b16 %v1345, %v1342
    %v1382 = vpack.c.b16 %v1346, %v1343
    %v1383 = vpack.c.b16 %v1350, %v1347
    %v1384 = vpack.c.b16 %v1351, %v1348
    %v1385 = vpack.c.b16 %v1352, %v1349
    %v1386 = vpack.c.b16 %v1356, %v1353
    %v1387 = vpack.c.b16 %v1357, %v1354
    %v1388 = vpack.c.b16 %v1358, %v1355
    %v1389 = vpack.c.b16 %v1362, %v1359
    %v1390 = vpack.c.b16 %v1363, %v1360
    %v1391 = vpack.c.b16 %v1364, %v1361
    %v1392 = vpack.c.b16 %v1368, %v1365
    %v1393 = vpack.c.b16 %v1369, %v1366
    %v1394 = vpack.c.b16 %v1370, %v1367
    %1419 = vmatpush.bf16.msra.mxu0 %v1392
    %1420 = vmatpush.bf16.msra.mxu0 %v1389
    %1421 = vmatpush.bf16.msra.mxu0 %v1386
    %1422 = vmatpush.bf16.msra.mxu0 %v1383
    %1423 = vmatpush.bf16.msra.mxu0 %v1380
    %1424 = vmatpush.bf16.msra.mxu0 %v1377
    %1425 = vmatpush.bf16.msra.mxu0 %v1374
    %1426 = vmatpush.bf16.msra.mxu0 %v1371
    %1427 = vmatmul.bf16.gmra.mxu0 %v1250
    %v1428 = vpop.f32.mrf.mxu0
    %v1429 = vadd.f32 %v1285, %v1428
    %v1430 = vpop.f32.mrf.mxu0
    %1431 = vdwg.mxu0
    %1432 = vmatpush.bf16.msra.mxu0 %v1393
    %1433 = vmatpush.bf16.msra.mxu0 %v1390
    %1434 = vmatpush.bf16.msra.mxu0 %v1387
    %1435 = vmatpush.bf16.msra.mxu0 %v1384
    %1436 = vmatpush.bf16.msra.mxu0 %v1381
    %1437 = vmatpush.bf16.msra.mxu0 %v1378
    %1438 = vmatpush.bf16.msra.mxu0 %v1375
    %1439 = vmatpush.bf16.msra.mxu0 %v1372
    %1440 = vmatmul.bf16.gmra.mxu0 %v1250
    %v1441 = vpop.f32.mrf.mxu0
    %v1442 = vadd.f32 %v1286, %v1441
    %v1443 = vpop.f32.mrf.mxu0
    %1444 = vdwg.mxu0
    %1445 = vmatpush.bf16.msra.mxu0 %v1394
    %1446 = vmatpush.bf16.msra.mxu0 %v1391
    %1447 = vmatpush.bf16.msra.mxu0 %v1388
    %1448 = vmatpush.bf16.msra.mxu0 %v1385
    %1449 = vmatpush.bf16.msra.mxu0 %v1382
    %1450 = vmatpush.bf16.msra.mxu0 %v1379
    %1451 = vmatpush.bf16.msra.mxu0 %v1376
    %1452 = vmatpush.bf16.msra.mxu0 %v1373
    %1453 = vmatmul.bf16.gmra.mxu0 %v1250
    %v1454 = vpop.f32.mrf.mxu0
    %v1455 = vadd.f32 %v1287, %v1454
    %v1456 = vpop.f32.mrf.mxu0
    %1457 = vdwg.mxu0
    %v1458 = vpack.c.bf16 %v1247, %v1247
    %v1459 = vld [vmem:[%s939] sm:$0xff]
    %v1460 = vld [vmem:[%s939 + $0x8] sm:$0xf]
    %v1461 = vld [vmem:[%s939 + $0xc] sm:$0xff]
    %v1462 = vld [vmem:[%s939 + $0x14] sm:$0xf]
    %v1463 = vld [vmem:[%s939 + $0x18] sm:$0xff]
    %v1464 = vld [vmem:[%s939 + $0x20] sm:$0xf]
    %v1465 = vld [vmem:[%s939 + $0x24] sm:$0xff]
    %v1466 = vld [vmem:[%s939 + $0x2c] sm:$0xf]
    %v1467 = vld [vmem:[%s939 + $0x30] sm:$0xff]
    %v1468 = vld [vmem:[%s939 + $0x38] sm:$0xf]
    %v1469 = vld [vmem:[%s939 + $0x3c] sm:$0xff]
    %v1470 = vld [vmem:[%s939 + $0x44] sm:$0xf]
    %v1471 = vld [vmem:[%s939 + $0x48] sm:$0xff]
    %v1472 = vld [vmem:[%s939 + $0x50] sm:$0xf]
    %v1473 = vld [vmem:[%s939 + $0x54] sm:$0xff]
    %v1474 = vld [vmem:[%s939 + $0x5c] sm:$0xf]
    %v1475 = vld [vmem:[%s939 + $0x60] sm:$0xff]
    %v1476 = vld [vmem:[%s939 + $0x68] sm:$0xf]
    %v1477 = vld [vmem:[%s939 + $0x6c] sm:$0xff]
    %v1478 = vld [vmem:[%s939 + $0x74] sm:$0xf]
    %v1479 = vld [vmem:[%s939 + $0x78] sm:$0xff]
    %v1480 = vld [vmem:[%s939 + $0x80] sm:$0xf]
    %v1481 = vld [vmem:[%s939 + $0x84] sm:$0xff]
    %v1482 = vld [vmem:[%s939 + $0x8c] sm:$0xf]
    %v1483 = vld [vmem:[%s939 + $0x90] sm:$0xff]
    %v1484 = vld [vmem:[%s939 + $0x98] sm:$0xf]
    %v1485 = vld [vmem:[%s939 + $0x9c] sm:$0xff]
    %v1486 = vld [vmem:[%s939 + $0xa4] sm:$0xf]
    %v1487 = vld [vmem:[%s939 + $0xa8] sm:$0xff]
    %v1488 = vld [vmem:[%s939 + $0xb0] sm:$0xf]
    %v1489 = vld [vmem:[%s939 + $0xb4] sm:$0xff]
    %v1490 = vld [vmem:[%s939 + $0xbc] sm:$0xf]
    %v1491 = vld [vmem:[%s972] sm:$0x7]
    %v1493 = vperm.slane %v1491, 0
    %v1494 = vperm.slane %v1491, 1
    %v1495 = vperm.slane %v1491, 2
    %v1531 = vunpack.c.l.b16 %v1459
    %v1532 = vunpack.c.h.b16 %v1459
    %v1533 = vunpack.c.l.b16 %v1460
    %v1534 = vunpack.c.l.b16 %v1461
    %v1535 = vunpack.c.h.b16 %v1461
    %v1536 = vunpack.c.l.b16 %v1462
    %v1537 = vunpack.c.l.b16 %v1463
    %v1538 = vunpack.c.h.b16 %v1463
    %v1539 = vunpack.c.l.b16 %v1464
    %v1540 = vunpack.c.l.b16 %v1465
    %v1541 = vunpack.c.h.b16 %v1465
    %v1542 = vunpack.c.l.b16 %v1466
    %v1543 = vunpack.c.l.b16 %v1467
    %v1544 = vunpack.c.h.b16 %v1467
    %v1545 = vunpack.c.l.b16 %v1468
    %v1546 = vunpack.c.l.b16 %v1469
    %v1547 = vunpack.c.h.b16 %v1469
    %v1548 = vunpack.c.l.b16 %v1470
    %v1549 = vunpack.c.l.b16 %v1471
    %v1550 = vunpack.c.h.b16 %v1471
    %v1551 = vunpack.c.l.b16 %v1472
    %v1552 = vunpack.c.l.b16 %v1473
    %v1553 = vunpack.c.h.b16 %v1473
    %v1554 = vunpack.c.l.b16 %v1474
    %v1555 = vunpack.c.l.b16 %v1475
    %v1556 = vunpack.c.h.b16 %v1475
    %v1557 = vunpack.c.l.b16 %v1476
    %v1558 = vunpack.c.l.b16 %v1477
    %v1559 = vunpack.c.h.b16 %v1477
    %v1560 = vunpack.c.l.b16 %v1478
    %v1561 = vunpack.c.l.b16 %v1479
    %v1562 = vunpack.c.h.b16 %v1479
    %v1563 = vunpack.c.l.b16 %v1480
    %v1564 = vunpack.c.l.b16 %v1481
    %v1565 = vunpack.c.h.b16 %v1481
    %v1566 = vunpack.c.l.b16 %v1482
    %v1567 = vunpack.c.l.b16 %v1483
    %v1568 = vunpack.c.h.b16 %v1483
    %v1569 = vunpack.c.l.b16 %v1484
    %v1570 = vunpack.c.l.b16 %v1485
    %v1571 = vunpack.c.h.b16 %v1485
    %v1572 = vunpack.c.l.b16 %v1486
    %v1573 = vunpack.c.l.b16 %v1487
    %v1574 = vunpack.c.h.b16 %v1487
    %v1575 = vunpack.c.l.b16 %v1488
    %v1576 = vunpack.c.l.b16 %v1489
    %v1577 = vunpack.c.h.b16 %v1489
    %v1578 = vunpack.c.l.b16 %v1490
    %v1579 = vpack.c.b16 %v1534, %v1531
    %v1580 = vpack.c.b16 %v1535, %v1532
    %v1581 = vpack.c.b16 %v1536, %v1533
    %v1582 = vpack.c.b16 %v1540, %v1537
    %v1583 = vpack.c.b16 %v1541, %v1538
    %v1584 = vpack.c.b16 %v1542, %v1539
    %v1585 = vpack.c.b16 %v1546, %v1543
    %v1586 = vpack.c.b16 %v1547, %v1544
    %v1587 = vpack.c.b16 %v1548, %v1545
    %v1588 = vpack.c.b16 %v1552, %v1549
    %v1589 = vpack.c.b16 %v1553, %v1550
    %v1590 = vpack.c.b16 %v1554, %v1551
    %v1591 = vpack.c.b16 %v1558, %v1555
    %v1592 = vpack.c.b16 %v1559, %v1556
    %v1593 = vpack.c.b16 %v1560, %v1557
    %v1594 = vpack.c.b16 %v1564, %v1561
    %v1595 = vpack.c.b16 %v1565, %v1562
    %v1596 = vpack.c.b16 %v1566, %v1563
    %v1597 = vpack.c.b16 %v1570, %v1567
    %v1598 = vpack.c.b16 %v1571, %v1568
    %v1599 = vpack.c.b16 %v1572, %v1569
    %v1600 = vpack.c.b16 %v1576, %v1573
    %v1601 = vpack.c.b16 %v1577, %v1574
    %v1602 = vpack.c.b16 %v1578, %v1575
    %1627 = vmatpush.bf16.msra.mxu0 %v1600
    %1628 = vmatpush.bf16.msra.mxu0 %v1597
    %1629 = vmatpush.bf16.msra.mxu0 %v1594
    %1630 = vmatpush.bf16.msra.mxu0 %v1591
    %1631 = vmatpush.bf16.msra.mxu0 %v1588
    %1632 = vmatpush.bf16.msra.mxu0 %v1585
    %1633 = vmatpush.bf16.msra.mxu0 %v1582
    %1634 = vmatpush.bf16.msra.mxu0 %v1579
    %1635 = vmatmul.bf16.gmra.mxu0 %v1458
    %v1636 = vpop.f32.mrf.mxu0
    %v1637 = vadd.f32 %v1493, %v1636
    %v1638 = vpop.f32.mrf.mxu0
    %1639 = vdwg.mxu0
    %1640 = vmatpush.bf16.msra.mxu0 %v1601
    %1641 = vmatpush.bf16.msra.mxu0 %v1598
    %1642 = vmatpush.bf16.msra.mxu0 %v1595
    %1643 = vmatpush.bf16.msra.mxu0 %v1592
    %1644 = vmatpush.bf16.msra.mxu0 %v1589
    %1645 = vmatpush.bf16.msra.mxu0 %v1586
    %1646 = vmatpush.bf16.msra.mxu0 %v1583
    %1647 = vmatpush.bf16.msra.mxu0 %v1580
    %1648 = vmatmul.bf16.gmra.mxu0 %v1458
    %v1649 = vpop.f32.mrf.mxu0
    %v1650 = vadd.f32 %v1494, %v1649
    %v1651 = vpop.f32.mrf.mxu0
    %1652 = vdwg.mxu0
    %1653 = vmatpush.bf16.msra.mxu0 %v1602
    %1654 = vmatpush.bf16.msra.mxu0 %v1599
    %1655 = vmatpush.bf16.msra.mxu0 %v1596
    %1656 = vmatpush.bf16.msra.mxu0 %v1593
    %1657 = vmatpush.bf16.msra.mxu0 %v1590
    %1658 = vmatpush.bf16.msra.mxu0 %v1587
    %1659 = vmatpush.bf16.msra.mxu0 %v1584
    %1660 = vmatpush.bf16.msra.mxu0 %v1581
    %1661 = vmatmul.bf16.gmra.mxu0 %v1458
    %v1662 = vpop.f32.mrf.mxu0
    %v1663 = vadd.f32 %v1495, %v1662
    %v1664 = vpop.f32.mrf.mxu0
    %1665 = vdwg.mxu0
    %v1666 = vld [vmem:[#allocation2 + $0x18] sm:$0xff]
    %v1667 = vld [vmem:[#allocation2 + $0x20] sm:$0xff]
    %v1668 = vld [vmem:[#allocation2 + $0x28] sm:$0xff]
    %v1669 = vld [vmem:[#allocation3 + $0x90] sm:$0xff]
    %v1670 = vld [vmem:[#allocation3 + $0x98] sm:$0xff]
    %v1671 = vld [vmem:[#allocation3 + $0xa0] sm:$0xff]
    %v1672 = vadd.f32 %v1666, %v1429
    %v1673 = vxor.u32 %v1672, 2147483648
    %v1674 = vmul.f32 %v1673, 1.442695
    %v1675 = vpow.pop %v1674
    %v1676 = vadd.f32 %v1675, 1.0
    %v1677 = vrcp.pop %v1676
    %v1678 = vmul.f32 %v1676, %v1677
    %v1679 = vsub.f32 1.0, %v1678
    %v1680 = vmul.f32 %v1677, %v1679
    %v1681 = vadd.f32 %v1677, %v1680
    %vm1682 = vweird.f32 %v1676
    %vm1683 = vweird.f32 %v1677
    %vm1684 = vmor %vm1682, %vm1683
    %v1685 = vsel %vm1684, %v1677, %v1681
    %v1686 = vand.u32 2147483647, %v1676
    %vm1687 = vcmp.eq.f32.partialorder %v1686, 8.507059e+37
    %v1688 = vand.u32 %v1676, 2147483648
    %v1689 = vor.u32 1.1754944e-38, %v1688
    %v1690 = vsel %vm1687, %v1689, %v1685
    %v1691 = vmul.f32 1.0, %v1690
    %v1692 = vadd.f32 %v1667, %v1442
    %v1693 = vxor.u32 %v1692, 2147483648
    %v1694 = vmul.f32 %v1693, 1.442695
    %v1695 = vpow.pop %v1694
    %v1696 = vadd.f32 %v1695, 1.0
    %v1697 = vrcp.pop %v1696
    %v1698 = vmul.f32 %v1696, %v1697
    %v1699 = vsub.f32 1.0, %v1698
    %v1700 = vmul.f32 %v1697, %v1699
    %v1701 = vadd.f32 %v1697, %v1700
    %vm1702 = vweird.f32 %v1696
    %vm1703 = vweird.f32 %v1697
    %vm1704 = vmor %vm1702, %vm1703
    %v1705 = vsel %vm1704, %v1697, %v1701
    %v1706 = vand.u32 2147483647, %v1696
    %vm1707 = vcmp.eq.f32.partialorder %v1706, 8.507059e+37
    %v1708 = vand.u32 %v1696, 2147483648
    %v1709 = vor.u32 1.1754944e-38, %v1708
    %v1710 = vsel %vm1707, %v1709, %v1705
    %v1711 = vmul.f32 1.0, %v1710
    %v1712 = vmul.f32 %v1691, %v1455
    %v1713 = vadd.f32 %v1668, %v1712
    %v1714 = vtanh.pop %v1713
    %v1715 = vsub.f32 1.0, %v1711
    %v1716 = vmul.f32 %v1715, %v1714
    %v1717 = vmul.f32 %v1711, %v1200
    %v1718 = vadd.f32 %v1716, %v1717
    %v1719 = vadd.f32 %v1669, %v1637
    %v1720 = vxor.u32 %v1719, 2147483648
    %v1721 = vmul.f32 %v1720, 1.442695
    %v1722 = vpow.pop %v1721
    %v1723 = vadd.f32 %v1722, 1.0
    %v1724 = vrcp.pop %v1723
    %v1725 = vmul.f32 %v1723, %v1724
    %v1726 = vsub.f32 1.0, %v1725
    %v1727 = vmul.f32 %v1724, %v1726
    %v1728 = vadd.f32 %v1724, %v1727
    %vm1729 = vweird.f32 %v1723
    %vm1730 = vweird.f32 %v1724
    %vm1731 = vmor %vm1729, %vm1730
    %v1732 = vsel %vm1731, %v1724, %v1728
    %v1733 = vand.u32 2147483647, %v1723
    %vm1734 = vcmp.eq.f32.partialorder %v1733, 8.507059e+37
    %v1735 = vand.u32 %v1723, 2147483648
    %v1736 = vor.u32 1.1754944e-38, %v1735
    %v1737 = vsel %vm1734, %v1736, %v1732
    %v1738 = vmul.f32 1.0, %v1737
    %v1739 = vadd.f32 %v1670, %v1650
    %v1740 = vxor.u32 %v1739, 2147483648
    %v1741 = vmul.f32 %v1740, 1.442695
    %v1742 = vpow.pop %v1741
    %v1743 = vadd.f32 %v1742, 1.0
    %v1744 = vrcp.pop %v1743
    %v1745 = vmul.f32 %v1743, %v1744
    %v1746 = vsub.f32 1.0, %v1745
    %v1747 = vmul.f32 %v1744, %v1746
    %v1748 = vadd.f32 %v1744, %v1747
    %vm1749 = vweird.f32 %v1743
    %vm1750 = vweird.f32 %v1744
    %vm1751 = vmor %vm1749, %vm1750
    %v1752 = vsel %vm1751, %v1744, %v1748
    %v1753 = vand.u32 2147483647, %v1743
    %vm1754 = vcmp.eq.f32.partialorder %v1753, 8.507059e+37
    %v1755 = vand.u32 %v1743, 2147483648
    %v1756 = vor.u32 1.1754944e-38, %v1755
    %v1757 = vsel %vm1754, %v1756, %v1752
    %v1758 = vmul.f32 1.0, %v1757
    %v1759 = vmul.f32 %v1738, %v1663
    %v1760 = vadd.f32 %v1671, %v1759
    %v1761 = vtanh.pop %v1760
    %v1762 = vsub.f32 1.0, %v1758
    %v1763 = vmul.f32 %v1762, %v1761
    %v1764 = vmul.f32 %v1758, %v1247
    %v1765 = vadd.f32 %v1763, %v1764
    %1766 = vst [vmem:[#allocation4 + $0x8] sm:$0xff] %v1718
    %1767 = vst [vmem:[#allocation5 + $0x30] sm:$0xff] %v1765
    %v1768 = vpack.c.bf16 %v1718, %v1718
    %v1769 = vld [vmem:[#allocation11] sm:$0xff]
    %v1770 = vld [vmem:[#allocation11 + $0x8] sm:$0xf]
    %v1771 = vld [vmem:[#allocation11 + $0xc] sm:$0xff]
    %v1772 = vld [vmem:[#allocation11 + $0x14] sm:$0xf]
    %v1773 = vld [vmem:[#allocation11 + $0x18] sm:$0xff]
    %v1774 = vld [vmem:[#allocation11 + $0x20] sm:$0xf]
    %v1775 = vld [vmem:[#allocation11 + $0x24] sm:$0xff]
    %v1776 = vld [vmem:[#allocation11 + $0x2c] sm:$0xf]
    %v1777 = vld [vmem:[#allocation11 + $0x30] sm:$0xff]
    %v1778 = vld [vmem:[#allocation11 + $0x38] sm:$0xf]
    %v1779 = vld [vmem:[#allocation11 + $0x3c] sm:$0xff]
    %v1780 = vld [vmem:[#allocation11 + $0x44] sm:$0xf]
    %v1781 = vld [vmem:[#allocation11 + $0x48] sm:$0xff]
    %v1782 = vld [vmem:[#allocation11 + $0x50] sm:$0xf]
    %v1783 = vld [vmem:[#allocation11 + $0x54] sm:$0xff]
    %v1784 = vld [vmem:[#allocation11 + $0x5c] sm:$0xf]
    %v1785 = vld [vmem:[#allocation11 + $0x60] sm:$0xff]
    %v1786 = vld [vmem:[#allocation11 + $0x68] sm:$0xf]
    %v1787 = vld [vmem:[#allocation11 + $0x6c] sm:$0xff]
    %v1788 = vld [vmem:[#allocation11 + $0x74] sm:$0xf]
    %v1789 = vld [vmem:[#allocation11 + $0x78] sm:$0xff]
    %v1790 = vld [vmem:[#allocation11 + $0x80] sm:$0xf]
    %v1791 = vld [vmem:[#allocation11 + $0x84] sm:$0xff]
    %v1792 = vld [vmem:[#allocation11 + $0x8c] sm:$0xf]
    %v1793 = vld [vmem:[#allocation11 + $0x90] sm:$0xff]
    %v1794 = vld [vmem:[#allocation11 + $0x98] sm:$0xf]
    %v1795 = vld [vmem:[#allocation11 + $0x9c] sm:$0xff]
    %v1796 = vld [vmem:[#allocation11 + $0xa4] sm:$0xf]
    %v1797 = vld [vmem:[#allocation11 + $0xa8] sm:$0xff]
    %v1798 = vld [vmem:[#allocation11 + $0xb0] sm:$0xf]
    %v1799 = vld [vmem:[#allocation11 + $0xb4] sm:$0xff]
    %v1800 = vld [vmem:[#allocation11 + $0xbc] sm:$0xf]
    %v1801 = vld [vmem:[#allocation17] sm:$0x7]
    %v1803 = vperm.slane %v1801, 0
    %v1804 = vperm.slane %v1801, 1
    %v1805 = vperm.slane %v1801, 2
    %v1841 = vunpack.c.l.b16 %v1769
    %v1842 = vunpack.c.h.b16 %v1769
    %v1843 = vunpack.c.l.b16 %v1770
    %v1844 = vunpack.c.l.b16 %v1771
    %v1845 = vunpack.c.h.b16 %v1771
    %v1846 = vunpack.c.l.b16 %v1772
    %v1847 = vunpack.c.l.b16 %v1773
    %v1848 = vunpack.c.h.b16 %v1773
    %v1849 = vunpack.c.l.b16 %v1774
    %v1850 = vunpack.c.l.b16 %v1775
    %v1851 = vunpack.c.h.b16 %v1775
    %v1852 = vunpack.c.l.b16 %v1776
    %v1853 = vunpack.c.l.b16 %v1777
    %v1854 = vunpack.c.h.b16 %v1777
    %v1855 = vunpack.c.l.b16 %v1778
    %v1856 = vunpack.c.l.b16 %v1779
    %v1857 = vunpack.c.h.b16 %v1779
    %v1858 = vunpack.c.l.b16 %v1780
    %v1859 = vunpack.c.l.b16 %v1781
    %v1860 = vunpack.c.h.b16 %v1781
    %v1861 = vunpack.c.l.b16 %v1782
    %v1862 = vunpack.c.l.b16 %v1783
    %v1863 = vunpack.c.h.b16 %v1783
    %v1864 = vunpack.c.l.b16 %v1784
    %v1865 = vunpack.c.l.b16 %v1785
    %v1866 = vunpack.c.h.b16 %v1785
    %v1867 = vunpack.c.l.b16 %v1786
    %v1868 = vunpack.c.l.b16 %v1787
    %v1869 = vunpack.c.h.b16 %v1787
    %v1870 = vunpack.c.l.b16 %v1788
    %v1871 = vunpack.c.l.b16 %v1789
    %v1872 = vunpack.c.h.b16 %v1789
    %v1873 = vunpack.c.l.b16 %v1790
    %v1874 = vunpack.c.l.b16 %v1791
    %v1875 = vunpack.c.h.b16 %v1791
    %v1876 = vunpack.c.l.b16 %v1792
    %v1877 = vunpack.c.l.b16 %v1793
    %v1878 = vunpack.c.h.b16 %v1793
    %v1879 = vunpack.c.l.b16 %v1794
    %v1880 = vunpack.c.l.b16 %v1795
    %v1881 = vunpack.c.h.b16 %v1795
    %v1882 = vunpack.c.l.b16 %v1796
    %v1883 = vunpack.c.l.b16 %v1797
    %v1884 = vunpack.c.h.b16 %v1797
    %v1885 = vunpack.c.l.b16 %v1798
    %v1886 = vunpack.c.l.b16 %v1799
    %v1887 = vunpack.c.h.b16 %v1799
    %v1888 = vunpack.c.l.b16 %v1800
    %v1889 = vpack.c.b16 %v1844, %v1841
    %v1890 = vpack.c.b16 %v1845, %v1842
    %v1891 = vpack.c.b16 %v1846, %v1843
    %v1892 = vpack.c.b16 %v1850, %v1847
    %v1893 = vpack.c.b16 %v1851, %v1848
    %v1894 = vpack.c.b16 %v1852, %v1849
    %v1895 = vpack.c.b16 %v1856, %v1853
    %v1896 = vpack.c.b16 %v1857, %v1854
    %v1897 = vpack.c.b16 %v1858, %v1855
    %v1898 = vpack.c.b16 %v1862, %v1859
    %v1899 = vpack.c.b16 %v1863, %v1860
    %v1900 = vpack.c.b16 %v1864, %v1861
    %v1901 = vpack.c.b16 %v1868, %v1865
    %v1902 = vpack.c.b16 %v1869, %v1866
    %v1903 = vpack.c.b16 %v1870, %v1867
    %v1904 = vpack.c.b16 %v1874, %v1871
    %v1905 = vpack.c.b16 %v1875, %v1872
    %v1906 = vpack.c.b16 %v1876, %v1873
    %v1907 = vpack.c.b16 %v1880, %v1877
    %v1908 = vpack.c.b16 %v1881, %v1878
    %v1909 = vpack.c.b16 %v1882, %v1879
    %v1910 = vpack.c.b16 %v1886, %v1883
    %v1911 = vpack.c.b16 %v1887, %v1884
    %v1912 = vpack.c.b16 %v1888, %v1885
    %1937 = vmatpush.bf16.msra.mxu0 %v1910
    %1938 = vmatpush.bf16.msra.mxu0 %v1907
    %1939 = vmatpush.bf16.msra.mxu0 %v1904
    %1940 = vmatpush.bf16.msra.mxu0 %v1901
    %1941 = vmatpush.bf16.msra.mxu0 %v1898
    %1942 = vmatpush.bf16.msra.mxu0 %v1895
    %1943 = vmatpush.bf16.msra.mxu0 %v1892
    %1944 = vmatpush.bf16.msra.mxu0 %v1889
    %1945 = vmatmul.bf16.gmra.mxu0 %v1768
    %v1946 = vpop.f32.mrf.mxu0
    %v1947 = vadd.f32 %v1803, %v1946
    %v1948 = vpop.f32.mrf.mxu0
    %1949 = vdwg.mxu0
    %1950 = vmatpush.bf16.msra.mxu0 %v1911
    %1951 = vmatpush.bf16.msra.mxu0 %v1908
    %1952 = vmatpush.bf16.msra.mxu0 %v1905
    %1953 = vmatpush.bf16.msra.mxu0 %v1902
    %1954 = vmatpush.bf16.msra.mxu0 %v1899
    %1955 = vmatpush.bf16.msra.mxu0 %v1896
    %1956 = vmatpush.bf16.msra.mxu0 %v1893
    %1957 = vmatpush.bf16.msra.mxu0 %v1890
    %1958 = vmatmul.bf16.gmra.mxu0 %v1768
    %v1959 = vpop.f32.mrf.mxu0
    %v1960 = vadd.f32 %v1804, %v1959
    %v1961 = vpop.f32.mrf.mxu0
    %1962 = vdwg.mxu0
    %1963 = vmatpush.bf16.msra.mxu0 %v1912
    %1964 = vmatpush.bf16.msra.mxu0 %v1909
    %1965 = vmatpush.bf16.msra.mxu0 %v1906
    %1966 = vmatpush.bf16.msra.mxu0 %v1903
    %1967 = vmatpush.bf16.msra.mxu0 %v1900
    %1968 = vmatpush.bf16.msra.mxu0 %v1897
    %1969 = vmatpush.bf16.msra.mxu0 %v1894
    %1970 = vmatpush.bf16.msra.mxu0 %v1891
    %1971 = vmatmul.bf16.gmra.mxu0 %v1768
    %v1972 = vpop.f32.mrf.mxu0
    %v1973 = vadd.f32 %v1805, %v1972
    %v1974 = vpop.f32.mrf.mxu0
    %1975 = vdwg.mxu0
    %v1976 = vpack.c.bf16 %v1765, %v1765
    %v1977 = vld [vmem:[%s939] sm:$0xff]
    %v1978 = vld [vmem:[%s939 + $0x8] sm:$0xf]
    %v1979 = vld [vmem:[%s939 + $0xc] sm:$0xff]
    %v1980 = vld [vmem:[%s939 + $0x14] sm:$0xf]
    %v1981 = vld [vmem:[%s939 + $0x18] sm:$0xff]
    %v1982 = vld [vmem:[%s939 + $0x20] sm:$0xf]
    %v1983 = vld [vmem:[%s939 + $0x24] sm:$0xff]
    %v1984 = vld [vmem:[%s939 + $0x2c] sm:$0xf]
    %v1985 = vld [vmem:[%s939 + $0x30] sm:$0xff]
    %v1986 = vld [vmem:[%s939 + $0x38] sm:$0xf]
    %v1987 = vld [vmem:[%s939 + $0x3c] sm:$0xff]
    %v1988 = vld [vmem:[%s939 + $0x44] sm:$0xf]
    %v1989 = vld [vmem:[%s939 + $0x48] sm:$0xff]
    %v1990 = vld [vmem:[%s939 + $0x50] sm:$0xf]
    %v1991 = vld [vmem:[%s939 + $0x54] sm:$0xff]
    %v1992 = vld [vmem:[%s939 + $0x5c] sm:$0xf]
    %v1993 = vld [vmem:[%s939 + $0x60] sm:$0xff]
    %v1994 = vld [vmem:[%s939 + $0x68] sm:$0xf]
    %v1995 = vld [vmem:[%s939 + $0x6c] sm:$0xff]
    %v1996 = vld [vmem:[%s939 + $0x74] sm:$0xf]
    %v1997 = vld [vmem:[%s939 + $0x78] sm:$0xff]
    %v1998 = vld [vmem:[%s939 + $0x80] sm:$0xf]
    %v1999 = vld [vmem:[%s939 + $0x84] sm:$0xff]
    %v2000 = vld [vmem:[%s939 + $0x8c] sm:$0xf]
    %v2001 = vld [vmem:[%s939 + $0x90] sm:$0xff]
    %v2002 = vld [vmem:[%s939 + $0x98] sm:$0xf]
    %v2003 = vld [vmem:[%s939 + $0x9c] sm:$0xff]
    %v2004 = vld [vmem:[%s939 + $0xa4] sm:$0xf]
    %v2005 = vld [vmem:[%s939 + $0xa8] sm:$0xff]
    %v2006 = vld [vmem:[%s939 + $0xb0] sm:$0xf]
    %v2007 = vld [vmem:[%s939 + $0xb4] sm:$0xff]
    %v2008 = vld [vmem:[%s939 + $0xbc] sm:$0xf]
    %v2009 = vld [vmem:[%s972] sm:$0x7]
    %v2011 = vperm.slane %v2009, 0
    %v2012 = vperm.slane %v2009, 1
    %v2013 = vperm.slane %v2009, 2
    %v2049 = vunpack.c.l.b16 %v1977
    %v2050 = vunpack.c.h.b16 %v1977
    %v2051 = vunpack.c.l.b16 %v1978
    %v2052 = vunpack.c.l.b16 %v1979
    %v2053 = vunpack.c.h.b16 %v1979
    %v2054 = vunpack.c.l.b16 %v1980
    %v2055 = vunpack.c.l.b16 %v1981
    %v2056 = vunpack.c.h.b16 %v1981
    %v2057 = vunpack.c.l.b16 %v1982
    %v2058 = vunpack.c.l.b16 %v1983
    %v2059 = vunpack.c.h.b16 %v1983
    %v2060 = vunpack.c.l.b16 %v1984
    %v2061 = vunpack.c.l.b16 %v1985
    %v2062 = vunpack.c.h.b16 %v1985
    %v2063 = vunpack.c.l.b16 %v1986
    %v2064 = vunpack.c.l.b16 %v1987
    %v2065 = vunpack.c.h.b16 %v1987
    %v2066 = vunpack.c.l.b16 %v1988
    %v2067 = vunpack.c.l.b16 %v1989
    %v2068 = vunpack.c.h.b16 %v1989
    %v2069 = vunpack.c.l.b16 %v1990
    %v2070 = vunpack.c.l.b16 %v1991
    %v2071 = vunpack.c.h.b16 %v1991
    %v2072 = vunpack.c.l.b16 %v1992
    %v2073 = vunpack.c.l.b16 %v1993
    %v2074 = vunpack.c.h.b16 %v1993
    %v2075 = vunpack.c.l.b16 %v1994
    %v2076 = vunpack.c.l.b16 %v1995
    %v2077 = vunpack.c.h.b16 %v1995
    %v2078 = vunpack.c.l.b16 %v1996
    %v2079 = vunpack.c.l.b16 %v1997
    %v2080 = vunpack.c.h.b16 %v1997
    %v2081 = vunpack.c.l.b16 %v1998
    %v2082 = vunpack.c.l.b16 %v1999
    %v2083 = vunpack.c.h.b16 %v1999
    %v2084 = vunpack.c.l.b16 %v2000
    %v2085 = vunpack.c.l.b16 %v2001
    %v2086 = vunpack.c.h.b16 %v2001
    %v2087 = vunpack.c.l.b16 %v2002
    %v2088 = vunpack.c.l.b16 %v2003
    %v2089 = vunpack.c.h.b16 %v2003
    %v2090 = vunpack.c.l.b16 %v2004
    %v2091 = vunpack.c.l.b16 %v2005
    %v2092 = vunpack.c.h.b16 %v2005
    %v2093 = vunpack.c.l.b16 %v2006
    %v2094 = vunpack.c.l.b16 %v2007
    %v2095 = vunpack.c.h.b16 %v2007
    %v2096 = vunpack.c.l.b16 %v2008
    %v2097 = vpack.c.b16 %v2052, %v2049
    %v2098 = vpack.c.b16 %v2053, %v2050
    %v2099 = vpack.c.b16 %v2054, %v2051
    %v2100 = vpack.c.b16 %v2058, %v2055
    %v2101 = vpack.c.b16 %v2059, %v2056
    %v2102 = vpack.c.b16 %v2060, %v2057
    %v2103 = vpack.c.b16 %v2064, %v2061
    %v2104 = vpack.c.b16 %v2065, %v2062
    %v2105 = vpack.c.b16 %v2066, %v2063
    %v2106 = vpack.c.b16 %v2070, %v2067
    %v2107 = vpack.c.b16 %v2071, %v2068
    %v2108 = vpack.c.b16 %v2072, %v2069
    %v2109 = vpack.c.b16 %v2076, %v2073
    %v2110 = vpack.c.b16 %v2077, %v2074
    %v2111 = vpack.c.b16 %v2078, %v2075
    %v2112 = vpack.c.b16 %v2082, %v2079
    %v2113 = vpack.c.b16 %v2083, %v2080
    %v2114 = vpack.c.b16 %v2084, %v2081
    %v2115 = vpack.c.b16 %v2088, %v2085
    %v2116 = vpack.c.b16 %v2089, %v2086
    %v2117 = vpack.c.b16 %v2090, %v2087
    %v2118 = vpack.c.b16 %v2094, %v2091
    %v2119 = vpack.c.b16 %v2095, %v2092
    %v2120 = vpack.c.b16 %v2096, %v2093
    %2145 = vmatpush.bf16.msra.mxu0 %v2118
    %2146 = vmatpush.bf16.msra.mxu0 %v2115
    %2147 = vmatpush.bf16.msra.mxu0 %v2112
    %2148 = vmatpush.bf16.msra.mxu0 %v2109
    %2149 = vmatpush.bf16.msra.mxu0 %v2106
    %2150 = vmatpush.bf16.msra.mxu0 %v2103
    %2151 = vmatpush.bf16.msra.mxu0 %v2100
    %2152 = vmatpush.bf16.msra.mxu0 %v2097
    %2153 = vmatmul.bf16.gmra.mxu0 %v1976
    %v2154 = vpop.f32.mrf.mxu0
    %v2155 = vadd.f32 %v2011, %v2154
    %v2156 = vpop.f32.mrf.mxu0
    %2157 = vdwg.mxu0
    %2158 = vmatpush.bf16.msra.mxu0 %v2119
    %2159 = vmatpush.bf16.msra.mxu0 %v2116
    %2160 = vmatpush.bf16.msra.mxu0 %v2113
    %2161 = vmatpush.bf16.msra.mxu0 %v2110
    %2162 = vmatpush.bf16.msra.mxu0 %v2107
    %2163 = vmatpush.bf16.msra.mxu0 %v2104
    %2164 = vmatpush.bf16.msra.mxu0 %v2101
    %2165 = vmatpush.bf16.msra.mxu0 %v2098
    %2166 = vmatmul.bf16.gmra.mxu0 %v1976
    %v2167 = vpop.f32.mrf.mxu0
    %v2168 = vadd.f32 %v2012, %v2167
    %v2169 = vpop.f32.mrf.mxu0
    %2170 = vdwg.mxu0
    %2171 = vmatpush.bf16.msra.mxu0 %v2120
    %2172 = vmatpush.bf16.msra.mxu0 %v2117
    %2173 = vmatpush.bf16.msra.mxu0 %v2114
    %2174 = vmatpush.bf16.msra.mxu0 %v2111
    %2175 = vmatpush.bf16.msra.mxu0 %v2108
    %2176 = vmatpush.bf16.msra.mxu0 %v2105
    %2177 = vmatpush.bf16.msra.mxu0 %v2102
    %2178 = vmatpush.bf16.msra.mxu0 %v2099
    %2179 = vmatmul.bf16.gmra.mxu0 %v1976
    %v2180 = vpop.f32.mrf.mxu0
    %v2181 = vadd.f32 %v2013, %v2180
    %v2182 = vpop.f32.mrf.mxu0
    %2183 = vdwg.mxu0
    %v2184 = vld [vmem:[#allocation2 + $0x30] sm:$0xff]
    %v2185 = vld [vmem:[#allocation2 + $0x38] sm:$0xff]
    %v2186 = vld [vmem:[#allocation2 + $0x40] sm:$0xff]
    %v2187 = vld [vmem:[#allocation3 + $0x78] sm:$0xff]
    %v2188 = vld [vmem:[#allocation3 + $0x80] sm:$0xff]
    %v2189 = vld [vmem:[#allocation3 + $0x88] sm:$0xff]
    %v2190 = vadd.f32 %v2184, %v1947
    %v2191 = vxor.u32 %v2190, 2147483648
    %v2192 = vmul.f32 %v2191, 1.442695
    %v2193 = vpow.pop %v2192
    %v2194 = vadd.f32 %v2193, 1.0
    %v2195 = vrcp.pop %v2194
    %v2196 = vmul.f32 %v2194, %v2195
    %v2197 = vsub.f32 1.0, %v2196
    %v2198 = vmul.f32 %v2195, %v2197
    %v2199 = vadd.f32 %v2195, %v2198
    %vm2200 = vweird.f32 %v2194
    %vm2201 = vweird.f32 %v2195
    %vm2202 = vmor %vm2200, %vm2201
    %v2203 = vsel %vm2202, %v2195, %v2199
    %v2204 = vand.u32 2147483647, %v2194
    %vm2205 = vcmp.eq.f32.partialorder %v2204, 8.507059e+37
    %v2206 = vand.u32 %v2194, 2147483648
    %v2207 = vor.u32 1.1754944e-38, %v2206
    %v2208 = vsel %vm2205, %v2207, %v2203
    %v2209 = vmul.f32 1.0, %v2208
    %v2210 = vadd.f32 %v2185, %v1960
    %v2211 = vxor.u32 %v2210, 2147483648
    %v2212 = vmul.f32 %v2211, 1.442695
    %v2213 = vpow.pop %v2212
    %v2214 = vadd.f32 %v2213, 1.0
    %v2215 = vrcp.pop %v2214
    %v2216 = vmul.f32 %v2214, %v2215
    %v2217 = vsub.f32 1.0, %v2216
    %v2218 = vmul.f32 %v2215, %v2217
    %v2219 = vadd.f32 %v2215, %v2218
    %vm2220 = vweird.f32 %v2214
    %vm2221 = vweird.f32 %v2215
    %vm2222 = vmor %vm2220, %vm2221
    %v2223 = vsel %vm2222, %v2215, %v2219
    %v2224 = vand.u32 2147483647, %v2214
    %vm2225 = vcmp.eq.f32.partialorder %v2224, 8.507059e+37
    %v2226 = vand.u32 %v2214, 2147483648
    %v2227 = vor.u32 1.1754944e-38, %v2226
    %v2228 = vsel %vm2225, %v2227, %v2223
    %v2229 = vmul.f32 1.0, %v2228
    %v2230 = vmul.f32 %v2209, %v1973
    %v2231 = vadd.f32 %v2186, %v2230
    %v2232 = vtanh.pop %v2231
    %v2233 = vsub.f32 1.0, %v2229
    %v2234 = vmul.f32 %v2233, %v2232
    %v2235 = vmul.f32 %v2229, %v1718
    %v2236 = vadd.f32 %v2234, %v2235
    %v2237 = vadd.f32 %v2187, %v2155
    %v2238 = vxor.u32 %v2237, 2147483648
    %v2239 = vmul.f32 %v2238, 1.442695
    %v2240 = vpow.pop %v2239
    %v2241 = vadd.f32 %v2240, 1.0
    %v2242 = vrcp.pop %v2241
    %v2243 = vmul.f32 %v2241, %v2242
    %v2244 = vsub.f32 1.0, %v2243
    %v2245 = vmul.f32 %v2242, %v2244
    %v2246 = vadd.f32 %v2242, %v2245
    %vm2247 = vweird.f32 %v2241
    %vm2248 = vweird.f32 %v2242
    %vm2249 = vmor %vm2247, %vm2248
    %v2250 = vsel %vm2249, %v2242, %v2246
    %v2251 = vand.u32 2147483647, %v2241
    %vm2252 = vcmp.eq.f32.partialorder %v2251, 8.507059e+37
    %v2253 = vand.u32 %v2241, 2147483648
    %v2254 = vor.u32 1.1754944e-38, %v2253
    %v2255 = vsel %vm2252, %v2254, %v2250
    %v2256 = vmul.f32 1.0, %v2255
    %v2257 = vadd.f32 %v2188, %v2168
    %v2258 = vxor.u32 %v2257, 2147483648
    %v2259 = vmul.f32 %v2258, 1.442695
    %v2260 = vpow.pop %v2259
    %v2261 = vadd.f32 %v2260, 1.0
    %v2262 = vrcp.pop %v2261
    %v2263 = vmul.f32 %v2261, %v2262
    %v2264 = vsub.f32 1.0, %v2263
    %v2265 = vmul.f32 %v2262, %v2264
    %v2266 = vadd.f32 %v2262, %v2265
    %vm2267 = vweird.f32 %v2261
    %vm2268 = vweird.f32 %v2262
    %vm2269 = vmor %vm2267, %vm2268
    %v2270 = vsel %vm2269, %v2262, %v2266
    %v2271 = vand.u32 2147483647, %v2261
    %vm2272 = vcmp.eq.f32.partialorder %v2271, 8.507059e+37
    %v2273 = vand.u32 %v2261, 2147483648
    %v2274 = vor.u32 1.1754944e-38, %v2273
    %v2275 = vsel %vm2272, %v2274, %v2270
    %v2276 = vmul.f32 1.0, %v2275
    %v2277 = vmul.f32 %v2256, %v2181
    %v2278 = vadd.f32 %v2189, %v2277
    %v2279 = vtanh.pop %v2278
    %v2280 = vsub.f32 1.0, %v2276
    %v2281 = vmul.f32 %v2280, %v2279
    %v2282 = vmul.f32 %v2276, %v1765
    %v2283 = vadd.f32 %v2281, %v2282
    %2284 = vst [vmem:[#allocation4 + $0x10] sm:$0xff] %v2236
    %2285 = vst [vmem:[#allocation5 + $0x28] sm:$0xff] %v2283
    %v2286 = vpack.c.bf16 %v2236, %v2236
    %v2287 = vld [vmem:[#allocation11] sm:$0xff]
    %v2288 = vld [vmem:[#allocation11 + $0x8] sm:$0xf]
    %v2289 = vld [vmem:[#allocation11 + $0xc] sm:$0xff]
    %v2290 = vld [vmem:[#allocation11 + $0x14] sm:$0xf]
    %v2291 = vld [vmem:[#allocation11 + $0x18] sm:$0xff]
    %v2292 = vld [vmem:[#allocation11 + $0x20] sm:$0xf]
    %v2293 = vld [vmem:[#allocation11 + $0x24] sm:$0xff]
    %v2294 = vld [vmem:[#allocation11 + $0x2c] sm:$0xf]
    %v2295 = vld [vmem:[#allocation11 + $0x30] sm:$0xff]
    %v2296 = vld [vmem:[#allocation11 + $0x38] sm:$0xf]
    %v2297 = vld [vmem:[#allocation11 + $0x3c] sm:$0xff]
    %v2298 = vld [vmem:[#allocation11 + $0x44] sm:$0xf]
    %v2299 = vld [vmem:[#allocation11 + $0x48] sm:$0xff]
    %v2300 = vld [vmem:[#allocation11 + $0x50] sm:$0xf]
    %v2301 = vld [vmem:[#allocation11 + $0x54] sm:$0xff]
    %v2302 = vld [vmem:[#allocation11 + $0x5c] sm:$0xf]
    %v2303 = vld [vmem:[#allocation11 + $0x60] sm:$0xff]
    %v2304 = vld [vmem:[#allocation11 + $0x68] sm:$0xf]
    %v2305 = vld [vmem:[#allocation11 + $0x6c] sm:$0xff]
    %v2306 = vld [vmem:[#allocation11 + $0x74] sm:$0xf]
    %v2307 = vld [vmem:[#allocation11 + $0x78] sm:$0xff]
    %v2308 = vld [vmem:[#allocation11 + $0x80] sm:$0xf]
    %v2309 = vld [vmem:[#allocation11 + $0x84] sm:$0xff]
    %v2310 = vld [vmem:[#allocation11 + $0x8c] sm:$0xf]
    %v2311 = vld [vmem:[#allocation11 + $0x90] sm:$0xff]
    %v2312 = vld [vmem:[#allocation11 + $0x98] sm:$0xf]
    %v2313 = vld [vmem:[#allocation11 + $0x9c] sm:$0xff]
    %v2314 = vld [vmem:[#allocation11 + $0xa4] sm:$0xf]
    %v2315 = vld [vmem:[#allocation11 + $0xa8] sm:$0xff]
    %v2316 = vld [vmem:[#allocation11 + $0xb0] sm:$0xf]
    %v2317 = vld [vmem:[#allocation11 + $0xb4] sm:$0xff]
    %v2318 = vld [vmem:[#allocation11 + $0xbc] sm:$0xf]
    %v2319 = vld [vmem:[#allocation17] sm:$0x7]
    %v2321 = vperm.slane %v2319, 0
    %v2322 = vperm.slane %v2319, 1
    %v2323 = vperm.slane %v2319, 2
    %v2359 = vunpack.c.l.b16 %v2287
    %v2360 = vunpack.c.h.b16 %v2287
    %v2361 = vunpack.c.l.b16 %v2288
    %v2362 = vunpack.c.l.b16 %v2289
    %v2363 = vunpack.c.h.b16 %v2289
    %v2364 = vunpack.c.l.b16 %v2290
    %v2365 = vunpack.c.l.b16 %v2291
    %v2366 = vunpack.c.h.b16 %v2291
    %v2367 = vunpack.c.l.b16 %v2292
    %v2368 = vunpack.c.l.b16 %v2293
    %v2369 = vunpack.c.h.b16 %v2293
    %v2370 = vunpack.c.l.b16 %v2294
    %v2371 = vunpack.c.l.b16 %v2295
    %v2372 = vunpack.c.h.b16 %v2295
    %v2373 = vunpack.c.l.b16 %v2296
    %v2374 = vunpack.c.l.b16 %v2297
    %v2375 = vunpack.c.h.b16 %v2297
    %v2376 = vunpack.c.l.b16 %v2298
    %v2377 = vunpack.c.l.b16 %v2299
    %v2378 = vunpack.c.h.b16 %v2299
    %v2379 = vunpack.c.l.b16 %v2300
    %v2380 = vunpack.c.l.b16 %v2301
    %v2381 = vunpack.c.h.b16 %v2301
    %v2382 = vunpack.c.l.b16 %v2302
    %v2383 = vunpack.c.l.b16 %v2303
    %v2384 = vunpack.c.h.b16 %v2303
    %v2385 = vunpack.c.l.b16 %v2304
    %v2386 = vunpack.c.l.b16 %v2305
    %v2387 = vunpack.c.h.b16 %v2305
    %v2388 = vunpack.c.l.b16 %v2306
    %v2389 = vunpack.c.l.b16 %v2307
    %v2390 = vunpack.c.h.b16 %v2307
    %v2391 = vunpack.c.l.b16 %v2308
    %v2392 = vunpack.c.l.b16 %v2309
    %v2393 = vunpack.c.h.b16 %v2309
    %v2394 = vunpack.c.l.b16 %v2310
    %v2395 = vunpack.c.l.b16 %v2311
    %v2396 = vunpack.c.h.b16 %v2311
    %v2397 = vunpack.c.l.b16 %v2312
    %v2398 = vunpack.c.l.b16 %v2313
    %v2399 = vunpack.c.h.b16 %v2313
    %v2400 = vunpack.c.l.b16 %v2314
    %v2401 = vunpack.c.l.b16 %v2315
    %v2402 = vunpack.c.h.b16 %v2315
    %v2403 = vunpack.c.l.b16 %v2316
    %v2404 = vunpack.c.l.b16 %v2317
    %v2405 = vunpack.c.h.b16 %v2317
    %v2406 = vunpack.c.l.b16 %v2318
    %v2407 = vpack.c.b16 %v2362, %v2359
    %v2408 = vpack.c.b16 %v2363, %v2360
    %v2409 = vpack.c.b16 %v2364, %v2361
    %v2410 = vpack.c.b16 %v2368, %v2365
    %v2411 = vpack.c.b16 %v2369, %v2366
    %v2412 = vpack.c.b16 %v2370, %v2367
    %v2413 = vpack.c.b16 %v2374, %v2371
    %v2414 = vpack.c.b16 %v2375, %v2372
    %v2415 = vpack.c.b16 %v2376, %v2373
    %v2416 = vpack.c.b16 %v2380, %v2377
    %v2417 = vpack.c.b16 %v2381, %v2378
    %v2418 = vpack.c.b16 %v2382, %v2379
    %v2419 = vpack.c.b16 %v2386, %v2383
    %v2420 = vpack.c.b16 %v2387, %v2384
    %v2421 = vpack.c.b16 %v2388, %v2385
    %v2422 = vpack.c.b16 %v2392, %v2389
    %v2423 = vpack.c.b16 %v2393, %v2390
    %v2424 = vpack.c.b16 %v2394, %v2391
    %v2425 = vpack.c.b16 %v2398, %v2395
    %v2426 = vpack.c.b16 %v2399, %v2396
    %v2427 = vpack.c.b16 %v2400, %v2397
    %v2428 = vpack.c.b16 %v2404, %v2401
    %v2429 = vpack.c.b16 %v2405, %v2402
    %v2430 = vpack.c.b16 %v2406, %v2403
    %2455 = vmatpush.bf16.msra.mxu0 %v2428
    %2456 = vmatpush.bf16.msra.mxu0 %v2425
    %2457 = vmatpush.bf16.msra.mxu0 %v2422
    %2458 = vmatpush.bf16.msra.mxu0 %v2419
    %2459 = vmatpush.bf16.msra.mxu0 %v2416
    %2460 = vmatpush.bf16.msra.mxu0 %v2413
    %2461 = vmatpush.bf16.msra.mxu0 %v2410
    %2462 = vmatpush.bf16.msra.mxu0 %v2407
    %2463 = vmatmul.bf16.gmra.mxu0 %v2286
    %v2464 = vpop.f32.mrf.mxu0
    %v2465 = vadd.f32 %v2321, %v2464
    %v2466 = vpop.f32.mrf.mxu0
    %2467 = vdwg.mxu0
    %2468 = vmatpush.bf16.msra.mxu0 %v2429
    %2469 = vmatpush.bf16.msra.mxu0 %v2426
    %2470 = vmatpush.bf16.msra.mxu0 %v2423
    %2471 = vmatpush.bf16.msra.mxu0 %v2420
    %2472 = vmatpush.bf16.msra.mxu0 %v2417
    %2473 = vmatpush.bf16.msra.mxu0 %v2414
    %2474 = vmatpush.bf16.msra.mxu0 %v2411
    %2475 = vmatpush.bf16.msra.mxu0 %v2408
    %2476 = vmatmul.bf16.gmra.mxu0 %v2286
    %v2477 = vpop.f32.mrf.mxu0
    %v2478 = vadd.f32 %v2322, %v2477
    %v2479 = vpop.f32.mrf.mxu0
    %2480 = vdwg.mxu0
    %2481 = vmatpush.bf16.msra.mxu0 %v2430
    %2482 = vmatpush.bf16.msra.mxu0 %v2427
    %2483 = vmatpush.bf16.msra.mxu0 %v2424
    %2484 = vmatpush.bf16.msra.mxu0 %v2421
    %2485 = vmatpush.bf16.msra.mxu0 %v2418
    %2486 = vmatpush.bf16.msra.mxu0 %v2415
    %2487 = vmatpush.bf16.msra.mxu0 %v2412
    %2488 = vmatpush.bf16.msra.mxu0 %v2409
    %2489 = vmatmul.bf16.gmra.mxu0 %v2286
    %v2490 = vpop.f32.mrf.mxu0
    %v2491 = vadd.f32 %v2323, %v2490
    %v2492 = vpop.f32.mrf.mxu0
    %2493 = vdwg.mxu0
    %v2494 = vpack.c.bf16 %v2283, %v2283
    %v2495 = vld [vmem:[%s939] sm:$0xff]
    %v2496 = vld [vmem:[%s939 + $0x8] sm:$0xf]
    %v2497 = vld [vmem:[%s939 + $0xc] sm:$0xff]
    %v2498 = vld [vmem:[%s939 + $0x14] sm:$0xf]
    %v2499 = vld [vmem:[%s939 + $0x18] sm:$0xff]
    %v2500 = vld [vmem:[%s939 + $0x20] sm:$0xf]
    %v2501 = vld [vmem:[%s939 + $0x24] sm:$0xff]
    %v2502 = vld [vmem:[%s939 + $0x2c] sm:$0xf]
    %v2503 = vld [vmem:[%s939 + $0x30] sm:$0xff]
    %v2504 = vld [vmem:[%s939 + $0x38] sm:$0xf]
    %v2505 = vld [vmem:[%s939 + $0x3c] sm:$0xff]
    %v2506 = vld [vmem:[%s939 + $0x44] sm:$0xf]
    %v2507 = vld [vmem:[%s939 + $0x48] sm:$0xff]
    %v2508 = vld [vmem:[%s939 + $0x50] sm:$0xf]
    %v2509 = vld [vmem:[%s939 + $0x54] sm:$0xff]
    %v2510 = vld [vmem:[%s939 + $0x5c] sm:$0xf]
    %v2511 = vld [vmem:[%s939 + $0x60] sm:$0xff]
    %v2512 = vld [vmem:[%s939 + $0x68] sm:$0xf]
    %v2513 = vld [vmem:[%s939 + $0x6c] sm:$0xff]
    %v2514 = vld [vmem:[%s939 + $0x74] sm:$0xf]
    %v2515 = vld [vmem:[%s939 + $0x78] sm:$0xff]
    %v2516 = vld [vmem:[%s939 + $0x80] sm:$0xf]
    %v2517 = vld [vmem:[%s939 + $0x84] sm:$0xff]
    %v2518 = vld [vmem:[%s939 + $0x8c] sm:$0xf]
    %v2519 = vld [vmem:[%s939 + $0x90] sm:$0xff]
    %v2520 = vld [vmem:[%s939 + $0x98] sm:$0xf]
    %v2521 = vld [vmem:[%s939 + $0x9c] sm:$0xff]
    %v2522 = vld [vmem:[%s939 + $0xa4] sm:$0xf]
    %v2523 = vld [vmem:[%s939 + $0xa8] sm:$0xff]
    %v2524 = vld [vmem:[%s939 + $0xb0] sm:$0xf]
    %v2525 = vld [vmem:[%s939 + $0xb4] sm:$0xff]
    %v2526 = vld [vmem:[%s939 + $0xbc] sm:$0xf]
    %v2527 = vld [vmem:[%s972] sm:$0x7]
    %v2529 = vperm.slane %v2527, 0
    %v2530 = vperm.slane %v2527, 1
    %v2531 = vperm.slane %v2527, 2
    %v2567 = vunpack.c.l.b16 %v2495
    %v2568 = vunpack.c.h.b16 %v2495
    %v2569 = vunpack.c.l.b16 %v2496
    %v2570 = vunpack.c.l.b16 %v2497
    %v2571 = vunpack.c.h.b16 %v2497
    %v2572 = vunpack.c.l.b16 %v2498
    %v2573 = vunpack.c.l.b16 %v2499
    %v2574 = vunpack.c.h.b16 %v2499
    %v2575 = vunpack.c.l.b16 %v2500
    %v2576 = vunpack.c.l.b16 %v2501
    %v2577 = vunpack.c.h.b16 %v2501
    %v2578 = vunpack.c.l.b16 %v2502
    %v2579 = vunpack.c.l.b16 %v2503
    %v2580 = vunpack.c.h.b16 %v2503
    %v2581 = vunpack.c.l.b16 %v2504
    %v2582 = vunpack.c.l.b16 %v2505
    %v2583 = vunpack.c.h.b16 %v2505
    %v2584 = vunpack.c.l.b16 %v2506
    %v2585 = vunpack.c.l.b16 %v2507
    %v2586 = vunpack.c.h.b16 %v2507
    %v2587 = vunpack.c.l.b16 %v2508
    %v2588 = vunpack.c.l.b16 %v2509
    %v2589 = vunpack.c.h.b16 %v2509
    %v2590 = vunpack.c.l.b16 %v2510
    %v2591 = vunpack.c.l.b16 %v2511
    %v2592 = vunpack.c.h.b16 %v2511
    %v2593 = vunpack.c.l.b16 %v2512
    %v2594 = vunpack.c.l.b16 %v2513
    %v2595 = vunpack.c.h.b16 %v2513
    %v2596 = vunpack.c.l.b16 %v2514
    %v2597 = vunpack.c.l.b16 %v2515
    %v2598 = vunpack.c.h.b16 %v2515
    %v2599 = vunpack.c.l.b16 %v2516
    %v2600 = vunpack.c.l.b16 %v2517
    %v2601 = vunpack.c.h.b16 %v2517
    %v2602 = vunpack.c.l.b16 %v2518
    %v2603 = vunpack.c.l.b16 %v2519
    %v2604 = vunpack.c.h.b16 %v2519
    %v2605 = vunpack.c.l.b16 %v2520
    %v2606 = vunpack.c.l.b16 %v2521
    %v2607 = vunpack.c.h.b16 %v2521
    %v2608 = vunpack.c.l.b16 %v2522
    %v2609 = vunpack.c.l.b16 %v2523
    %v2610 = vunpack.c.h.b16 %v2523
    %v2611 = vunpack.c.l.b16 %v2524
    %v2612 = vunpack.c.l.b16 %v2525
    %v2613 = vunpack.c.h.b16 %v2525
    %v2614 = vunpack.c.l.b16 %v2526
    %v2615 = vpack.c.b16 %v2570, %v2567
    %v2616 = vpack.c.b16 %v2571, %v2568
    %v2617 = vpack.c.b16 %v2572, %v2569
    %v2618 = vpack.c.b16 %v2576, %v2573
    %v2619 = vpack.c.b16 %v2577, %v2574
    %v2620 = vpack.c.b16 %v2578, %v2575
    %v2621 = vpack.c.b16 %v2582, %v2579
    %v2622 = vpack.c.b16 %v2583, %v2580
    %v2623 = vpack.c.b16 %v2584, %v2581
    %v2624 = vpack.c.b16 %v2588, %v2585
    %v2625 = vpack.c.b16 %v2589, %v2586
    %v2626 = vpack.c.b16 %v2590, %v2587
    %v2627 = vpack.c.b16 %v2594, %v2591
    %v2628 = vpack.c.b16 %v2595, %v2592
    %v2629 = vpack.c.b16 %v2596, %v2593
    %v2630 = vpack.c.b16 %v2600, %v2597
    %v2631 = vpack.c.b16 %v2601, %v2598
    %v2632 = vpack.c.b16 %v2602, %v2599
    %v2633 = vpack.c.b16 %v2606, %v2603
    %v2634 = vpack.c.b16 %v2607, %v2604
    %v2635 = vpack.c.b16 %v2608, %v2605
    %v2636 = vpack.c.b16 %v2612, %v2609
    %v2637 = vpack.c.b16 %v2613, %v2610
    %v2638 = vpack.c.b16 %v2614, %v2611
    %2663 = vmatpush.bf16.msra.mxu0 %v2636
    %2664 = vmatpush.bf16.msra.mxu0 %v2633
    %2665 = vmatpush.bf16.msra.mxu0 %v2630
    %2666 = vmatpush.bf16.msra.mxu0 %v2627
    %2667 = vmatpush.bf16.msra.mxu0 %v2624
    %2668 = vmatpush.bf16.msra.mxu0 %v2621
    %2669 = vmatpush.bf16.msra.mxu0 %v2618
    %2670 = vmatpush.bf16.msra.mxu0 %v2615
    %2671 = vmatmul.bf16.gmra.mxu0 %v2494
    %v2672 = vpop.f32.mrf.mxu0
    %v2673 = vadd.f32 %v2529, %v2672
    %v2674 = vpop.f32.mrf.mxu0
    %2675 = vdwg.mxu0
    %2676 = vmatpush.bf16.msra.mxu0 %v2637
    %2677 = vmatpush.bf16.msra.mxu0 %v2634
    %2678 = vmatpush.bf16.msra.mxu0 %v2631
    %2679 = vmatpush.bf16.msra.mxu0 %v2628
    %2680 = vmatpush.bf16.msra.mxu0 %v2625
    %2681 = vmatpush.bf16.msra.mxu0 %v2622
    %2682 = vmatpush.bf16.msra.mxu0 %v2619
    %2683 = vmatpush.bf16.msra.mxu0 %v2616
    %2684 = vmatmul.bf16.gmra.mxu0 %v2494
    %v2685 = vpop.f32.mrf.mxu0
    %v2686 = vadd.f32 %v2530, %v2685
    %v2687 = vpop.f32.mrf.mxu0
    %2688 = vdwg.mxu0
    %2689 = vmatpush.bf16.msra.mxu0 %v2638
    %2690 = vmatpush.bf16.msra.mxu0 %v2635
    %2691 = vmatpush.bf16.msra.mxu0 %v2632
    %2692 = vmatpush.bf16.msra.mxu0 %v2629
    %2693 = vmatpush.bf16.msra.mxu0 %v2626
    %2694 = vmatpush.bf16.msra.mxu0 %v2623
    %2695 = vmatpush.bf16.msra.mxu0 %v2620
    %2696 = vmatpush.bf16.msra.mxu0 %v2617
    %2697 = vmatmul.bf16.gmra.mxu0 %v2494
    %v2698 = vpop.f32.mrf.mxu0
    %v2699 = vadd.f32 %v2531, %v2698
    %v2700 = vpop.f32.mrf.mxu0
    %2701 = vdwg.mxu0
    %v2702 = vld [vmem:[#allocation2 + $0x48] sm:$0xff]
    %v2703 = vld [vmem:[#allocation2 + $0x50] sm:$0xff]
    %v2704 = vld [vmem:[#allocation2 + $0x58] sm:$0xff]
    %v2705 = vld [vmem:[#allocation3 + $0x60] sm:$0xff]
    %v2706 = vld [vmem:[#allocation3 + $0x68] sm:$0xff]
    %v2707 = vld [vmem:[#allocation3 + $0x70] sm:$0xff]
    %v2708 = vadd.f32 %v2702, %v2465
    %v2709 = vxor.u32 %v2708, 2147483648
    %v2710 = vmul.f32 %v2709, 1.442695
    %v2711 = vpow.pop %v2710
    %v2712 = vadd.f32 %v2711, 1.0
    %v2713 = vrcp.pop %v2712
    %v2714 = vmul.f32 %v2712, %v2713
    %v2715 = vsub.f32 1.0, %v2714
    %v2716 = vmul.f32 %v2713, %v2715
    %v2717 = vadd.f32 %v2713, %v2716
    %vm2718 = vweird.f32 %v2712
    %vm2719 = vweird.f32 %v2713
    %vm2720 = vmor %vm2718, %vm2719
    %v2721 = vsel %vm2720, %v2713, %v2717
    %v2722 = vand.u32 2147483647, %v2712
    %vm2723 = vcmp.eq.f32.partialorder %v2722, 8.507059e+37
    %v2724 = vand.u32 %v2712, 2147483648
    %v2725 = vor.u32 1.1754944e-38, %v2724
    %v2726 = vsel %vm2723, %v2725, %v2721
    %v2727 = vmul.f32 1.0, %v2726
    %v2728 = vadd.f32 %v2703, %v2478
    %v2729 = vxor.u32 %v2728, 2147483648
    %v2730 = vmul.f32 %v2729, 1.442695
    %v2731 = vpow.pop %v2730
    %v2732 = vadd.f32 %v2731, 1.0
    %v2733 = vrcp.pop %v2732
    %v2734 = vmul.f32 %v2732, %v2733
    %v2735 = vsub.f32 1.0, %v2734
    %v2736 = vmul.f32 %v2733, %v2735
    %v2737 = vadd.f32 %v2733, %v2736
    %vm2738 = vweird.f32 %v2732
    %vm2739 = vweird.f32 %v2733
    %vm2740 = vmor %vm2738, %vm2739
    %v2741 = vsel %vm2740, %v2733, %v2737
    %v2742 = vand.u32 2147483647, %v2732
    %vm2743 = vcmp.eq.f32.partialorder %v2742, 8.507059e+37
    %v2744 = vand.u32 %v2732, 2147483648
    %v2745 = vor.u32 1.1754944e-38, %v2744
    %v2746 = vsel %vm2743, %v2745, %v2741
    %v2747 = vmul.f32 1.0, %v2746
    %v2748 = vmul.f32 %v2727, %v2491
    %v2749 = vadd.f32 %v2704, %v2748
    %v2750 = vtanh.pop %v2749
    %v2751 = vsub.f32 1.0, %v2747
    %v2752 = vmul.f32 %v2751, %v2750
    %v2753 = vmul.f32 %v2747, %v2236
    %v2754 = vadd.f32 %v2752, %v2753
    %v2755 = vadd.f32 %v2705, %v2673
    %v2756 = vxor.u32 %v2755, 2147483648
    %v2757 = vmul.f32 %v2756, 1.442695
    %v2758 = vpow.pop %v2757
    %v2759 = vadd.f32 %v2758, 1.0
    %v2760 = vrcp.pop %v2759
    %v2761 = vmul.f32 %v2759, %v2760
    %v2762 = vsub.f32 1.0, %v2761
    %v2763 = vmul.f32 %v2760, %v2762
    %v2764 = vadd.f32 %v2760, %v2763
    %vm2765 = vweird.f32 %v2759
    %vm2766 = vweird.f32 %v2760
    %vm2767 = vmor %vm2765, %vm2766
    %v2768 = vsel %vm2767, %v2760, %v2764
    %v2769 = vand.u32 2147483647, %v2759
    %vm2770 = vcmp.eq.f32.partialorder %v2769, 8.507059e+37
    %v2771 = vand.u32 %v2759, 2147483648
    %v2772 = vor.u32 1.1754944e-38, %v2771
    %v2773 = vsel %vm2770, %v2772, %v2768
    %v2774 = vmul.f32 1.0, %v2773
    %v2775 = vadd.f32 %v2706, %v2686
    %v2776 = vxor.u32 %v2775, 2147483648
    %v2777 = vmul.f32 %v2776, 1.442695
    %v2778 = vpow.pop %v2777
    %v2779 = vadd.f32 %v2778, 1.0
    %v2780 = vrcp.pop %v2779
    %v2781 = vmul.f32 %v2779, %v2780
    %v2782 = vsub.f32 1.0, %v2781
    %v2783 = vmul.f32 %v2780, %v2782
    %v2784 = vadd.f32 %v2780, %v2783
    %vm2785 = vweird.f32 %v2779
    %vm2786 = vweird.f32 %v2780
    %vm2787 = vmor %vm2785, %vm2786
    %v2788 = vsel %vm2787, %v2780, %v2784
    %v2789 = vand.u32 2147483647, %v2779
    %vm2790 = vcmp.eq.f32.partialorder %v2789, 8.507059e+37
    %v2791 = vand.u32 %v2779, 2147483648
    %v2792 = vor.u32 1.1754944e-38, %v2791
    %v2793 = vsel %vm2790, %v2792, %v2788
    %v2794 = vmul.f32 1.0, %v2793
    %v2795 = vmul.f32 %v2774, %v2699
    %v2796 = vadd.f32 %v2707, %v2795
    %v2797 = vtanh.pop %v2796
    %v2798 = vsub.f32 1.0, %v2794
    %v2799 = vmul.f32 %v2798, %v2797
    %v2800 = vmul.f32 %v2794, %v2283
    %v2801 = vadd.f32 %v2799, %v2800
    %2802 = vst [vmem:[#allocation4 + $0x18] sm:$0xff] %v2754
    %2803 = vst [vmem:[#allocation5 + $0x20] sm:$0xff] %v2801
    %v2804 = vpack.c.bf16 %v2754, %v2754
    %v2805 = vld [vmem:[#allocation11] sm:$0xff]
    %v2806 = vld [vmem:[#allocation11 + $0x8] sm:$0xf]
    %v2807 = vld [vmem:[#allocation11 + $0xc] sm:$0xff]
    %v2808 = vld [vmem:[#allocation11 + $0x14] sm:$0xf]
    %v2809 = vld [vmem:[#allocation11 + $0x18] sm:$0xff]
    %v2810 = vld [vmem:[#allocation11 + $0x20] sm:$0xf]
    %v2811 = vld [vmem:[#allocation11 + $0x24] sm:$0xff]
    %v2812 = vld [vmem:[#allocation11 + $0x2c] sm:$0xf]
    %v2813 = vld [vmem:[#allocation11 + $0x30] sm:$0xff]
    %v2814 = vld [vmem:[#allocation11 + $0x38] sm:$0xf]
    %v2815 = vld [vmem:[#allocation11 + $0x3c] sm:$0xff]
    %v2816 = vld [vmem:[#allocation11 + $0x44] sm:$0xf]
    %v2817 = vld [vmem:[#allocation11 + $0x48] sm:$0xff]
    %v2818 = vld [vmem:[#allocation11 + $0x50] sm:$0xf]
    %v2819 = vld [vmem:[#allocation11 + $0x54] sm:$0xff]
    %v2820 = vld [vmem:[#allocation11 + $0x5c] sm:$0xf]
    %v2821 = vld [vmem:[#allocation11 + $0x60] sm:$0xff]
    %v2822 = vld [vmem:[#allocation11 + $0x68] sm:$0xf]
    %v2823 = vld [vmem:[#allocation11 + $0x6c] sm:$0xff]
    %v2824 = vld [vmem:[#allocation11 + $0x74] sm:$0xf]
    %v2825 = vld [vmem:[#allocation11 + $0x78] sm:$0xff]
    %v2826 = vld [vmem:[#allocation11 + $0x80] sm:$0xf]
    %v2827 = vld [vmem:[#allocation11 + $0x84] sm:$0xff]
    %v2828 = vld [vmem:[#allocation11 + $0x8c] sm:$0xf]
    %v2829 = vld [vmem:[#allocation11 + $0x90] sm:$0xff]
    %v2830 = vld [vmem:[#allocation11 + $0x98] sm:$0xf]
    %v2831 = vld [vmem:[#allocation11 + $0x9c] sm:$0xff]
    %v2832 = vld [vmem:[#allocation11 + $0xa4] sm:$0xf]
    %v2833 = vld [vmem:[#allocation11 + $0xa8] sm:$0xff]
    %v2834 = vld [vmem:[#allocation11 + $0xb0] sm:$0xf]
    %v2835 = vld [vmem:[#allocation11 + $0xb4] sm:$0xff]
    %v2836 = vld [vmem:[#allocation11 + $0xbc] sm:$0xf]
    %v2837 = vld [vmem:[#allocation17] sm:$0x7]
    %v2839 = vperm.slane %v2837, 0
    %v2840 = vperm.slane %v2837, 1
    %v2841 = vperm.slane %v2837, 2
    %v2877 = vunpack.c.l.b16 %v2805
    %v2878 = vunpack.c.h.b16 %v2805
    %v2879 = vunpack.c.l.b16 %v2806
    %v2880 = vunpack.c.l.b16 %v2807
    %v2881 = vunpack.c.h.b16 %v2807
    %v2882 = vunpack.c.l.b16 %v2808
    %v2883 = vunpack.c.l.b16 %v2809
    %v2884 = vunpack.c.h.b16 %v2809
    %v2885 = vunpack.c.l.b16 %v2810
    %v2886 = vunpack.c.l.b16 %v2811
    %v2887 = vunpack.c.h.b16 %v2811
    %v2888 = vunpack.c.l.b16 %v2812
    %v2889 = vunpack.c.l.b16 %v2813
    %v2890 = vunpack.c.h.b16 %v2813
    %v2891 = vunpack.c.l.b16 %v2814
    %v2892 = vunpack.c.l.b16 %v2815
    %v2893 = vunpack.c.h.b16 %v2815
    %v2894 = vunpack.c.l.b16 %v2816
    %v2895 = vunpack.c.l.b16 %v2817
    %v2896 = vunpack.c.h.b16 %v2817
    %v2897 = vunpack.c.l.b16 %v2818
    %v2898 = vunpack.c.l.b16 %v2819
    %v2899 = vunpack.c.h.b16 %v2819
    %v2900 = vunpack.c.l.b16 %v2820
    %v2901 = vunpack.c.l.b16 %v2821
    %v2902 = vunpack.c.h.b16 %v2821
    %v2903 = vunpack.c.l.b16 %v2822
    %v2904 = vunpack.c.l.b16 %v2823
    %v2905 = vunpack.c.h.b16 %v2823
    %v2906 = vunpack.c.l.b16 %v2824
    %v2907 = vunpack.c.l.b16 %v2825
    %v2908 = vunpack.c.h.b16 %v2825
    %v2909 = vunpack.c.l.b16 %v2826
    %v2910 = vunpack.c.l.b16 %v2827
    %v2911 = vunpack.c.h.b16 %v2827
    %v2912 = vunpack.c.l.b16 %v2828
    %v2913 = vunpack.c.l.b16 %v2829
    %v2914 = vunpack.c.h.b16 %v2829
    %v2915 = vunpack.c.l.b16 %v2830
    %v2916 = vunpack.c.l.b16 %v2831
    %v2917 = vunpack.c.h.b16 %v2831
    %v2918 = vunpack.c.l.b16 %v2832
    %v2919 = vunpack.c.l.b16 %v2833
    %v2920 = vunpack.c.h.b16 %v2833
    %v2921 = vunpack.c.l.b16 %v2834
    %v2922 = vunpack.c.l.b16 %v2835
    %v2923 = vunpack.c.h.b16 %v2835
    %v2924 = vunpack.c.l.b16 %v2836
    %v2925 = vpack.c.b16 %v2880, %v2877
    %v2926 = vpack.c.b16 %v2881, %v2878
    %v2927 = vpack.c.b16 %v2882, %v2879
    %v2928 = vpack.c.b16 %v2886, %v2883
    %v2929 = vpack.c.b16 %v2887, %v2884
    %v2930 = vpack.c.b16 %v2888, %v2885
    %v2931 = vpack.c.b16 %v2892, %v2889
    %v2932 = vpack.c.b16 %v2893, %v2890
    %v2933 = vpack.c.b16 %v2894, %v2891
    %v2934 = vpack.c.b16 %v2898, %v2895
    %v2935 = vpack.c.b16 %v2899, %v2896
    %v2936 = vpack.c.b16 %v2900, %v2897
    %v2937 = vpack.c.b16 %v2904, %v2901
    %v2938 = vpack.c.b16 %v2905, %v2902
    %v2939 = vpack.c.b16 %v2906, %v2903
    %v2940 = vpack.c.b16 %v2910, %v2907
    %v2941 = vpack.c.b16 %v2911, %v2908
    %v2942 = vpack.c.b16 %v2912, %v2909
    %v2943 = vpack.c.b16 %v2916, %v2913
    %v2944 = vpack.c.b16 %v2917, %v2914
    %v2945 = vpack.c.b16 %v2918, %v2915
    %v2946 = vpack.c.b16 %v2922, %v2919
    %v2947 = vpack.c.b16 %v2923, %v2920
    %v2948 = vpack.c.b16 %v2924, %v2921
    %2973 = vmatpush.bf16.msra.mxu0 %v2946
    %2974 = vmatpush.bf16.msra.mxu0 %v2943
    %2975 = vmatpush.bf16.msra.mxu0 %v2940
    %2976 = vmatpush.bf16.msra.mxu0 %v2937
    %2977 = vmatpush.bf16.msra.mxu0 %v2934
    %2978 = vmatpush.bf16.msra.mxu0 %v2931
    %2979 = vmatpush.bf16.msra.mxu0 %v2928
    %2980 = vmatpush.bf16.msra.mxu0 %v2925
    %2981 = vmatmul.bf16.gmra.mxu0 %v2804
    %v2982 = vpop.f32.mrf.mxu0
    %v2983 = vadd.f32 %v2839, %v2982
    %v2984 = vpop.f32.mrf.mxu0
    %2985 = vdwg.mxu0
    %2986 = vmatpush.bf16.msra.mxu0 %v2947
    %2987 = vmatpush.bf16.msra.mxu0 %v2944
    %2988 = vmatpush.bf16.msra.mxu0 %v2941
    %2989 = vmatpush.bf16.msra.mxu0 %v2938
    %2990 = vmatpush.bf16.msra.mxu0 %v2935
    %2991 = vmatpush.bf16.msra.mxu0 %v2932
    %2992 = vmatpush.bf16.msra.mxu0 %v2929
    %2993 = vmatpush.bf16.msra.mxu0 %v2926
    %2994 = vmatmul.bf16.gmra.mxu0 %v2804
    %v2995 = vpop.f32.mrf.mxu0
    %v2996 = vadd.f32 %v2840, %v2995
    %v2997 = vpop.f32.mrf.mxu0
    %2998 = vdwg.mxu0
    %2999 = vmatpush.bf16.msra.mxu0 %v2948
    %3000 = vmatpush.bf16.msra.mxu0 %v2945
    %3001 = vmatpush.bf16.msra.mxu0 %v2942
    %3002 = vmatpush.bf16.msra.mxu0 %v2939
    %3003 = vmatpush.bf16.msra.mxu0 %v2936
    %3004 = vmatpush.bf16.msra.mxu0 %v2933
    %3005 = vmatpush.bf16.msra.mxu0 %v2930
    %3006 = vmatpush.bf16.msra.mxu0 %v2927
    %3007 = vmatmul.bf16.gmra.mxu0 %v2804
    %v3008 = vpop.f32.mrf.mxu0
    %v3009 = vadd.f32 %v2841, %v3008
    %v3010 = vpop.f32.mrf.mxu0
    %3011 = vdwg.mxu0
    %v3012 = vpack.c.bf16 %v2801, %v2801
    %v3013 = vld [vmem:[%s939] sm:$0xff]
    %v3014 = vld [vmem:[%s939 + $0x8] sm:$0xf]
    %v3015 = vld [vmem:[%s939 + $0xc] sm:$0xff]
    %v3016 = vld [vmem:[%s939 + $0x14] sm:$0xf]
    %v3017 = vld [vmem:[%s939 + $0x18] sm:$0xff]
    %v3018 = vld [vmem:[%s939 + $0x20] sm:$0xf]
    %v3019 = vld [vmem:[%s939 + $0x24] sm:$0xff]
    %v3020 = vld [vmem:[%s939 + $0x2c] sm:$0xf]
    %v3021 = vld [vmem:[%s939 + $0x30] sm:$0xff]
    %v3022 = vld [vmem:[%s939 + $0x38] sm:$0xf]
    %v3023 = vld [vmem:[%s939 + $0x3c] sm:$0xff]
    %v3024 = vld [vmem:[%s939 + $0x44] sm:$0xf]
    %v3025 = vld [vmem:[%s939 + $0x48] sm:$0xff]
    %v3026 = vld [vmem:[%s939 + $0x50] sm:$0xf]
    %v3027 = vld [vmem:[%s939 + $0x54] sm:$0xff]
    %v3028 = vld [vmem:[%s939 + $0x5c] sm:$0xf]
    %v3029 = vld [vmem:[%s939 + $0x60] sm:$0xff]
    %v3030 = vld [vmem:[%s939 + $0x68] sm:$0xf]
    %v3031 = vld [vmem:[%s939 + $0x6c] sm:$0xff]
    %v3032 = vld [vmem:[%s939 + $0x74] sm:$0xf]
    %v3033 = vld [vmem:[%s939 + $0x78] sm:$0xff]
    %v3034 = vld [vmem:[%s939 + $0x80] sm:$0xf]
    %v3035 = vld [vmem:[%s939 + $0x84] sm:$0xff]
    %v3036 = vld [vmem:[%s939 + $0x8c] sm:$0xf]
    %v3037 = vld [vmem:[%s939 + $0x90] sm:$0xff]
    %v3038 = vld [vmem:[%s939 + $0x98] sm:$0xf]
    %v3039 = vld [vmem:[%s939 + $0x9c] sm:$0xff]
    %v3040 = vld [vmem:[%s939 + $0xa4] sm:$0xf]
    %v3041 = vld [vmem:[%s939 + $0xa8] sm:$0xff]
    %v3042 = vld [vmem:[%s939 + $0xb0] sm:$0xf]
    %v3043 = vld [vmem:[%s939 + $0xb4] sm:$0xff]
    %v3044 = vld [vmem:[%s939 + $0xbc] sm:$0xf]
    %v3045 = vld [vmem:[%s972] sm:$0x7]
    %v3047 = vperm.slane %v3045, 0
    %v3048 = vperm.slane %v3045, 1
    %v3049 = vperm.slane %v3045, 2
    %v3085 = vunpack.c.l.b16 %v3013
    %v3086 = vunpack.c.h.b16 %v3013
    %v3087 = vunpack.c.l.b16 %v3014
    %v3088 = vunpack.c.l.b16 %v3015
    %v3089 = vunpack.c.h.b16 %v3015
    %v3090 = vunpack.c.l.b16 %v3016
    %v3091 = vunpack.c.l.b16 %v3017
    %v3092 = vunpack.c.h.b16 %v3017
    %v3093 = vunpack.c.l.b16 %v3018
    %v3094 = vunpack.c.l.b16 %v3019
    %v3095 = vunpack.c.h.b16 %v3019
    %v3096 = vunpack.c.l.b16 %v3020
    %v3097 = vunpack.c.l.b16 %v3021
    %v3098 = vunpack.c.h.b16 %v3021
    %v3099 = vunpack.c.l.b16 %v3022
    %v3100 = vunpack.c.l.b16 %v3023
    %v3101 = vunpack.c.h.b16 %v3023
    %v3102 = vunpack.c.l.b16 %v3024
    %v3103 = vunpack.c.l.b16 %v3025
    %v3104 = vunpack.c.h.b16 %v3025
    %v3105 = vunpack.c.l.b16 %v3026
    %v3106 = vunpack.c.l.b16 %v3027
    %v3107 = vunpack.c.h.b16 %v3027
    %v3108 = vunpack.c.l.b16 %v3028
    %v3109 = vunpack.c.l.b16 %v3029
    %v3110 = vunpack.c.h.b16 %v3029
    %v3111 = vunpack.c.l.b16 %v3030
    %v3112 = vunpack.c.l.b16 %v3031
    %v3113 = vunpack.c.h.b16 %v3031
    %v3114 = vunpack.c.l.b16 %v3032
    %v3115 = vunpack.c.l.b16 %v3033
    %v3116 = vunpack.c.h.b16 %v3033
    %v3117 = vunpack.c.l.b16 %v3034
    %v3118 = vunpack.c.l.b16 %v3035
    %v3119 = vunpack.c.h.b16 %v3035
    %v3120 = vunpack.c.l.b16 %v3036
    %v3121 = vunpack.c.l.b16 %v3037
    %v3122 = vunpack.c.h.b16 %v3037
    %v3123 = vunpack.c.l.b16 %v3038
    %v3124 = vunpack.c.l.b16 %v3039
    %v3125 = vunpack.c.h.b16 %v3039
    %v3126 = vunpack.c.l.b16 %v3040
    %v3127 = vunpack.c.l.b16 %v3041
    %v3128 = vunpack.c.h.b16 %v3041
    %v3129 = vunpack.c.l.b16 %v3042
    %v3130 = vunpack.c.l.b16 %v3043
    %v3131 = vunpack.c.h.b16 %v3043
    %v3132 = vunpack.c.l.b16 %v3044
    %v3133 = vpack.c.b16 %v3088, %v3085
    %v3134 = vpack.c.b16 %v3089, %v3086
    %v3135 = vpack.c.b16 %v3090, %v3087
    %v3136 = vpack.c.b16 %v3094, %v3091
    %v3137 = vpack.c.b16 %v3095, %v3092
    %v3138 = vpack.c.b16 %v3096, %v3093
    %v3139 = vpack.c.b16 %v3100, %v3097
    %v3140 = vpack.c.b16 %v3101, %v3098
    %v3141 = vpack.c.b16 %v3102, %v3099
    %v3142 = vpack.c.b16 %v3106, %v3103
    %v3143 = vpack.c.b16 %v3107, %v3104
    %v3144 = vpack.c.b16 %v3108, %v3105
    %v3145 = vpack.c.b16 %v3112, %v3109
    %v3146 = vpack.c.b16 %v3113, %v3110
    %v3147 = vpack.c.b16 %v3114, %v3111
    %v3148 = vpack.c.b16 %v3118, %v3115
    %v3149 = vpack.c.b16 %v3119, %v3116
    %v3150 = vpack.c.b16 %v3120, %v3117
    %v3151 = vpack.c.b16 %v3124, %v3121
    %v3152 = vpack.c.b16 %v3125, %v3122
    %v3153 = vpack.c.b16 %v3126, %v3123
    %v3154 = vpack.c.b16 %v3130, %v3127
    %v3155 = vpack.c.b16 %v3131, %v3128
    %v3156 = vpack.c.b16 %v3132, %v3129
    %3181 = vmatpush.bf16.msra.mxu0 %v3154
    %3182 = vmatpush.bf16.msra.mxu0 %v3151
    %3183 = vmatpush.bf16.msra.mxu0 %v3148
    %3184 = vmatpush.bf16.msra.mxu0 %v3145
    %3185 = vmatpush.bf16.msra.mxu0 %v3142
    %3186 = vmatpush.bf16.msra.mxu0 %v3139
    %3187 = vmatpush.bf16.msra.mxu0 %v3136
    %3188 = vmatpush.bf16.msra.mxu0 %v3133
    %3189 = vmatmul.bf16.gmra.mxu0 %v3012
    %v3190 = vpop.f32.mrf.mxu0
    %v3191 = vadd.f32 %v3047, %v3190
    %v3192 = vpop.f32.mrf.mxu0
    %3193 = vdwg.mxu0
    %3194 = vmatpush.bf16.msra.mxu0 %v3155
    %3195 = vmatpush.bf16.msra.mxu0 %v3152
    %3196 = vmatpush.bf16.msra.mxu0 %v3149
    %3197 = vmatpush.bf16.msra.mxu0 %v3146
    %3198 = vmatpush.bf16.msra.mxu0 %v3143
    %3199 = vmatpush.bf16.msra.mxu0 %v3140
    %3200 = vmatpush.bf16.msra.mxu0 %v3137
    %3201 = vmatpush.bf16.msra.mxu0 %v3134
    %3202 = vmatmul.bf16.gmra.mxu0 %v3012
    %v3203 = vpop.f32.mrf.mxu0
    %v3204 = vadd.f32 %v3048, %v3203
    %v3205 = vpop.f32.mrf.mxu0
    %3206 = vdwg.mxu0
    %3207 = vmatpush.bf16.msra.mxu0 %v3156
    %3208 = vmatpush.bf16.msra.mxu0 %v3153
    %3209 = vmatpush.bf16.msra.mxu0 %v3150
    %3210 = vmatpush.bf16.msra.mxu0 %v3147
    %3211 = vmatpush.bf16.msra.mxu0 %v3144
    %3212 = vmatpush.bf16.msra.mxu0 %v3141
    %3213 = vmatpush.bf16.msra.mxu0 %v3138
    %3214 = vmatpush.bf16.msra.mxu0 %v3135
    %3215 = vmatmul.bf16.gmra.mxu0 %v3012
    %v3216 = vpop.f32.mrf.mxu0
    %v3217 = vadd.f32 %v3049, %v3216
    %v3218 = vpop.f32.mrf.mxu0
    %3219 = vdwg.mxu0
    %v3220 = vld [vmem:[#allocation2 + $0x60] sm:$0xff]
    %v3221 = vld [vmem:[#allocation2 + $0x68] sm:$0xff]
    %v3222 = vld [vmem:[#allocation2 + $0x70] sm:$0xff]
    %v3223 = vld [vmem:[#allocation3 + $0x48] sm:$0xff]
    %v3224 = vld [vmem:[#allocation3 + $0x50] sm:$0xff]
    %v3225 = vld [vmem:[#allocation3 + $0x58] sm:$0xff]
    %v3226 = vadd.f32 %v3220, %v2983
    %v3227 = vxor.u32 %v3226, 2147483648
    %v3228 = vmul.f32 %v3227, 1.442695
    %v3229 = vpow.pop %v3228
    %v3230 = vadd.f32 %v3229, 1.0
    %v3231 = vrcp.pop %v3230
    %v3232 = vmul.f32 %v3230, %v3231
    %v3233 = vsub.f32 1.0, %v3232
    %v3234 = vmul.f32 %v3231, %v3233
    %v3235 = vadd.f32 %v3231, %v3234
    %vm3236 = vweird.f32 %v3230
    %vm3237 = vweird.f32 %v3231
    %vm3238 = vmor %vm3236, %vm3237
    %v3239 = vsel %vm3238, %v3231, %v3235
    %v3240 = vand.u32 2147483647, %v3230
    %vm3241 = vcmp.eq.f32.partialorder %v3240, 8.507059e+37
    %v3242 = vand.u32 %v3230, 2147483648
    %v3243 = vor.u32 1.1754944e-38, %v3242
    %v3244 = vsel %vm3241, %v3243, %v3239
    %v3245 = vmul.f32 1.0, %v3244
    %v3246 = vadd.f32 %v3221, %v2996
    %v3247 = vxor.u32 %v3246, 2147483648
    %v3248 = vmul.f32 %v3247, 1.442695
    %v3249 = vpow.pop %v3248
    %v3250 = vadd.f32 %v3249, 1.0
    %v3251 = vrcp.pop %v3250
    %v3252 = vmul.f32 %v3250, %v3251
    %v3253 = vsub.f32 1.0, %v3252
    %v3254 = vmul.f32 %v3251, %v3253
    %v3255 = vadd.f32 %v3251, %v3254
    %vm3256 = vweird.f32 %v3250
    %vm3257 = vweird.f32 %v3251
    %vm3258 = vmor %vm3256, %vm3257
    %v3259 = vsel %vm3258, %v3251, %v3255
    %v3260 = vand.u32 2147483647, %v3250
    %vm3261 = vcmp.eq.f32.partialorder %v3260, 8.507059e+37
    %v3262 = vand.u32 %v3250, 2147483648
    %v3263 = vor.u32 1.1754944e-38, %v3262
    %v3264 = vsel %vm3261, %v3263, %v3259
    %v3265 = vmul.f32 1.0, %v3264
    %v3266 = vmul.f32 %v3245, %v3009
    %v3267 = vadd.f32 %v3222, %v3266
    %v3268 = vtanh.pop %v3267
    %v3269 = vsub.f32 1.0, %v3265
    %v3270 = vmul.f32 %v3269, %v3268
    %v3271 = vmul.f32 %v3265, %v2754
    %v3272 = vadd.f32 %v3270, %v3271
    %v3273 = vadd.f32 %v3223, %v3191
    %v3274 = vxor.u32 %v3273, 2147483648
    %v3275 = vmul.f32 %v3274, 1.442695
    %v3276 = vpow.pop %v3275
    %v3277 = vadd.f32 %v3276, 1.0
    %v3278 = vrcp.pop %v3277
    %v3279 = vmul.f32 %v3277, %v3278
    %v3280 = vsub.f32 1.0, %v3279
    %v3281 = vmul.f32 %v3278, %v3280
    %v3282 = vadd.f32 %v3278, %v3281
    %vm3283 = vweird.f32 %v3277
    %vm3284 = vweird.f32 %v3278
    %vm3285 = vmor %vm3283, %vm3284
    %v3286 = vsel %vm3285, %v3278, %v3282
    %v3287 = vand.u32 2147483647, %v3277
    %vm3288 = vcmp.eq.f32.partialorder %v3287, 8.507059e+37
    %v3289 = vand.u32 %v3277, 2147483648
    %v3290 = vor.u32 1.1754944e-38, %v3289
    %v3291 = vsel %vm3288, %v3290, %v3286
    %v3292 = vmul.f32 1.0, %v3291
    %v3293 = vadd.f32 %v3224, %v3204
    %v3294 = vxor.u32 %v3293, 2147483648
    %v3295 = vmul.f32 %v3294, 1.442695
    %v3296 = vpow.pop %v3295
    %v3297 = vadd.f32 %v3296, 1.0
    %v3298 = vrcp.pop %v3297
    %v3299 = vmul.f32 %v3297, %v3298
    %v3300 = vsub.f32 1.0, %v3299
    %v3301 = vmul.f32 %v3298, %v3300
    %v3302 = vadd.f32 %v3298, %v3301
    %vm3303 = vweird.f32 %v3297
    %vm3304 = vweird.f32 %v3298
    %vm3305 = vmor %vm3303, %vm3304
    %v3306 = vsel %vm3305, %v3298, %v3302
    %v3307 = vand.u32 2147483647, %v3297
    %vm3308 = vcmp.eq.f32.partialorder %v3307, 8.507059e+37
    %v3309 = vand.u32 %v3297, 2147483648
    %v3310 = vor.u32 1.1754944e-38, %v3309
    %v3311 = vsel %vm3308, %v3310, %v3306
    %v3312 = vmul.f32 1.0, %v3311
    %v3313 = vmul.f32 %v3292, %v3217
    %v3314 = vadd.f32 %v3225, %v3313
    %v3315 = vtanh.pop %v3314
    %v3316 = vsub.f32 1.0, %v3312
    %v3317 = vmul.f32 %v3316, %v3315
    %v3318 = vmul.f32 %v3312, %v2801
    %v3319 = vadd.f32 %v3317, %v3318
    %3320 = vst [vmem:[#allocation4 + $0x20] sm:$0xff] %v3272
    %3321 = vst [vmem:[#allocation5 + $0x18] sm:$0xff] %v3319
    %v3322 = vpack.c.bf16 %v3272, %v3272
    %v3323 = vld [vmem:[#allocation11] sm:$0xff]
    %v3324 = vld [vmem:[#allocation11 + $0x8] sm:$0xf]
    %v3325 = vld [vmem:[#allocation11 + $0xc] sm:$0xff]
    %v3326 = vld [vmem:[#allocation11 + $0x14] sm:$0xf]
    %v3327 = vld [vmem:[#allocation11 + $0x18] sm:$0xff]
    %v3328 = vld [vmem:[#allocation11 + $0x20] sm:$0xf]
    %v3329 = vld [vmem:[#allocation11 + $0x24] sm:$0xff]
    %v3330 = vld [vmem:[#allocation11 + $0x2c] sm:$0xf]
    %v3331 = vld [vmem:[#allocation11 + $0x30] sm:$0xff]
    %v3332 = vld [vmem:[#allocation11 + $0x38] sm:$0xf]
    %v3333 = vld [vmem:[#allocation11 + $0x3c] sm:$0xff]
    %v3334 = vld [vmem:[#allocation11 + $0x44] sm:$0xf]
    %v3335 = vld [vmem:[#allocation11 + $0x48] sm:$0xff]
    %v3336 = vld [vmem:[#allocation11 + $0x50] sm:$0xf]
    %v3337 = vld [vmem:[#allocation11 + $0x54] sm:$0xff]
    %v3338 = vld [vmem:[#allocation11 + $0x5c] sm:$0xf]
    %v3339 = vld [vmem:[#allocation11 + $0x60] sm:$0xff]
    %v3340 = vld [vmem:[#allocation11 + $0x68] sm:$0xf]
    %v3341 = vld [vmem:[#allocation11 + $0x6c] sm:$0xff]
    %v3342 = vld [vmem:[#allocation11 + $0x74] sm:$0xf]
    %v3343 = vld [vmem:[#allocation11 + $0x78] sm:$0xff]
    %v3344 = vld [vmem:[#allocation11 + $0x80] sm:$0xf]
    %v3345 = vld [vmem:[#allocation11 + $0x84] sm:$0xff]
    %v3346 = vld [vmem:[#allocation11 + $0x8c] sm:$0xf]
    %v3347 = vld [vmem:[#allocation11 + $0x90] sm:$0xff]
    %v3348 = vld [vmem:[#allocation11 + $0x98] sm:$0xf]
    %v3349 = vld [vmem:[#allocation11 + $0x9c] sm:$0xff]
    %v3350 = vld [vmem:[#allocation11 + $0xa4] sm:$0xf]
    %v3351 = vld [vmem:[#allocation11 + $0xa8] sm:$0xff]
    %v3352 = vld [vmem:[#allocation11 + $0xb0] sm:$0xf]
    %v3353 = vld [vmem:[#allocation11 + $0xb4] sm:$0xff]
    %v3354 = vld [vmem:[#allocation11 + $0xbc] sm:$0xf]
    %v3355 = vld [vmem:[#allocation17] sm:$0x7]
    %v3357 = vperm.slane %v3355, 0
    %v3358 = vperm.slane %v3355, 1
    %v3359 = vperm.slane %v3355, 2
    %v3395 = vunpack.c.l.b16 %v3323
    %v3396 = vunpack.c.h.b16 %v3323
    %v3397 = vunpack.c.l.b16 %v3324
    %v3398 = vunpack.c.l.b16 %v3325
    %v3399 = vunpack.c.h.b16 %v3325
    %v3400 = vunpack.c.l.b16 %v3326
    %v3401 = vunpack.c.l.b16 %v3327
    %v3402 = vunpack.c.h.b16 %v3327
    %v3403 = vunpack.c.l.b16 %v3328
    %v3404 = vunpack.c.l.b16 %v3329
    %v3405 = vunpack.c.h.b16 %v3329
    %v3406 = vunpack.c.l.b16 %v3330
    %v3407 = vunpack.c.l.b16 %v3331
    %v3408 = vunpack.c.h.b16 %v3331
    %v3409 = vunpack.c.l.b16 %v3332
    %v3410 = vunpack.c.l.b16 %v3333
    %v3411 = vunpack.c.h.b16 %v3333
    %v3412 = vunpack.c.l.b16 %v3334
    %v3413 = vunpack.c.l.b16 %v3335
    %v3414 = vunpack.c.h.b16 %v3335
    %v3415 = vunpack.c.l.b16 %v3336
    %v3416 = vunpack.c.l.b16 %v3337
    %v3417 = vunpack.c.h.b16 %v3337
    %v3418 = vunpack.c.l.b16 %v3338
    %v3419 = vunpack.c.l.b16 %v3339
    %v3420 = vunpack.c.h.b16 %v3339
    %v3421 = vunpack.c.l.b16 %v3340
    %v3422 = vunpack.c.l.b16 %v3341
    %v3423 = vunpack.c.h.b16 %v3341
    %v3424 = vunpack.c.l.b16 %v3342
    %v3425 = vunpack.c.l.b16 %v3343
    %v3426 = vunpack.c.h.b16 %v3343
    %v3427 = vunpack.c.l.b16 %v3344
    %v3428 = vunpack.c.l.b16 %v3345
    %v3429 = vunpack.c.h.b16 %v3345
    %v3430 = vunpack.c.l.b16 %v3346
    %v3431 = vunpack.c.l.b16 %v3347
    %v3432 = vunpack.c.h.b16 %v3347
    %v3433 = vunpack.c.l.b16 %v3348
    %v3434 = vunpack.c.l.b16 %v3349
    %v3435 = vunpack.c.h.b16 %v3349
    %v3436 = vunpack.c.l.b16 %v3350
    %v3437 = vunpack.c.l.b16 %v3351
    %v3438 = vunpack.c.h.b16 %v3351
    %v3439 = vunpack.c.l.b16 %v3352
    %v3440 = vunpack.c.l.b16 %v3353
    %v3441 = vunpack.c.h.b16 %v3353
    %v3442 = vunpack.c.l.b16 %v3354
    %v3443 = vpack.c.b16 %v3398, %v3395
    %v3444 = vpack.c.b16 %v3399, %v3396
    %v3445 = vpack.c.b16 %v3400, %v3397
    %v3446 = vpack.c.b16 %v3404, %v3401
    %v3447 = vpack.c.b16 %v3405, %v3402
    %v3448 = vpack.c.b16 %v3406, %v3403
    %v3449 = vpack.c.b16 %v3410, %v3407
    %v3450 = vpack.c.b16 %v3411, %v3408
    %v3451 = vpack.c.b16 %v3412, %v3409
    %v3452 = vpack.c.b16 %v3416, %v3413
    %v3453 = vpack.c.b16 %v3417, %v3414
    %v3454 = vpack.c.b16 %v3418, %v3415
    %v3455 = vpack.c.b16 %v3422, %v3419
    %v3456 = vpack.c.b16 %v3423, %v3420
    %v3457 = vpack.c.b16 %v3424, %v3421
    %v3458 = vpack.c.b16 %v3428, %v3425
    %v3459 = vpack.c.b16 %v3429, %v3426
    %v3460 = vpack.c.b16 %v3430, %v3427
    %v3461 = vpack.c.b16 %v3434, %v3431
    %v3462 = vpack.c.b16 %v3435, %v3432
    %v3463 = vpack.c.b16 %v3436, %v3433
    %v3464 = vpack.c.b16 %v3440, %v3437
    %v3465 = vpack.c.b16 %v3441, %v3438
    %v3466 = vpack.c.b16 %v3442, %v3439
    %3491 = vmatpush.bf16.msra.mxu0 %v3464
    %3492 = vmatpush.bf16.msra.mxu0 %v3461
    %3493 = vmatpush.bf16.msra.mxu0 %v3458
    %3494 = vmatpush.bf16.msra.mxu0 %v3455
    %3495 = vmatpush.bf16.msra.mxu0 %v3452
    %3496 = vmatpush.bf16.msra.mxu0 %v3449
    %3497 = vmatpush.bf16.msra.mxu0 %v3446
    %3498 = vmatpush.bf16.msra.mxu0 %v3443
    %3499 = vmatmul.bf16.gmra.mxu0 %v3322
    %v3500 = vpop.f32.mrf.mxu0
    %v3501 = vadd.f32 %v3357, %v3500
    %v3502 = vpop.f32.mrf.mxu0
    %3503 = vdwg.mxu0
    %3504 = vmatpush.bf16.msra.mxu0 %v3465
    %3505 = vmatpush.bf16.msra.mxu0 %v3462
    %3506 = vmatpush.bf16.msra.mxu0 %v3459
    %3507 = vmatpush.bf16.msra.mxu0 %v3456
    %3508 = vmatpush.bf16.msra.mxu0 %v3453
    %3509 = vmatpush.bf16.msra.mxu0 %v3450
    %3510 = vmatpush.bf16.msra.mxu0 %v3447
    %3511 = vmatpush.bf16.msra.mxu0 %v3444
    %3512 = vmatmul.bf16.gmra.mxu0 %v3322
    %v3513 = vpop.f32.mrf.mxu0
    %v3514 = vadd.f32 %v3358, %v3513
    %v3515 = vpop.f32.mrf.mxu0
    %3516 = vdwg.mxu0
    %3517 = vmatpush.bf16.msra.mxu0 %v3466
    %3518 = vmatpush.bf16.msra.mxu0 %v3463
    %3519 = vmatpush.bf16.msra.mxu0 %v3460
    %3520 = vmatpush.bf16.msra.mxu0 %v3457
    %3521 = vmatpush.bf16.msra.mxu0 %v3454
    %3522 = vmatpush.bf16.msra.mxu0 %v3451
    %3523 = vmatpush.bf16.msra.mxu0 %v3448
    %3524 = vmatpush.bf16.msra.mxu0 %v3445
    %3525 = vmatmul.bf16.gmra.mxu0 %v3322
    %v3526 = vpop.f32.mrf.mxu0
    %v3527 = vadd.f32 %v3359, %v3526
    %v3528 = vpop.f32.mrf.mxu0
    %3529 = vdwg.mxu0
    %v3530 = vpack.c.bf16 %v3319, %v3319
    %v3531 = vld [vmem:[%s939] sm:$0xff]
    %v3532 = vld [vmem:[%s939 + $0x8] sm:$0xf]
    %v3533 = vld [vmem:[%s939 + $0xc] sm:$0xff]
    %v3534 = vld [vmem:[%s939 + $0x14] sm:$0xf]
    %v3535 = vld [vmem:[%s939 + $0x18] sm:$0xff]
    %v3536 = vld [vmem:[%s939 + $0x20] sm:$0xf]
    %v3537 = vld [vmem:[%s939 + $0x24] sm:$0xff]
    %v3538 = vld [vmem:[%s939 + $0x2c] sm:$0xf]
    %v3539 = vld [vmem:[%s939 + $0x30] sm:$0xff]
    %v3540 = vld [vmem:[%s939 + $0x38] sm:$0xf]
    %v3541 = vld [vmem:[%s939 + $0x3c] sm:$0xff]
    %v3542 = vld [vmem:[%s939 + $0x44] sm:$0xf]
    %v3543 = vld [vmem:[%s939 + $0x48] sm:$0xff]
    %v3544 = vld [vmem:[%s939 + $0x50] sm:$0xf]
    %v3545 = vld [vmem:[%s939 + $0x54] sm:$0xff]
    %v3546 = vld [vmem:[%s939 + $0x5c] sm:$0xf]
    %v3547 = vld [vmem:[%s939 + $0x60] sm:$0xff]
    %v3548 = vld [vmem:[%s939 + $0x68] sm:$0xf]
    %v3549 = vld [vmem:[%s939 + $0x6c] sm:$0xff]
    %v3550 = vld [vmem:[%s939 + $0x74] sm:$0xf]
    %v3551 = vld [vmem:[%s939 + $0x78] sm:$0xff]
    %v3552 = vld [vmem:[%s939 + $0x80] sm:$0xf]
    %v3553 = vld [vmem:[%s939 + $0x84] sm:$0xff]
    %v3554 = vld [vmem:[%s939 + $0x8c] sm:$0xf]
    %v3555 = vld [vmem:[%s939 + $0x90] sm:$0xff]
    %v3556 = vld [vmem:[%s939 + $0x98] sm:$0xf]
    %v3557 = vld [vmem:[%s939 + $0x9c] sm:$0xff]
    %v3558 = vld [vmem:[%s939 + $0xa4] sm:$0xf]
    %v3559 = vld [vmem:[%s939 + $0xa8] sm:$0xff]
    %v3560 = vld [vmem:[%s939 + $0xb0] sm:$0xf]
    %v3561 = vld [vmem:[%s939 + $0xb4] sm:$0xff]
    %v3562 = vld [vmem:[%s939 + $0xbc] sm:$0xf]
    %v3563 = vld [vmem:[%s972] sm:$0x7]
    %v3565 = vperm.slane %v3563, 0
    %v3566 = vperm.slane %v3563, 1
    %v3567 = vperm.slane %v3563, 2
    %v3603 = vunpack.c.l.b16 %v3531
    %v3604 = vunpack.c.h.b16 %v3531
    %v3605 = vunpack.c.l.b16 %v3532
    %v3606 = vunpack.c.l.b16 %v3533
    %v3607 = vunpack.c.h.b16 %v3533
    %v3608 = vunpack.c.l.b16 %v3534
    %v3609 = vunpack.c.l.b16 %v3535
    %v3610 = vunpack.c.h.b16 %v3535
    %v3611 = vunpack.c.l.b16 %v3536
    %v3612 = vunpack.c.l.b16 %v3537
    %v3613 = vunpack.c.h.b16 %v3537
    %v3614 = vunpack.c.l.b16 %v3538
    %v3615 = vunpack.c.l.b16 %v3539
    %v3616 = vunpack.c.h.b16 %v3539
    %v3617 = vunpack.c.l.b16 %v3540
    %v3618 = vunpack.c.l.b16 %v3541
    %v3619 = vunpack.c.h.b16 %v3541
    %v3620 = vunpack.c.l.b16 %v3542
    %v3621 = vunpack.c.l.b16 %v3543
    %v3622 = vunpack.c.h.b16 %v3543
    %v3623 = vunpack.c.l.b16 %v3544
    %v3624 = vunpack.c.l.b16 %v3545
    %v3625 = vunpack.c.h.b16 %v3545
    %v3626 = vunpack.c.l.b16 %v3546
    %v3627 = vunpack.c.l.b16 %v3547
    %v3628 = vunpack.c.h.b16 %v3547
    %v3629 = vunpack.c.l.b16 %v3548
    %v3630 = vunpack.c.l.b16 %v3549
    %v3631 = vunpack.c.h.b16 %v3549
    %v3632 = vunpack.c.l.b16 %v3550
    %v3633 = vunpack.c.l.b16 %v3551
    %v3634 = vunpack.c.h.b16 %v3551
    %v3635 = vunpack.c.l.b16 %v3552
    %v3636 = vunpack.c.l.b16 %v3553
    %v3637 = vunpack.c.h.b16 %v3553
    %v3638 = vunpack.c.l.b16 %v3554
    %v3639 = vunpack.c.l.b16 %v3555
    %v3640 = vunpack.c.h.b16 %v3555
    %v3641 = vunpack.c.l.b16 %v3556
    %v3642 = vunpack.c.l.b16 %v3557
    %v3643 = vunpack.c.h.b16 %v3557
    %v3644 = vunpack.c.l.b16 %v3558
    %v3645 = vunpack.c.l.b16 %v3559
    %v3646 = vunpack.c.h.b16 %v3559
    %v3647 = vunpack.c.l.b16 %v3560
    %v3648 = vunpack.c.l.b16 %v3561
    %v3649 = vunpack.c.h.b16 %v3561
    %v3650 = vunpack.c.l.b16 %v3562
    %v3651 = vpack.c.b16 %v3606, %v3603
    %v3652 = vpack.c.b16 %v3607, %v3604
    %v3653 = vpack.c.b16 %v3608, %v3605
    %v3654 = vpack.c.b16 %v3612, %v3609
    %v3655 = vpack.c.b16 %v3613, %v3610
    %v3656 = vpack.c.b16 %v3614, %v3611
    %v3657 = vpack.c.b16 %v3618, %v3615
    %v3658 = vpack.c.b16 %v3619, %v3616
    %v3659 = vpack.c.b16 %v3620, %v3617
    %v3660 = vpack.c.b16 %v3624, %v3621
    %v3661 = vpack.c.b16 %v3625, %v3622
    %v3662 = vpack.c.b16 %v3626, %v3623
    %v3663 = vpack.c.b16 %v3630, %v3627
    %v3664 = vpack.c.b16 %v3631, %v3628
    %v3665 = vpack.c.b16 %v3632, %v3629
    %v3666 = vpack.c.b16 %v3636, %v3633
    %v3667 = vpack.c.b16 %v3637, %v3634
    %v3668 = vpack.c.b16 %v3638, %v3635
    %v3669 = vpack.c.b16 %v3642, %v3639
    %v3670 = vpack.c.b16 %v3643, %v3640
    %v3671 = vpack.c.b16 %v3644, %v3641
    %v3672 = vpack.c.b16 %v3648, %v3645
    %v3673 = vpack.c.b16 %v3649, %v3646
    %v3674 = vpack.c.b16 %v3650, %v3647
    %3699 = vmatpush.bf16.msra.mxu0 %v3672
    %3700 = vmatpush.bf16.msra.mxu0 %v3669
    %3701 = vmatpush.bf16.msra.mxu0 %v3666
    %3702 = vmatpush.bf16.msra.mxu0 %v3663
    %3703 = vmatpush.bf16.msra.mxu0 %v3660
    %3704 = vmatpush.bf16.msra.mxu0 %v3657
    %3705 = vmatpush.bf16.msra.mxu0 %v3654
    %3706 = vmatpush.bf16.msra.mxu0 %v3651
    %3707 = vmatmul.bf16.gmra.mxu0 %v3530
    %v3708 = vpop.f32.mrf.mxu0
    %v3709 = vadd.f32 %v3565, %v3708
    %v3710 = vpop.f32.mrf.mxu0
    %3711 = vdwg.mxu0
    %3712 = vmatpush.bf16.msra.mxu0 %v3673
    %3713 = vmatpush.bf16.msra.mxu0 %v3670
    %3714 = vmatpush.bf16.msra.mxu0 %v3667
    %3715 = vmatpush.bf16.msra.mxu0 %v3664
    %3716 = vmatpush.bf16.msra.mxu0 %v3661
    %3717 = vmatpush.bf16.msra.mxu0 %v3658
    %3718 = vmatpush.bf16.msra.mxu0 %v3655
    %3719 = vmatpush.bf16.msra.mxu0 %v3652
    %3720 = vmatmul.bf16.gmra.mxu0 %v3530
    %v3721 = vpop.f32.mrf.mxu0
    %v3722 = vadd.f32 %v3566, %v3721
    %v3723 = vpop.f32.mrf.mxu0
    %3724 = vdwg.mxu0
    %3725 = vmatpush.bf16.msra.mxu0 %v3674
    %3726 = vmatpush.bf16.msra.mxu0 %v3671
    %3727 = vmatpush.bf16.msra.mxu0 %v3668
    %3728 = vmatpush.bf16.msra.mxu0 %v3665
    %3729 = vmatpush.bf16.msra.mxu0 %v3662
    %3730 = vmatpush.bf16.msra.mxu0 %v3659
    %3731 = vmatpush.bf16.msra.mxu0 %v3656
    %3732 = vmatpush.bf16.msra.mxu0 %v3653
    %3733 = vmatmul.bf16.gmra.mxu0 %v3530
    %v3734 = vpop.f32.mrf.mxu0
    %v3735 = vadd.f32 %v3567, %v3734
    %v3736 = vpop.f32.mrf.mxu0
    %3737 = vdwg.mxu0
    %v3738 = vld [vmem:[#allocation2 + $0x78] sm:$0xff]
    %v3739 = vld [vmem:[#allocation2 + $0x80] sm:$0xff]
    %v3740 = vld [vmem:[#allocation2 + $0x88] sm:$0xff]
    %v3741 = vld [vmem:[#allocation3 + $0x30] sm:$0xff]
    %v3742 = vld [vmem:[#allocation3 + $0x38] sm:$0xff]
    %v3743 = vld [vmem:[#allocation3 + $0x40] sm:$0xff]
    %v3744 = vadd.f32 %v3738, %v3501
    %v3745 = vxor.u32 %v3744, 2147483648
    %v3746 = vmul.f32 %v3745, 1.442695
    %v3747 = vpow.pop %v3746
    %v3748 = vadd.f32 %v3747, 1.0
    %v3749 = vrcp.pop %v3748
    %v3750 = vmul.f32 %v3748, %v3749
    %v3751 = vsub.f32 1.0, %v3750
    %v3752 = vmul.f32 %v3749, %v3751
    %v3753 = vadd.f32 %v3749, %v3752
    %vm3754 = vweird.f32 %v3748
    %vm3755 = vweird.f32 %v3749
    %vm3756 = vmor %vm3754, %vm3755
    %v3757 = vsel %vm3756, %v3749, %v3753
    %v3758 = vand.u32 2147483647, %v3748
    %vm3759 = vcmp.eq.f32.partialorder %v3758, 8.507059e+37
    %v3760 = vand.u32 %v3748, 2147483648
    %v3761 = vor.u32 1.1754944e-38, %v3760
    %v3762 = vsel %vm3759, %v3761, %v3757
    %v3763 = vmul.f32 1.0, %v3762
    %v3764 = vadd.f32 %v3739, %v3514
    %v3765 = vxor.u32 %v3764, 2147483648
    %v3766 = vmul.f32 %v3765, 1.442695
    %v3767 = vpow.pop %v3766
    %v3768 = vadd.f32 %v3767, 1.0
    %v3769 = vrcp.pop %v3768
    %v3770 = vmul.f32 %v3768, %v3769
    %v3771 = vsub.f32 1.0, %v3770
    %v3772 = vmul.f32 %v3769, %v3771
    %v3773 = vadd.f32 %v3769, %v3772
    %vm3774 = vweird.f32 %v3768
    %vm3775 = vweird.f32 %v3769
    %vm3776 = vmor %vm3774, %vm3775
    %v3777 = vsel %vm3776, %v3769, %v3773
    %v3778 = vand.u32 2147483647, %v3768
    %vm3779 = vcmp.eq.f32.partialorder %v3778, 8.507059e+37
    %v3780 = vand.u32 %v3768, 2147483648
    %v3781 = vor.u32 1.1754944e-38, %v3780
    %v3782 = vsel %vm3779, %v3781, %v3777
    %v3783 = vmul.f32 1.0, %v3782
    %v3784 = vmul.f32 %v3763, %v3527
    %v3785 = vadd.f32 %v3740, %v3784
    %v3786 = vtanh.pop %v3785
    %v3787 = vsub.f32 1.0, %v3783
    %v3788 = vmul.f32 %v3787, %v3786
    %v3789 = vmul.f32 %v3783, %v3272
    %v3790 = vadd.f32 %v3788, %v3789
    %v3791 = vadd.f32 %v3741, %v3709
    %v3792 = vxor.u32 %v3791, 2147483648
    %v3793 = vmul.f32 %v3792, 1.442695
    %v3794 = vpow.pop %v3793
    %v3795 = vadd.f32 %v3794, 1.0
    %v3796 = vrcp.pop %v3795
    %v3797 = vmul.f32 %v3795, %v3796
    %v3798 = vsub.f32 1.0, %v3797
    %v3799 = vmul.f32 %v3796, %v3798
    %v3800 = vadd.f32 %v3796, %v3799
    %vm3801 = vweird.f32 %v3795
    %vm3802 = vweird.f32 %v3796
    %vm3803 = vmor %vm3801, %vm3802
    %v3804 = vsel %vm3803, %v3796, %v3800
    %v3805 = vand.u32 2147483647, %v3795
    %vm3806 = vcmp.eq.f32.partialorder %v3805, 8.507059e+37
    %v3807 = vand.u32 %v3795, 2147483648
    %v3808 = vor.u32 1.1754944e-38, %v3807
    %v3809 = vsel %vm3806, %v3808, %v3804
    %v3810 = vmul.f32 1.0, %v3809
    %v3811 = vadd.f32 %v3742, %v3722
    %v3812 = vxor.u32 %v3811, 2147483648
    %v3813 = vmul.f32 %v3812, 1.442695
    %v3814 = vpow.pop %v3813
    %v3815 = vadd.f32 %v3814, 1.0
    %v3816 = vrcp.pop %v3815
    %v3817 = vmul.f32 %v3815, %v3816
    %v3818 = vsub.f32 1.0, %v3817
    %v3819 = vmul.f32 %v3816, %v3818
    %v3820 = vadd.f32 %v3816, %v3819
    %vm3821 = vweird.f32 %v3815
    %vm3822 = vweird.f32 %v3816
    %vm3823 = vmor %vm3821, %vm3822
    %v3824 = vsel %vm3823, %v3816, %v3820
    %v3825 = vand.u32 2147483647, %v3815
    %vm3826 = vcmp.eq.f32.partialorder %v3825, 8.507059e+37
    %v3827 = vand.u32 %v3815, 2147483648
    %v3828 = vor.u32 1.1754944e-38, %v3827
    %v3829 = vsel %vm3826, %v3828, %v3824
    %v3830 = vmul.f32 1.0, %v3829
    %v3831 = vmul.f32 %v3810, %v3735
    %v3832 = vadd.f32 %v3743, %v3831
    %v3833 = vtanh.pop %v3832
    %v3834 = vsub.f32 1.0, %v3830
    %v3835 = vmul.f32 %v3834, %v3833
    %v3836 = vmul.f32 %v3830, %v3319
    %v3837 = vadd.f32 %v3835, %v3836
    %3838 = vst [vmem:[#allocation4 + $0x28] sm:$0xff] %v3790
    %3839 = vst [vmem:[#allocation5 + $0x10] sm:$0xff] %v3837
    %v3840 = vpack.c.bf16 %v3790, %v3790
    %v3841 = vld [vmem:[#allocation11] sm:$0xff]
    %v3842 = vld [vmem:[#allocation11 + $0x8] sm:$0xf]
    %v3843 = vld [vmem:[#allocation11 + $0xc] sm:$0xff]
    %v3844 = vld [vmem:[#allocation11 + $0x14] sm:$0xf]
    %v3845 = vld [vmem:[#allocation11 + $0x18] sm:$0xff]
    %v3846 = vld [vmem:[#allocation11 + $0x20] sm:$0xf]
    %v3847 = vld [vmem:[#allocation11 + $0x24] sm:$0xff]
    %v3848 = vld [vmem:[#allocation11 + $0x2c] sm:$0xf]
    %v3849 = vld [vmem:[#allocation11 + $0x30] sm:$0xff]
    %v3850 = vld [vmem:[#allocation11 + $0x38] sm:$0xf]
    %v3851 = vld [vmem:[#allocation11 + $0x3c] sm:$0xff]
    %v3852 = vld [vmem:[#allocation11 + $0x44] sm:$0xf]
    %v3853 = vld [vmem:[#allocation11 + $0x48] sm:$0xff]
    %v3854 = vld [vmem:[#allocation11 + $0x50] sm:$0xf]
    %v3855 = vld [vmem:[#allocation11 + $0x54] sm:$0xff]
    %v3856 = vld [vmem:[#allocation11 + $0x5c] sm:$0xf]
    %v3857 = vld [vmem:[#allocation11 + $0x60] sm:$0xff]
    %v3858 = vld [vmem:[#allocation11 + $0x68] sm:$0xf]
    %v3859 = vld [vmem:[#allocation11 + $0x6c] sm:$0xff]
    %v3860 = vld [vmem:[#allocation11 + $0x74] sm:$0xf]
    %v3861 = vld [vmem:[#allocation11 + $0x78] sm:$0xff]
    %v3862 = vld [vmem:[#allocation11 + $0x80] sm:$0xf]
    %v3863 = vld [vmem:[#allocation11 + $0x84] sm:$0xff]
    %v3864 = vld [vmem:[#allocation11 + $0x8c] sm:$0xf]
    %v3865 = vld [vmem:[#allocation11 + $0x90] sm:$0xff]
    %v3866 = vld [vmem:[#allocation11 + $0x98] sm:$0xf]
    %v3867 = vld [vmem:[#allocation11 + $0x9c] sm:$0xff]
    %v3868 = vld [vmem:[#allocation11 + $0xa4] sm:$0xf]
    %v3869 = vld [vmem:[#allocation11 + $0xa8] sm:$0xff]
    %v3870 = vld [vmem:[#allocation11 + $0xb0] sm:$0xf]
    %v3871 = vld [vmem:[#allocation11 + $0xb4] sm:$0xff]
    %v3872 = vld [vmem:[#allocation11 + $0xbc] sm:$0xf]
    %v3873 = vld [vmem:[#allocation17] sm:$0x7]
    %v3875 = vperm.slane %v3873, 0
    %v3876 = vperm.slane %v3873, 1
    %v3877 = vperm.slane %v3873, 2
    %v3913 = vunpack.c.l.b16 %v3841
    %v3914 = vunpack.c.h.b16 %v3841
    %v3915 = vunpack.c.l.b16 %v3842
    %v3916 = vunpack.c.l.b16 %v3843
    %v3917 = vunpack.c.h.b16 %v3843
    %v3918 = vunpack.c.l.b16 %v3844
    %v3919 = vunpack.c.l.b16 %v3845
    %v3920 = vunpack.c.h.b16 %v3845
    %v3921 = vunpack.c.l.b16 %v3846
    %v3922 = vunpack.c.l.b16 %v3847
    %v3923 = vunpack.c.h.b16 %v3847
    %v3924 = vunpack.c.l.b16 %v3848
    %v3925 = vunpack.c.l.b16 %v3849
    %v3926 = vunpack.c.h.b16 %v3849
    %v3927 = vunpack.c.l.b16 %v3850
    %v3928 = vunpack.c.l.b16 %v3851
    %v3929 = vunpack.c.h.b16 %v3851
    %v3930 = vunpack.c.l.b16 %v3852
    %v3931 = vunpack.c.l.b16 %v3853
    %v3932 = vunpack.c.h.b16 %v3853
    %v3933 = vunpack.c.l.b16 %v3854
    %v3934 = vunpack.c.l.b16 %v3855
    %v3935 = vunpack.c.h.b16 %v3855
    %v3936 = vunpack.c.l.b16 %v3856
    %v3937 = vunpack.c.l.b16 %v3857
    %v3938 = vunpack.c.h.b16 %v3857
    %v3939 = vunpack.c.l.b16 %v3858
    %v3940 = vunpack.c.l.b16 %v3859
    %v3941 = vunpack.c.h.b16 %v3859
    %v3942 = vunpack.c.l.b16 %v3860
    %v3943 = vunpack.c.l.b16 %v3861
    %v3944 = vunpack.c.h.b16 %v3861
    %v3945 = vunpack.c.l.b16 %v3862
    %v3946 = vunpack.c.l.b16 %v3863
    %v3947 = vunpack.c.h.b16 %v3863
    %v3948 = vunpack.c.l.b16 %v3864
    %v3949 = vunpack.c.l.b16 %v3865
    %v3950 = vunpack.c.h.b16 %v3865
    %v3951 = vunpack.c.l.b16 %v3866
    %v3952 = vunpack.c.l.b16 %v3867
    %v3953 = vunpack.c.h.b16 %v3867
    %v3954 = vunpack.c.l.b16 %v3868
    %v3955 = vunpack.c.l.b16 %v3869
    %v3956 = vunpack.c.h.b16 %v3869
    %v3957 = vunpack.c.l.b16 %v3870
    %v3958 = vunpack.c.l.b16 %v3871
    %v3959 = vunpack.c.h.b16 %v3871
    %v3960 = vunpack.c.l.b16 %v3872
    %v3961 = vpack.c.b16 %v3916, %v3913
    %v3962 = vpack.c.b16 %v3917, %v3914
    %v3963 = vpack.c.b16 %v3918, %v3915
    %v3964 = vpack.c.b16 %v3922, %v3919
    %v3965 = vpack.c.b16 %v3923, %v3920
    %v3966 = vpack.c.b16 %v3924, %v3921
    %v3967 = vpack.c.b16 %v3928, %v3925
    %v3968 = vpack.c.b16 %v3929, %v3926
    %v3969 = vpack.c.b16 %v3930, %v3927
    %v3970 = vpack.c.b16 %v3934, %v3931
    %v3971 = vpack.c.b16 %v3935, %v3932
    %v3972 = vpack.c.b16 %v3936, %v3933
    %v3973 = vpack.c.b16 %v3940, %v3937
    %v3974 = vpack.c.b16 %v3941, %v3938
    %v3975 = vpack.c.b16 %v3942, %v3939
    %v3976 = vpack.c.b16 %v3946, %v3943
    %v3977 = vpack.c.b16 %v3947, %v3944
    %v3978 = vpack.c.b16 %v3948, %v3945
    %v3979 = vpack.c.b16 %v3952, %v3949
    %v3980 = vpack.c.b16 %v3953, %v3950
    %v3981 = vpack.c.b16 %v3954, %v3951
    %v3982 = vpack.c.b16 %v3958, %v3955
    %v3983 = vpack.c.b16 %v3959, %v3956
    %v3984 = vpack.c.b16 %v3960, %v3957
    %4009 = vmatpush.bf16.msra.mxu0 %v3982
    %4010 = vmatpush.bf16.msra.mxu0 %v3979
    %4011 = vmatpush.bf16.msra.mxu0 %v3976
    %4012 = vmatpush.bf16.msra.mxu0 %v3973
    %4013 = vmatpush.bf16.msra.mxu0 %v3970
    %4014 = vmatpush.bf16.msra.mxu0 %v3967
    %4015 = vmatpush.bf16.msra.mxu0 %v3964
    %4016 = vmatpush.bf16.msra.mxu0 %v3961
    %4017 = vmatmul.bf16.gmra.mxu0 %v3840
    %v4018 = vpop.f32.mrf.mxu0
    %v4019 = vadd.f32 %v3875, %v4018
    %v4020 = vpop.f32.mrf.mxu0
    %4021 = vdwg.mxu0
    %4022 = vmatpush.bf16.msra.mxu0 %v3983
    %4023 = vmatpush.bf16.msra.mxu0 %v3980
    %4024 = vmatpush.bf16.msra.mxu0 %v3977
    %4025 = vmatpush.bf16.msra.mxu0 %v3974
    %4026 = vmatpush.bf16.msra.mxu0 %v3971
    %4027 = vmatpush.bf16.msra.mxu0 %v3968
    %4028 = vmatpush.bf16.msra.mxu0 %v3965
    %4029 = vmatpush.bf16.msra.mxu0 %v3962
    %4030 = vmatmul.bf16.gmra.mxu0 %v3840
    %v4031 = vpop.f32.mrf.mxu0
    %v4032 = vadd.f32 %v3876, %v4031
    %v4033 = vpop.f32.mrf.mxu0
    %4034 = vdwg.mxu0
    %4035 = vmatpush.bf16.msra.mxu0 %v3984
    %4036 = vmatpush.bf16.msra.mxu0 %v3981
    %4037 = vmatpush.bf16.msra.mxu0 %v3978
    %4038 = vmatpush.bf16.msra.mxu0 %v3975
    %4039 = vmatpush.bf16.msra.mxu0 %v3972
    %4040 = vmatpush.bf16.msra.mxu0 %v3969
    %4041 = vmatpush.bf16.msra.mxu0 %v3966
    %4042 = vmatpush.bf16.msra.mxu0 %v3963
    %4043 = vmatmul.bf16.gmra.mxu0 %v3840
    %v4044 = vpop.f32.mrf.mxu0
    %v4045 = vadd.f32 %v3877, %v4044
    %v4046 = vpop.f32.mrf.mxu0
    %4047 = vdwg.mxu0
    %v4048 = vpack.c.bf16 %v3837, %v3837
    %v4049 = vld [vmem:[%s939] sm:$0xff]
    %v4050 = vld [vmem:[%s939 + $0x8] sm:$0xf]
    %v4051 = vld [vmem:[%s939 + $0xc] sm:$0xff]
    %v4052 = vld [vmem:[%s939 + $0x14] sm:$0xf]
    %v4053 = vld [vmem:[%s939 + $0x18] sm:$0xff]
    %v4054 = vld [vmem:[%s939 + $0x20] sm:$0xf]
    %v4055 = vld [vmem:[%s939 + $0x24] sm:$0xff]
    %v4056 = vld [vmem:[%s939 + $0x2c] sm:$0xf]
    %v4057 = vld [vmem:[%s939 + $0x30] sm:$0xff]
    %v4058 = vld [vmem:[%s939 + $0x38] sm:$0xf]
    %v4059 = vld [vmem:[%s939 + $0x3c] sm:$0xff]
    %v4060 = vld [vmem:[%s939 + $0x44] sm:$0xf]
    %v4061 = vld [vmem:[%s939 + $0x48] sm:$0xff]
    %v4062 = vld [vmem:[%s939 + $0x50] sm:$0xf]
    %v4063 = vld [vmem:[%s939 + $0x54] sm:$0xff]
    %v4064 = vld [vmem:[%s939 + $0x5c] sm:$0xf]
    %v4065 = vld [vmem:[%s939 + $0x60] sm:$0xff]
    %v4066 = vld [vmem:[%s939 + $0x68] sm:$0xf]
    %v4067 = vld [vmem:[%s939 + $0x6c] sm:$0xff]
    %v4068 = vld [vmem:[%s939 + $0x74] sm:$0xf]
    %v4069 = vld [vmem:[%s939 + $0x78] sm:$0xff]
    %v4070 = vld [vmem:[%s939 + $0x80] sm:$0xf]
    %v4071 = vld [vmem:[%s939 + $0x84] sm:$0xff]
    %v4072 = vld [vmem:[%s939 + $0x8c] sm:$0xf]
    %v4073 = vld [vmem:[%s939 + $0x90] sm:$0xff]
    %v4074 = vld [vmem:[%s939 + $0x98] sm:$0xf]
    %v4075 = vld [vmem:[%s939 + $0x9c] sm:$0xff]
    %v4076 = vld [vmem:[%s939 + $0xa4] sm:$0xf]
    %v4077 = vld [vmem:[%s939 + $0xa8] sm:$0xff]
    %v4078 = vld [vmem:[%s939 + $0xb0] sm:$0xf]
    %v4079 = vld [vmem:[%s939 + $0xb4] sm:$0xff]
    %v4080 = vld [vmem:[%s939 + $0xbc] sm:$0xf]
    %v4081 = vld [vmem:[%s972] sm:$0x7]
    %v4083 = vperm.slane %v4081, 0
    %v4084 = vperm.slane %v4081, 1
    %v4085 = vperm.slane %v4081, 2
    %v4121 = vunpack.c.l.b16 %v4049
    %v4122 = vunpack.c.h.b16 %v4049
    %v4123 = vunpack.c.l.b16 %v4050
    %v4124 = vunpack.c.l.b16 %v4051
    %v4125 = vunpack.c.h.b16 %v4051
    %v4126 = vunpack.c.l.b16 %v4052
    %v4127 = vunpack.c.l.b16 %v4053
    %v4128 = vunpack.c.h.b16 %v4053
    %v4129 = vunpack.c.l.b16 %v4054
    %v4130 = vunpack.c.l.b16 %v4055
    %v4131 = vunpack.c.h.b16 %v4055
    %v4132 = vunpack.c.l.b16 %v4056
    %v4133 = vunpack.c.l.b16 %v4057
    %v4134 = vunpack.c.h.b16 %v4057
    %v4135 = vunpack.c.l.b16 %v4058
    %v4136 = vunpack.c.l.b16 %v4059
    %v4137 = vunpack.c.h.b16 %v4059
    %v4138 = vunpack.c.l.b16 %v4060
    %v4139 = vunpack.c.l.b16 %v4061
    %v4140 = vunpack.c.h.b16 %v4061
    %v4141 = vunpack.c.l.b16 %v4062
    %v4142 = vunpack.c.l.b16 %v4063
    %v4143 = vunpack.c.h.b16 %v4063
    %v4144 = vunpack.c.l.b16 %v4064
    %v4145 = vunpack.c.l.b16 %v4065
    %v4146 = vunpack.c.h.b16 %v4065
    %v4147 = vunpack.c.l.b16 %v4066
    %v4148 = vunpack.c.l.b16 %v4067
    %v4149 = vunpack.c.h.b16 %v4067
    %v4150 = vunpack.c.l.b16 %v4068
    %v4151 = vunpack.c.l.b16 %v4069
    %v4152 = vunpack.c.h.b16 %v4069
    %v4153 = vunpack.c.l.b16 %v4070
    %v4154 = vunpack.c.l.b16 %v4071
    %v4155 = vunpack.c.h.b16 %v4071
    %v4156 = vunpack.c.l.b16 %v4072
    %v4157 = vunpack.c.l.b16 %v4073
    %v4158 = vunpack.c.h.b16 %v4073
    %v4159 = vunpack.c.l.b16 %v4074
    %v4160 = vunpack.c.l.b16 %v4075
    %v4161 = vunpack.c.h.b16 %v4075
    %v4162 = vunpack.c.l.b16 %v4076
    %v4163 = vunpack.c.l.b16 %v4077
    %v4164 = vunpack.c.h.b16 %v4077
    %v4165 = vunpack.c.l.b16 %v4078
    %v4166 = vunpack.c.l.b16 %v4079
    %v4167 = vunpack.c.h.b16 %v4079
    %v4168 = vunpack.c.l.b16 %v4080
    %v4169 = vpack.c.b16 %v4124, %v4121
    %v4170 = vpack.c.b16 %v4125, %v4122
    %v4171 = vpack.c.b16 %v4126, %v4123
    %v4172 = vpack.c.b16 %v4130, %v4127
    %v4173 = vpack.c.b16 %v4131, %v4128
    %v4174 = vpack.c.b16 %v4132, %v4129
    %v4175 = vpack.c.b16 %v4136, %v4133
    %v4176 = vpack.c.b16 %v4137, %v4134
    %v4177 = vpack.c.b16 %v4138, %v4135
    %v4178 = vpack.c.b16 %v4142, %v4139
    %v4179 = vpack.c.b16 %v4143, %v4140
    %v4180 = vpack.c.b16 %v4144, %v4141
    %v4181 = vpack.c.b16 %v4148, %v4145
    %v4182 = vpack.c.b16 %v4149, %v4146
    %v4183 = vpack.c.b16 %v4150, %v4147
    %v4184 = vpack.c.b16 %v4154, %v4151
    %v4185 = vpack.c.b16 %v4155, %v4152
    %v4186 = vpack.c.b16 %v4156, %v4153
    %v4187 = vpack.c.b16 %v4160, %v4157
    %v4188 = vpack.c.b16 %v4161, %v4158
    %v4189 = vpack.c.b16 %v4162, %v4159
    %v4190 = vpack.c.b16 %v4166, %v4163
    %v4191 = vpack.c.b16 %v4167, %v4164
    %v4192 = vpack.c.b16 %v4168, %v4165
    %4217 = vmatpush.bf16.msra.mxu0 %v4190
    %4218 = vmatpush.bf16.msra.mxu0 %v4187
    %4219 = vmatpush.bf16.msra.mxu0 %v4184
    %4220 = vmatpush.bf16.msra.mxu0 %v4181
    %4221 = vmatpush.bf16.msra.mxu0 %v4178
    %4222 = vmatpush.bf16.msra.mxu0 %v4175
    %4223 = vmatpush.bf16.msra.mxu0 %v4172
    %4224 = vmatpush.bf16.msra.mxu0 %v4169
    %4225 = vmatmul.bf16.gmra.mxu0 %v4048
    %v4226 = vpop.f32.mrf.mxu0
    %v4227 = vadd.f32 %v4083, %v4226
    %v4228 = vpop.f32.mrf.mxu0
    %4229 = vdwg.mxu0
    %4230 = vmatpush.bf16.msra.mxu0 %v4191
    %4231 = vmatpush.bf16.msra.mxu0 %v4188
    %4232 = vmatpush.bf16.msra.mxu0 %v4185
    %4233 = vmatpush.bf16.msra.mxu0 %v4182
    %4234 = vmatpush.bf16.msra.mxu0 %v4179
    %4235 = vmatpush.bf16.msra.mxu0 %v4176
    %4236 = vmatpush.bf16.msra.mxu0 %v4173
    %4237 = vmatpush.bf16.msra.mxu0 %v4170
    %4238 = vmatmul.bf16.gmra.mxu0 %v4048
    %v4239 = vpop.f32.mrf.mxu0
    %v4240 = vadd.f32 %v4084, %v4239
    %v4241 = vpop.f32.mrf.mxu0
    %4242 = vdwg.mxu0
    %4243 = vmatpush.bf16.msra.mxu0 %v4192
    %4244 = vmatpush.bf16.msra.mxu0 %v4189
    %4245 = vmatpush.bf16.msra.mxu0 %v4186
    %4246 = vmatpush.bf16.msra.mxu0 %v4183
    %4247 = vmatpush.bf16.msra.mxu0 %v4180
    %4248 = vmatpush.bf16.msra.mxu0 %v4177
    %4249 = vmatpush.bf16.msra.mxu0 %v4174
    %4250 = vmatpush.bf16.msra.mxu0 %v4171
    %4251 = vmatmul.bf16.gmra.mxu0 %v4048
    %v4252 = vpop.f32.mrf.mxu0
    %v4253 = vadd.f32 %v4085, %v4252
    %v4254 = vpop.f32.mrf.mxu0
    %4255 = vdwg.mxu0
    %v4256 = vld [vmem:[#allocation2 + $0x90] sm:$0xff]
    %v4257 = vld [vmem:[#allocation2 + $0x98] sm:$0xff]
    %v4258 = vld [vmem:[#allocation2 + $0xa0] sm:$0xff]
    %v4259 = vld [vmem:[#allocation3 + $0x18] sm:$0xff]
    %v4260 = vld [vmem:[#allocation3 + $0x20] sm:$0xff]
    %v4261 = vld [vmem:[#allocation3 + $0x28] sm:$0xff]
    %v4262 = vadd.f32 %v4256, %v4019
    %v4263 = vxor.u32 %v4262, 2147483648
    %v4264 = vmul.f32 %v4263, 1.442695
    %v4265 = vpow.pop %v4264
    %v4266 = vadd.f32 %v4265, 1.0
    %v4267 = vrcp.pop %v4266
    %v4268 = vmul.f32 %v4266, %v4267
    %v4269 = vsub.f32 1.0, %v4268
    %v4270 = vmul.f32 %v4267, %v4269
    %v4271 = vadd.f32 %v4267, %v4270
    %vm4272 = vweird.f32 %v4266
    %vm4273 = vweird.f32 %v4267
    %vm4274 = vmor %vm4272, %vm4273
    %v4275 = vsel %vm4274, %v4267, %v4271
    %v4276 = vand.u32 2147483647, %v4266
    %vm4277 = vcmp.eq.f32.partialorder %v4276, 8.507059e+37
    %v4278 = vand.u32 %v4266, 2147483648
    %v4279 = vor.u32 1.1754944e-38, %v4278
    %v4280 = vsel %vm4277, %v4279, %v4275
    %v4281 = vmul.f32 1.0, %v4280
    %v4282 = vadd.f32 %v4257, %v4032
    %v4283 = vxor.u32 %v4282, 2147483648
    %v4284 = vmul.f32 %v4283, 1.442695
    %v4285 = vpow.pop %v4284
    %v4286 = vadd.f32 %v4285, 1.0
    %v4287 = vrcp.pop %v4286
    %v4288 = vmul.f32 %v4286, %v4287
    %v4289 = vsub.f32 1.0, %v4288
    %v4290 = vmul.f32 %v4287, %v4289
    %v4291 = vadd.f32 %v4287, %v4290
    %vm4292 = vweird.f32 %v4286
    %vm4293 = vweird.f32 %v4287
    %vm4294 = vmor %vm4292, %vm4293
    %v4295 = vsel %vm4294, %v4287, %v4291
    %v4296 = vand.u32 2147483647, %v4286
    %vm4297 = vcmp.eq.f32.partialorder %v4296, 8.507059e+37
    %v4298 = vand.u32 %v4286, 2147483648
    %v4299 = vor.u32 1.1754944e-38, %v4298
    %v4300 = vsel %vm4297, %v4299, %v4295
    %v4301 = vmul.f32 1.0, %v4300
    %v4302 = vmul.f32 %v4281, %v4045
    %v4303 = vadd.f32 %v4258, %v4302
    %v4304 = vtanh.pop %v4303
    %v4305 = vsub.f32 1.0, %v4301
    %v4306 = vmul.f32 %v4305, %v4304
    %v4307 = vmul.f32 %v4301, %v3790
    %v4308 = vadd.f32 %v4306, %v4307
    %v4309 = vadd.f32 %v4259, %v4227
    %v4310 = vxor.u32 %v4309, 2147483648
    %v4311 = vmul.f32 %v4310, 1.442695
    %v4312 = vpow.pop %v4311
    %v4313 = vadd.f32 %v4312, 1.0
    %v4314 = vrcp.pop %v4313
    %v4315 = vmul.f32 %v4313, %v4314
    %v4316 = vsub.f32 1.0, %v4315
    %v4317 = vmul.f32 %v4314, %v4316
    %v4318 = vadd.f32 %v4314, %v4317
    %vm4319 = vweird.f32 %v4313
    %vm4320 = vweird.f32 %v4314
    %vm4321 = vmor %vm4319, %vm4320
    %v4322 = vsel %vm4321, %v4314, %v4318
    %v4323 = vand.u32 2147483647, %v4313
    %vm4324 = vcmp.eq.f32.partialorder %v4323, 8.507059e+37
    %v4325 = vand.u32 %v4313, 2147483648
    %v4326 = vor.u32 1.1754944e-38, %v4325
    %v4327 = vsel %vm4324, %v4326, %v4322
    %v4328 = vmul.f32 1.0, %v4327
    %v4329 = vadd.f32 %v4260, %v4240
    %v4330 = vxor.u32 %v4329, 2147483648
    %v4331 = vmul.f32 %v4330, 1.442695
    %v4332 = vpow.pop %v4331
    %v4333 = vadd.f32 %v4332, 1.0
    %v4334 = vrcp.pop %v4333
    %v4335 = vmul.f32 %v4333, %v4334
    %v4336 = vsub.f32 1.0, %v4335
    %v4337 = vmul.f32 %v4334, %v4336
    %v4338 = vadd.f32 %v4334, %v4337
    %vm4339 = vweird.f32 %v4333
    %vm4340 = vweird.f32 %v4334
    %vm4341 = vmor %vm4339, %vm4340
    %v4342 = vsel %vm4341, %v4334, %v4338
    %v4343 = vand.u32 2147483647, %v4333
    %vm4344 = vcmp.eq.f32.partialorder %v4343, 8.507059e+37
    %v4345 = vand.u32 %v4333, 2147483648
    %v4346 = vor.u32 1.1754944e-38, %v4345
    %v4347 = vsel %vm4344, %v4346, %v4342
    %v4348 = vmul.f32 1.0, %v4347
    %v4349 = vmul.f32 %v4328, %v4253
    %v4350 = vadd.f32 %v4261, %v4349
    %v4351 = vtanh.pop %v4350
    %v4352 = vsub.f32 1.0, %v4348
    %v4353 = vmul.f32 %v4352, %v4351
    %v4354 = vmul.f32 %v4348, %v3837
    %v4355 = vadd.f32 %v4353, %v4354
    %4356 = vst [vmem:[#allocation4 + $0x30] sm:$0xff] %v4308
    %4357 = vst [vmem:[#allocation5 + $0x8] sm:$0xff] %v4355
    %v4358 = vpack.c.bf16 %v4308, %v4308
    %v4359 = vld [vmem:[#allocation11] sm:$0xff]
    %v4360 = vld [vmem:[#allocation11 + $0x8] sm:$0xf]
    %v4361 = vld [vmem:[#allocation11 + $0xc] sm:$0xff]
    %v4362 = vld [vmem:[#allocation11 + $0x14] sm:$0xf]
    %v4363 = vld [vmem:[#allocation11 + $0x18] sm:$0xff]
    %v4364 = vld [vmem:[#allocation11 + $0x20] sm:$0xf]
    %v4365 = vld [vmem:[#allocation11 + $0x24] sm:$0xff]
    %v4366 = vld [vmem:[#allocation11 + $0x2c] sm:$0xf]
    %v4367 = vld [vmem:[#allocation11 + $0x30] sm:$0xff]
    %v4368 = vld [vmem:[#allocation11 + $0x38] sm:$0xf]
    %v4369 = vld [vmem:[#allocation11 + $0x3c] sm:$0xff]
    %v4370 = vld [vmem:[#allocation11 + $0x44] sm:$0xf]
    %v4371 = vld [vmem:[#allocation11 + $0x48] sm:$0xff]
    %v4372 = vld [vmem:[#allocation11 + $0x50] sm:$0xf]
    %v4373 = vld [vmem:[#allocation11 + $0x54] sm:$0xff]
    %v4374 = vld [vmem:[#allocation11 + $0x5c] sm:$0xf]
    %v4375 = vld [vmem:[#allocation11 + $0x60] sm:$0xff]
    %v4376 = vld [vmem:[#allocation11 + $0x68] sm:$0xf]
    %v4377 = vld [vmem:[#allocation11 + $0x6c] sm:$0xff]
    %v4378 = vld [vmem:[#allocation11 + $0x74] sm:$0xf]
    %v4379 = vld [vmem:[#allocation11 + $0x78] sm:$0xff]
    %v4380 = vld [vmem:[#allocation11 + $0x80] sm:$0xf]
    %v4381 = vld [vmem:[#allocation11 + $0x84] sm:$0xff]
    %v4382 = vld [vmem:[#allocation11 + $0x8c] sm:$0xf]
    %v4383 = vld [vmem:[#allocation11 + $0x90] sm:$0xff]
    %v4384 = vld [vmem:[#allocation11 + $0x98] sm:$0xf]
    %v4385 = vld [vmem:[#allocation11 + $0x9c] sm:$0xff]
    %v4386 = vld [vmem:[#allocation11 + $0xa4] sm:$0xf]
    %v4387 = vld [vmem:[#allocation11 + $0xa8] sm:$0xff]
    %v4388 = vld [vmem:[#allocation11 + $0xb0] sm:$0xf]
    %v4389 = vld [vmem:[#allocation11 + $0xb4] sm:$0xff]
    %v4390 = vld [vmem:[#allocation11 + $0xbc] sm:$0xf]
    %v4391 = vld [vmem:[#allocation17] sm:$0x7]
    %v4393 = vperm.slane %v4391, 0
    %v4394 = vperm.slane %v4391, 1
    %v4395 = vperm.slane %v4391, 2
    %v4431 = vunpack.c.l.b16 %v4359
    %v4432 = vunpack.c.h.b16 %v4359
    %v4433 = vunpack.c.l.b16 %v4360
    %v4434 = vunpack.c.l.b16 %v4361
    %v4435 = vunpack.c.h.b16 %v4361
    %v4436 = vunpack.c.l.b16 %v4362
    %v4437 = vunpack.c.l.b16 %v4363
    %v4438 = vunpack.c.h.b16 %v4363
    %v4439 = vunpack.c.l.b16 %v4364
    %v4440 = vunpack.c.l.b16 %v4365
    %v4441 = vunpack.c.h.b16 %v4365
    %v4442 = vunpack.c.l.b16 %v4366
    %v4443 = vunpack.c.l.b16 %v4367
    %v4444 = vunpack.c.h.b16 %v4367
    %v4445 = vunpack.c.l.b16 %v4368
    %v4446 = vunpack.c.l.b16 %v4369
    %v4447 = vunpack.c.h.b16 %v4369
    %v4448 = vunpack.c.l.b16 %v4370
    %v4449 = vunpack.c.l.b16 %v4371
    %v4450 = vunpack.c.h.b16 %v4371
    %v4451 = vunpack.c.l.b16 %v4372
    %v4452 = vunpack.c.l.b16 %v4373
    %v4453 = vunpack.c.h.b16 %v4373
    %v4454 = vunpack.c.l.b16 %v4374
    %v4455 = vunpack.c.l.b16 %v4375
    %v4456 = vunpack.c.h.b16 %v4375
    %v4457 = vunpack.c.l.b16 %v4376
    %v4458 = vunpack.c.l.b16 %v4377
    %v4459 = vunpack.c.h.b16 %v4377
    %v4460 = vunpack.c.l.b16 %v4378
    %v4461 = vunpack.c.l.b16 %v4379
    %v4462 = vunpack.c.h.b16 %v4379
    %v4463 = vunpack.c.l.b16 %v4380
    %v4464 = vunpack.c.l.b16 %v4381
    %v4465 = vunpack.c.h.b16 %v4381
    %v4466 = vunpack.c.l.b16 %v4382
    %v4467 = vunpack.c.l.b16 %v4383
    %v4468 = vunpack.c.h.b16 %v4383
    %v4469 = vunpack.c.l.b16 %v4384
    %v4470 = vunpack.c.l.b16 %v4385
    %v4471 = vunpack.c.h.b16 %v4385
    %v4472 = vunpack.c.l.b16 %v4386
    %v4473 = vunpack.c.l.b16 %v4387
    %v4474 = vunpack.c.h.b16 %v4387
    %v4475 = vunpack.c.l.b16 %v4388
    %v4476 = vunpack.c.l.b16 %v4389
    %v4477 = vunpack.c.h.b16 %v4389
    %v4478 = vunpack.c.l.b16 %v4390
    %v4479 = vpack.c.b16 %v4434, %v4431
    %v4480 = vpack.c.b16 %v4435, %v4432
    %v4481 = vpack.c.b16 %v4436, %v4433
    %v4482 = vpack.c.b16 %v4440, %v4437
    %v4483 = vpack.c.b16 %v4441, %v4438
    %v4484 = vpack.c.b16 %v4442, %v4439
    %v4485 = vpack.c.b16 %v4446, %v4443
    %v4486 = vpack.c.b16 %v4447, %v4444
    %v4487 = vpack.c.b16 %v4448, %v4445
    %v4488 = vpack.c.b16 %v4452, %v4449
    %v4489 = vpack.c.b16 %v4453, %v4450
    %v4490 = vpack.c.b16 %v4454, %v4451
    %v4491 = vpack.c.b16 %v4458, %v4455
    %v4492 = vpack.c.b16 %v4459, %v4456
    %v4493 = vpack.c.b16 %v4460, %v4457
    %v4494 = vpack.c.b16 %v4464, %v4461
    %v4495 = vpack.c.b16 %v4465, %v4462
    %v4496 = vpack.c.b16 %v4466, %v4463
    %v4497 = vpack.c.b16 %v4470, %v4467
    %v4498 = vpack.c.b16 %v4471, %v4468
    %v4499 = vpack.c.b16 %v4472, %v4469
    %v4500 = vpack.c.b16 %v4476, %v4473
    %v4501 = vpack.c.b16 %v4477, %v4474
    %v4502 = vpack.c.b16 %v4478, %v4475
    %4527 = vmatpush.bf16.msra.mxu0 %v4500
    %4528 = vmatpush.bf16.msra.mxu0 %v4497
    %4529 = vmatpush.bf16.msra.mxu0 %v4494
    %4530 = vmatpush.bf16.msra.mxu0 %v4491
    %4531 = vmatpush.bf16.msra.mxu0 %v4488
    %4532 = vmatpush.bf16.msra.mxu0 %v4485
    %4533 = vmatpush.bf16.msra.mxu0 %v4482
    %4534 = vmatpush.bf16.msra.mxu0 %v4479
    %4535 = vmatmul.bf16.gmra.mxu0 %v4358
    %v4536 = vpop.f32.mrf.mxu0
    %v4537 = vadd.f32 %v4393, %v4536
    %v4538 = vpop.f32.mrf.mxu0
    %4539 = vdwg.mxu0
    %4540 = vmatpush.bf16.msra.mxu0 %v4501
    %4541 = vmatpush.bf16.msra.mxu0 %v4498
    %4542 = vmatpush.bf16.msra.mxu0 %v4495
    %4543 = vmatpush.bf16.msra.mxu0 %v4492
    %4544 = vmatpush.bf16.msra.mxu0 %v4489
    %4545 = vmatpush.bf16.msra.mxu0 %v4486
    %4546 = vmatpush.bf16.msra.mxu0 %v4483
    %4547 = vmatpush.bf16.msra.mxu0 %v4480
    %4548 = vmatmul.bf16.gmra.mxu0 %v4358
    %v4549 = vpop.f32.mrf.mxu0
    %v4550 = vadd.f32 %v4394, %v4549
    %v4551 = vpop.f32.mrf.mxu0
    %4552 = vdwg.mxu0
    %4553 = vmatpush.bf16.msra.mxu0 %v4502
    %4554 = vmatpush.bf16.msra.mxu0 %v4499
    %4555 = vmatpush.bf16.msra.mxu0 %v4496
    %4556 = vmatpush.bf16.msra.mxu0 %v4493
    %4557 = vmatpush.bf16.msra.mxu0 %v4490
    %4558 = vmatpush.bf16.msra.mxu0 %v4487
    %4559 = vmatpush.bf16.msra.mxu0 %v4484
    %4560 = vmatpush.bf16.msra.mxu0 %v4481
    %4561 = vmatmul.bf16.gmra.mxu0 %v4358
    %v4562 = vpop.f32.mrf.mxu0
    %v4563 = vadd.f32 %v4395, %v4562
    %v4564 = vpop.f32.mrf.mxu0
    %4565 = vdwg.mxu0
    %v4566 = vpack.c.bf16 %v4355, %v4355
    %v4567 = vld [vmem:[%s939] sm:$0xff]
    %v4568 = vld [vmem:[%s939 + $0x8] sm:$0xf]
    %v4569 = vld [vmem:[%s939 + $0xc] sm:$0xff]
    %v4570 = vld [vmem:[%s939 + $0x14] sm:$0xf]
    %v4571 = vld [vmem:[%s939 + $0x18] sm:$0xff]
    %v4572 = vld [vmem:[%s939 + $0x20] sm:$0xf]
    %v4573 = vld [vmem:[%s939 + $0x24] sm:$0xff]
    %v4574 = vld [vmem:[%s939 + $0x2c] sm:$0xf]
    %v4575 = vld [vmem:[%s939 + $0x30] sm:$0xff]
    %v4576 = vld [vmem:[%s939 + $0x38] sm:$0xf]
    %v4577 = vld [vmem:[%s939 + $0x3c] sm:$0xff]
    %v4578 = vld [vmem:[%s939 + $0x44] sm:$0xf]
    %v4579 = vld [vmem:[%s939 + $0x48] sm:$0xff]
    %v4580 = vld [vmem:[%s939 + $0x50] sm:$0xf]
    %v4581 = vld [vmem:[%s939 + $0x54] sm:$0xff]
    %v4582 = vld [vmem:[%s939 + $0x5c] sm:$0xf]
    %v4583 = vld [vmem:[%s939 + $0x60] sm:$0xff]
    %v4584 = vld [vmem:[%s939 + $0x68] sm:$0xf]
    %v4585 = vld [vmem:[%s939 + $0x6c] sm:$0xff]
    %v4586 = vld [vmem:[%s939 + $0x74] sm:$0xf]
    %v4587 = vld [vmem:[%s939 + $0x78] sm:$0xff]
    %v4588 = vld [vmem:[%s939 + $0x80] sm:$0xf]
    %v4589 = vld [vmem:[%s939 + $0x84] sm:$0xff]
    %v4590 = vld [vmem:[%s939 + $0x8c] sm:$0xf]
    %v4591 = vld [vmem:[%s939 + $0x90] sm:$0xff]
    %v4592 = vld [vmem:[%s939 + $0x98] sm:$0xf]
    %v4593 = vld [vmem:[%s939 + $0x9c] sm:$0xff]
    %v4594 = vld [vmem:[%s939 + $0xa4] sm:$0xf]
    %v4595 = vld [vmem:[%s939 + $0xa8] sm:$0xff]
    %v4596 = vld [vmem:[%s939 + $0xb0] sm:$0xf]
    %v4597 = vld [vmem:[%s939 + $0xb4] sm:$0xff]
    %v4598 = vld [vmem:[%s939 + $0xbc] sm:$0xf]
    %v4599 = vld [vmem:[%s972] sm:$0x7]
    %v4601 = vperm.slane %v4599, 0
    %v4602 = vperm.slane %v4599, 1
    %v4603 = vperm.slane %v4599, 2
    %v4639 = vunpack.c.l.b16 %v4567
    %v4640 = vunpack.c.h.b16 %v4567
    %v4641 = vunpack.c.l.b16 %v4568
    %v4642 = vunpack.c.l.b16 %v4569
    %v4643 = vunpack.c.h.b16 %v4569
    %v4644 = vunpack.c.l.b16 %v4570
    %v4645 = vunpack.c.l.b16 %v4571
    %v4646 = vunpack.c.h.b16 %v4571
    %v4647 = vunpack.c.l.b16 %v4572
    %v4648 = vunpack.c.l.b16 %v4573
    %v4649 = vunpack.c.h.b16 %v4573
    %v4650 = vunpack.c.l.b16 %v4574
    %v4651 = vunpack.c.l.b16 %v4575
    %v4652 = vunpack.c.h.b16 %v4575
    %v4653 = vunpack.c.l.b16 %v4576
    %v4654 = vunpack.c.l.b16 %v4577
    %v4655 = vunpack.c.h.b16 %v4577
    %v4656 = vunpack.c.l.b16 %v4578
    %v4657 = vunpack.c.l.b16 %v4579
    %v4658 = vunpack.c.h.b16 %v4579
    %v4659 = vunpack.c.l.b16 %v4580
    %v4660 = vunpack.c.l.b16 %v4581
    %v4661 = vunpack.c.h.b16 %v4581
    %v4662 = vunpack.c.l.b16 %v4582
    %v4663 = vunpack.c.l.b16 %v4583
    %v4664 = vunpack.c.h.b16 %v4583
    %v4665 = vunpack.c.l.b16 %v4584
    %v4666 = vunpack.c.l.b16 %v4585
    %v4667 = vunpack.c.h.b16 %v4585
    %v4668 = vunpack.c.l.b16 %v4586
    %v4669 = vunpack.c.l.b16 %v4587
    %v4670 = vunpack.c.h.b16 %v4587
    %v4671 = vunpack.c.l.b16 %v4588
    %v4672 = vunpack.c.l.b16 %v4589
    %v4673 = vunpack.c.h.b16 %v4589
    %v4674 = vunpack.c.l.b16 %v4590
    %v4675 = vunpack.c.l.b16 %v4591
    %v4676 = vunpack.c.h.b16 %v4591
    %v4677 = vunpack.c.l.b16 %v4592
    %v4678 = vunpack.c.l.b16 %v4593
    %v4679 = vunpack.c.h.b16 %v4593
    %v4680 = vunpack.c.l.b16 %v4594
    %v4681 = vunpack.c.l.b16 %v4595
    %v4682 = vunpack.c.h.b16 %v4595
    %v4683 = vunpack.c.l.b16 %v4596
    %v4684 = vunpack.c.l.b16 %v4597
    %v4685 = vunpack.c.h.b16 %v4597
    %v4686 = vunpack.c.l.b16 %v4598
    %v4687 = vpack.c.b16 %v4642, %v4639
    %v4688 = vpack.c.b16 %v4643, %v4640
    %v4689 = vpack.c.b16 %v4644, %v4641
    %v4690 = vpack.c.b16 %v4648, %v4645
    %v4691 = vpack.c.b16 %v4649, %v4646
    %v4692 = vpack.c.b16 %v4650, %v4647
    %v4693 = vpack.c.b16 %v4654, %v4651
    %v4694 = vpack.c.b16 %v4655, %v4652
    %v4695 = vpack.c.b16 %v4656, %v4653
    %v4696 = vpack.c.b16 %v4660, %v4657
    %v4697 = vpack.c.b16 %v4661, %v4658
    %v4698 = vpack.c.b16 %v4662, %v4659
    %v4699 = vpack.c.b16 %v4666, %v4663
    %v4700 = vpack.c.b16 %v4667, %v4664
    %v4701 = vpack.c.b16 %v4668, %v4665
    %v4702 = vpack.c.b16 %v4672, %v4669
    %v4703 = vpack.c.b16 %v4673, %v4670
    %v4704 = vpack.c.b16 %v4674, %v4671
    %v4705 = vpack.c.b16 %v4678, %v4675
    %v4706 = vpack.c.b16 %v4679, %v4676
    %v4707 = vpack.c.b16 %v4680, %v4677
    %v4708 = vpack.c.b16 %v4684, %v4681
    %v4709 = vpack.c.b16 %v4685, %v4682
    %v4710 = vpack.c.b16 %v4686, %v4683
    %4735 = vmatpush.bf16.msra.mxu0 %v4708
    %4736 = vmatpush.bf16.msra.mxu0 %v4705
    %4737 = vmatpush.bf16.msra.mxu0 %v4702
    %4738 = vmatpush.bf16.msra.mxu0 %v4699
    %4739 = vmatpush.bf16.msra.mxu0 %v4696
    %4740 = vmatpush.bf16.msra.mxu0 %v4693
    %4741 = vmatpush.bf16.msra.mxu0 %v4690
    %4742 = vmatpush.bf16.msra.mxu0 %v4687
    %4743 = vmatmul.bf16.gmra.mxu0 %v4566
    %v4744 = vpop.f32.mrf.mxu0
    %v4745 = vadd.f32 %v4601, %v4744
    %v4746 = vpop.f32.mrf.mxu0
    %4747 = vdwg.mxu0
    %4748 = vmatpush.bf16.msra.mxu0 %v4709
    %4749 = vmatpush.bf16.msra.mxu0 %v4706
    %4750 = vmatpush.bf16.msra.mxu0 %v4703
    %4751 = vmatpush.bf16.msra.mxu0 %v4700
    %4752 = vmatpush.bf16.msra.mxu0 %v4697
    %4753 = vmatpush.bf16.msra.mxu0 %v4694
    %4754 = vmatpush.bf16.msra.mxu0 %v4691
    %4755 = vmatpush.bf16.msra.mxu0 %v4688
    %4756 = vmatmul.bf16.gmra.mxu0 %v4566
    %v4757 = vpop.f32.mrf.mxu0
    %v4758 = vadd.f32 %v4602, %v4757
    %v4759 = vpop.f32.mrf.mxu0
    %4760 = vdwg.mxu0
    %4761 = vmatpush.bf16.msra.mxu0 %v4710
    %4762 = vmatpush.bf16.msra.mxu0 %v4707
    %4763 = vmatpush.bf16.msra.mxu0 %v4704
    %4764 = vmatpush.bf16.msra.mxu0 %v4701
    %4765 = vmatpush.bf16.msra.mxu0 %v4698
    %4766 = vmatpush.bf16.msra.mxu0 %v4695
    %4767 = vmatpush.bf16.msra.mxu0 %v4692
    %4768 = vmatpush.bf16.msra.mxu0 %v4689
    %4769 = vmatmul.bf16.gmra.mxu0 %v4566
    %v4770 = vpop.f32.mrf.mxu0
    %v4771 = vadd.f32 %v4603, %v4770
    %v4772 = vpop.f32.mrf.mxu0
    %4773 = vdwg.mxu0
    %v4774 = vld [vmem:[#allocation2 + $0xa8] sm:$0xff]
    %v4775 = vld [vmem:[#allocation2 + $0xb0] sm:$0xff]
    %v4776 = vld [vmem:[#allocation2 + $0xb8] sm:$0xff]
    %v4777 = vld [vmem:[#allocation3] sm:$0xff]
    %v4778 = vld [vmem:[#allocation3 + $0x8] sm:$0xff]
    %v4779 = vld [vmem:[#allocation3 + $0x10] sm:$0xff]
    %v4780 = vadd.f32 %v4774, %v4537
    %v4781 = vxor.u32 %v4780, 2147483648
    %v4782 = vmul.f32 %v4781, 1.442695
    %v4783 = vpow.pop %v4782
    %v4784 = vadd.f32 %v4783, 1.0
    %v4785 = vrcp.pop %v4784
    %v4786 = vmul.f32 %v4784, %v4785
    %v4787 = vsub.f32 1.0, %v4786
    %v4788 = vmul.f32 %v4785, %v4787
    %v4789 = vadd.f32 %v4785, %v4788
    %vm4790 = vweird.f32 %v4784
    %vm4791 = vweird.f32 %v4785
    %vm4792 = vmor %vm4790, %vm4791
    %v4793 = vsel %vm4792, %v4785, %v4789
    %v4794 = vand.u32 2147483647, %v4784
    %vm4795 = vcmp.eq.f32.partialorder %v4794, 8.507059e+37
    %v4796 = vand.u32 %v4784, 2147483648
    %v4797 = vor.u32 1.1754944e-38, %v4796
    %v4798 = vsel %vm4795, %v4797, %v4793
    %v4799 = vmul.f32 1.0, %v4798
    %v4800 = vadd.f32 %v4775, %v4550
    %v4801 = vxor.u32 %v4800, 2147483648
    %v4802 = vmul.f32 %v4801, 1.442695
    %v4803 = vpow.pop %v4802
    %v4804 = vadd.f32 %v4803, 1.0
    %v4805 = vrcp.pop %v4804
    %v4806 = vmul.f32 %v4804, %v4805
    %v4807 = vsub.f32 1.0, %v4806
    %v4808 = vmul.f32 %v4805, %v4807
    %v4809 = vadd.f32 %v4805, %v4808
    %vm4810 = vweird.f32 %v4804
    %vm4811 = vweird.f32 %v4805
    %vm4812 = vmor %vm4810, %vm4811
    %v4813 = vsel %vm4812, %v4805, %v4809
    %v4814 = vand.u32 2147483647, %v4804
    %vm4815 = vcmp.eq.f32.partialorder %v4814, 8.507059e+37
    %v4816 = vand.u32 %v4804, 2147483648
    %v4817 = vor.u32 1.1754944e-38, %v4816
    %v4818 = vsel %vm4815, %v4817, %v4813
    %v4819 = vmul.f32 1.0, %v4818
    %v4820 = vmul.f32 %v4799, %v4563
    %v4821 = vadd.f32 %v4776, %v4820
    %v4822 = vtanh.pop %v4821
    %v4823 = vsub.f32 1.0, %v4819
    %v4824 = vmul.f32 %v4823, %v4822
    %v4825 = vmul.f32 %v4819, %v4308
    %v4826 = vadd.f32 %v4824, %v4825
    %v4827 = vadd.f32 %v4777, %v4745
    %v4828 = vxor.u32 %v4827, 2147483648
    %v4829 = vmul.f32 %v4828, 1.442695
    %v4830 = vpow.pop %v4829
    %v4831 = vadd.f32 %v4830, 1.0
    %v4832 = vrcp.pop %v4831
    %v4833 = vmul.f32 %v4831, %v4832
    %v4834 = vsub.f32 1.0, %v4833
    %v4835 = vmul.f32 %v4832, %v4834
    %v4836 = vadd.f32 %v4832, %v4835
    %vm4837 = vweird.f32 %v4831
    %vm4838 = vweird.f32 %v4832
    %vm4839 = vmor %vm4837, %vm4838
    %v4840 = vsel %vm4839, %v4832, %v4836
    %v4841 = vand.u32 2147483647, %v4831
    %vm4842 = vcmp.eq.f32.partialorder %v4841, 8.507059e+37
    %v4843 = vand.u32 %v4831, 2147483648
    %v4844 = vor.u32 1.1754944e-38, %v4843
    %v4845 = vsel %vm4842, %v4844, %v4840
    %v4846 = vmul.f32 1.0, %v4845
    %v4847 = vadd.f32 %v4778, %v4758
    %v4848 = vxor.u32 %v4847, 2147483648
    %v4849 = vmul.f32 %v4848, 1.442695
    %v4850 = vpow.pop %v4849
    %v4851 = vadd.f32 %v4850, 1.0
    %v4852 = vrcp.pop %v4851
    %v4853 = vmul.f32 %v4851, %v4852
    %v4854 = vsub.f32 1.0, %v4853
    %v4855 = vmul.f32 %v4852, %v4854
    %v4856 = vadd.f32 %v4852, %v4855
    %vm4857 = vweird.f32 %v4851
    %vm4858 = vweird.f32 %v4852
    %vm4859 = vmor %vm4857, %vm4858
    %v4860 = vsel %vm4859, %v4852, %v4856
    %v4861 = vand.u32 2147483647, %v4851
    %vm4862 = vcmp.eq.f32.partialorder %v4861, 8.507059e+37
    %v4863 = vand.u32 %v4851, 2147483648
    %v4864 = vor.u32 1.1754944e-38, %v4863
    %v4865 = vsel %vm4862, %v4864, %v4860
    %v4866 = vmul.f32 1.0, %v4865
    %v4867 = vmul.f32 %v4846, %v4771
    %v4868 = vadd.f32 %v4779, %v4867
    %v4869 = vtanh.pop %v4868
    %v4870 = vsub.f32 1.0, %v4866
    %v4871 = vmul.f32 %v4870, %v4869
    %v4872 = vmul.f32 %v4866, %v4355
    %v4873 = vadd.f32 %v4871, %v4872
    %4874 = vst [vmem:[#allocation4 + $0x38] sm:$0xff] %v4826
    %4875 = vst [vmem:[#allocation5] sm:$0xff] %v4873
    %v4876 = vld [vmem:[#allocation4] sm:$0xff]
    %v4877 = vld [vmem:[#allocation4 + $0x8] sm:$0xff]
    %v4878 = vld [vmem:[#allocation4 + $0x10] sm:$0xff]
    %v4879 = vld [vmem:[#allocation4 + $0x18] sm:$0xff]
    %v4880 = vld [vmem:[#allocation4 + $0x20] sm:$0xff]
    %v4881 = vld [vmem:[#allocation4 + $0x28] sm:$0xff]
    %v4882 = vld [vmem:[#allocation4 + $0x30] sm:$0xff]
    %v4883 = vld [vmem:[#allocation4 + $0x38] sm:$0xff]
    %v4884 = vpack.c.bf16 %v4877, %v4876
    %v4885 = vpack.c.bf16 %v4879, %v4878
    %v4886 = vpack.c.bf16 %v4881, %v4880
    %v4887 = vpack.c.bf16 %v4883, %v4882
    %v4888 = vld [vmem:[#allocation5] sm:$0xff]
    %v4889 = vld [vmem:[#allocation5 + $0x8] sm:$0xff]
    %v4890 = vld [vmem:[#allocation5 + $0x10] sm:$0xff]
    %v4891 = vld [vmem:[#allocation5 + $0x18] sm:$0xff]
    %v4892 = vld [vmem:[#allocation5 + $0x20] sm:$0xff]
    %v4893 = vld [vmem:[#allocation5 + $0x28] sm:$0xff]
    %v4894 = vld [vmem:[#allocation5 + $0x30] sm:$0xff]
    %v4895 = vld [vmem:[#allocation5 + $0x38] sm:$0xff]
    %v4896 = vpack.c.bf16 %v4889, %v4888
    %v4897 = vpack.c.bf16 %v4891, %v4890
    %v4898 = vpack.c.bf16 %v4893, %v4892
    %v4899 = vpack.c.bf16 %v4895, %v4894
    %v4900 = vld [vmem:[#allocation12] sm:$0xff]
    %v4901 = vld [vmem:[#allocation12 + $0x8] sm:$0xf]
    %v4902 = vld [vmem:[#allocation12 + $0xc] sm:$0xff]
    %v4903 = vld [vmem:[#allocation12 + $0x14] sm:$0xf]
    %v4904 = vld [vmem:[#allocation12 + $0x18] sm:$0xff]
    %v4905 = vld [vmem:[#allocation12 + $0x20] sm:$0xf]
    %v4906 = vld [vmem:[#allocation12 + $0x24] sm:$0xff]
    %v4907 = vld [vmem:[#allocation12 + $0x2c] sm:$0xf]
    %v4908 = vld [vmem:[#allocation12 + $0x30] sm:$0xff]
    %v4909 = vld [vmem:[#allocation12 + $0x38] sm:$0xf]
    %v4910 = vld [vmem:[#allocation12 + $0x3c] sm:$0xff]
    %v4911 = vld [vmem:[#allocation12 + $0x44] sm:$0xf]
    %v4912 = vld [vmem:[#allocation12 + $0x48] sm:$0xff]
    %v4913 = vld [vmem:[#allocation12 + $0x50] sm:$0xf]
    %v4914 = vld [vmem:[#allocation12 + $0x54] sm:$0xff]
    %v4915 = vld [vmem:[#allocation12 + $0x5c] sm:$0xf]
    %v4916 = vld [vmem:[#allocation12 + $0x60] sm:$0xff]
    %v4917 = vld [vmem:[#allocation12 + $0x68] sm:$0xf]
    %v4918 = vld [vmem:[#allocation12 + $0x6c] sm:$0xff]
    %v4919 = vld [vmem:[#allocation12 + $0x74] sm:$0xf]
    %v4920 = vld [vmem:[#allocation12 + $0x78] sm:$0xff]
    %v4921 = vld [vmem:[#allocation12 + $0x80] sm:$0xf]
    %v4922 = vld [vmem:[#allocation12 + $0x84] sm:$0xff]
    %v4923 = vld [vmem:[#allocation12 + $0x8c] sm:$0xf]
    %v4924 = vld [vmem:[#allocation12 + $0x90] sm:$0xff]
    %v4925 = vld [vmem:[#allocation12 + $0x98] sm:$0xf]
    %v4926 = vld [vmem:[#allocation12 + $0x9c] sm:$0xff]
    %v4927 = vld [vmem:[#allocation12 + $0xa4] sm:$0xf]
    %v4928 = vld [vmem:[#allocation12 + $0xa8] sm:$0xff]
    %v4929 = vld [vmem:[#allocation12 + $0xb0] sm:$0xf]
    %v4930 = vld [vmem:[#allocation12 + $0xb4] sm:$0xff]
    %v4931 = vld [vmem:[#allocation12 + $0xbc] sm:$0xf]
    %s4932 = scalar_lea.vmem [#allocation12], 192
    %v4933 = vld [vmem:[%s4932] sm:$0xff]
    %v4934 = vld [vmem:[%s4932 + $0x8] sm:$0xf]
    %v4935 = vld [vmem:[%s4932 + $0xc] sm:$0xff]
    %v4936 = vld [vmem:[%s4932 + $0x14] sm:$0xf]
    %v4937 = vld [vmem:[%s4932 + $0x18] sm:$0xff]
    %v4938 = vld [vmem:[%s4932 + $0x20] sm:$0xf]
    %v4939 = vld [vmem:[%s4932 + $0x24] sm:$0xff]
    %v4940 = vld [vmem:[%s4932 + $0x2c] sm:$0xf]
    %v4941 = vld [vmem:[%s4932 + $0x30] sm:$0xff]
    %v4942 = vld [vmem:[%s4932 + $0x38] sm:$0xf]
    %v4943 = vld [vmem:[%s4932 + $0x3c] sm:$0xff]
    %v4944 = vld [vmem:[%s4932 + $0x44] sm:$0xf]
    %v4945 = vld [vmem:[%s4932 + $0x48] sm:$0xff]
    %v4946 = vld [vmem:[%s4932 + $0x50] sm:$0xf]
    %v4947 = vld [vmem:[%s4932 + $0x54] sm:$0xff]
    %v4948 = vld [vmem:[%s4932 + $0x5c] sm:$0xf]
    %v4949 = vld [vmem:[%s4932 + $0x60] sm:$0xff]
    %v4950 = vld [vmem:[%s4932 + $0x68] sm:$0xf]
    %v4951 = vld [vmem:[%s4932 + $0x6c] sm:$0xff]
    %v4952 = vld [vmem:[%s4932 + $0x74] sm:$0xf]
    %v4953 = vld [vmem:[%s4932 + $0x78] sm:$0xff]
    %v4954 = vld [vmem:[%s4932 + $0x80] sm:$0xf]
    %v4955 = vld [vmem:[%s4932 + $0x84] sm:$0xff]
    %v4956 = vld [vmem:[%s4932 + $0x8c] sm:$0xf]
    %v4957 = vld [vmem:[%s4932 + $0x90] sm:$0xff]
    %v4958 = vld [vmem:[%s4932 + $0x98] sm:$0xf]
    %v4959 = vld [vmem:[%s4932 + $0x9c] sm:$0xff]
    %v4960 = vld [vmem:[%s4932 + $0xa4] sm:$0xf]
    %v4961 = vld [vmem:[%s4932 + $0xa8] sm:$0xff]
    %v4962 = vld [vmem:[%s4932 + $0xb0] sm:$0xf]
    %v4963 = vld [vmem:[%s4932 + $0xb4] sm:$0xff]
    %v4964 = vld [vmem:[%s4932 + $0xbc] sm:$0xf]
    %v4997 = vunpack.c.l.b16 %v4933
    %v4998 = vunpack.c.h.b16 %v4933
    %v4999 = vunpack.c.l.b16 %v4934
    %v5000 = vunpack.c.l.b16 %v4935
    %v5001 = vunpack.c.h.b16 %v4935
    %v5002 = vunpack.c.l.b16 %v4936
    %v5003 = vunpack.c.l.b16 %v4937
    %v5004 = vunpack.c.h.b16 %v4937
    %v5005 = vunpack.c.l.b16 %v4938
    %v5006 = vunpack.c.l.b16 %v4939
    %v5007 = vunpack.c.h.b16 %v4939
    %v5008 = vunpack.c.l.b16 %v4940
    %v5009 = vunpack.c.l.b16 %v4941
    %v5010 = vunpack.c.h.b16 %v4941
    %v5011 = vunpack.c.l.b16 %v4942
    %v5012 = vunpack.c.l.b16 %v4943
    %v5013 = vunpack.c.h.b16 %v4943
    %v5014 = vunpack.c.l.b16 %v4944
    %v5015 = vunpack.c.l.b16 %v4945
    %v5016 = vunpack.c.h.b16 %v4945
    %v5017 = vunpack.c.l.b16 %v4946
    %v5018 = vunpack.c.l.b16 %v4947
    %v5019 = vunpack.c.h.b16 %v4947
    %v5020 = vunpack.c.l.b16 %v4948
    %v5021 = vunpack.c.l.b16 %v4949
    %v5022 = vunpack.c.h.b16 %v4949
    %v5023 = vunpack.c.l.b16 %v4950
    %v5024 = vunpack.c.l.b16 %v4951
    %v5025 = vunpack.c.h.b16 %v4951
    %v5026 = vunpack.c.l.b16 %v4952
    %v5027 = vunpack.c.l.b16 %v4953
    %v5028 = vunpack.c.h.b16 %v4953
    %v5029 = vunpack.c.l.b16 %v4954
    %v5030 = vunpack.c.l.b16 %v4955
    %v5031 = vunpack.c.h.b16 %v4955
    %v5032 = vunpack.c.l.b16 %v4956
    %v5033 = vunpack.c.l.b16 %v4957
    %v5034 = vunpack.c.h.b16 %v4957
    %v5035 = vunpack.c.l.b16 %v4958
    %v5036 = vunpack.c.l.b16 %v4959
    %v5037 = vunpack.c.h.b16 %v4959
    %v5038 = vunpack.c.l.b16 %v4960
    %v5039 = vunpack.c.l.b16 %v4961
    %v5040 = vunpack.c.h.b16 %v4961
    %v5041 = vunpack.c.l.b16 %v4962
    %v5042 = vunpack.c.l.b16 %v4963
    %v5043 = vunpack.c.h.b16 %v4963
    %v5044 = vunpack.c.l.b16 %v4964
    %v5045 = vpack.c.b16 %v5000, %v4997
    %v5046 = vpack.c.b16 %v5001, %v4998
    %v5047 = vpack.c.b16 %v5002, %v4999
    %v5048 = vpack.c.b16 %v5006, %v5003
    %v5049 = vpack.c.b16 %v5007, %v5004
    %v5050 = vpack.c.b16 %v5008, %v5005
    %v5051 = vpack.c.b16 %v5012, %v5009
    %v5052 = vpack.c.b16 %v5013, %v5010
    %v5053 = vpack.c.b16 %v5014, %v5011
    %v5054 = vpack.c.b16 %v5018, %v5015
    %v5055 = vpack.c.b16 %v5019, %v5016
    %v5056 = vpack.c.b16 %v5020, %v5017
    %v5057 = vpack.c.b16 %v5024, %v5021
    %v5058 = vpack.c.b16 %v5025, %v5022
    %v5059 = vpack.c.b16 %v5026, %v5023
    %v5060 = vpack.c.b16 %v5030, %v5027
    %v5061 = vpack.c.b16 %v5031, %v5028
    %v5062 = vpack.c.b16 %v5032, %v5029
    %v5063 = vpack.c.b16 %v5036, %v5033
    %v5064 = vpack.c.b16 %v5037, %v5034
    %v5065 = vpack.c.b16 %v5038, %v5035
    %v5066 = vpack.c.b16 %v5042, %v5039
    %v5067 = vpack.c.b16 %v5043, %v5040
    %v5068 = vpack.c.b16 %v5044, %v5041
    %5093 = vmatpush.bf16.msra.mxu0 %v5066
    %5094 = vmatpush.bf16.msra.mxu0 %v5063
    %5095 = vmatpush.bf16.msra.mxu0 %v5060
    %5096 = vmatpush.bf16.msra.mxu0 %v5057
    %5097 = vmatpush.bf16.msra.mxu0 %v5054
    %5098 = vmatpush.bf16.msra.mxu0 %v5051
    %5099 = vmatpush.bf16.msra.mxu0 %v5048
    %5100 = vmatpush.bf16.msra.mxu0 %v5045
    %5101 = vmatmul.bf16.gmra.mxu0 %v4896
    %v5102 = vpop.f32.mrf.mxu0
    %v5103 = vadd.f32 0.0, %v5102
    %v5104 = vpop.f32.mrf.mxu0
    %v5105 = vadd.f32 0.0, %v5104
    %5106 = vmatmul.bf16.gmra.mxu0 %v4897
    %v5107 = vpop.f32.mrf.mxu0
    %v5108 = vadd.f32 0.0, %v5107
    %v5109 = vpop.f32.mrf.mxu0
    %v5110 = vadd.f32 0.0, %v5109
    %5111 = vmatmul.bf16.gmra.mxu0 %v4898
    %v5112 = vpop.f32.mrf.mxu0
    %v5113 = vadd.f32 0.0, %v5112
    %v5114 = vpop.f32.mrf.mxu0
    %v5115 = vadd.f32 0.0, %v5114
    %5116 = vmatmul.bf16.gmra.mxu0 %v4899
    %v5117 = vpop.f32.mrf.mxu0
    %v5118 = vadd.f32 0.0, %v5117
    %v5119 = vpop.f32.mrf.mxu0
    %v5120 = vadd.f32 0.0, %v5119
    %5121 = vdwg.mxu0
    %5122 = vmatpush.bf16.msra.mxu0 %v5067
    %5123 = vmatpush.bf16.msra.mxu0 %v5064
    %5124 = vmatpush.bf16.msra.mxu0 %v5061
    %5125 = vmatpush.bf16.msra.mxu0 %v5058
    %5126 = vmatpush.bf16.msra.mxu0 %v5055
    %5127 = vmatpush.bf16.msra.mxu0 %v5052
    %5128 = vmatpush.bf16.msra.mxu0 %v5049
    %5129 = vmatpush.bf16.msra.mxu0 %v5046
    %5130 = vmatmul.bf16.gmra.mxu0 %v4896
    %v5131 = vpop.f32.mrf.mxu0
    %v5132 = vadd.f32 0.0, %v5131
    %v5133 = vpop.f32.mrf.mxu0
    %v5134 = vadd.f32 0.0, %v5133
    %5135 = vmatmul.bf16.gmra.mxu0 %v4897
    %v5136 = vpop.f32.mrf.mxu0
    %v5137 = vadd.f32 0.0, %v5136
    %v5138 = vpop.f32.mrf.mxu0
    %v5139 = vadd.f32 0.0, %v5138
    %5140 = vmatmul.bf16.gmra.mxu0 %v4898
    %v5141 = vpop.f32.mrf.mxu0
    %v5142 = vadd.f32 0.0, %v5141
    %v5143 = vpop.f32.mrf.mxu0
    %v5144 = vadd.f32 0.0, %v5143
    %5145 = vmatmul.bf16.gmra.mxu0 %v4899
    %v5146 = vpop.f32.mrf.mxu0
    %v5147 = vadd.f32 0.0, %v5146
    %v5148 = vpop.f32.mrf.mxu0
    %v5149 = vadd.f32 0.0, %v5148
    %5150 = vdwg.mxu0
    %5151 = vmatpush.bf16.msra.mxu0 %v5068
    %5152 = vmatpush.bf16.msra.mxu0 %v5065
    %5153 = vmatpush.bf16.msra.mxu0 %v5062
    %5154 = vmatpush.bf16.msra.mxu0 %v5059
    %5155 = vmatpush.bf16.msra.mxu0 %v5056
    %5156 = vmatpush.bf16.msra.mxu0 %v5053
    %5157 = vmatpush.bf16.msra.mxu0 %v5050
    %5158 = vmatpush.bf16.msra.mxu0 %v5047
    %5159 = vmatmul.bf16.gmra.mxu0 %v4896
    %v5160 = vpop.f32.mrf.mxu0
    %v5161 = vadd.f32 0.0, %v5160
    %v5162 = vpop.f32.mrf.mxu0
    %v5163 = vadd.f32 0.0, %v5162
    %5164 = vmatmul.bf16.gmra.mxu0 %v4897
    %v5165 = vpop.f32.mrf.mxu0
    %v5166 = vadd.f32 0.0, %v5165
    %v5167 = vpop.f32.mrf.mxu0
    %v5168 = vadd.f32 0.0, %v5167
    %5169 = vmatmul.bf16.gmra.mxu0 %v4898
    %v5170 = vpop.f32.mrf.mxu0
    %v5171 = vadd.f32 0.0, %v5170
    %v5172 = vpop.f32.mrf.mxu0
    %v5173 = vadd.f32 0.0, %v5172
    %5174 = vmatmul.bf16.gmra.mxu0 %v4899
    %v5175 = vpop.f32.mrf.mxu0
    %v5176 = vadd.f32 0.0, %v5175
    %v5177 = vpop.f32.mrf.mxu0
    %v5178 = vadd.f32 0.0, %v5177
    %5179 = vdwg.mxu0
    %v5212 = vunpack.c.l.b16 %v4900
    %v5213 = vunpack.c.h.b16 %v4900
    %v5214 = vunpack.c.l.b16 %v4901
    %v5215 = vunpack.c.l.b16 %v4902
    %v5216 = vunpack.c.h.b16 %v4902
    %v5217 = vunpack.c.l.b16 %v4903
    %v5218 = vunpack.c.l.b16 %v4904
    %v5219 = vunpack.c.h.b16 %v4904
    %v5220 = vunpack.c.l.b16 %v4905
    %v5221 = vunpack.c.l.b16 %v4906
    %v5222 = vunpack.c.h.b16 %v4906
    %v5223 = vunpack.c.l.b16 %v4907
    %v5224 = vunpack.c.l.b16 %v4908
    %v5225 = vunpack.c.h.b16 %v4908
    %v5226 = vunpack.c.l.b16 %v4909
    %v5227 = vunpack.c.l.b16 %v4910
    %v5228 = vunpack.c.h.b16 %v4910
    %v5229 = vunpack.c.l.b16 %v4911
    %v5230 = vunpack.c.l.b16 %v4912
    %v5231 = vunpack.c.h.b16 %v4912
    %v5232 = vunpack.c.l.b16 %v4913
    %v5233 = vunpack.c.l.b16 %v4914
    %v5234 = vunpack.c.h.b16 %v4914
    %v5235 = vunpack.c.l.b16 %v4915
    %v5236 = vunpack.c.l.b16 %v4916
    %v5237 = vunpack.c.h.b16 %v4916
    %v5238 = vunpack.c.l.b16 %v4917
    %v5239 = vunpack.c.l.b16 %v4918
    %v5240 = vunpack.c.h.b16 %v4918
    %v5241 = vunpack.c.l.b16 %v4919
    %v5242 = vunpack.c.l.b16 %v4920
    %v5243 = vunpack.c.h.b16 %v4920
    %v5244 = vunpack.c.l.b16 %v4921
    %v5245 = vunpack.c.l.b16 %v4922
    %v5246 = vunpack.c.h.b16 %v4922
    %v5247 = vunpack.c.l.b16 %v4923
    %v5248 = vunpack.c.l.b16 %v4924
    %v5249 = vunpack.c.h.b16 %v4924
    %v5250 = vunpack.c.l.b16 %v4925
    %v5251 = vunpack.c.l.b16 %v4926
    %v5252 = vunpack.c.h.b16 %v4926
    %v5253 = vunpack.c.l.b16 %v4927
    %v5254 = vunpack.c.l.b16 %v4928
    %v5255 = vunpack.c.h.b16 %v4928
    %v5256 = vunpack.c.l.b16 %v4929
    %v5257 = vunpack.c.l.b16 %v4930
    %v5258 = vunpack.c.h.b16 %v4930
    %v5259 = vunpack.c.l.b16 %v4931
    %v5260 = vpack.c.b16 %v5215, %v5212
    %v5261 = vpack.c.b16 %v5216, %v5213
    %v5262 = vpack.c.b16 %v5217, %v5214
    %v5263 = vpack.c.b16 %v5221, %v5218
    %v5264 = vpack.c.b16 %v5222, %v5219
    %v5265 = vpack.c.b16 %v5223, %v5220
    %v5266 = vpack.c.b16 %v5227, %v5224
    %v5267 = vpack.c.b16 %v5228, %v5225
    %v5268 = vpack.c.b16 %v5229, %v5226
    %v5269 = vpack.c.b16 %v5233, %v5230
    %v5270 = vpack.c.b16 %v5234, %v5231
    %v5271 = vpack.c.b16 %v5235, %v5232
    %v5272 = vpack.c.b16 %v5239, %v5236
    %v5273 = vpack.c.b16 %v5240, %v5237
    %v5274 = vpack.c.b16 %v5241, %v5238
    %v5275 = vpack.c.b16 %v5245, %v5242
    %v5276 = vpack.c.b16 %v5246, %v5243
    %v5277 = vpack.c.b16 %v5247, %v5244
    %v5278 = vpack.c.b16 %v5251, %v5248
    %v5279 = vpack.c.b16 %v5252, %v5249
    %v5280 = vpack.c.b16 %v5253, %v5250
    %v5281 = vpack.c.b16 %v5257, %v5254
    %v5282 = vpack.c.b16 %v5258, %v5255
    %v5283 = vpack.c.b16 %v5259, %v5256
    %5308 = vmatpush.bf16.msra.mxu0 %v5281
    %5309 = vmatpush.bf16.msra.mxu0 %v5278
    %5310 = vmatpush.bf16.msra.mxu0 %v5275
    %5311 = vmatpush.bf16.msra.mxu0 %v5272
    %5312 = vmatpush.bf16.msra.mxu0 %v5269
    %5313 = vmatpush.bf16.msra.mxu0 %v5266
    %5314 = vmatpush.bf16.msra.mxu0 %v5263
    %5315 = vmatpush.bf16.msra.mxu0 %v5260
    %5316 = vmatmul.bf16.gmra.mxu0 %v4884
    %v5317 = vpop.f32.mrf.mxu0
    %v5318 = vadd.f32 %v5103, %v5317
    %v5319 = vpop.f32.mrf.mxu0
    %v5320 = vadd.f32 %v5105, %v5319
    %5321 = vmatmul.bf16.gmra.mxu0 %v4885
    %v5322 = vpop.f32.mrf.mxu0
    %v5323 = vadd.f32 %v5108, %v5322
    %v5324 = vpop.f32.mrf.mxu0
    %v5325 = vadd.f32 %v5110, %v5324
    %5326 = vmatmul.bf16.gmra.mxu0 %v4886
    %v5327 = vpop.f32.mrf.mxu0
    %v5328 = vadd.f32 %v5113, %v5327
    %v5329 = vpop.f32.mrf.mxu0
    %v5330 = vadd.f32 %v5115, %v5329
    %5331 = vmatmul.bf16.gmra.mxu0 %v4887
    %v5332 = vpop.f32.mrf.mxu0
    %v5333 = vadd.f32 %v5118, %v5332
    %v5334 = vpop.f32.mrf.mxu0
    %v5335 = vadd.f32 %v5120, %v5334
    %5336 = vdwg.mxu0
    %5337 = vmatpush.bf16.msra.mxu0 %v5282
    %5338 = vmatpush.bf16.msra.mxu0 %v5279
    %5339 = vmatpush.bf16.msra.mxu0 %v5276
    %5340 = vmatpush.bf16.msra.mxu0 %v5273
    %5341 = vmatpush.bf16.msra.mxu0 %v5270
    %5342 = vmatpush.bf16.msra.mxu0 %v5267
    %5343 = vmatpush.bf16.msra.mxu0 %v5264
    %5344 = vmatpush.bf16.msra.mxu0 %v5261
    %5345 = vmatmul.bf16.gmra.mxu0 %v4884
    %v5346 = vpop.f32.mrf.mxu0
    %v5347 = vadd.f32 %v5132, %v5346
    %v5348 = vpop.f32.mrf.mxu0
    %v5349 = vadd.f32 %v5134, %v5348
    %5350 = vmatmul.bf16.gmra.mxu0 %v4885
    %v5351 = vpop.f32.mrf.mxu0
    %v5352 = vadd.f32 %v5137, %v5351
    %v5353 = vpop.f32.mrf.mxu0
    %v5354 = vadd.f32 %v5139, %v5353
    %5355 = vmatmul.bf16.gmra.mxu0 %v4886
    %v5356 = vpop.f32.mrf.mxu0
    %v5357 = vadd.f32 %v5142, %v5356
    %v5358 = vpop.f32.mrf.mxu0
    %v5359 = vadd.f32 %v5144, %v5358
    %5360 = vmatmul.bf16.gmra.mxu0 %v4887
    %v5361 = vpop.f32.mrf.mxu0
    %v5362 = vadd.f32 %v5147, %v5361
    %v5363 = vpop.f32.mrf.mxu0
    %v5364 = vadd.f32 %v5149, %v5363
    %5365 = vdwg.mxu0
    %5366 = vmatpush.bf16.msra.mxu0 %v5283
    %5367 = vmatpush.bf16.msra.mxu0 %v5280
    %5368 = vmatpush.bf16.msra.mxu0 %v5277
    %5369 = vmatpush.bf16.msra.mxu0 %v5274
    %5370 = vmatpush.bf16.msra.mxu0 %v5271
    %5371 = vmatpush.bf16.msra.mxu0 %v5268
    %5372 = vmatpush.bf16.msra.mxu0 %v5265
    %5373 = vmatpush.bf16.msra.mxu0 %v5262
    %5374 = vmatmul.bf16.gmra.mxu0 %v4884
    %v5375 = vpop.f32.mrf.mxu0
    %v5376 = vadd.f32 %v5161, %v5375
    %v5377 = vpop.f32.mrf.mxu0
    %v5378 = vadd.f32 %v5163, %v5377
    %5379 = vmatmul.bf16.gmra.mxu0 %v4885
    %v5380 = vpop.f32.mrf.mxu0
    %v5381 = vadd.f32 %v5166, %v5380
    %v5382 = vpop.f32.mrf.mxu0
    %v5383 = vadd.f32 %v5168, %v5382
    %5384 = vmatmul.bf16.gmra.mxu0 %v4886
    %v5385 = vpop.f32.mrf.mxu0
    %v5386 = vadd.f32 %v5171, %v5385
    %v5387 = vpop.f32.mrf.mxu0
    %v5388 = vadd.f32 %v5173, %v5387
    %5389 = vmatmul.bf16.gmra.mxu0 %v4887
    %v5390 = vpop.f32.mrf.mxu0
    %v5391 = vadd.f32 %v5176, %v5390
    %v5392 = vpop.f32.mrf.mxu0
    %v5393 = vadd.f32 %v5178, %v5392
    %5394 = vdwg.mxu0
    %s5395 = scalar_lea.vmem [#allocation15], 6
    %v5396 = vld [vmem:[%s5395] sm:$0x7]
    %v5398 = vperm.slane %v5396, 0
    %v5399 = vperm.slane %v5396, 1
    %v5400 = vperm.slane %v5396, 2
    %v5404 = vadd.f32 %v5318, %v5398
    %v5405 = vadd.f32 %v5347, %v5399
    %v5406 = vadd.f32 %v5376, %v5400
    %v5407 = vadd.f32 %v5320, %v5398
    %v5408 = vadd.f32 %v5349, %v5399
    %v5409 = vadd.f32 %v5378, %v5400
    %v5410 = vadd.f32 %v5323, %v5398
    %v5411 = vadd.f32 %v5352, %v5399
    %v5412 = vadd.f32 %v5381, %v5400
    %v5413 = vadd.f32 %v5325, %v5398
    %v5414 = vadd.f32 %v5354, %v5399
    %v5415 = vadd.f32 %v5383, %v5400
    %v5416 = vadd.f32 %v5328, %v5398
    %v5417 = vadd.f32 %v5357, %v5399
    %v5418 = vadd.f32 %v5386, %v5400
    %v5419 = vadd.f32 %v5330, %v5398
    %v5420 = vadd.f32 %v5359, %v5399
    %v5421 = vadd.f32 %v5388, %v5400
    %v5422 = vadd.f32 %v5333, %v5398
    %v5423 = vadd.f32 %v5362, %v5399
    %v5424 = vadd.f32 %v5391, %v5400
    %v5425 = vadd.f32 %v5335, %v5398
    %v5426 = vadd.f32 %v5364, %v5399
    %v5427 = vadd.f32 %v5393, %v5400
    %5428 = vst [vmem:[#allocation2] sm:$0xff] %v5404
    %5429 = vst [vmem:[#allocation2 + $0x8] sm:$0xff] %v5405
    %5430 = vst [vmem:[#allocation2 + $0x10] sm:$0xff] %v5406
    %5431 = vst [vmem:[#allocation2 + $0x18] sm:$0xff] %v5407
    %5432 = vst [vmem:[#allocation2 + $0x20] sm:$0xff] %v5408
    %5433 = vst [vmem:[#allocation2 + $0x28] sm:$0xff] %v5409
    %5434 = vst [vmem:[#allocation2 + $0x30] sm:$0xff] %v5410
    %5435 = vst [vmem:[#allocation2 + $0x38] sm:$0xff] %v5411
    %5436 = vst [vmem:[#allocation2 + $0x40] sm:$0xff] %v5412
    %5437 = vst [vmem:[#allocation2 + $0x48] sm:$0xff] %v5413
    %5438 = vst [vmem:[#allocation2 + $0x50] sm:$0xff] %v5414
    %5439 = vst [vmem:[#allocation2 + $0x58] sm:$0xff] %v5415
    %5440 = vst [vmem:[#allocation2 + $0x60] sm:$0xff] %v5416
    %5441 = vst [vmem:[#allocation2 + $0x68] sm:$0xff] %v5417
    %5442 = vst [vmem:[#allocation2 + $0x70] sm:$0xff] %v5418
    %5443 = vst [vmem:[#allocation2 + $0x78] sm:$0xff] %v5419
    %5444 = vst [vmem:[#allocation2 + $0x80] sm:$0xff] %v5420
    %5445 = vst [vmem:[#allocation2 + $0x88] sm:$0xff] %v5421
    %5446 = vst [vmem:[#allocation2 + $0x90] sm:$0xff] %v5422
    %5447 = vst [vmem:[#allocation2 + $0x98] sm:$0xff] %v5423
    %5448 = vst [vmem:[#allocation2 + $0xa0] sm:$0xff] %v5424
    %5449 = vst [vmem:[#allocation2 + $0xa8] sm:$0xff] %v5425
    %5450 = vst [vmem:[#allocation2 + $0xb0] sm:$0xff] %v5426
    %5451 = vst [vmem:[#allocation2 + $0xb8] sm:$0xff] %v5427
    %s5452 = scalar_lea.vmem [#allocation12], 384
    %v5453 = vld [vmem:[%s5452] sm:$0xff]
    %v5454 = vld [vmem:[%s5452 + $0x8] sm:$0xf]
    %v5455 = vld [vmem:[%s5452 + $0xc] sm:$0xff]
    %v5456 = vld [vmem:[%s5452 + $0x14] sm:$0xf]
    %v5457 = vld [vmem:[%s5452 + $0x18] sm:$0xff]
    %v5458 = vld [vmem:[%s5452 + $0x20] sm:$0xf]
    %v5459 = vld [vmem:[%s5452 + $0x24] sm:$0xff]
    %v5460 = vld [vmem:[%s5452 + $0x2c] sm:$0xf]
    %v5461 = vld [vmem:[%s5452 + $0x30] sm:$0xff]
    %v5462 = vld [vmem:[%s5452 + $0x38] sm:$0xf]
    %v5463 = vld [vmem:[%s5452 + $0x3c] sm:$0xff]
    %v5464 = vld [vmem:[%s5452 + $0x44] sm:$0xf]
    %v5465 = vld [vmem:[%s5452 + $0x48] sm:$0xff]
    %v5466 = vld [vmem:[%s5452 + $0x50] sm:$0xf]
    %v5467 = vld [vmem:[%s5452 + $0x54] sm:$0xff]
    %v5468 = vld [vmem:[%s5452 + $0x5c] sm:$0xf]
    %v5469 = vld [vmem:[%s5452 + $0x60] sm:$0xff]
    %v5470 = vld [vmem:[%s5452 + $0x68] sm:$0xf]
    %v5471 = vld [vmem:[%s5452 + $0x6c] sm:$0xff]
    %v5472 = vld [vmem:[%s5452 + $0x74] sm:$0xf]
    %v5473 = vld [vmem:[%s5452 + $0x78] sm:$0xff]
    %v5474 = vld [vmem:[%s5452 + $0x80] sm:$0xf]
    %v5475 = vld [vmem:[%s5452 + $0x84] sm:$0xff]
    %v5476 = vld [vmem:[%s5452 + $0x8c] sm:$0xf]
    %v5477 = vld [vmem:[%s5452 + $0x90] sm:$0xff]
    %v5478 = vld [vmem:[%s5452 + $0x98] sm:$0xf]
    %v5479 = vld [vmem:[%s5452 + $0x9c] sm:$0xff]
    %v5480 = vld [vmem:[%s5452 + $0xa4] sm:$0xf]
    %v5481 = vld [vmem:[%s5452 + $0xa8] sm:$0xff]
    %v5482 = vld [vmem:[%s5452 + $0xb0] sm:$0xf]
    %v5483 = vld [vmem:[%s5452 + $0xb4] sm:$0xff]
    %v5484 = vld [vmem:[%s5452 + $0xbc] sm:$0xf]
    %s5485 = scalar_lea.vmem [#allocation12], 576
    %v5486 = vld [vmem:[%s5485] sm:$0xff]
    %v5487 = vld [vmem:[%s5485 + $0x8] sm:$0xf]
    %v5488 = vld [vmem:[%s5485 + $0xc] sm:$0xff]
    %v5489 = vld [vmem:[%s5485 + $0x14] sm:$0xf]
    %v5490 = vld [vmem:[%s5485 + $0x18] sm:$0xff]
    %v5491 = vld [vmem:[%s5485 + $0x20] sm:$0xf]
    %v5492 = vld [vmem:[%s5485 + $0x24] sm:$0xff]
    %v5493 = vld [vmem:[%s5485 + $0x2c] sm:$0xf]
    %v5494 = vld [vmem:[%s5485 + $0x30] sm:$0xff]
    %v5495 = vld [vmem:[%s5485 + $0x38] sm:$0xf]
    %v5496 = vld [vmem:[%s5485 + $0x3c] sm:$0xff]
    %v5497 = vld [vmem:[%s5485 + $0x44] sm:$0xf]
    %v5498 = vld [vmem:[%s5485 + $0x48] sm:$0xff]
    %v5499 = vld [vmem:[%s5485 + $0x50] sm:$0xf]
    %v5500 = vld [vmem:[%s5485 + $0x54] sm:$0xff]
    %v5501 = vld [vmem:[%s5485 + $0x5c] sm:$0xf]
    %v5502 = vld [vmem:[%s5485 + $0x60] sm:$0xff]
    %v5503 = vld [vmem:[%s5485 + $0x68] sm:$0xf]
    %v5504 = vld [vmem:[%s5485 + $0x6c] sm:$0xff]
    %v5505 = vld [vmem:[%s5485 + $0x74] sm:$0xf]
    %v5506 = vld [vmem:[%s5485 + $0x78] sm:$0xff]
    %v5507 = vld [vmem:[%s5485 + $0x80] sm:$0xf]
    %v5508 = vld [vmem:[%s5485 + $0x84] sm:$0xff]
    %v5509 = vld [vmem:[%s5485 + $0x8c] sm:$0xf]
    %v5510 = vld [vmem:[%s5485 + $0x90] sm:$0xff]
    %v5511 = vld [vmem:[%s5485 + $0x98] sm:$0xf]
    %v5512 = vld [vmem:[%s5485 + $0x9c] sm:$0xff]
    %v5513 = vld [vmem:[%s5485 + $0xa4] sm:$0xf]
    %v5514 = vld [vmem:[%s5485 + $0xa8] sm:$0xff]
    %v5515 = vld [vmem:[%s5485 + $0xb0] sm:$0xf]
    %v5516 = vld [vmem:[%s5485 + $0xb4] sm:$0xff]
    %v5517 = vld [vmem:[%s5485 + $0xbc] sm:$0xf]
    %v5550 = vunpack.c.l.b16 %v5486
    %v5551 = vunpack.c.h.b16 %v5486
    %v5552 = vunpack.c.l.b16 %v5487
    %v5553 = vunpack.c.l.b16 %v5488
    %v5554 = vunpack.c.h.b16 %v5488
    %v5555 = vunpack.c.l.b16 %v5489
    %v5556 = vunpack.c.l.b16 %v5490
    %v5557 = vunpack.c.h.b16 %v5490
    %v5558 = vunpack.c.l.b16 %v5491
    %v5559 = vunpack.c.l.b16 %v5492
    %v5560 = vunpack.c.h.b16 %v5492
    %v5561 = vunpack.c.l.b16 %v5493
    %v5562 = vunpack.c.l.b16 %v5494
    %v5563 = vunpack.c.h.b16 %v5494
    %v5564 = vunpack.c.l.b16 %v5495
    %v5565 = vunpack.c.l.b16 %v5496
    %v5566 = vunpack.c.h.b16 %v5496
    %v5567 = vunpack.c.l.b16 %v5497
    %v5568 = vunpack.c.l.b16 %v5498
    %v5569 = vunpack.c.h.b16 %v5498
    %v5570 = vunpack.c.l.b16 %v5499
    %v5571 = vunpack.c.l.b16 %v5500
    %v5572 = vunpack.c.h.b16 %v5500
    %v5573 = vunpack.c.l.b16 %v5501
    %v5574 = vunpack.c.l.b16 %v5502
    %v5575 = vunpack.c.h.b16 %v5502
    %v5576 = vunpack.c.l.b16 %v5503
    %v5577 = vunpack.c.l.b16 %v5504
    %v5578 = vunpack.c.h.b16 %v5504
    %v5579 = vunpack.c.l.b16 %v5505
    %v5580 = vunpack.c.l.b16 %v5506
    %v5581 = vunpack.c.h.b16 %v5506
    %v5582 = vunpack.c.l.b16 %v5507
    %v5583 = vunpack.c.l.b16 %v5508
    %v5584 = vunpack.c.h.b16 %v5508
    %v5585 = vunpack.c.l.b16 %v5509
    %v5586 = vunpack.c.l.b16 %v5510
    %v5587 = vunpack.c.h.b16 %v5510
    %v5588 = vunpack.c.l.b16 %v5511
    %v5589 = vunpack.c.l.b16 %v5512
    %v5590 = vunpack.c.h.b16 %v5512
    %v5591 = vunpack.c.l.b16 %v5513
    %v5592 = vunpack.c.l.b16 %v5514
    %v5593 = vunpack.c.h.b16 %v5514
    %v5594 = vunpack.c.l.b16 %v5515
    %v5595 = vunpack.c.l.b16 %v5516
    %v5596 = vunpack.c.h.b16 %v5516
    %v5597 = vunpack.c.l.b16 %v5517
    %v5598 = vpack.c.b16 %v5553, %v5550
    %v5599 = vpack.c.b16 %v5554, %v5551
    %v5600 = vpack.c.b16 %v5555, %v5552
    %v5601 = vpack.c.b16 %v5559, %v5556
    %v5602 = vpack.c.b16 %v5560, %v5557
    %v5603 = vpack.c.b16 %v5561, %v5558
    %v5604 = vpack.c.b16 %v5565, %v5562
    %v5605 = vpack.c.b16 %v5566, %v5563
    %v5606 = vpack.c.b16 %v5567, %v5564
    %v5607 = vpack.c.b16 %v5571, %v5568
    %v5608 = vpack.c.b16 %v5572, %v5569
    %v5609 = vpack.c.b16 %v5573, %v5570
    %v5610 = vpack.c.b16 %v5577, %v5574
    %v5611 = vpack.c.b16 %v5578, %v5575
    %v5612 = vpack.c.b16 %v5579, %v5576
    %v5613 = vpack.c.b16 %v5583, %v5580
    %v5614 = vpack.c.b16 %v5584, %v5581
    %v5615 = vpack.c.b16 %v5585, %v5582
    %v5616 = vpack.c.b16 %v5589, %v5586
    %v5617 = vpack.c.b16 %v5590, %v5587
    %v5618 = vpack.c.b16 %v5591, %v5588
    %v5619 = vpack.c.b16 %v5595, %v5592
    %v5620 = vpack.c.b16 %v5596, %v5593
    %v5621 = vpack.c.b16 %v5597, %v5594
    %5646 = vmatpush.bf16.msra.mxu0 %v5619
    %5647 = vmatpush.bf16.msra.mxu0 %v5616
    %5648 = vmatpush.bf16.msra.mxu0 %v5613
    %5649 = vmatpush.bf16.msra.mxu0 %v5610
    %5650 = vmatpush.bf16.msra.mxu0 %v5607
    %5651 = vmatpush.bf16.msra.mxu0 %v5604
    %5652 = vmatpush.bf16.msra.mxu0 %v5601
    %5653 = vmatpush.bf16.msra.mxu0 %v5598
    %5654 = vmatmul.bf16.gmra.mxu0 %v4896
    %v5655 = vpop.f32.mrf.mxu0
    %v5656 = vadd.f32 0.0, %v5655
    %v5657 = vpop.f32.mrf.mxu0
    %v5658 = vadd.f32 0.0, %v5657
    %5659 = vmatmul.bf16.gmra.mxu0 %v4897
    %v5660 = vpop.f32.mrf.mxu0
    %v5661 = vadd.f32 0.0, %v5660
    %v5662 = vpop.f32.mrf.mxu0
    %v5663 = vadd.f32 0.0, %v5662
    %5664 = vmatmul.bf16.gmra.mxu0 %v4898
    %v5665 = vpop.f32.mrf.mxu0
    %v5666 = vadd.f32 0.0, %v5665
    %v5667 = vpop.f32.mrf.mxu0
    %v5668 = vadd.f32 0.0, %v5667
    %5669 = vmatmul.bf16.gmra.mxu0 %v4899
    %v5670 = vpop.f32.mrf.mxu0
    %v5671 = vadd.f32 0.0, %v5670
    %v5672 = vpop.f32.mrf.mxu0
    %v5673 = vadd.f32 0.0, %v5672
    %5674 = vdwg.mxu0
    %5675 = vmatpush.bf16.msra.mxu0 %v5620
    %5676 = vmatpush.bf16.msra.mxu0 %v5617
    %5677 = vmatpush.bf16.msra.mxu0 %v5614
    %5678 = vmatpush.bf16.msra.mxu0 %v5611
    %5679 = vmatpush.bf16.msra.mxu0 %v5608
    %5680 = vmatpush.bf16.msra.mxu0 %v5605
    %5681 = vmatpush.bf16.msra.mxu0 %v5602
    %5682 = vmatpush.bf16.msra.mxu0 %v5599
    %5683 = vmatmul.bf16.gmra.mxu0 %v4896
    %v5684 = vpop.f32.mrf.mxu0
    %v5685 = vadd.f32 0.0, %v5684
    %v5686 = vpop.f32.mrf.mxu0
    %v5687 = vadd.f32 0.0, %v5686
    %5688 = vmatmul.bf16.gmra.mxu0 %v4897
    %v5689 = vpop.f32.mrf.mxu0
    %v5690 = vadd.f32 0.0, %v5689
    %v5691 = vpop.f32.mrf.mxu0
    %v5692 = vadd.f32 0.0, %v5691
    %5693 = vmatmul.bf16.gmra.mxu0 %v4898
    %v5694 = vpop.f32.mrf.mxu0
    %v5695 = vadd.f32 0.0, %v5694
    %v5696 = vpop.f32.mrf.mxu0
    %v5697 = vadd.f32 0.0, %v5696
    %5698 = vmatmul.bf16.gmra.mxu0 %v4899
    %v5699 = vpop.f32.mrf.mxu0
    %v5700 = vadd.f32 0.0, %v5699
    %v5701 = vpop.f32.mrf.mxu0
    %v5702 = vadd.f32 0.0, %v5701
    %5703 = vdwg.mxu0
    %5704 = vmatpush.bf16.msra.mxu0 %v5621
    %5705 = vmatpush.bf16.msra.mxu0 %v5618
    %5706 = vmatpush.bf16.msra.mxu0 %v5615
    %5707 = vmatpush.bf16.msra.mxu0 %v5612
    %5708 = vmatpush.bf16.msra.mxu0 %v5609
    %5709 = vmatpush.bf16.msra.mxu0 %v5606
    %5710 = vmatpush.bf16.msra.mxu0 %v5603
    %5711 = vmatpush.bf16.msra.mxu0 %v5600
    %5712 = vmatmul.bf16.gmra.mxu0 %v4896
    %v5713 = vpop.f32.mrf.mxu0
    %v5714 = vadd.f32 0.0, %v5713
    %v5715 = vpop.f32.mrf.mxu0
    %v5716 = vadd.f32 0.0, %v5715
    %5717 = vmatmul.bf16.gmra.mxu0 %v4897
    %v5718 = vpop.f32.mrf.mxu0
    %v5719 = vadd.f32 0.0, %v5718
    %v5720 = vpop.f32.mrf.mxu0
    %v5721 = vadd.f32 0.0, %v5720
    %5722 = vmatmul.bf16.gmra.mxu0 %v4898
    %v5723 = vpop.f32.mrf.mxu0
    %v5724 = vadd.f32 0.0, %v5723
    %v5725 = vpop.f32.mrf.mxu0
    %v5726 = vadd.f32 0.0, %v5725
    %5727 = vmatmul.bf16.gmra.mxu0 %v4899
    %v5728 = vpop.f32.mrf.mxu0
    %v5729 = vadd.f32 0.0, %v5728
    %v5730 = vpop.f32.mrf.mxu0
    %v5731 = vadd.f32 0.0, %v5730
    %5732 = vdwg.mxu0
    %v5765 = vunpack.c.l.b16 %v5453
    %v5766 = vunpack.c.h.b16 %v5453
    %v5767 = vunpack.c.l.b16 %v5454
    %v5768 = vunpack.c.l.b16 %v5455
    %v5769 = vunpack.c.h.b16 %v5455
    %v5770 = vunpack.c.l.b16 %v5456
    %v5771 = vunpack.c.l.b16 %v5457
    %v5772 = vunpack.c.h.b16 %v5457
    %v5773 = vunpack.c.l.b16 %v5458
    %v5774 = vunpack.c.l.b16 %v5459
    %v5775 = vunpack.c.h.b16 %v5459
    %v5776 = vunpack.c.l.b16 %v5460
    %v5777 = vunpack.c.l.b16 %v5461
    %v5778 = vunpack.c.h.b16 %v5461
    %v5779 = vunpack.c.l.b16 %v5462
    %v5780 = vunpack.c.l.b16 %v5463
    %v5781 = vunpack.c.h.b16 %v5463
    %v5782 = vunpack.c.l.b16 %v5464
    %v5783 = vunpack.c.l.b16 %v5465
    %v5784 = vunpack.c.h.b16 %v5465
    %v5785 = vunpack.c.l.b16 %v5466
    %v5786 = vunpack.c.l.b16 %v5467
    %v5787 = vunpack.c.h.b16 %v5467
    %v5788 = vunpack.c.l.b16 %v5468
    %v5789 = vunpack.c.l.b16 %v5469
    %v5790 = vunpack.c.h.b16 %v5469
    %v5791 = vunpack.c.l.b16 %v5470
    %v5792 = vunpack.c.l.b16 %v5471
    %v5793 = vunpack.c.h.b16 %v5471
    %v5794 = vunpack.c.l.b16 %v5472
    %v5795 = vunpack.c.l.b16 %v5473
    %v5796 = vunpack.c.h.b16 %v5473
    %v5797 = vunpack.c.l.b16 %v5474
    %v5798 = vunpack.c.l.b16 %v5475
    %v5799 = vunpack.c.h.b16 %v5475
    %v5800 = vunpack.c.l.b16 %v5476
    %v5801 = vunpack.c.l.b16 %v5477
    %v5802 = vunpack.c.h.b16 %v5477
    %v5803 = vunpack.c.l.b16 %v5478
    %v5804 = vunpack.c.l.b16 %v5479
    %v5805 = vunpack.c.h.b16 %v5479
    %v5806 = vunpack.c.l.b16 %v5480
    %v5807 = vunpack.c.l.b16 %v5481
    %v5808 = vunpack.c.h.b16 %v5481
    %v5809 = vunpack.c.l.b16 %v5482
    %v5810 = vunpack.c.l.b16 %v5483
    %v5811 = vunpack.c.h.b16 %v5483
    %v5812 = vunpack.c.l.b16 %v5484
    %v5813 = vpack.c.b16 %v5768, %v5765
    %v5814 = vpack.c.b16 %v5769, %v5766
    %v5815 = vpack.c.b16 %v5770, %v5767
    %v5816 = vpack.c.b16 %v5774, %v5771
    %v5817 = vpack.c.b16 %v5775, %v5772
    %v5818 = vpack.c.b16 %v5776, %v5773
    %v5819 = vpack.c.b16 %v5780, %v5777
    %v5820 = vpack.c.b16 %v5781, %v5778
    %v5821 = vpack.c.b16 %v5782, %v5779
    %v5822 = vpack.c.b16 %v5786, %v5783
    %v5823 = vpack.c.b16 %v5787, %v5784
    %v5824 = vpack.c.b16 %v5788, %v5785
    %v5825 = vpack.c.b16 %v5792, %v5789
    %v5826 = vpack.c.b16 %v5793, %v5790
    %v5827 = vpack.c.b16 %v5794, %v5791
    %v5828 = vpack.c.b16 %v5798, %v5795
    %v5829 = vpack.c.b16 %v5799, %v5796
    %v5830 = vpack.c.b16 %v5800, %v5797
    %v5831 = vpack.c.b16 %v5804, %v5801
    %v5832 = vpack.c.b16 %v5805, %v5802
    %v5833 = vpack.c.b16 %v5806, %v5803
    %v5834 = vpack.c.b16 %v5810, %v5807
    %v5835 = vpack.c.b16 %v5811, %v5808
    %v5836 = vpack.c.b16 %v5812, %v5809
    %5861 = vmatpush.bf16.msra.mxu0 %v5834
    %5862 = vmatpush.bf16.msra.mxu0 %v5831
    %5863 = vmatpush.bf16.msra.mxu0 %v5828
    %5864 = vmatpush.bf16.msra.mxu0 %v5825
    %5865 = vmatpush.bf16.msra.mxu0 %v5822
    %5866 = vmatpush.bf16.msra.mxu0 %v5819
    %5867 = vmatpush.bf16.msra.mxu0 %v5816
    %5868 = vmatpush.bf16.msra.mxu0 %v5813
    %5869 = vmatmul.bf16.gmra.mxu0 %v4884
    %v5870 = vpop.f32.mrf.mxu0
    %v5871 = vadd.f32 %v5656, %v5870
    %v5872 = vpop.f32.mrf.mxu0
    %v5873 = vadd.f32 %v5658, %v5872
    %5874 = vmatmul.bf16.gmra.mxu0 %v4885
    %v5875 = vpop.f32.mrf.mxu0
    %v5876 = vadd.f32 %v5661, %v5875
    %v5877 = vpop.f32.mrf.mxu0
    %v5878 = vadd.f32 %v5663, %v5877
    %5879 = vmatmul.bf16.gmra.mxu0 %v4886
    %v5880 = vpop.f32.mrf.mxu0
    %v5881 = vadd.f32 %v5666, %v5880
    %v5882 = vpop.f32.mrf.mxu0
    %v5883 = vadd.f32 %v5668, %v5882
    %5884 = vmatmul.bf16.gmra.mxu0 %v4887
    %v5885 = vpop.f32.mrf.mxu0
    %v5886 = vadd.f32 %v5671, %v5885
    %v5887 = vpop.f32.mrf.mxu0
    %v5888 = vadd.f32 %v5673, %v5887
    %5889 = vdwg.mxu0
    %5890 = vmatpush.bf16.msra.mxu0 %v5835
    %5891 = vmatpush.bf16.msra.mxu0 %v5832
    %5892 = vmatpush.bf16.msra.mxu0 %v5829
    %5893 = vmatpush.bf16.msra.mxu0 %v5826
    %5894 = vmatpush.bf16.msra.mxu0 %v5823
    %5895 = vmatpush.bf16.msra.mxu0 %v5820
    %5896 = vmatpush.bf16.msra.mxu0 %v5817
    %5897 = vmatpush.bf16.msra.mxu0 %v5814
    %5898 = vmatmul.bf16.gmra.mxu0 %v4884
    %v5899 = vpop.f32.mrf.mxu0
    %v5900 = vadd.f32 %v5685, %v5899
    %v5901 = vpop.f32.mrf.mxu0
    %v5902 = vadd.f32 %v5687, %v5901
    %5903 = vmatmul.bf16.gmra.mxu0 %v4885
    %v5904 = vpop.f32.mrf.mxu0
    %v5905 = vadd.f32 %v5690, %v5904
    %v5906 = vpop.f32.mrf.mxu0
    %v5907 = vadd.f32 %v5692, %v5906
    %5908 = vmatmul.bf16.gmra.mxu0 %v4886
    %v5909 = vpop.f32.mrf.mxu0
    %v5910 = vadd.f32 %v5695, %v5909
    %v5911 = vpop.f32.mrf.mxu0
    %v5912 = vadd.f32 %v5697, %v5911
    %5913 = vmatmul.bf16.gmra.mxu0 %v4887
    %v5914 = vpop.f32.mrf.mxu0
    %v5915 = vadd.f32 %v5700, %v5914
    %v5916 = vpop.f32.mrf.mxu0
    %v5917 = vadd.f32 %v5702, %v5916
    %5918 = vdwg.mxu0
    %5919 = vmatpush.bf16.msra.mxu0 %v5836
    %5920 = vmatpush.bf16.msra.mxu0 %v5833
    %5921 = vmatpush.bf16.msra.mxu0 %v5830
    %5922 = vmatpush.bf16.msra.mxu0 %v5827
    %5923 = vmatpush.bf16.msra.mxu0 %v5824
    %5924 = vmatpush.bf16.msra.mxu0 %v5821
    %5925 = vmatpush.bf16.msra.mxu0 %v5818
    %5926 = vmatpush.bf16.msra.mxu0 %v5815
    %5927 = vmatmul.bf16.gmra.mxu0 %v4884
    %v5928 = vpop.f32.mrf.mxu0
    %v5929 = vadd.f32 %v5714, %v5928
    %v5930 = vpop.f32.mrf.mxu0
    %v5931 = vadd.f32 %v5716, %v5930
    %5932 = vmatmul.bf16.gmra.mxu0 %v4885
    %v5933 = vpop.f32.mrf.mxu0
    %v5934 = vadd.f32 %v5719, %v5933
    %v5935 = vpop.f32.mrf.mxu0
    %v5936 = vadd.f32 %v5721, %v5935
    %5937 = vmatmul.bf16.gmra.mxu0 %v4886
    %v5938 = vpop.f32.mrf.mxu0
    %v5939 = vadd.f32 %v5724, %v5938
    %v5940 = vpop.f32.mrf.mxu0
    %v5941 = vadd.f32 %v5726, %v5940
    %5942 = vmatmul.bf16.gmra.mxu0 %v4887
    %v5943 = vpop.f32.mrf.mxu0
    %v5944 = vadd.f32 %v5729, %v5943
    %v5945 = vpop.f32.mrf.mxu0
    %v5946 = vadd.f32 %v5731, %v5945
    %5947 = vdwg.mxu0
    %s5948 = scalar_lea.vmem [#allocation15], 9
    %v5949 = vld [vmem:[%s5948] sm:$0x7]
    %v5951 = vperm.slane %v5949, 0
    %v5952 = vperm.slane %v5949, 1
    %v5953 = vperm.slane %v5949, 2
    %v5957 = vadd.f32 %v5871, %v5951
    %v5958 = vadd.f32 %v5900, %v5952
    %v5959 = vadd.f32 %v5929, %v5953
    %v5960 = vadd.f32 %v5873, %v5951
    %v5961 = vadd.f32 %v5902, %v5952
    %v5962 = vadd.f32 %v5931, %v5953
    %v5963 = vadd.f32 %v5876, %v5951
    %v5964 = vadd.f32 %v5905, %v5952
    %v5965 = vadd.f32 %v5934, %v5953
    %v5966 = vadd.f32 %v5878, %v5951
    %v5967 = vadd.f32 %v5907, %v5952
    %v5968 = vadd.f32 %v5936, %v5953
    %v5969 = vadd.f32 %v5881, %v5951
    %v5970 = vadd.f32 %v5910, %v5952
    %v5971 = vadd.f32 %v5939, %v5953
    %v5972 = vadd.f32 %v5883, %v5951
    %v5973 = vadd.f32 %v5912, %v5952
    %v5974 = vadd.f32 %v5941, %v5953
    %v5975 = vadd.f32 %v5886, %v5951
    %v5976 = vadd.f32 %v5915, %v5952
    %v5977 = vadd.f32 %v5944, %v5953
    %v5978 = vadd.f32 %v5888, %v5951
    %v5979 = vadd.f32 %v5917, %v5952
    %v5980 = vadd.f32 %v5946, %v5953
    %5981 = vst [vmem:[#allocation3] sm:$0xff] %v5957
    %5982 = vst [vmem:[#allocation3 + $0x8] sm:$0xff] %v5958
    %5983 = vst [vmem:[#allocation3 + $0x10] sm:$0xff] %v5959
    %5984 = vst [vmem:[#allocation3 + $0x18] sm:$0xff] %v5960
    %5985 = vst [vmem:[#allocation3 + $0x20] sm:$0xff] %v5961
    %5986 = vst [vmem:[#allocation3 + $0x28] sm:$0xff] %v5962
    %5987 = vst [vmem:[#allocation3 + $0x30] sm:$0xff] %v5963
    %5988 = vst [vmem:[#allocation3 + $0x38] sm:$0xff] %v5964
    %5989 = vst [vmem:[#allocation3 + $0x40] sm:$0xff] %v5965
    %5990 = vst [vmem:[#allocation3 + $0x48] sm:$0xff] %v5966
    %5991 = vst [vmem:[#allocation3 + $0x50] sm:$0xff] %v5967
    %5992 = vst [vmem:[#allocation3 + $0x58] sm:$0xff] %v5968
    %5993 = vst [vmem:[#allocation3 + $0x60] sm:$0xff] %v5969
    %5994 = vst [vmem:[#allocation3 + $0x68] sm:$0xff] %v5970
    %5995 = vst [vmem:[#allocation3 + $0x70] sm:$0xff] %v5971
    %5996 = vst [vmem:[#allocation3 + $0x78] sm:$0xff] %v5972
    %5997 = vst [vmem:[#allocation3 + $0x80] sm:$0xff] %v5973
    %5998 = vst [vmem:[#allocation3 + $0x88] sm:$0xff] %v5974
    %5999 = vst [vmem:[#allocation3 + $0x90] sm:$0xff] %v5975
    %6000 = vst [vmem:[#allocation3 + $0x98] sm:$0xff] %v5976
    %6001 = vst [vmem:[#allocation3 + $0xa0] sm:$0xff] %v5977
    %6002 = vst [vmem:[#allocation3 + $0xa8] sm:$0xff] %v5978
    %6003 = vst [vmem:[#allocation3 + $0xb0] sm:$0xff] %v5979
    %6004 = vst [vmem:[#allocation3 + $0xb8] sm:$0xff] %v5980
    %s6005 = scalar_lea.vmem [#allocation11], 384
    %v6006 = vld [vmem:[%s6005] sm:$0xff]
    %v6007 = vld [vmem:[%s6005 + $0x8] sm:$0xf]
    %v6008 = vld [vmem:[%s6005 + $0xc] sm:$0xff]
    %v6009 = vld [vmem:[%s6005 + $0x14] sm:$0xf]
    %v6010 = vld [vmem:[%s6005 + $0x18] sm:$0xff]
    %v6011 = vld [vmem:[%s6005 + $0x20] sm:$0xf]
    %v6012 = vld [vmem:[%s6005 + $0x24] sm:$0xff]
    %v6013 = vld [vmem:[%s6005 + $0x2c] sm:$0xf]
    %v6014 = vld [vmem:[%s6005 + $0x30] sm:$0xff]
    %v6015 = vld [vmem:[%s6005 + $0x38] sm:$0xf]
    %v6016 = vld [vmem:[%s6005 + $0x3c] sm:$0xff]
    %v6017 = vld [vmem:[%s6005 + $0x44] sm:$0xf]
    %v6018 = vld [vmem:[%s6005 + $0x48] sm:$0xff]
    %v6019 = vld [vmem:[%s6005 + $0x50] sm:$0xf]
    %v6020 = vld [vmem:[%s6005 + $0x54] sm:$0xff]
    %v6021 = vld [vmem:[%s6005 + $0x5c] sm:$0xf]
    %v6022 = vld [vmem:[%s6005 + $0x60] sm:$0xff]
    %v6023 = vld [vmem:[%s6005 + $0x68] sm:$0xf]
    %v6024 = vld [vmem:[%s6005 + $0x6c] sm:$0xff]
    %v6025 = vld [vmem:[%s6005 + $0x74] sm:$0xf]
    %v6026 = vld [vmem:[%s6005 + $0x78] sm:$0xff]
    %v6027 = vld [vmem:[%s6005 + $0x80] sm:$0xf]
    %v6028 = vld [vmem:[%s6005 + $0x84] sm:$0xff]
    %v6029 = vld [vmem:[%s6005 + $0x8c] sm:$0xf]
    %v6030 = vld [vmem:[%s6005 + $0x90] sm:$0xff]
    %v6031 = vld [vmem:[%s6005 + $0x98] sm:$0xf]
    %v6032 = vld [vmem:[%s6005 + $0x9c] sm:$0xff]
    %v6033 = vld [vmem:[%s6005 + $0xa4] sm:$0xf]
    %v6034 = vld [vmem:[%s6005 + $0xa8] sm:$0xff]
    %v6035 = vld [vmem:[%s6005 + $0xb0] sm:$0xf]
    %v6036 = vld [vmem:[%s6005 + $0xb4] sm:$0xff]
    %v6037 = vld [vmem:[%s6005 + $0xbc] sm:$0xf]
    %s6038 = scalar_lea.vmem [#allocation17], 6
    %v6039 = vld [vmem:[%s6038] sm:$0x7]
    %v6041 = vperm.slane %v6039, 0
    %v6042 = vperm.slane %v6039, 1
    %v6043 = vperm.slane %v6039, 2
    %v6079 = vunpack.c.l.b16 %v6006
    %v6080 = vunpack.c.h.b16 %v6006
    %v6081 = vunpack.c.l.b16 %v6007
    %v6082 = vunpack.c.l.b16 %v6008
    %v6083 = vunpack.c.h.b16 %v6008
    %v6084 = vunpack.c.l.b16 %v6009
    %v6085 = vunpack.c.l.b16 %v6010
    %v6086 = vunpack.c.h.b16 %v6010
    %v6087 = vunpack.c.l.b16 %v6011
    %v6088 = vunpack.c.l.b16 %v6012
    %v6089 = vunpack.c.h.b16 %v6012
    %v6090 = vunpack.c.l.b16 %v6013
    %v6091 = vunpack.c.l.b16 %v6014
    %v6092 = vunpack.c.h.b16 %v6014
    %v6093 = vunpack.c.l.b16 %v6015
    %v6094 = vunpack.c.l.b16 %v6016
    %v6095 = vunpack.c.h.b16 %v6016
    %v6096 = vunpack.c.l.b16 %v6017
    %v6097 = vunpack.c.l.b16 %v6018
    %v6098 = vunpack.c.h.b16 %v6018
    %v6099 = vunpack.c.l.b16 %v6019
    %v6100 = vunpack.c.l.b16 %v6020
    %v6101 = vunpack.c.h.b16 %v6020
    %v6102 = vunpack.c.l.b16 %v6021
    %v6103 = vunpack.c.l.b16 %v6022
    %v6104 = vunpack.c.h.b16 %v6022
    %v6105 = vunpack.c.l.b16 %v6023
    %v6106 = vunpack.c.l.b16 %v6024
    %v6107 = vunpack.c.h.b16 %v6024
    %v6108 = vunpack.c.l.b16 %v6025
    %v6109 = vunpack.c.l.b16 %v6026
    %v6110 = vunpack.c.h.b16 %v6026
    %v6111 = vunpack.c.l.b16 %v6027
    %v6112 = vunpack.c.l.b16 %v6028
    %v6113 = vunpack.c.h.b16 %v6028
    %v6114 = vunpack.c.l.b16 %v6029
    %v6115 = vunpack.c.l.b16 %v6030
    %v6116 = vunpack.c.h.b16 %v6030
    %v6117 = vunpack.c.l.b16 %v6031
    %v6118 = vunpack.c.l.b16 %v6032
    %v6119 = vunpack.c.h.b16 %v6032
    %v6120 = vunpack.c.l.b16 %v6033
    %v6121 = vunpack.c.l.b16 %v6034
    %v6122 = vunpack.c.h.b16 %v6034
    %v6123 = vunpack.c.l.b16 %v6035
    %v6124 = vunpack.c.l.b16 %v6036
    %v6125 = vunpack.c.h.b16 %v6036
    %v6126 = vunpack.c.l.b16 %v6037
    %v6127 = vpack.c.b16 %v6082, %v6079
    %v6128 = vpack.c.b16 %v6083, %v6080
    %v6129 = vpack.c.b16 %v6084, %v6081
    %v6130 = vpack.c.b16 %v6088, %v6085
    %v6131 = vpack.c.b16 %v6089, %v6086
    %v6132 = vpack.c.b16 %v6090, %v6087
    %v6133 = vpack.c.b16 %v6094, %v6091
    %v6134 = vpack.c.b16 %v6095, %v6092
    %v6135 = vpack.c.b16 %v6096, %v6093
    %v6136 = vpack.c.b16 %v6100, %v6097
    %v6137 = vpack.c.b16 %v6101, %v6098
    %v6138 = vpack.c.b16 %v6102, %v6099
    %v6139 = vpack.c.b16 %v6106, %v6103
    %v6140 = vpack.c.b16 %v6107, %v6104
    %v6141 = vpack.c.b16 %v6108, %v6105
    %v6142 = vpack.c.b16 %v6112, %v6109
    %v6143 = vpack.c.b16 %v6113, %v6110
    %v6144 = vpack.c.b16 %v6114, %v6111
    %v6145 = vpack.c.b16 %v6118, %v6115
    %v6146 = vpack.c.b16 %v6119, %v6116
    %v6147 = vpack.c.b16 %v6120, %v6117
    %v6148 = vpack.c.b16 %v6124, %v6121
    %v6149 = vpack.c.b16 %v6125, %v6122
    %v6150 = vpack.c.b16 %v6126, %v6123
    %6175 = vmatpush.bf16.msra.mxu0 %v6148
    %6176 = vmatpush.bf16.msra.mxu0 %v6145
    %6177 = vmatpush.bf16.msra.mxu0 %v6142
    %6178 = vmatpush.bf16.msra.mxu0 %v6139
    %6179 = vmatpush.bf16.msra.mxu0 %v6136
    %6180 = vmatpush.bf16.msra.mxu0 %v6133
    %6181 = vmatpush.bf16.msra.mxu0 %v6130
    %6182 = vmatpush.bf16.msra.mxu0 %v6127
    %6183 = vmatmul.bf16.gmra.mxu0 0
    %v6184 = vpop.f32.mrf.mxu0
    %v6185 = vadd.f32 %v6041, %v6184
    %v6186 = vpop.f32.mrf.mxu0
    %6187 = vdwg.mxu0
    %6188 = vmatpush.bf16.msra.mxu0 %v6149
    %6189 = vmatpush.bf16.msra.mxu0 %v6146
    %6190 = vmatpush.bf16.msra.mxu0 %v6143
    %6191 = vmatpush.bf16.msra.mxu0 %v6140
    %6192 = vmatpush.bf16.msra.mxu0 %v6137
    %6193 = vmatpush.bf16.msra.mxu0 %v6134
    %6194 = vmatpush.bf16.msra.mxu0 %v6131
    %6195 = vmatpush.bf16.msra.mxu0 %v6128
    %6196 = vmatmul.bf16.gmra.mxu0 0
    %v6197 = vpop.f32.mrf.mxu0
    %v6198 = vadd.f32 %v6042, %v6197
    %v6199 = vpop.f32.mrf.mxu0
    %6200 = vdwg.mxu0
    %6201 = vmatpush.bf16.msra.mxu0 %v6150
    %6202 = vmatpush.bf16.msra.mxu0 %v6147
    %6203 = vmatpush.bf16.msra.mxu0 %v6144
    %6204 = vmatpush.bf16.msra.mxu0 %v6141
    %6205 = vmatpush.bf16.msra.mxu0 %v6138
    %6206 = vmatpush.bf16.msra.mxu0 %v6135
    %6207 = vmatpush.bf16.msra.mxu0 %v6132
    %6208 = vmatpush.bf16.msra.mxu0 %v6129
    %6209 = vmatmul.bf16.gmra.mxu0 0
    %v6210 = vpop.f32.mrf.mxu0
    %v6211 = vadd.f32 %v6043, %v6210
    %v6212 = vpop.f32.mrf.mxu0
    %6213 = vdwg.mxu0
    %s6214 = scalar_lea.vmem [#allocation11], 576
    %v6215 = vld [vmem:[%s6214] sm:$0xff]
    %v6216 = vld [vmem:[%s6214 + $0x8] sm:$0xf]
    %v6217 = vld [vmem:[%s6214 + $0xc] sm:$0xff]
    %v6218 = vld [vmem:[%s6214 + $0x14] sm:$0xf]
    %v6219 = vld [vmem:[%s6214 + $0x18] sm:$0xff]
    %v6220 = vld [vmem:[%s6214 + $0x20] sm:$0xf]
    %v6221 = vld [vmem:[%s6214 + $0x24] sm:$0xff]
    %v6222 = vld [vmem:[%s6214 + $0x2c] sm:$0xf]
    %v6223 = vld [vmem:[%s6214 + $0x30] sm:$0xff]
    %v6224 = vld [vmem:[%s6214 + $0x38] sm:$0xf]
    %v6225 = vld [vmem:[%s6214 + $0x3c] sm:$0xff]
    %v6226 = vld [vmem:[%s6214 + $0x44] sm:$0xf]
    %v6227 = vld [vmem:[%s6214 + $0x48] sm:$0xff]
    %v6228 = vld [vmem:[%s6214 + $0x50] sm:$0xf]
    %v6229 = vld [vmem:[%s6214 + $0x54] sm:$0xff]
    %v6230 = vld [vmem:[%s6214 + $0x5c] sm:$0xf]
    %v6231 = vld [vmem:[%s6214 + $0x60] sm:$0xff]
    %v6232 = vld [vmem:[%s6214 + $0x68] sm:$0xf]
    %v6233 = vld [vmem:[%s6214 + $0x6c] sm:$0xff]
    %v6234 = vld [vmem:[%s6214 + $0x74] sm:$0xf]
    %v6235 = vld [vmem:[%s6214 + $0x78] sm:$0xff]
    %v6236 = vld [vmem:[%s6214 + $0x80] sm:$0xf]
    %v6237 = vld [vmem:[%s6214 + $0x84] sm:$0xff]
    %v6238 = vld [vmem:[%s6214 + $0x8c] sm:$0xf]
    %v6239 = vld [vmem:[%s6214 + $0x90] sm:$0xff]
    %v6240 = vld [vmem:[%s6214 + $0x98] sm:$0xf]
    %v6241 = vld [vmem:[%s6214 + $0x9c] sm:$0xff]
    %v6242 = vld [vmem:[%s6214 + $0xa4] sm:$0xf]
    %v6243 = vld [vmem:[%s6214 + $0xa8] sm:$0xff]
    %v6244 = vld [vmem:[%s6214 + $0xb0] sm:$0xf]
    %v6245 = vld [vmem:[%s6214 + $0xb4] sm:$0xff]
    %v6246 = vld [vmem:[%s6214 + $0xbc] sm:$0xf]
    %s6247 = scalar_lea.vmem [#allocation17], 9
    %v6248 = vld [vmem:[%s6247] sm:$0x7]
    %v6250 = vperm.slane %v6248, 0
    %v6251 = vperm.slane %v6248, 1
    %v6252 = vperm.slane %v6248, 2
    %v6288 = vunpack.c.l.b16 %v6215
    %v6289 = vunpack.c.h.b16 %v6215
    %v6290 = vunpack.c.l.b16 %v6216
    %v6291 = vunpack.c.l.b16 %v6217
    %v6292 = vunpack.c.h.b16 %v6217
    %v6293 = vunpack.c.l.b16 %v6218
    %v6294 = vunpack.c.l.b16 %v6219
    %v6295 = vunpack.c.h.b16 %v6219
    %v6296 = vunpack.c.l.b16 %v6220
    %v6297 = vunpack.c.l.b16 %v6221
    %v6298 = vunpack.c.h.b16 %v6221
    %v6299 = vunpack.c.l.b16 %v6222
    %v6300 = vunpack.c.l.b16 %v6223
    %v6301 = vunpack.c.h.b16 %v6223
    %v6302 = vunpack.c.l.b16 %v6224
    %v6303 = vunpack.c.l.b16 %v6225
    %v6304 = vunpack.c.h.b16 %v6225
    %v6305 = vunpack.c.l.b16 %v6226
    %v6306 = vunpack.c.l.b16 %v6227
    %v6307 = vunpack.c.h.b16 %v6227
    %v6308 = vunpack.c.l.b16 %v6228
    %v6309 = vunpack.c.l.b16 %v6229
    %v6310 = vunpack.c.h.b16 %v6229
    %v6311 = vunpack.c.l.b16 %v6230
    %v6312 = vunpack.c.l.b16 %v6231
    %v6313 = vunpack.c.h.b16 %v6231
    %v6314 = vunpack.c.l.b16 %v6232
    %v6315 = vunpack.c.l.b16 %v6233
    %v6316 = vunpack.c.h.b16 %v6233
    %v6317 = vunpack.c.l.b16 %v6234
    %v6318 = vunpack.c.l.b16 %v6235
    %v6319 = vunpack.c.h.b16 %v6235
    %v6320 = vunpack.c.l.b16 %v6236
    %v6321 = vunpack.c.l.b16 %v6237
    %v6322 = vunpack.c.h.b16 %v6237
    %v6323 = vunpack.c.l.b16 %v6238
    %v6324 = vunpack.c.l.b16 %v6239
    %v6325 = vunpack.c.h.b16 %v6239
    %v6326 = vunpack.c.l.b16 %v6240
    %v6327 = vunpack.c.l.b16 %v6241
    %v6328 = vunpack.c.h.b16 %v6241
    %v6329 = vunpack.c.l.b16 %v6242
    %v6330 = vunpack.c.l.b16 %v6243
    %v6331 = vunpack.c.h.b16 %v6243
    %v6332 = vunpack.c.l.b16 %v6244
    %v6333 = vunpack.c.l.b16 %v6245
    %v6334 = vunpack.c.h.b16 %v6245
    %v6335 = vunpack.c.l.b16 %v6246
    %v6336 = vpack.c.b16 %v6291, %v6288
    %v6337 = vpack.c.b16 %v6292, %v6289
    %v6338 = vpack.c.b16 %v6293, %v6290
    %v6339 = vpack.c.b16 %v6297, %v6294
    %v6340 = vpack.c.b16 %v6298, %v6295
    %v6341 = vpack.c.b16 %v6299, %v6296
    %v6342 = vpack.c.b16 %v6303, %v6300
    %v6343 = vpack.c.b16 %v6304, %v6301
    %v6344 = vpack.c.b16 %v6305, %v6302
    %v6345 = vpack.c.b16 %v6309, %v6306
    %v6346 = vpack.c.b16 %v6310, %v6307
    %v6347 = vpack.c.b16 %v6311, %v6308
    %v6348 = vpack.c.b16 %v6315, %v6312
    %v6349 = vpack.c.b16 %v6316, %v6313
    %v6350 = vpack.c.b16 %v6317, %v6314
    %v6351 = vpack.c.b16 %v6321, %v6318
    %v6352 = vpack.c.b16 %v6322, %v6319
    %v6353 = vpack.c.b16 %v6323, %v6320
    %v6354 = vpack.c.b16 %v6327, %v6324
    %v6355 = vpack.c.b16 %v6328, %v6325
    %v6356 = vpack.c.b16 %v6329, %v6326
    %v6357 = vpack.c.b16 %v6333, %v6330
    %v6358 = vpack.c.b16 %v6334, %v6331
    %v6359 = vpack.c.b16 %v6335, %v6332
    %6384 = vmatpush.bf16.msra.mxu0 %v6357
    %6385 = vmatpush.bf16.msra.mxu0 %v6354
    %6386 = vmatpush.bf16.msra.mxu0 %v6351
    %6387 = vmatpush.bf16.msra.mxu0 %v6348
    %6388 = vmatpush.bf16.msra.mxu0 %v6345
    %6389 = vmatpush.bf16.msra.mxu0 %v6342
    %6390 = vmatpush.bf16.msra.mxu0 %v6339
    %6391 = vmatpush.bf16.msra.mxu0 %v6336
    %6392 = vmatmul.bf16.gmra.mxu0 0
    %v6393 = vpop.f32.mrf.mxu0
    %v6394 = vadd.f32 %v6250, %v6393
    %v6395 = vpop.f32.mrf.mxu0
    %6396 = vdwg.mxu0
    %6397 = vmatpush.bf16.msra.mxu0 %v6358
    %6398 = vmatpush.bf16.msra.mxu0 %v6355
    %6399 = vmatpush.bf16.msra.mxu0 %v6352
    %6400 = vmatpush.bf16.msra.mxu0 %v6349
    %6401 = vmatpush.bf16.msra.mxu0 %v6346
    %6402 = vmatpush.bf16.msra.mxu0 %v6343
    %6403 = vmatpush.bf16.msra.mxu0 %v6340
    %6404 = vmatpush.bf16.msra.mxu0 %v6337
    %6405 = vmatmul.bf16.gmra.mxu0 0
    %v6406 = vpop.f32.mrf.mxu0
    %v6407 = vadd.f32 %v6251, %v6406
    %v6408 = vpop.f32.mrf.mxu0
    %6409 = vdwg.mxu0
    %6410 = vmatpush.bf16.msra.mxu0 %v6359
    %6411 = vmatpush.bf16.msra.mxu0 %v6356
    %6412 = vmatpush.bf16.msra.mxu0 %v6353
    %6413 = vmatpush.bf16.msra.mxu0 %v6350
    %6414 = vmatpush.bf16.msra.mxu0 %v6347
    %6415 = vmatpush.bf16.msra.mxu0 %v6344
    %6416 = vmatpush.bf16.msra.mxu0 %v6341
    %6417 = vmatpush.bf16.msra.mxu0 %v6338
    %6418 = vmatmul.bf16.gmra.mxu0 0
    %v6419 = vpop.f32.mrf.mxu0
    %v6420 = vadd.f32 %v6252, %v6419
    %v6421 = vpop.f32.mrf.mxu0
    %6422 = vdwg.mxu0
    %v6423 = vld [vmem:[#allocation2] sm:$0xff]
    %v6424 = vld [vmem:[#allocation2 + $0x8] sm:$0xff]
    %v6425 = vld [vmem:[#allocation2 + $0x10] sm:$0xff]
    %v6426 = vld [vmem:[#allocation3 + $0xa8] sm:$0xff]
    %v6427 = vld [vmem:[#allocation3 + $0xb0] sm:$0xff]
    %v6428 = vld [vmem:[#allocation3 + $0xb8] sm:$0xff]
    %v6429 = vadd.f32 %v6423, %v6185
    %v6430 = vxor.u32 %v6429, 2147483648
    %v6431 = vmul.f32 %v6430, 1.442695
    %v6432 = vpow.pop %v6431
    %v6433 = vadd.f32 %v6432, 1.0
    %v6434 = vrcp.pop %v6433
    %v6435 = vmul.f32 %v6433, %v6434
    %v6436 = vsub.f32 1.0, %v6435
    %v6437 = vmul.f32 %v6434, %v6436
    %v6438 = vadd.f32 %v6434, %v6437
    %vm6439 = vweird.f32 %v6433
    %vm6440 = vweird.f32 %v6434
    %vm6441 = vmor %vm6439, %vm6440
    %v6442 = vsel %vm6441, %v6434, %v6438
    %v6443 = vand.u32 2147483647, %v6433
    %vm6444 = vcmp.eq.f32.partialorder %v6443, 8.507059e+37
    %v6445 = vand.u32 %v6433, 2147483648
    %v6446 = vor.u32 1.1754944e-38, %v6445
    %v6447 = vsel %vm6444, %v6446, %v6442
    %v6448 = vmul.f32 1.0, %v6447
    %v6449 = vadd.f32 %v6424, %v6198
    %v6450 = vxor.u32 %v6449, 2147483648
    %v6451 = vmul.f32 %v6450, 1.442695
    %v6452 = vpow.pop %v6451
    %v6453 = vadd.f32 %v6452, 1.0
    %v6454 = vrcp.pop %v6453
    %v6455 = vmul.f32 %v6453, %v6454
    %v6456 = vsub.f32 1.0, %v6455
    %v6457 = vmul.f32 %v6454, %v6456
    %v6458 = vadd.f32 %v6454, %v6457
    %vm6459 = vweird.f32 %v6453
    %vm6460 = vweird.f32 %v6454
    %vm6461 = vmor %vm6459, %vm6460
    %v6462 = vsel %vm6461, %v6454, %v6458
    %v6463 = vand.u32 2147483647, %v6453
    %vm6464 = vcmp.eq.f32.partialorder %v6463, 8.507059e+37
    %v6465 = vand.u32 %v6453, 2147483648
    %v6466 = vor.u32 1.1754944e-38, %v6465
    %v6467 = vsel %vm6464, %v6466, %v6462
    %v6468 = vmul.f32 1.0, %v6467
    %v6469 = vmul.f32 %v6448, %v6211
    %v6470 = vadd.f32 %v6425, %v6469
    %v6471 = vtanh.pop %v6470
    %v6472 = vsub.f32 1.0, %v6468
    %v6473 = vmul.f32 %v6472, %v6471
    %v6474 = vmul.f32 %v6468, 0.0
    %v6475 = vadd.f32 %v6473, %v6474
    %v6476 = vadd.f32 %v6426, %v6394
    %v6477 = vxor.u32 %v6476, 2147483648
    %v6478 = vmul.f32 %v6477, 1.442695
    %v6479 = vpow.pop %v6478
    %v6480 = vadd.f32 %v6479, 1.0
    %v6481 = vrcp.pop %v6480
    %v6482 = vmul.f32 %v6480, %v6481
    %v6483 = vsub.f32 1.0, %v6482
    %v6484 = vmul.f32 %v6481, %v6483
    %v6485 = vadd.f32 %v6481, %v6484
    %vm6486 = vweird.f32 %v6480
    %vm6487 = vweird.f32 %v6481
    %vm6488 = vmor %vm6486, %vm6487
    %v6489 = vsel %vm6488, %v6481, %v6485
    %v6490 = vand.u32 2147483647, %v6480
    %vm6491 = vcmp.eq.f32.partialorder %v6490, 8.507059e+37
    %v6492 = vand.u32 %v6480, 2147483648
    %v6493 = vor.u32 1.1754944e-38, %v6492
    %v6494 = vsel %vm6491, %v6493, %v6489
    %v6495 = vmul.f32 1.0, %v6494
    %v6496 = vadd.f32 %v6427, %v6407
    %v6497 = vxor.u32 %v6496, 2147483648
    %v6498 = vmul.f32 %v6497, 1.442695
    %v6499 = vpow.pop %v6498
    %v6500 = vadd.f32 %v6499, 1.0
    %v6501 = vrcp.pop %v6500
    %v6502 = vmul.f32 %v6500, %v6501
    %v6503 = vsub.f32 1.0, %v6502
    %v6504 = vmul.f32 %v6501, %v6503
    %v6505 = vadd.f32 %v6501, %v6504
    %vm6506 = vweird.f32 %v6500
    %vm6507 = vweird.f32 %v6501
    %vm6508 = vmor %vm6506, %vm6507
    %v6509 = vsel %vm6508, %v6501, %v6505
    %v6510 = vand.u32 2147483647, %v6500
    %vm6511 = vcmp.eq.f32.partialorder %v6510, 8.507059e+37
    %v6512 = vand.u32 %v6500, 2147483648
    %v6513 = vor.u32 1.1754944e-38, %v6512
    %v6514 = vsel %vm6511, %v6513, %v6509
    %v6515 = vmul.f32 1.0, %v6514
    %v6516 = vmul.f32 %v6495, %v6420
    %v6517 = vadd.f32 %v6428, %v6516
    %v6518 = vtanh.pop %v6517
    %v6519 = vsub.f32 1.0, %v6515
    %v6520 = vmul.f32 %v6519, %v6518
    %v6521 = vmul.f32 %v6515, 0.0
    %v6522 = vadd.f32 %v6520, %v6521
    %v6523 = vpack.c.bf16 %v6475, %v6475
    %6524 = vmatpush.bf16.msra.mxu0 %v6148
    %6525 = vmatpush.bf16.msra.mxu0 %v6145
    %6526 = vmatpush.bf16.msra.mxu0 %v6142
    %6527 = vmatpush.bf16.msra.mxu0 %v6139
    %6528 = vmatpush.bf16.msra.mxu0 %v6136
    %6529 = vmatpush.bf16.msra.mxu0 %v6133
    %6530 = vmatpush.bf16.msra.mxu0 %v6130
    %6531 = vmatpush.bf16.msra.mxu0 %v6127
    %6532 = vmatmul.bf16.gmra.mxu0 %v6523
    %v6533 = vpop.f32.mrf.mxu0
    %v6534 = vadd.f32 %v6041, %v6533
    %v6535 = vpop.f32.mrf.mxu0
    %6536 = vdwg.mxu0
    %6537 = vmatpush.bf16.msra.mxu0 %v6149
    %6538 = vmatpush.bf16.msra.mxu0 %v6146
    %6539 = vmatpush.bf16.msra.mxu0 %v6143
    %6540 = vmatpush.bf16.msra.mxu0 %v6140
    %6541 = vmatpush.bf16.msra.mxu0 %v6137
    %6542 = vmatpush.bf16.msra.mxu0 %v6134
    %6543 = vmatpush.bf16.msra.mxu0 %v6131
    %6544 = vmatpush.bf16.msra.mxu0 %v6128
    %6545 = vmatmul.bf16.gmra.mxu0 %v6523
    %v6546 = vpop.f32.mrf.mxu0
    %v6547 = vadd.f32 %v6042, %v6546
    %v6548 = vpop.f32.mrf.mxu0
    %6549 = vdwg.mxu0
    %6550 = vmatpush.bf16.msra.mxu0 %v6150
    %6551 = vmatpush.bf16.msra.mxu0 %v6147
    %6552 = vmatpush.bf16.msra.mxu0 %v6144
    %6553 = vmatpush.bf16.msra.mxu0 %v6141
    %6554 = vmatpush.bf16.msra.mxu0 %v6138
    %6555 = vmatpush.bf16.msra.mxu0 %v6135
    %6556 = vmatpush.bf16.msra.mxu0 %v6132
    %6557 = vmatpush.bf16.msra.mxu0 %v6129
    %6558 = vmatmul.bf16.gmra.mxu0 %v6523
    %v6559 = vpop.f32.mrf.mxu0
    %v6560 = vadd.f32 %v6043, %v6559
    %v6561 = vpop.f32.mrf.mxu0
    %6562 = vdwg.mxu0
    %v6563 = vpack.c.bf16 %v6522, %v6522
    %6564 = vmatpush.bf16.msra.mxu0 %v6357
    %6565 = vmatpush.bf16.msra.mxu0 %v6354
    %6566 = vmatpush.bf16.msra.mxu0 %v6351
    %6567 = vmatpush.bf16.msra.mxu0 %v6348
    %6568 = vmatpush.bf16.msra.mxu0 %v6345
    %6569 = vmatpush.bf16.msra.mxu0 %v6342
    %6570 = vmatpush.bf16.msra.mxu0 %v6339
    %6571 = vmatpush.bf16.msra.mxu0 %v6336
    %6572 = vmatmul.bf16.gmra.mxu0 %v6563
    %v6573 = vpop.f32.mrf.mxu0
    %v6574 = vadd.f32 %v6250, %v6573
    %v6575 = vpop.f32.mrf.mxu0
    %6576 = vdwg.mxu0
    %6577 = vmatpush.bf16.msra.mxu0 %v6358
    %6578 = vmatpush.bf16.msra.mxu0 %v6355
    %6579 = vmatpush.bf16.msra.mxu0 %v6352
    %6580 = vmatpush.bf16.msra.mxu0 %v6349
    %6581 = vmatpush.bf16.msra.mxu0 %v6346
    %6582 = vmatpush.bf16.msra.mxu0 %v6343
    %6583 = vmatpush.bf16.msra.mxu0 %v6340
    %6584 = vmatpush.bf16.msra.mxu0 %v6337
    %6585 = vmatmul.bf16.gmra.mxu0 %v6563
    %v6586 = vpop.f32.mrf.mxu0
    %v6587 = vadd.f32 %v6251, %v6586
    %v6588 = vpop.f32.mrf.mxu0
    %6589 = vdwg.mxu0
    %6590 = vmatpush.bf16.msra.mxu0 %v6359
    %6591 = vmatpush.bf16.msra.mxu0 %v6356
    %6592 = vmatpush.bf16.msra.mxu0 %v6353
    %6593 = vmatpush.bf16.msra.mxu0 %v6350
    %6594 = vmatpush.bf16.msra.mxu0 %v6347
    %6595 = vmatpush.bf16.msra.mxu0 %v6344
    %6596 = vmatpush.bf16.msra.mxu0 %v6341
    %6597 = vmatpush.bf16.msra.mxu0 %v6338
    %6598 = vmatmul.bf16.gmra.mxu0 %v6563
    %v6599 = vpop.f32.mrf.mxu0
    %v6600 = vadd.f32 %v6252, %v6599
    %v6601 = vpop.f32.mrf.mxu0
    %6602 = vdwg.mxu0
    %v6603 = vld [vmem:[#allocation2 + $0x18] sm:$0xff]
    %v6604 = vld [vmem:[#allocation2 + $0x20] sm:$0xff]
    %v6605 = vld [vmem:[#allocation2 + $0x28] sm:$0xff]
    %v6606 = vld [vmem:[#allocation3 + $0x90] sm:$0xff]
    %v6607 = vld [vmem:[#allocation3 + $0x98] sm:$0xff]
    %v6608 = vld [vmem:[#allocation3 + $0xa0] sm:$0xff]
    %v6609 = vadd.f32 %v6603, %v6534
    %v6610 = vxor.u32 %v6609, 2147483648
    %v6611 = vmul.f32 %v6610, 1.442695
    %v6612 = vpow.pop %v6611
    %v6613 = vadd.f32 %v6612, 1.0
    %v6614 = vrcp.pop %v6613
    %v6615 = vmul.f32 %v6613, %v6614
    %v6616 = vsub.f32 1.0, %v6615
    %v6617 = vmul.f32 %v6614, %v6616
    %v6618 = vadd.f32 %v6614, %v6617
    %vm6619 = vweird.f32 %v6613
    %vm6620 = vweird.f32 %v6614
    %vm6621 = vmor %vm6619, %vm6620
    %v6622 = vsel %vm6621, %v6614, %v6618
    %v6623 = vand.u32 2147483647, %v6613
    %vm6624 = vcmp.eq.f32.partialorder %v6623, 8.507059e+37
    %v6625 = vand.u32 %v6613, 2147483648
    %v6626 = vor.u32 1.1754944e-38, %v6625
    %v6627 = vsel %vm6624, %v6626, %v6622
    %v6628 = vmul.f32 1.0, %v6627
    %v6629 = vadd.f32 %v6604, %v6547
    %v6630 = vxor.u32 %v6629, 2147483648
    %v6631 = vmul.f32 %v6630, 1.442695
    %v6632 = vpow.pop %v6631
    %v6633 = vadd.f32 %v6632, 1.0
    %v6634 = vrcp.pop %v6633
    %v6635 = vmul.f32 %v6633, %v6634
    %v6636 = vsub.f32 1.0, %v6635
    %v6637 = vmul.f32 %v6634, %v6636
    %v6638 = vadd.f32 %v6634, %v6637
    %vm6639 = vweird.f32 %v6633
    %vm6640 = vweird.f32 %v6634
    %vm6641 = vmor %vm6639, %vm6640
    %v6642 = vsel %vm6641, %v6634, %v6638
    %v6643 = vand.u32 2147483647, %v6633
    %vm6644 = vcmp.eq.f32.partialorder %v6643, 8.507059e+37
    %v6645 = vand.u32 %v6633, 2147483648
    %v6646 = vor.u32 1.1754944e-38, %v6645
    %v6647 = vsel %vm6644, %v6646, %v6642
    %v6648 = vmul.f32 1.0, %v6647
    %v6649 = vmul.f32 %v6628, %v6560
    %v6650 = vadd.f32 %v6605, %v6649
    %v6651 = vtanh.pop %v6650
    %v6652 = vsub.f32 1.0, %v6648
    %v6653 = vmul.f32 %v6652, %v6651
    %v6654 = vmul.f32 %v6648, %v6475
    %v6655 = vadd.f32 %v6653, %v6654
    %v6656 = vadd.f32 %v6606, %v6574
    %v6657 = vxor.u32 %v6656, 2147483648
    %v6658 = vmul.f32 %v6657, 1.442695
    %v6659 = vpow.pop %v6658
    %v6660 = vadd.f32 %v6659, 1.0
    %v6661 = vrcp.pop %v6660
    %v6662 = vmul.f32 %v6660, %v6661
    %v6663 = vsub.f32 1.0, %v6662
    %v6664 = vmul.f32 %v6661, %v6663
    %v6665 = vadd.f32 %v6661, %v6664
    %vm6666 = vweird.f32 %v6660
    %vm6667 = vweird.f32 %v6661
    %vm6668 = vmor %vm6666, %vm6667
    %v6669 = vsel %vm6668, %v6661, %v6665
    %v6670 = vand.u32 2147483647, %v6660
    %vm6671 = vcmp.eq.f32.partialorder %v6670, 8.507059e+37
    %v6672 = vand.u32 %v6660, 2147483648
    %v6673 = vor.u32 1.1754944e-38, %v6672
    %v6674 = vsel %vm6671, %v6673, %v6669
    %v6675 = vmul.f32 1.0, %v6674
    %v6676 = vadd.f32 %v6607, %v6587
    %v6677 = vxor.u32 %v6676, 2147483648
    %v6678 = vmul.f32 %v6677, 1.442695
    %v6679 = vpow.pop %v6678
    %v6680 = vadd.f32 %v6679, 1.0
    %v6681 = vrcp.pop %v6680
    %v6682 = vmul.f32 %v6680, %v6681
    %v6683 = vsub.f32 1.0, %v6682
    %v6684 = vmul.f32 %v6681, %v6683
    %v6685 = vadd.f32 %v6681, %v6684
    %vm6686 = vweird.f32 %v6680
    %vm6687 = vweird.f32 %v6681
    %vm6688 = vmor %vm6686, %vm6687
    %v6689 = vsel %vm6688, %v6681, %v6685
    %v6690 = vand.u32 2147483647, %v6680
    %vm6691 = vcmp.eq.f32.partialorder %v6690, 8.507059e+37
    %v6692 = vand.u32 %v6680, 2147483648
    %v6693 = vor.u32 1.1754944e-38, %v6692
    %v6694 = vsel %vm6691, %v6693, %v6689
    %v6695 = vmul.f32 1.0, %v6694
    %v6696 = vmul.f32 %v6675, %v6600
    %v6697 = vadd.f32 %v6608, %v6696
    %v6698 = vtanh.pop %v6697
    %v6699 = vsub.f32 1.0, %v6695
    %v6700 = vmul.f32 %v6699, %v6698
    %v6701 = vmul.f32 %v6695, %v6522
    %v6702 = vadd.f32 %v6700, %v6701
    %v6703 = vpack.c.bf16 %v6655, %v6655
    %6704 = vmatpush.bf16.msra.mxu0 %v6148
    %6705 = vmatpush.bf16.msra.mxu0 %v6145
    %6706 = vmatpush.bf16.msra.mxu0 %v6142
    %6707 = vmatpush.bf16.msra.mxu0 %v6139
    %6708 = vmatpush.bf16.msra.mxu0 %v6136
    %6709 = vmatpush.bf16.msra.mxu0 %v6133
    %6710 = vmatpush.bf16.msra.mxu0 %v6130
    %6711 = vmatpush.bf16.msra.mxu0 %v6127
    %6712 = vmatmul.bf16.gmra.mxu0 %v6703
    %v6713 = vpop.f32.mrf.mxu0
    %v6714 = vadd.f32 %v6041, %v6713
    %v6715 = vpop.f32.mrf.mxu0
    %6716 = vdwg.mxu0
    %6717 = vmatpush.bf16.msra.mxu0 %v6149
    %6718 = vmatpush.bf16.msra.mxu0 %v6146
    %6719 = vmatpush.bf16.msra.mxu0 %v6143
    %6720 = vmatpush.bf16.msra.mxu0 %v6140
    %6721 = vmatpush.bf16.msra.mxu0 %v6137
    %6722 = vmatpush.bf16.msra.mxu0 %v6134
    %6723 = vmatpush.bf16.msra.mxu0 %v6131
    %6724 = vmatpush.bf16.msra.mxu0 %v6128
    %6725 = vmatmul.bf16.gmra.mxu0 %v6703
    %v6726 = vpop.f32.mrf.mxu0
    %v6727 = vadd.f32 %v6042, %v6726
    %v6728 = vpop.f32.mrf.mxu0
    %6729 = vdwg.mxu0
    %6730 = vmatpush.bf16.msra.mxu0 %v6150
    %6731 = vmatpush.bf16.msra.mxu0 %v6147
    %6732 = vmatpush.bf16.msra.mxu0 %v6144
    %6733 = vmatpush.bf16.msra.mxu0 %v6141
    %6734 = vmatpush.bf16.msra.mxu0 %v6138
    %6735 = vmatpush.bf16.msra.mxu0 %v6135
    %6736 = vmatpush.bf16.msra.mxu0 %v6132
    %6737 = vmatpush.bf16.msra.mxu0 %v6129
    %6738 = vmatmul.bf16.gmra.mxu0 %v6703
    %v6739 = vpop.f32.mrf.mxu0
    %v6740 = vadd.f32 %v6043, %v6739
    %v6741 = vpop.f32.mrf.mxu0
    %6742 = vdwg.mxu0
    %v6743 = vpack.c.bf16 %v6702, %v6702
    %6744 = vmatpush.bf16.msra.mxu0 %v6357
    %6745 = vmatpush.bf16.msra.mxu0 %v6354
    %6746 = vmatpush.bf16.msra.mxu0 %v6351
    %6747 = vmatpush.bf16.msra.mxu0 %v6348
    %6748 = vmatpush.bf16.msra.mxu0 %v6345
    %6749 = vmatpush.bf16.msra.mxu0 %v6342
    %6750 = vmatpush.bf16.msra.mxu0 %v6339
    %6751 = vmatpush.bf16.msra.mxu0 %v6336
    %6752 = vmatmul.bf16.gmra.mxu0 %v6743
    %v6753 = vpop.f32.mrf.mxu0
    %v6754 = vadd.f32 %v6250, %v6753
    %v6755 = vpop.f32.mrf.mxu0
    %6756 = vdwg.mxu0
    %6757 = vmatpush.bf16.msra.mxu0 %v6358
    %6758 = vmatpush.bf16.msra.mxu0 %v6355
    %6759 = vmatpush.bf16.msra.mxu0 %v6352
    %6760 = vmatpush.bf16.msra.mxu0 %v6349
    %6761 = vmatpush.bf16.msra.mxu0 %v6346
    %6762 = vmatpush.bf16.msra.mxu0 %v6343
    %6763 = vmatpush.bf16.msra.mxu0 %v6340
    %6764 = vmatpush.bf16.msra.mxu0 %v6337
    %6765 = vmatmul.bf16.gmra.mxu0 %v6743
    %v6766 = vpop.f32.mrf.mxu0
    %v6767 = vadd.f32 %v6251, %v6766
    %v6768 = vpop.f32.mrf.mxu0
    %6769 = vdwg.mxu0
    %6770 = vmatpush.bf16.msra.mxu0 %v6359
    %6771 = vmatpush.bf16.msra.mxu0 %v6356
    %6772 = vmatpush.bf16.msra.mxu0 %v6353
    %6773 = vmatpush.bf16.msra.mxu0 %v6350
    %6774 = vmatpush.bf16.msra.mxu0 %v6347
    %6775 = vmatpush.bf16.msra.mxu0 %v6344
    %6776 = vmatpush.bf16.msra.mxu0 %v6341
    %6777 = vmatpush.bf16.msra.mxu0 %v6338
    %6778 = vmatmul.bf16.gmra.mxu0 %v6743
    %v6779 = vpop.f32.mrf.mxu0
    %v6780 = vadd.f32 %v6252, %v6779
    %v6781 = vpop.f32.mrf.mxu0
    %6782 = vdwg.mxu0
    %v6783 = vld [vmem:[#allocation2 + $0x30] sm:$0xff]
    %v6784 = vld [vmem:[#allocation2 + $0x38] sm:$0xff]
    %v6785 = vld [vmem:[#allocation2 + $0x40] sm:$0xff]
    %v6786 = vld [vmem:[#allocation3 + $0x78] sm:$0xff]
    %v6787 = vld [vmem:[#allocation3 + $0x80] sm:$0xff]
    %v6788 = vld [vmem:[#allocation3 + $0x88] sm:$0xff]
    %v6789 = vadd.f32 %v6783, %v6714
    %v6790 = vxor.u32 %v6789, 2147483648
    %v6791 = vmul.f32 %v6790, 1.442695
    %v6792 = vpow.pop %v6791
    %v6793 = vadd.f32 %v6792, 1.0
    %v6794 = vrcp.pop %v6793
    %v6795 = vmul.f32 %v6793, %v6794
    %v6796 = vsub.f32 1.0, %v6795
    %v6797 = vmul.f32 %v6794, %v6796
    %v6798 = vadd.f32 %v6794, %v6797
    %vm6799 = vweird.f32 %v6793
    %vm6800 = vweird.f32 %v6794
    %vm6801 = vmor %vm6799, %vm6800
    %v6802 = vsel %vm6801, %v6794, %v6798
    %v6803 = vand.u32 2147483647, %v6793
    %vm6804 = vcmp.eq.f32.partialorder %v6803, 8.507059e+37
    %v6805 = vand.u32 %v6793, 2147483648
    %v6806 = vor.u32 1.1754944e-38, %v6805
    %v6807 = vsel %vm6804, %v6806, %v6802
    %v6808 = vmul.f32 1.0, %v6807
    %v6809 = vadd.f32 %v6784, %v6727
    %v6810 = vxor.u32 %v6809, 2147483648
    %v6811 = vmul.f32 %v6810, 1.442695
    %v6812 = vpow.pop %v6811
    %v6813 = vadd.f32 %v6812, 1.0
    %v6814 = vrcp.pop %v6813
    %v6815 = vmul.f32 %v6813, %v6814
    %v6816 = vsub.f32 1.0, %v6815
    %v6817 = vmul.f32 %v6814, %v6816
    %v6818 = vadd.f32 %v6814, %v6817
    %vm6819 = vweird.f32 %v6813
    %vm6820 = vweird.f32 %v6814
    %vm6821 = vmor %vm6819, %vm6820
    %v6822 = vsel %vm6821, %v6814, %v6818
    %v6823 = vand.u32 2147483647, %v6813
    %vm6824 = vcmp.eq.f32.partialorder %v6823, 8.507059e+37
    %v6825 = vand.u32 %v6813, 2147483648
    %v6826 = vor.u32 1.1754944e-38, %v6825
    %v6827 = vsel %vm6824, %v6826, %v6822
    %v6828 = vmul.f32 1.0, %v6827
    %v6829 = vmul.f32 %v6808, %v6740
    %v6830 = vadd.f32 %v6785, %v6829
    %v6831 = vtanh.pop %v6830
    %v6832 = vsub.f32 1.0, %v6828
    %v6833 = vmul.f32 %v6832, %v6831
    %v6834 = vmul.f32 %v6828, %v6655
    %v6835 = vadd.f32 %v6833, %v6834
    %v6836 = vadd.f32 %v6786, %v6754
    %v6837 = vxor.u32 %v6836, 2147483648
    %v6838 = vmul.f32 %v6837, 1.442695
    %v6839 = vpow.pop %v6838
    %v6840 = vadd.f32 %v6839, 1.0
    %v6841 = vrcp.pop %v6840
    %v6842 = vmul.f32 %v6840, %v6841
    %v6843 = vsub.f32 1.0, %v6842
    %v6844 = vmul.f32 %v6841, %v6843
    %v6845 = vadd.f32 %v6841, %v6844
    %vm6846 = vweird.f32 %v6840
    %vm6847 = vweird.f32 %v6841
    %vm6848 = vmor %vm6846, %vm6847
    %v6849 = vsel %vm6848, %v6841, %v6845
    %v6850 = vand.u32 2147483647, %v6840
    %vm6851 = vcmp.eq.f32.partialorder %v6850, 8.507059e+37
    %v6852 = vand.u32 %v6840, 2147483648
    %v6853 = vor.u32 1.1754944e-38, %v6852
    %v6854 = vsel %vm6851, %v6853, %v6849
    %v6855 = vmul.f32 1.0, %v6854
    %v6856 = vadd.f32 %v6787, %v6767
    %v6857 = vxor.u32 %v6856, 2147483648
    %v6858 = vmul.f32 %v6857, 1.442695
    %v6859 = vpow.pop %v6858
    %v6860 = vadd.f32 %v6859, 1.0
    %v6861 = vrcp.pop %v6860
    %v6862 = vmul.f32 %v6860, %v6861
    %v6863 = vsub.f32 1.0, %v6862
    %v6864 = vmul.f32 %v6861, %v6863
    %v6865 = vadd.f32 %v6861, %v6864
    %vm6866 = vweird.f32 %v6860
    %vm6867 = vweird.f32 %v6861
    %vm6868 = vmor %vm6866, %vm6867
    %v6869 = vsel %vm6868, %v6861, %v6865
    %v6870 = vand.u32 2147483647, %v6860
    %vm6871 = vcmp.eq.f32.partialorder %v6870, 8.507059e+37
    %v6872 = vand.u32 %v6860, 2147483648
    %v6873 = vor.u32 1.1754944e-38, %v6872
    %v6874 = vsel %vm6871, %v6873, %v6869
    %v6875 = vmul.f32 1.0, %v6874
    %v6876 = vmul.f32 %v6855, %v6780
    %v6877 = vadd.f32 %v6788, %v6876
    %v6878 = vtanh.pop %v6877
    %v6879 = vsub.f32 1.0, %v6875
    %v6880 = vmul.f32 %v6879, %v6878
    %v6881 = vmul.f32 %v6875, %v6702
    %v6882 = vadd.f32 %v6880, %v6881
    %v6883 = vpack.c.bf16 %v6835, %v6835
    %6884 = vmatpush.bf16.msra.mxu0 %v6148
    %6885 = vmatpush.bf16.msra.mxu0 %v6145
    %6886 = vmatpush.bf16.msra.mxu0 %v6142
    %6887 = vmatpush.bf16.msra.mxu0 %v6139
    %6888 = vmatpush.bf16.msra.mxu0 %v6136
    %6889 = vmatpush.bf16.msra.mxu0 %v6133
    %6890 = vmatpush.bf16.msra.mxu0 %v6130
    %6891 = vmatpush.bf16.msra.mxu0 %v6127
    %6892 = vmatmul.bf16.gmra.mxu0 %v6883
    %v6893 = vpop.f32.mrf.mxu0
    %v6894 = vadd.f32 %v6041, %v6893
    %v6895 = vpop.f32.mrf.mxu0
    %6896 = vdwg.mxu0
    %6897 = vmatpush.bf16.msra.mxu0 %v6149
    %6898 = vmatpush.bf16.msra.mxu0 %v6146
    %6899 = vmatpush.bf16.msra.mxu0 %v6143
    %6900 = vmatpush.bf16.msra.mxu0 %v6140
    %6901 = vmatpush.bf16.msra.mxu0 %v6137
    %6902 = vmatpush.bf16.msra.mxu0 %v6134
    %6903 = vmatpush.bf16.msra.mxu0 %v6131
    %6904 = vmatpush.bf16.msra.mxu0 %v6128
    %6905 = vmatmul.bf16.gmra.mxu0 %v6883
    %v6906 = vpop.f32.mrf.mxu0
    %v6907 = vadd.f32 %v6042, %v6906
    %v6908 = vpop.f32.mrf.mxu0
    %6909 = vdwg.mxu0
    %6910 = vmatpush.bf16.msra.mxu0 %v6150
    %6911 = vmatpush.bf16.msra.mxu0 %v6147
    %6912 = vmatpush.bf16.msra.mxu0 %v6144
    %6913 = vmatpush.bf16.msra.mxu0 %v6141
    %6914 = vmatpush.bf16.msra.mxu0 %v6138
    %6915 = vmatpush.bf16.msra.mxu0 %v6135
    %6916 = vmatpush.bf16.msra.mxu0 %v6132
    %6917 = vmatpush.bf16.msra.mxu0 %v6129
    %6918 = vmatmul.bf16.gmra.mxu0 %v6883
    %v6919 = vpop.f32.mrf.mxu0
    %v6920 = vadd.f32 %v6043, %v6919
    %v6921 = vpop.f32.mrf.mxu0
    %6922 = vdwg.mxu0
    %v6923 = vpack.c.bf16 %v6882, %v6882
    %6924 = vmatpush.bf16.msra.mxu0 %v6357
    %6925 = vmatpush.bf16.msra.mxu0 %v6354
    %6926 = vmatpush.bf16.msra.mxu0 %v6351
    %6927 = vmatpush.bf16.msra.mxu0 %v6348
    %6928 = vmatpush.bf16.msra.mxu0 %v6345
    %6929 = vmatpush.bf16.msra.mxu0 %v6342
    %6930 = vmatpush.bf16.msra.mxu0 %v6339
    %6931 = vmatpush.bf16.msra.mxu0 %v6336
    %6932 = vmatmul.bf16.gmra.mxu0 %v6923
    %v6933 = vpop.f32.mrf.mxu0
    %v6934 = vadd.f32 %v6250, %v6933
    %v6935 = vpop.f32.mrf.mxu0
    %6936 = vdwg.mxu0
    %6937 = vmatpush.bf16.msra.mxu0 %v6358
    %6938 = vmatpush.bf16.msra.mxu0 %v6355
    %6939 = vmatpush.bf16.msra.mxu0 %v6352
    %6940 = vmatpush.bf16.msra.mxu0 %v6349
    %6941 = vmatpush.bf16.msra.mxu0 %v6346
    %6942 = vmatpush.bf16.msra.mxu0 %v6343
    %6943 = vmatpush.bf16.msra.mxu0 %v6340
    %6944 = vmatpush.bf16.msra.mxu0 %v6337
    %6945 = vmatmul.bf16.gmra.mxu0 %v6923
    %v6946 = vpop.f32.mrf.mxu0
    %v6947 = vadd.f32 %v6251, %v6946
    %v6948 = vpop.f32.mrf.mxu0
    %6949 = vdwg.mxu0
    %6950 = vmatpush.bf16.msra.mxu0 %v6359
    %6951 = vmatpush.bf16.msra.mxu0 %v6356
    %6952 = vmatpush.bf16.msra.mxu0 %v6353
    %6953 = vmatpush.bf16.msra.mxu0 %v6350
    %6954 = vmatpush.bf16.msra.mxu0 %v6347
    %6955 = vmatpush.bf16.msra.mxu0 %v6344
    %6956 = vmatpush.bf16.msra.mxu0 %v6341
    %6957 = vmatpush.bf16.msra.mxu0 %v6338
    %6958 = vmatmul.bf16.gmra.mxu0 %v6923
    %v6959 = vpop.f32.mrf.mxu0
    %v6960 = vadd.f32 %v6252, %v6959
    %v6961 = vpop.f32.mrf.mxu0
    %6962 = vdwg.mxu0
    %v6963 = vld [vmem:[#allocation2 + $0x48] sm:$0xff]
    %v6964 = vld [vmem:[#allocation2 + $0x50] sm:$0xff]
    %v6965 = vld [vmem:[#allocation2 + $0x58] sm:$0xff]
    %v6966 = vld [vmem:[#allocation3 + $0x60] sm:$0xff]
    %v6967 = vld [vmem:[#allocation3 + $0x68] sm:$0xff]
    %v6968 = vld [vmem:[#allocation3 + $0x70] sm:$0xff]
    %v6969 = vadd.f32 %v6963, %v6894
    %v6970 = vxor.u32 %v6969, 2147483648
    %v6971 = vmul.f32 %v6970, 1.442695
    %v6972 = vpow.pop %v6971
    %v6973 = vadd.f32 %v6972, 1.0
    %v6974 = vrcp.pop %v6973
    %v6975 = vmul.f32 %v6973, %v6974
    %v6976 = vsub.f32 1.0, %v6975
    %v6977 = vmul.f32 %v6974, %v6976
    %v6978 = vadd.f32 %v6974, %v6977
    %vm6979 = vweird.f32 %v6973
    %vm6980 = vweird.f32 %v6974
    %vm6981 = vmor %vm6979, %vm6980
    %v6982 = vsel %vm6981, %v6974, %v6978
    %v6983 = vand.u32 2147483647, %v6973
    %vm6984 = vcmp.eq.f32.partialorder %v6983, 8.507059e+37
    %v6985 = vand.u32 %v6973, 2147483648
    %v6986 = vor.u32 1.1754944e-38, %v6985
    %v6987 = vsel %vm6984, %v6986, %v6982
    %v6988 = vmul.f32 1.0, %v6987
    %v6989 = vadd.f32 %v6964, %v6907
    %v6990 = vxor.u32 %v6989, 2147483648
    %v6991 = vmul.f32 %v6990, 1.442695
    %v6992 = vpow.pop %v6991
    %v6993 = vadd.f32 %v6992, 1.0
    %v6994 = vrcp.pop %v6993
    %v6995 = vmul.f32 %v6993, %v6994
    %v6996 = vsub.f32 1.0, %v6995
    %v6997 = vmul.f32 %v6994, %v6996
    %v6998 = vadd.f32 %v6994, %v6997
    %vm6999 = vweird.f32 %v6993
    %vm7000 = vweird.f32 %v6994
    %vm7001 = vmor %vm6999, %vm7000
    %v7002 = vsel %vm7001, %v6994, %v6998
    %v7003 = vand.u32 2147483647, %v6993
    %vm7004 = vcmp.eq.f32.partialorder %v7003, 8.507059e+37
    %v7005 = vand.u32 %v6993, 2147483648
    %v7006 = vor.u32 1.1754944e-38, %v7005
    %v7007 = vsel %vm7004, %v7006, %v7002
    %v7008 = vmul.f32 1.0, %v7007
    %v7009 = vmul.f32 %v6988, %v6920
    %v7010 = vadd.f32 %v6965, %v7009
    %v7011 = vtanh.pop %v7010
    %v7012 = vsub.f32 1.0, %v7008
    %v7013 = vmul.f32 %v7012, %v7011
    %v7014 = vmul.f32 %v7008, %v6835
    %v7015 = vadd.f32 %v7013, %v7014
    %v7016 = vadd.f32 %v6966, %v6934
    %v7017 = vxor.u32 %v7016, 2147483648
    %v7018 = vmul.f32 %v7017, 1.442695
    %v7019 = vpow.pop %v7018
    %v7020 = vadd.f32 %v7019, 1.0
    %v7021 = vrcp.pop %v7020
    %v7022 = vmul.f32 %v7020, %v7021
    %v7023 = vsub.f32 1.0, %v7022
    %v7024 = vmul.f32 %v7021, %v7023
    %v7025 = vadd.f32 %v7021, %v7024
    %vm7026 = vweird.f32 %v7020
    %vm7027 = vweird.f32 %v7021
    %vm7028 = vmor %vm7026, %vm7027
    %v7029 = vsel %vm7028, %v7021, %v7025
    %v7030 = vand.u32 2147483647, %v7020
    %vm7031 = vcmp.eq.f32.partialorder %v7030, 8.507059e+37
    %v7032 = vand.u32 %v7020, 2147483648
    %v7033 = vor.u32 1.1754944e-38, %v7032
    %v7034 = vsel %vm7031, %v7033, %v7029
    %v7035 = vmul.f32 1.0, %v7034
    %v7036 = vadd.f32 %v6967, %v6947
    %v7037 = vxor.u32 %v7036, 2147483648
    %v7038 = vmul.f32 %v7037, 1.442695
    %v7039 = vpow.pop %v7038
    %v7040 = vadd.f32 %v7039, 1.0
    %v7041 = vrcp.pop %v7040
    %v7042 = vmul.f32 %v7040, %v7041
    %v7043 = vsub.f32 1.0, %v7042
    %v7044 = vmul.f32 %v7041, %v7043
    %v7045 = vadd.f32 %v7041, %v7044
    %vm7046 = vweird.f32 %v7040
    %vm7047 = vweird.f32 %v7041
    %vm7048 = vmor %vm7046, %vm7047
    %v7049 = vsel %vm7048, %v7041, %v7045
    %v7050 = vand.u32 2147483647, %v7040
    %vm7051 = vcmp.eq.f32.partialorder %v7050, 8.507059e+37
    %v7052 = vand.u32 %v7040, 2147483648
    %v7053 = vor.u32 1.1754944e-38, %v7052
    %v7054 = vsel %vm7051, %v7053, %v7049
    %v7055 = vmul.f32 1.0, %v7054
    %v7056 = vmul.f32 %v7035, %v6960
    %v7057 = vadd.f32 %v6968, %v7056
    %v7058 = vtanh.pop %v7057
    %v7059 = vsub.f32 1.0, %v7055
    %v7060 = vmul.f32 %v7059, %v7058
    %v7061 = vmul.f32 %v7055, %v6882
    %v7062 = vadd.f32 %v7060, %v7061
    %v7063 = vpack.c.bf16 %v7015, %v7015
    %7064 = vmatpush.bf16.msra.mxu0 %v6148
    %7065 = vmatpush.bf16.msra.mxu0 %v6145
    %7066 = vmatpush.bf16.msra.mxu0 %v6142
    %7067 = vmatpush.bf16.msra.mxu0 %v6139
    %7068 = vmatpush.bf16.msra.mxu0 %v6136
    %7069 = vmatpush.bf16.msra.mxu0 %v6133
    %7070 = vmatpush.bf16.msra.mxu0 %v6130
    %7071 = vmatpush.bf16.msra.mxu0 %v6127
    %7072 = vmatmul.bf16.gmra.mxu0 %v7063
    %v7073 = vpop.f32.mrf.mxu0
    %v7074 = vadd.f32 %v6041, %v7073
    %v7075 = vpop.f32.mrf.mxu0
    %7076 = vdwg.mxu0
    %7077 = vmatpush.bf16.msra.mxu0 %v6149
    %7078 = vmatpush.bf16.msra.mxu0 %v6146
    %7079 = vmatpush.bf16.msra.mxu0 %v6143
    %7080 = vmatpush.bf16.msra.mxu0 %v6140
    %7081 = vmatpush.bf16.msra.mxu0 %v6137
    %7082 = vmatpush.bf16.msra.mxu0 %v6134
    %7083 = vmatpush.bf16.msra.mxu0 %v6131
    %7084 = vmatpush.bf16.msra.mxu0 %v6128
    %7085 = vmatmul.bf16.gmra.mxu0 %v7063
    %v7086 = vpop.f32.mrf.mxu0
    %v7087 = vadd.f32 %v6042, %v7086
    %v7088 = vpop.f32.mrf.mxu0
    %7089 = vdwg.mxu0
    %7090 = vmatpush.bf16.msra.mxu0 %v6150
    %7091 = vmatpush.bf16.msra.mxu0 %v6147
    %7092 = vmatpush.bf16.msra.mxu0 %v6144
    %7093 = vmatpush.bf16.msra.mxu0 %v6141
    %7094 = vmatpush.bf16.msra.mxu0 %v6138
    %7095 = vmatpush.bf16.msra.mxu0 %v6135
    %7096 = vmatpush.bf16.msra.mxu0 %v6132
    %7097 = vmatpush.bf16.msra.mxu0 %v6129
    %7098 = vmatmul.bf16.gmra.mxu0 %v7063
    %v7099 = vpop.f32.mrf.mxu0
    %v7100 = vadd.f32 %v6043, %v7099
    %v7101 = vpop.f32.mrf.mxu0
    %7102 = vdwg.mxu0
    %v7103 = vpack.c.bf16 %v7062, %v7062
    %7104 = vmatpush.bf16.msra.mxu0 %v6357
    %7105 = vmatpush.bf16.msra.mxu0 %v6354
    %7106 = vmatpush.bf16.msra.mxu0 %v6351
    %7107 = vmatpush.bf16.msra.mxu0 %v6348
    %7108 = vmatpush.bf16.msra.mxu0 %v6345
    %7109 = vmatpush.bf16.msra.mxu0 %v6342
    %7110 = vmatpush.bf16.msra.mxu0 %v6339
    %7111 = vmatpush.bf16.msra.mxu0 %v6336
    %7112 = vmatmul.bf16.gmra.mxu0 %v7103
    %v7113 = vpop.f32.mrf.mxu0
    %v7114 = vadd.f32 %v6250, %v7113
    %v7115 = vpop.f32.mrf.mxu0
    %7116 = vdwg.mxu0
    %7117 = vmatpush.bf16.msra.mxu0 %v6358
    %7118 = vmatpush.bf16.msra.mxu0 %v6355
    %7119 = vmatpush.bf16.msra.mxu0 %v6352
    %7120 = vmatpush.bf16.msra.mxu0 %v6349
    %7121 = vmatpush.bf16.msra.mxu0 %v6346
    %7122 = vmatpush.bf16.msra.mxu0 %v6343
    %7123 = vmatpush.bf16.msra.mxu0 %v6340
    %7124 = vmatpush.bf16.msra.mxu0 %v6337
    %7125 = vmatmul.bf16.gmra.mxu0 %v7103
    %v7126 = vpop.f32.mrf.mxu0
    %v7127 = vadd.f32 %v6251, %v7126
    %v7128 = vpop.f32.mrf.mxu0
    %7129 = vdwg.mxu0
    %7130 = vmatpush.bf16.msra.mxu0 %v6359
    %7131 = vmatpush.bf16.msra.mxu0 %v6356
    %7132 = vmatpush.bf16.msra.mxu0 %v6353
    %7133 = vmatpush.bf16.msra.mxu0 %v6350
    %7134 = vmatpush.bf16.msra.mxu0 %v6347
    %7135 = vmatpush.bf16.msra.mxu0 %v6344
    %7136 = vmatpush.bf16.msra.mxu0 %v6341
    %7137 = vmatpush.bf16.msra.mxu0 %v6338
    %7138 = vmatmul.bf16.gmra.mxu0 %v7103
    %v7139 = vpop.f32.mrf.mxu0
    %v7140 = vadd.f32 %v6252, %v7139
    %v7141 = vpop.f32.mrf.mxu0
    %7142 = vdwg.mxu0
    %v7143 = vld [vmem:[#allocation2 + $0x60] sm:$0xff]
    %v7144 = vld [vmem:[#allocation2 + $0x68] sm:$0xff]
    %v7145 = vld [vmem:[#allocation2 + $0x70] sm:$0xff]
    %v7146 = vld [vmem:[#allocation3 + $0x48] sm:$0xff]
    %v7147 = vld [vmem:[#allocation3 + $0x50] sm:$0xff]
    %v7148 = vld [vmem:[#allocation3 + $0x58] sm:$0xff]
    %v7149 = vadd.f32 %v7143, %v7074
    %v7150 = vxor.u32 %v7149, 2147483648
    %v7151 = vmul.f32 %v7150, 1.442695
    %v7152 = vpow.pop %v7151
    %v7153 = vadd.f32 %v7152, 1.0
    %v7154 = vrcp.pop %v7153
    %v7155 = vmul.f32 %v7153, %v7154
    %v7156 = vsub.f32 1.0, %v7155
    %v7157 = vmul.f32 %v7154, %v7156
    %v7158 = vadd.f32 %v7154, %v7157
    %vm7159 = vweird.f32 %v7153
    %vm7160 = vweird.f32 %v7154
    %vm7161 = vmor %vm7159, %vm7160
    %v7162 = vsel %vm7161, %v7154, %v7158
    %v7163 = vand.u32 2147483647, %v7153
    %vm7164 = vcmp.eq.f32.partialorder %v7163, 8.507059e+37
    %v7165 = vand.u32 %v7153, 2147483648
    %v7166 = vor.u32 1.1754944e-38, %v7165
    %v7167 = vsel %vm7164, %v7166, %v7162
    %v7168 = vmul.f32 1.0, %v7167
    %v7169 = vadd.f32 %v7144, %v7087
    %v7170 = vxor.u32 %v7169, 2147483648
    %v7171 = vmul.f32 %v7170, 1.442695
    %v7172 = vpow.pop %v7171
    %v7173 = vadd.f32 %v7172, 1.0
    %v7174 = vrcp.pop %v7173
    %v7175 = vmul.f32 %v7173, %v7174
    %v7176 = vsub.f32 1.0, %v7175
    %v7177 = vmul.f32 %v7174, %v7176
    %v7178 = vadd.f32 %v7174, %v7177
    %vm7179 = vweird.f32 %v7173
    %vm7180 = vweird.f32 %v7174
    %vm7181 = vmor %vm7179, %vm7180
    %v7182 = vsel %vm7181, %v7174, %v7178
    %v7183 = vand.u32 2147483647, %v7173
    %vm7184 = vcmp.eq.f32.partialorder %v7183, 8.507059e+37
    %v7185 = vand.u32 %v7173, 2147483648
    %v7186 = vor.u32 1.1754944e-38, %v7185
    %v7187 = vsel %vm7184, %v7186, %v7182
    %v7188 = vmul.f32 1.0, %v7187
    %v7189 = vmul.f32 %v7168, %v7100
    %v7190 = vadd.f32 %v7145, %v7189
    %v7191 = vtanh.pop %v7190
    %v7192 = vsub.f32 1.0, %v7188
    %v7193 = vmul.f32 %v7192, %v7191
    %v7194 = vmul.f32 %v7188, %v7015
    %v7195 = vadd.f32 %v7193, %v7194
    %v7196 = vadd.f32 %v7146, %v7114
    %v7197 = vxor.u32 %v7196, 2147483648
    %v7198 = vmul.f32 %v7197, 1.442695
    %v7199 = vpow.pop %v7198
    %v7200 = vadd.f32 %v7199, 1.0
    %v7201 = vrcp.pop %v7200
    %v7202 = vmul.f32 %v7200, %v7201
    %v7203 = vsub.f32 1.0, %v7202
    %v7204 = vmul.f32 %v7201, %v7203
    %v7205 = vadd.f32 %v7201, %v7204
    %vm7206 = vweird.f32 %v7200
    %vm7207 = vweird.f32 %v7201
    %vm7208 = vmor %vm7206, %vm7207
    %v7209 = vsel %vm7208, %v7201, %v7205
    %v7210 = vand.u32 2147483647, %v7200
    %vm7211 = vcmp.eq.f32.partialorder %v7210, 8.507059e+37
    %v7212 = vand.u32 %v7200, 2147483648
    %v7213 = vor.u32 1.1754944e-38, %v7212
    %v7214 = vsel %vm7211, %v7213, %v7209
    %v7215 = vmul.f32 1.0, %v7214
    %v7216 = vadd.f32 %v7147, %v7127
    %v7217 = vxor.u32 %v7216, 2147483648
    %v7218 = vmul.f32 %v7217, 1.442695
    %v7219 = vpow.pop %v7218
    %v7220 = vadd.f32 %v7219, 1.0
    %v7221 = vrcp.pop %v7220
    %v7222 = vmul.f32 %v7220, %v7221
    %v7223 = vsub.f32 1.0, %v7222
    %v7224 = vmul.f32 %v7221, %v7223
    %v7225 = vadd.f32 %v7221, %v7224
    %vm7226 = vweird.f32 %v7220
    %vm7227 = vweird.f32 %v7221
    %vm7228 = vmor %vm7226, %vm7227
    %v7229 = vsel %vm7228, %v7221, %v7225
    %v7230 = vand.u32 2147483647, %v7220
    %vm7231 = vcmp.eq.f32.partialorder %v7230, 8.507059e+37
    %v7232 = vand.u32 %v7220, 2147483648
    %v7233 = vor.u32 1.1754944e-38, %v7232
    %v7234 = vsel %vm7231, %v7233, %v7229
    %v7235 = vmul.f32 1.0, %v7234
    %v7236 = vmul.f32 %v7215, %v7140
    %v7237 = vadd.f32 %v7148, %v7236
    %v7238 = vtanh.pop %v7237
    %v7239 = vsub.f32 1.0, %v7235
    %v7240 = vmul.f32 %v7239, %v7238
    %v7241 = vmul.f32 %v7235, %v7062
    %v7242 = vadd.f32 %v7240, %v7241
    %v7243 = vpack.c.bf16 %v7195, %v7195
    %7244 = vmatpush.bf16.msra.mxu0 %v6148
    %7245 = vmatpush.bf16.msra.mxu0 %v6145
    %7246 = vmatpush.bf16.msra.mxu0 %v6142
    %7247 = vmatpush.bf16.msra.mxu0 %v6139
    %7248 = vmatpush.bf16.msra.mxu0 %v6136
    %7249 = vmatpush.bf16.msra.mxu0 %v6133
    %7250 = vmatpush.bf16.msra.mxu0 %v6130
    %7251 = vmatpush.bf16.msra.mxu0 %v6127
    %7252 = vmatmul.bf16.gmra.mxu0 %v7243
    %v7253 = vpop.f32.mrf.mxu0
    %v7254 = vadd.f32 %v6041, %v7253
    %v7255 = vpop.f32.mrf.mxu0
    %7256 = vdwg.mxu0
    %7257 = vmatpush.bf16.msra.mxu0 %v6149
    %7258 = vmatpush.bf16.msra.mxu0 %v6146
    %7259 = vmatpush.bf16.msra.mxu0 %v6143
    %7260 = vmatpush.bf16.msra.mxu0 %v6140
    %7261 = vmatpush.bf16.msra.mxu0 %v6137
    %7262 = vmatpush.bf16.msra.mxu0 %v6134
    %7263 = vmatpush.bf16.msra.mxu0 %v6131
    %7264 = vmatpush.bf16.msra.mxu0 %v6128
    %7265 = vmatmul.bf16.gmra.mxu0 %v7243
    %v7266 = vpop.f32.mrf.mxu0
    %v7267 = vadd.f32 %v6042, %v7266
    %v7268 = vpop.f32.mrf.mxu0
    %7269 = vdwg.mxu0
    %7270 = vmatpush.bf16.msra.mxu0 %v6150
    %7271 = vmatpush.bf16.msra.mxu0 %v6147
    %7272 = vmatpush.bf16.msra.mxu0 %v6144
    %7273 = vmatpush.bf16.msra.mxu0 %v6141
    %7274 = vmatpush.bf16.msra.mxu0 %v6138
    %7275 = vmatpush.bf16.msra.mxu0 %v6135
    %7276 = vmatpush.bf16.msra.mxu0 %v6132
    %7277 = vmatpush.bf16.msra.mxu0 %v6129
    %7278 = vmatmul.bf16.gmra.mxu0 %v7243
    %v7279 = vpop.f32.mrf.mxu0
    %v7280 = vadd.f32 %v6043, %v7279
    %v7281 = vpop.f32.mrf.mxu0
    %7282 = vdwg.mxu0
    %v7283 = vpack.c.bf16 %v7242, %v7242
    %7284 = vmatpush.bf16.msra.mxu0 %v6357
    %7285 = vmatpush.bf16.msra.mxu0 %v6354
    %7286 = vmatpush.bf16.msra.mxu0 %v6351
    %7287 = vmatpush.bf16.msra.mxu0 %v6348
    %7288 = vmatpush.bf16.msra.mxu0 %v6345
    %7289 = vmatpush.bf16.msra.mxu0 %v6342
    %7290 = vmatpush.bf16.msra.mxu0 %v6339
    %7291 = vmatpush.bf16.msra.mxu0 %v6336
    %7292 = vmatmul.bf16.gmra.mxu0 %v7283
    %v7293 = vpop.f32.mrf.mxu0
    %v7294 = vadd.f32 %v6250, %v7293
    %v7295 = vpop.f32.mrf.mxu0
    %7296 = vdwg.mxu0
    %7297 = vmatpush.bf16.msra.mxu0 %v6358
    %7298 = vmatpush.bf16.msra.mxu0 %v6355
    %7299 = vmatpush.bf16.msra.mxu0 %v6352
    %7300 = vmatpush.bf16.msra.mxu0 %v6349
    %7301 = vmatpush.bf16.msra.mxu0 %v6346
    %7302 = vmatpush.bf16.msra.mxu0 %v6343
    %7303 = vmatpush.bf16.msra.mxu0 %v6340
    %7304 = vmatpush.bf16.msra.mxu0 %v6337
    %7305 = vmatmul.bf16.gmra.mxu0 %v7283
    %v7306 = vpop.f32.mrf.mxu0
    %v7307 = vadd.f32 %v6251, %v7306
    %v7308 = vpop.f32.mrf.mxu0
    %7309 = vdwg.mxu0
    %7310 = vmatpush.bf16.msra.mxu0 %v6359
    %7311 = vmatpush.bf16.msra.mxu0 %v6356
    %7312 = vmatpush.bf16.msra.mxu0 %v6353
    %7313 = vmatpush.bf16.msra.mxu0 %v6350
    %7314 = vmatpush.bf16.msra.mxu0 %v6347
    %7315 = vmatpush.bf16.msra.mxu0 %v6344
    %7316 = vmatpush.bf16.msra.mxu0 %v6341
    %7317 = vmatpush.bf16.msra.mxu0 %v6338
    %7318 = vmatmul.bf16.gmra.mxu0 %v7283
    %v7319 = vpop.f32.mrf.mxu0
    %v7320 = vadd.f32 %v6252, %v7319
    %v7321 = vpop.f32.mrf.mxu0
    %7322 = vdwg.mxu0
    %v7323 = vld [vmem:[#allocation2 + $0x78] sm:$0xff]
    %v7324 = vld [vmem:[#allocation2 + $0x80] sm:$0xff]
    %v7325 = vld [vmem:[#allocation2 + $0x88] sm:$0xff]
    %v7326 = vld [vmem:[#allocation3 + $0x30] sm:$0xff]
    %v7327 = vld [vmem:[#allocation3 + $0x38] sm:$0xff]
    %v7328 = vld [vmem:[#allocation3 + $0x40] sm:$0xff]
    %v7329 = vadd.f32 %v7323, %v7254
    %v7330 = vxor.u32 %v7329, 2147483648
    %v7331 = vmul.f32 %v7330, 1.442695
    %v7332 = vpow.pop %v7331
    %v7333 = vadd.f32 %v7332, 1.0
    %v7334 = vrcp.pop %v7333
    %v7335 = vmul.f32 %v7333, %v7334
    %v7336 = vsub.f32 1.0, %v7335
    %v7337 = vmul.f32 %v7334, %v7336
    %v7338 = vadd.f32 %v7334, %v7337
    %vm7339 = vweird.f32 %v7333
    %vm7340 = vweird.f32 %v7334
    %vm7341 = vmor %vm7339, %vm7340
    %v7342 = vsel %vm7341, %v7334, %v7338
    %v7343 = vand.u32 2147483647, %v7333
    %vm7344 = vcmp.eq.f32.partialorder %v7343, 8.507059e+37
    %v7345 = vand.u32 %v7333, 2147483648
    %v7346 = vor.u32 1.1754944e-38, %v7345
    %v7347 = vsel %vm7344, %v7346, %v7342
    %v7348 = vmul.f32 1.0, %v7347
    %v7349 = vadd.f32 %v7324, %v7267
    %v7350 = vxor.u32 %v7349, 2147483648
    %v7351 = vmul.f32 %v7350, 1.442695
    %v7352 = vpow.pop %v7351
    %v7353 = vadd.f32 %v7352, 1.0
    %v7354 = vrcp.pop %v7353
    %v7355 = vmul.f32 %v7353, %v7354
    %v7356 = vsub.f32 1.0, %v7355
    %v7357 = vmul.f32 %v7354, %v7356
    %v7358 = vadd.f32 %v7354, %v7357
    %vm7359 = vweird.f32 %v7353
    %vm7360 = vweird.f32 %v7354
    %vm7361 = vmor %vm7359, %vm7360
    %v7362 = vsel %vm7361, %v7354, %v7358
    %v7363 = vand.u32 2147483647, %v7353
    %vm7364 = vcmp.eq.f32.partialorder %v7363, 8.507059e+37
    %v7365 = vand.u32 %v7353, 2147483648
    %v7366 = vor.u32 1.1754944e-38, %v7365
    %v7367 = vsel %vm7364, %v7366, %v7362
    %v7368 = vmul.f32 1.0, %v7367
    %v7369 = vmul.f32 %v7348, %v7280
    %v7370 = vadd.f32 %v7325, %v7369
    %v7371 = vtanh.pop %v7370
    %v7372 = vsub.f32 1.0, %v7368
    %v7373 = vmul.f32 %v7372, %v7371
    %v7374 = vmul.f32 %v7368, %v7195
    %v7375 = vadd.f32 %v7373, %v7374
    %v7376 = vadd.f32 %v7326, %v7294
    %v7377 = vxor.u32 %v7376, 2147483648
    %v7378 = vmul.f32 %v7377, 1.442695
    %v7379 = vpow.pop %v7378
    %v7380 = vadd.f32 %v7379, 1.0
    %v7381 = vrcp.pop %v7380
    %v7382 = vmul.f32 %v7380, %v7381
    %v7383 = vsub.f32 1.0, %v7382
    %v7384 = vmul.f32 %v7381, %v7383
    %v7385 = vadd.f32 %v7381, %v7384
    %vm7386 = vweird.f32 %v7380
    %vm7387 = vweird.f32 %v7381
    %vm7388 = vmor %vm7386, %vm7387
    %v7389 = vsel %vm7388, %v7381, %v7385
    %v7390 = vand.u32 2147483647, %v7380
    %vm7391 = vcmp.eq.f32.partialorder %v7390, 8.507059e+37
    %v7392 = vand.u32 %v7380, 2147483648
    %v7393 = vor.u32 1.1754944e-38, %v7392
    %v7394 = vsel %vm7391, %v7393, %v7389
    %v7395 = vmul.f32 1.0, %v7394
    %v7396 = vadd.f32 %v7327, %v7307
    %v7397 = vxor.u32 %v7396, 2147483648
    %v7398 = vmul.f32 %v7397, 1.442695
    %v7399 = vpow.pop %v7398
    %v7400 = vadd.f32 %v7399, 1.0
    %v7401 = vrcp.pop %v7400
    %v7402 = vmul.f32 %v7400, %v7401
    %v7403 = vsub.f32 1.0, %v7402
    %v7404 = vmul.f32 %v7401, %v7403
    %v7405 = vadd.f32 %v7401, %v7404
    %vm7406 = vweird.f32 %v7400
    %vm7407 = vweird.f32 %v7401
    %vm7408 = vmor %vm7406, %vm7407
    %v7409 = vsel %vm7408, %v7401, %v7405
    %v7410 = vand.u32 2147483647, %v7400
    %vm7411 = vcmp.eq.f32.partialorder %v7410, 8.507059e+37
    %v7412 = vand.u32 %v7400, 2147483648
    %v7413 = vor.u32 1.1754944e-38, %v7412
    %v7414 = vsel %vm7411, %v7413, %v7409
    %v7415 = vmul.f32 1.0, %v7414
    %v7416 = vmul.f32 %v7395, %v7320
    %v7417 = vadd.f32 %v7328, %v7416
    %v7418 = vtanh.pop %v7417
    %v7419 = vsub.f32 1.0, %v7415
    %v7420 = vmul.f32 %v7419, %v7418
    %v7421 = vmul.f32 %v7415, %v7242
    %v7422 = vadd.f32 %v7420, %v7421
    %v7423 = vpack.c.bf16 %v7375, %v7375
    %7424 = vmatpush.bf16.msra.mxu0 %v6148
    %7425 = vmatpush.bf16.msra.mxu0 %v6145
    %7426 = vmatpush.bf16.msra.mxu0 %v6142
    %7427 = vmatpush.bf16.msra.mxu0 %v6139
    %7428 = vmatpush.bf16.msra.mxu0 %v6136
    %7429 = vmatpush.bf16.msra.mxu0 %v6133
    %7430 = vmatpush.bf16.msra.mxu0 %v6130
    %7431 = vmatpush.bf16.msra.mxu0 %v6127
    %7432 = vmatmul.bf16.gmra.mxu0 %v7423
    %v7433 = vpop.f32.mrf.mxu0
    %v7434 = vadd.f32 %v6041, %v7433
    %v7435 = vpop.f32.mrf.mxu0
    %7436 = vdwg.mxu0
    %7437 = vmatpush.bf16.msra.mxu0 %v6149
    %7438 = vmatpush.bf16.msra.mxu0 %v6146
    %7439 = vmatpush.bf16.msra.mxu0 %v6143
    %7440 = vmatpush.bf16.msra.mxu0 %v6140
    %7441 = vmatpush.bf16.msra.mxu0 %v6137
    %7442 = vmatpush.bf16.msra.mxu0 %v6134
    %7443 = vmatpush.bf16.msra.mxu0 %v6131
    %7444 = vmatpush.bf16.msra.mxu0 %v6128
    %7445 = vmatmul.bf16.gmra.mxu0 %v7423
    %v7446 = vpop.f32.mrf.mxu0
    %v7447 = vadd.f32 %v6042, %v7446
    %v7448 = vpop.f32.mrf.mxu0
    %7449 = vdwg.mxu0
    %7450 = vmatpush.bf16.msra.mxu0 %v6150
    %7451 = vmatpush.bf16.msra.mxu0 %v6147
    %7452 = vmatpush.bf16.msra.mxu0 %v6144
    %7453 = vmatpush.bf16.msra.mxu0 %v6141
    %7454 = vmatpush.bf16.msra.mxu0 %v6138
    %7455 = vmatpush.bf16.msra.mxu0 %v6135
    %7456 = vmatpush.bf16.msra.mxu0 %v6132
    %7457 = vmatpush.bf16.msra.mxu0 %v6129
    %7458 = vmatmul.bf16.gmra.mxu0 %v7423
    %v7459 = vpop.f32.mrf.mxu0
    %v7460 = vadd.f32 %v6043, %v7459
    %v7461 = vpop.f32.mrf.mxu0
    %7462 = vdwg.mxu0
    %v7463 = vpack.c.bf16 %v7422, %v7422
    %7464 = vmatpush.bf16.msra.mxu0 %v6357
    %7465 = vmatpush.bf16.msra.mxu0 %v6354
    %7466 = vmatpush.bf16.msra.mxu0 %v6351
    %7467 = vmatpush.bf16.msra.mxu0 %v6348
    %7468 = vmatpush.bf16.msra.mxu0 %v6345
    %7469 = vmatpush.bf16.msra.mxu0 %v6342
    %7470 = vmatpush.bf16.msra.mxu0 %v6339
    %7471 = vmatpush.bf16.msra.mxu0 %v6336
    %7472 = vmatmul.bf16.gmra.mxu0 %v7463
    %v7473 = vpop.f32.mrf.mxu0
    %v7474 = vadd.f32 %v6250, %v7473
    %v7475 = vpop.f32.mrf.mxu0
    %7476 = vdwg.mxu0
    %7477 = vmatpush.bf16.msra.mxu0 %v6358
    %7478 = vmatpush.bf16.msra.mxu0 %v6355
    %7479 = vmatpush.bf16.msra.mxu0 %v6352
    %7480 = vmatpush.bf16.msra.mxu0 %v6349
    %7481 = vmatpush.bf16.msra.mxu0 %v6346
    %7482 = vmatpush.bf16.msra.mxu0 %v6343
    %7483 = vmatpush.bf16.msra.mxu0 %v6340
    %7484 = vmatpush.bf16.msra.mxu0 %v6337
    %7485 = vmatmul.bf16.gmra.mxu0 %v7463
    %v7486 = vpop.f32.mrf.mxu0
    %v7487 = vadd.f32 %v6251, %v7486
    %v7488 = vpop.f32.mrf.mxu0
    %7489 = vdwg.mxu0
    %7490 = vmatpush.bf16.msra.mxu0 %v6359
    %7491 = vmatpush.bf16.msra.mxu0 %v6356
    %7492 = vmatpush.bf16.msra.mxu0 %v6353
    %7493 = vmatpush.bf16.msra.mxu0 %v6350
    %7494 = vmatpush.bf16.msra.mxu0 %v6347
    %7495 = vmatpush.bf16.msra.mxu0 %v6344
    %7496 = vmatpush.bf16.msra.mxu0 %v6341
    %7497 = vmatpush.bf16.msra.mxu0 %v6338
    %7498 = vmatmul.bf16.gmra.mxu0 %v7463
    %v7499 = vpop.f32.mrf.mxu0
    %v7500 = vadd.f32 %v6252, %v7499
    %v7501 = vpop.f32.mrf.mxu0
    %7502 = vdwg.mxu0
    %v7503 = vld [vmem:[#allocation2 + $0x90] sm:$0xff]
    %v7504 = vld [vmem:[#allocation2 + $0x98] sm:$0xff]
    %v7505 = vld [vmem:[#allocation2 + $0xa0] sm:$0xff]
    %v7506 = vld [vmem:[#allocation3 + $0x18] sm:$0xff]
    %v7507 = vld [vmem:[#allocation3 + $0x20] sm:$0xff]
    %v7508 = vld [vmem:[#allocation3 + $0x28] sm:$0xff]
    %v7509 = vadd.f32 %v7503, %v7434
    %v7510 = vxor.u32 %v7509, 2147483648
    %v7511 = vmul.f32 %v7510, 1.442695
    %v7512 = vpow.pop %v7511
    %v7513 = vadd.f32 %v7512, 1.0
    %v7514 = vrcp.pop %v7513
    %v7515 = vmul.f32 %v7513, %v7514
    %v7516 = vsub.f32 1.0, %v7515
    %v7517 = vmul.f32 %v7514, %v7516
    %v7518 = vadd.f32 %v7514, %v7517
    %vm7519 = vweird.f32 %v7513
    %vm7520 = vweird.f32 %v7514
    %vm7521 = vmor %vm7519, %vm7520
    %v7522 = vsel %vm7521, %v7514, %v7518
    %v7523 = vand.u32 2147483647, %v7513
    %vm7524 = vcmp.eq.f32.partialorder %v7523, 8.507059e+37
    %v7525 = vand.u32 %v7513, 2147483648
    %v7526 = vor.u32 1.1754944e-38, %v7525
    %v7527 = vsel %vm7524, %v7526, %v7522
    %v7528 = vmul.f32 1.0, %v7527
    %v7529 = vadd.f32 %v7504, %v7447
    %v7530 = vxor.u32 %v7529, 2147483648
    %v7531 = vmul.f32 %v7530, 1.442695
    %v7532 = vpow.pop %v7531
    %v7533 = vadd.f32 %v7532, 1.0
    %v7534 = vrcp.pop %v7533
    %v7535 = vmul.f32 %v7533, %v7534
    %v7536 = vsub.f32 1.0, %v7535
    %v7537 = vmul.f32 %v7534, %v7536
    %v7538 = vadd.f32 %v7534, %v7537
    %vm7539 = vweird.f32 %v7533
    %vm7540 = vweird.f32 %v7534
    %vm7541 = vmor %vm7539, %vm7540
    %v7542 = vsel %vm7541, %v7534, %v7538
    %v7543 = vand.u32 2147483647, %v7533
    %vm7544 = vcmp.eq.f32.partialorder %v7543, 8.507059e+37
    %v7545 = vand.u32 %v7533, 2147483648
    %v7546 = vor.u32 1.1754944e-38, %v7545
    %v7547 = vsel %vm7544, %v7546, %v7542
    %v7548 = vmul.f32 1.0, %v7547
    %v7549 = vmul.f32 %v7528, %v7460
    %v7550 = vadd.f32 %v7505, %v7549
    %v7551 = vtanh.pop %v7550
    %v7552 = vsub.f32 1.0, %v7548
    %v7553 = vmul.f32 %v7552, %v7551
    %v7554 = vmul.f32 %v7548, %v7375
    %v7555 = vadd.f32 %v7553, %v7554
    %v7556 = vadd.f32 %v7506, %v7474
    %v7557 = vxor.u32 %v7556, 2147483648
    %v7558 = vmul.f32 %v7557, 1.442695
    %v7559 = vpow.pop %v7558
    %v7560 = vadd.f32 %v7559, 1.0
    %v7561 = vrcp.pop %v7560
    %v7562 = vmul.f32 %v7560, %v7561
    %v7563 = vsub.f32 1.0, %v7562
    %v7564 = vmul.f32 %v7561, %v7563
    %v7565 = vadd.f32 %v7561, %v7564
    %vm7566 = vweird.f32 %v7560
    %vm7567 = vweird.f32 %v7561
    %vm7568 = vmor %vm7566, %vm7567
    %v7569 = vsel %vm7568, %v7561, %v7565
    %v7570 = vand.u32 2147483647, %v7560
    %vm7571 = vcmp.eq.f32.partialorder %v7570, 8.507059e+37
    %v7572 = vand.u32 %v7560, 2147483648
    %v7573 = vor.u32 1.1754944e-38, %v7572
    %v7574 = vsel %vm7571, %v7573, %v7569
    %v7575 = vmul.f32 1.0, %v7574
    %v7576 = vadd.f32 %v7507, %v7487
    %v7577 = vxor.u32 %v7576, 2147483648
    %v7578 = vmul.f32 %v7577, 1.442695
    %v7579 = vpow.pop %v7578
    %v7580 = vadd.f32 %v7579, 1.0
    %v7581 = vrcp.pop %v7580
    %v7582 = vmul.f32 %v7580, %v7581
    %v7583 = vsub.f32 1.0, %v7582
    %v7584 = vmul.f32 %v7581, %v7583
    %v7585 = vadd.f32 %v7581, %v7584
    %vm7586 = vweird.f32 %v7580
    %vm7587 = vweird.f32 %v7581
    %vm7588 = vmor %vm7586, %vm7587
    %v7589 = vsel %vm7588, %v7581, %v7585
    %v7590 = vand.u32 2147483647, %v7580
    %vm7591 = vcmp.eq.f32.partialorder %v7590, 8.507059e+37
    %v7592 = vand.u32 %v7580, 2147483648
    %v7593 = vor.u32 1.1754944e-38, %v7592
    %v7594 = vsel %vm7591, %v7593, %v7589
    %v7595 = vmul.f32 1.0, %v7594
    %v7596 = vmul.f32 %v7575, %v7500
    %v7597 = vadd.f32 %v7508, %v7596
    %v7598 = vtanh.pop %v7597
    %v7599 = vsub.f32 1.0, %v7595
    %v7600 = vmul.f32 %v7599, %v7598
    %v7601 = vmul.f32 %v7595, %v7422
    %v7602 = vadd.f32 %v7600, %v7601
    %v7603 = vpack.c.bf16 %v7555, %v7555
    %7604 = vmatpush.bf16.msra.mxu0 %v6148
    %7605 = vmatpush.bf16.msra.mxu0 %v6145
    %7606 = vmatpush.bf16.msra.mxu0 %v6142
    %7607 = vmatpush.bf16.msra.mxu0 %v6139
    %7608 = vmatpush.bf16.msra.mxu0 %v6136
    %7609 = vmatpush.bf16.msra.mxu0 %v6133
    %7610 = vmatpush.bf16.msra.mxu0 %v6130
    %7611 = vmatpush.bf16.msra.mxu0 %v6127
    %7612 = vmatmul.bf16.gmra.mxu0 %v7603
    %v7613 = vpop.f32.mrf.mxu0
    %v7614 = vadd.f32 %v6041, %v7613
    %v7615 = vpop.f32.mrf.mxu0
    %7616 = vdwg.mxu0
    %7617 = vmatpush.bf16.msra.mxu0 %v6149
    %7618 = vmatpush.bf16.msra.mxu0 %v6146
    %7619 = vmatpush.bf16.msra.mxu0 %v6143
    %7620 = vmatpush.bf16.msra.mxu0 %v6140
    %7621 = vmatpush.bf16.msra.mxu0 %v6137
    %7622 = vmatpush.bf16.msra.mxu0 %v6134
    %7623 = vmatpush.bf16.msra.mxu0 %v6131
    %7624 = vmatpush.bf16.msra.mxu0 %v6128
    %7625 = vmatmul.bf16.gmra.mxu0 %v7603
    %v7626 = vpop.f32.mrf.mxu0
    %v7627 = vadd.f32 %v6042, %v7626
    %v7628 = vpop.f32.mrf.mxu0
    %7629 = vdwg.mxu0
    %7630 = vmatpush.bf16.msra.mxu0 %v6150
    %7631 = vmatpush.bf16.msra.mxu0 %v6147
    %7632 = vmatpush.bf16.msra.mxu0 %v6144
    %7633 = vmatpush.bf16.msra.mxu0 %v6141
    %7634 = vmatpush.bf16.msra.mxu0 %v6138
    %7635 = vmatpush.bf16.msra.mxu0 %v6135
    %7636 = vmatpush.bf16.msra.mxu0 %v6132
    %7637 = vmatpush.bf16.msra.mxu0 %v6129
    %7638 = vmatmul.bf16.gmra.mxu0 %v7603
    %v7639 = vpop.f32.mrf.mxu0
    %v7640 = vadd.f32 %v6043, %v7639
    %v7641 = vpop.f32.mrf.mxu0
    %7642 = vdwg.mxu0
    %v7643 = vpack.c.bf16 %v7602, %v7602
    %7644 = vmatpush.bf16.msra.mxu0 %v6357
    %7645 = vmatpush.bf16.msra.mxu0 %v6354
    %7646 = vmatpush.bf16.msra.mxu0 %v6351
    %7647 = vmatpush.bf16.msra.mxu0 %v6348
    %7648 = vmatpush.bf16.msra.mxu0 %v6345
    %7649 = vmatpush.bf16.msra.mxu0 %v6342
    %7650 = vmatpush.bf16.msra.mxu0 %v6339
    %7651 = vmatpush.bf16.msra.mxu0 %v6336
    %7652 = vmatmul.bf16.gmra.mxu0 %v7643
    %v7653 = vpop.f32.mrf.mxu0
    %v7654 = vadd.f32 %v6250, %v7653
    %v7655 = vpop.f32.mrf.mxu0
    %7656 = vdwg.mxu0
    %7657 = vmatpush.bf16.msra.mxu0 %v6358
    %7658 = vmatpush.bf16.msra.mxu0 %v6355
    %7659 = vmatpush.bf16.msra.mxu0 %v6352
    %7660 = vmatpush.bf16.msra.mxu0 %v6349
    %7661 = vmatpush.bf16.msra.mxu0 %v6346
    %7662 = vmatpush.bf16.msra.mxu0 %v6343
    %7663 = vmatpush.bf16.msra.mxu0 %v6340
    %7664 = vmatpush.bf16.msra.mxu0 %v6337
    %7665 = vmatmul.bf16.gmra.mxu0 %v7643
    %v7666 = vpop.f32.mrf.mxu0
    %v7667 = vadd.f32 %v6251, %v7666
    %v7668 = vpop.f32.mrf.mxu0
    %7669 = vdwg.mxu0
    %7670 = vmatpush.bf16.msra.mxu0 %v6359
    %7671 = vmatpush.bf16.msra.mxu0 %v6356
    %7672 = vmatpush.bf16.msra.mxu0 %v6353
    %7673 = vmatpush.bf16.msra.mxu0 %v6350
    %7674 = vmatpush.bf16.msra.mxu0 %v6347
    %7675 = vmatpush.bf16.msra.mxu0 %v6344
    %7676 = vmatpush.bf16.msra.mxu0 %v6341
    %7677 = vmatpush.bf16.msra.mxu0 %v6338
    %7678 = vmatmul.bf16.gmra.mxu0 %v7643
    %v7679 = vpop.f32.mrf.mxu0
    %v7680 = vadd.f32 %v6252, %v7679
    %v7681 = vpop.f32.mrf.mxu0
    %7682 = vdwg.mxu0
    %v7683 = vld [vmem:[#allocation2 + $0xa8] sm:$0xff]
    %v7684 = vld [vmem:[#allocation2 + $0xb0] sm:$0xff]
    %v7685 = vld [vmem:[#allocation2 + $0xb8] sm:$0xff]
    %v7686 = vld [vmem:[#allocation3] sm:$0xff]
    %v7687 = vld [vmem:[#allocation3 + $0x8] sm:$0xff]
    %v7688 = vld [vmem:[#allocation3 + $0x10] sm:$0xff]
    %v7689 = vadd.f32 %v7683, %v7614
    %v7690 = vxor.u32 %v7689, 2147483648
    %v7691 = vmul.f32 %v7690, 1.442695
    %v7692 = vpow.pop %v7691
    %v7693 = vadd.f32 %v7692, 1.0
    %v7694 = vrcp.pop %v7693
    %v7695 = vmul.f32 %v7693, %v7694
    %v7696 = vsub.f32 1.0, %v7695
    %v7697 = vmul.f32 %v7694, %v7696
    %v7698 = vadd.f32 %v7694, %v7697
    %vm7699 = vweird.f32 %v7693
    %vm7700 = vweird.f32 %v7694
    %vm7701 = vmor %vm7699, %vm7700
    %v7702 = vsel %vm7701, %v7694, %v7698
    %v7703 = vand.u32 2147483647, %v7693
    %vm7704 = vcmp.eq.f32.partialorder %v7703, 8.507059e+37
    %v7705 = vand.u32 %v7693, 2147483648
    %v7706 = vor.u32 1.1754944e-38, %v7705
    %v7707 = vsel %vm7704, %v7706, %v7702
    %v7708 = vmul.f32 1.0, %v7707
    %v7709 = vadd.f32 %v7684, %v7627
    %v7710 = vxor.u32 %v7709, 2147483648
    %v7711 = vmul.f32 %v7710, 1.442695
    %v7712 = vpow.pop %v7711
    %v7713 = vadd.f32 %v7712, 1.0
    %v7714 = vrcp.pop %v7713
    %v7715 = vmul.f32 %v7713, %v7714
    %v7716 = vsub.f32 1.0, %v7715
    %v7717 = vmul.f32 %v7714, %v7716
    %v7718 = vadd.f32 %v7714, %v7717
    %vm7719 = vweird.f32 %v7713
    %vm7720 = vweird.f32 %v7714
    %vm7721 = vmor %vm7719, %vm7720
    %v7722 = vsel %vm7721, %v7714, %v7718
    %v7723 = vand.u32 2147483647, %v7713
    %vm7724 = vcmp.eq.f32.partialorder %v7723, 8.507059e+37
    %v7725 = vand.u32 %v7713, 2147483648
    %v7726 = vor.u32 1.1754944e-38, %v7725
    %v7727 = vsel %vm7724, %v7726, %v7722
    %v7728 = vmul.f32 1.0, %v7727
    %v7729 = vmul.f32 %v7708, %v7640
    %v7730 = vadd.f32 %v7685, %v7729
    %v7731 = vtanh.pop %v7730
    %v7732 = vsub.f32 1.0, %v7728
    %v7733 = vmul.f32 %v7732, %v7731
    %v7734 = vmul.f32 %v7728, %v7555
    %v7735 = vadd.f32 %v7733, %v7734
    %v7736 = vadd.f32 %v7686, %v7654
    %v7737 = vxor.u32 %v7736, 2147483648
    %v7738 = vmul.f32 %v7737, 1.442695
    %v7739 = vpow.pop %v7738
    %v7740 = vadd.f32 %v7739, 1.0
    %v7741 = vrcp.pop %v7740
    %v7742 = vmul.f32 %v7740, %v7741
    %v7743 = vsub.f32 1.0, %v7742
    %v7744 = vmul.f32 %v7741, %v7743
    %v7745 = vadd.f32 %v7741, %v7744
    %vm7746 = vweird.f32 %v7740
    %vm7747 = vweird.f32 %v7741
    %vm7748 = vmor %vm7746, %vm7747
    %v7749 = vsel %vm7748, %v7741, %v7745
    %v7750 = vand.u32 2147483647, %v7740
    %vm7751 = vcmp.eq.f32.partialorder %v7750, 8.507059e+37
    %v7752 = vand.u32 %v7740, 2147483648
    %v7753 = vor.u32 1.1754944e-38, %v7752
    %v7754 = vsel %vm7751, %v7753, %v7749
    %v7755 = vmul.f32 1.0, %v7754
    %v7756 = vadd.f32 %v7687, %v7667
    %v7757 = vxor.u32 %v7756, 2147483648
    %v7758 = vmul.f32 %v7757, 1.442695
    %v7759 = vpow.pop %v7758
    %v7760 = vadd.f32 %v7759, 1.0
    %v7761 = vrcp.pop %v7760
    %v7762 = vmul.f32 %v7760, %v7761
    %v7763 = vsub.f32 1.0, %v7762
    %v7764 = vmul.f32 %v7761, %v7763
    %v7765 = vadd.f32 %v7761, %v7764
    %vm7766 = vweird.f32 %v7760
    %vm7767 = vweird.f32 %v7761
    %vm7768 = vmor %vm7766, %vm7767
    %v7769 = vsel %vm7768, %v7761, %v7765
    %v7770 = vand.u32 2147483647, %v7760
    %vm7771 = vcmp.eq.f32.partialorder %v7770, 8.507059e+37
    %v7772 = vand.u32 %v7760, 2147483648
    %v7773 = vor.u32 1.1754944e-38, %v7772
    %v7774 = vsel %vm7771, %v7773, %v7769
    %v7775 = vmul.f32 1.0, %v7774
    %v7776 = vmul.f32 %v7755, %v7680
    %v7777 = vadd.f32 %v7688, %v7776
    %v7778 = vtanh.pop %v7777
    %v7779 = vsub.f32 1.0, %v7775
    %v7780 = vmul.f32 %v7779, %v7778
    %v7781 = vmul.f32 %v7775, %v7602
    %v7782 = vadd.f32 %v7780, %v7781
    %v7783 = vpack.c.bf16 %v7735, %v7735
    %v7784 = vld [vmem:[#allocation14] sm:$0xf]
    %v7785 = vld [vmem:[#allocation14 + $0x4] sm:$0xf]
    %v7786 = vld [vmem:[#allocation14 + $0x8] sm:$0xf]
    %v7787 = vld [vmem:[#allocation14 + $0xc] sm:$0xf]
    %v7788 = vld [vmem:[#allocation14 + $0x10] sm:$0xf]
    %v7789 = vld [vmem:[#allocation14 + $0x14] sm:$0xf]
    %v7790 = vld [vmem:[#allocation14 + $0x18] sm:$0xf]
    %v7791 = vld [vmem:[#allocation14 + $0x1c] sm:$0xf]
    %v7792 = vld [vmem:[#allocation14 + $0x20] sm:$0xf]
    %v7793 = vld [vmem:[#allocation14 + $0x24] sm:$0xf]
    %v7794 = vld [vmem:[#allocation14 + $0x28] sm:$0xf]
    %v7795 = vld [vmem:[#allocation14 + $0x2c] sm:$0xf]
    %v7796 = vld [vmem:[#allocation14 + $0x30] sm:$0xf]
    %v7797 = vld [vmem:[#allocation14 + $0x34] sm:$0xf]
    %v7798 = vld [vmem:[#allocation14 + $0x38] sm:$0xf]
    %v7799 = vld [vmem:[#allocation14 + $0x3c] sm:$0xf]
    %v7800 = vpack.c.bf16 %v7782, %v7782
    %s7801 = scalar_lea.vmem [#allocation14], 64
    %v7802 = vld [vmem:[%s7801] sm:$0xf]
    %v7803 = vld [vmem:[%s7801 + $0x4] sm:$0xf]
    %v7804 = vld [vmem:[%s7801 + $0x8] sm:$0xf]
    %v7805 = vld [vmem:[%s7801 + $0xc] sm:$0xf]
    %v7806 = vld [vmem:[%s7801 + $0x10] sm:$0xf]
    %v7807 = vld [vmem:[%s7801 + $0x14] sm:$0xf]
    %v7808 = vld [vmem:[%s7801 + $0x18] sm:$0xf]
    %v7809 = vld [vmem:[%s7801 + $0x1c] sm:$0xf]
    %v7810 = vld [vmem:[%s7801 + $0x20] sm:$0xf]
    %v7811 = vld [vmem:[%s7801 + $0x24] sm:$0xf]
    %v7812 = vld [vmem:[%s7801 + $0x28] sm:$0xf]
    %v7813 = vld [vmem:[%s7801 + $0x2c] sm:$0xf]
    %v7814 = vld [vmem:[%s7801 + $0x30] sm:$0xf]
    %v7815 = vld [vmem:[%s7801 + $0x34] sm:$0xf]
    %v7816 = vld [vmem:[%s7801 + $0x38] sm:$0xf]
    %v7817 = vld [vmem:[%s7801 + $0x3c] sm:$0xf]
    %v7834 = vunpack.c.l.b16 %v7802
    %v7835 = vunpack.c.l.b16 %v7803
    %v7836 = vunpack.c.l.b16 %v7804
    %v7837 = vunpack.c.l.b16 %v7805
    %v7838 = vunpack.c.l.b16 %v7806
    %v7839 = vunpack.c.l.b16 %v7807
    %v7840 = vunpack.c.l.b16 %v7808
    %v7841 = vunpack.c.l.b16 %v7809
    %v7842 = vunpack.c.l.b16 %v7810
    %v7843 = vunpack.c.l.b16 %v7811
    %v7844 = vunpack.c.l.b16 %v7812
    %v7845 = vunpack.c.l.b16 %v7813
    %v7846 = vunpack.c.l.b16 %v7814
    %v7847 = vunpack.c.l.b16 %v7815
    %v7848 = vunpack.c.l.b16 %v7816
    %v7849 = vunpack.c.l.b16 %v7817
    %v7850 = vpack.c.b16 %v7835, %v7834
    %v7851 = vpack.c.b16 %v7837, %v7836
    %v7852 = vpack.c.b16 %v7839, %v7838
    %v7853 = vpack.c.b16 %v7841, %v7840
    %v7854 = vpack.c.b16 %v7843, %v7842
    %v7855 = vpack.c.b16 %v7845, %v7844
    %v7856 = vpack.c.b16 %v7847, %v7846
    %v7857 = vpack.c.b16 %v7849, %v7848
    %7866 = vmatpush.bf16.msra.mxu0 %v7857
    %7867 = vmatpush.bf16.msra.mxu0 %v7856
    %7868 = vmatpush.bf16.msra.mxu0 %v7855
    %7869 = vmatpush.bf16.msra.mxu0 %v7854
    %7870 = vmatpush.bf16.msra.mxu0 %v7853
    %7871 = vmatpush.bf16.msra.mxu0 %v7852
    %7872 = vmatpush.bf16.msra.mxu0 %v7851
    %7873 = vmatpush.bf16.msra.mxu0 %v7850
    %7874 = vmatmul.bf16.gmra.mxu0 %v7800
    %v7875 = vpop.f32.mrf.mxu0
    %v7876 = vadd.f32 0.0, %v7875
    %v7877 = vpop.f32.mrf.mxu0
    %7878 = vdwg.mxu0
    %v7895 = vunpack.c.l.b16 %v7784
    %v7896 = vunpack.c.l.b16 %v7785
    %v7897 = vunpack.c.l.b16 %v7786
    %v7898 = vunpack.c.l.b16 %v7787
    %v7899 = vunpack.c.l.b16 %v7788
    %v7900 = vunpack.c.l.b16 %v7789
    %v7901 = vunpack.c.l.b16 %v7790
    %v7902 = vunpack.c.l.b16 %v7791
    %v7903 = vunpack.c.l.b16 %v7792
    %v7904 = vunpack.c.l.b16 %v7793
    %v7905 = vunpack.c.l.b16 %v7794
    %v7906 = vunpack.c.l.b16 %v7795
    %v7907 = vunpack.c.l.b16 %v7796
    %v7908 = vunpack.c.l.b16 %v7797
    %v7909 = vunpack.c.l.b16 %v7798
    %v7910 = vunpack.c.l.b16 %v7799
    %v7911 = vpack.c.b16 %v7896, %v7895
    %v7912 = vpack.c.b16 %v7898, %v7897
    %v7913 = vpack.c.b16 %v7900, %v7899
    %v7914 = vpack.c.b16 %v7902, %v7901
    %v7915 = vpack.c.b16 %v7904, %v7903
    %v7916 = vpack.c.b16 %v7906, %v7905
    %v7917 = vpack.c.b16 %v7908, %v7907
    %v7918 = vpack.c.b16 %v7910, %v7909
    %7927 = vmatpush.bf16.msra.mxu0 %v7918
    %7928 = vmatpush.bf16.msra.mxu0 %v7917
    %7929 = vmatpush.bf16.msra.mxu0 %v7916
    %7930 = vmatpush.bf16.msra.mxu0 %v7915
    %7931 = vmatpush.bf16.msra.mxu0 %v7914
    %7932 = vmatpush.bf16.msra.mxu0 %v7913
    %7933 = vmatpush.bf16.msra.mxu0 %v7912
    %7934 = vmatpush.bf16.msra.mxu0 %v7911
    %7935 = vmatmul.bf16.gmra.mxu0 %v7783
    %v7936 = vpop.f32.mrf.mxu0
    %v7937 = vadd.f32 %v7876, %v7936
    %v7938 = vpop.f32.mrf.mxu0
    %7939 = vdwg.mxu0
    %v7940 = vld [vmem:[%s7] sm:$0x1]
    %v7942 = vperm.slane %v7940, 0
    %v7944 = vadd.f32 %v7937, %v7942
    %7945 = vst [vmem:[#allocation18] sm:$0xff] %v7944
    // Predicated region
    $region62: #{tpu_custom_call.1} parent=1 // pred_check
      _
    $region63: #{tpu_custom_call.1} parent=1 // pred_check_branch
      %7947 = sbr.rel (0) target = $region65
    $region64: #{tpu_custom_call.1} parent=1 // pred_region
      %7949 = vsyncadd [#allocation8], 0
      %s7951 = sshll.u32 [#allocation18], 4
      %s7952 = int_to_ptr.vmem [resolvable:$true] %s7951
      %s7953 = sshll.u32 %s8, 4
      %s7954 = int_to_ptr.hbm [resolvable:$true] %s7953
      %7956 = dma.vmem_to_hbm [thread:$0]  %s7952, 128, %s7954, [#allocation8]
    $region65: #{tpu_custom_call.1} parent=1 // pred_fallthru
      _
    // Predicated region
    $region66: #{tpu_custom_call.1} parent=1 // pred_check
      _
    $region67: #{tpu_custom_call.1} parent=1 // pred_check_branch
      %7958 = sbr.rel (0) target = $region69
    $region68: #{tpu_custom_call.1} parent=1 // pred_region
      %7960 = dma.done [#allocation8], 128
    $region69: #{tpu_custom_call.1} parent=1 // pred_fallthru
      _
    %7961 = vsyncpa [#allocation7], 1
    %7962 = vsyncpa [#allocation10], 1
    %7963 = vsyncpa [#allocation13], 1
    %7964 = vsyncpa [#allocation16], 1
    %7965 = vsyncpa [#allocation8], 1

</llo_original>
